<compile_context>
chip_gen: v7x
topology: tpu7x:2x2x1
jax: 0.10.0
libtpu: 0.0.40
codegen_flags: <defaults>
</compile_context>

<pallas_src>
import numpy as np

import jax
import jax.numpy as jnp
from jax.experimental import pallas as pl
from jax.experimental.pallas import tpu as pltpu

F32 = jnp.float32
BF16 = jnp.bfloat16

# Model geometry: image_shape=(1,28,28), conv_size=(1,6,16,4), dense=(784,128), z=20.
IMG_H = IMG_W = 28
C_IN, C1, C2, C3 = 1, 6, 16, 4
H1, W1 = 28, 28            # enConv0 output (stride 1)
H2, W2 = 14, 14            # enConv1 output (stride 2)
H3, W3 = 14, 14            # enConv2 output (stride 1)
Z_DIM = 20
DENSE_H = 128
FLAT = H3 * W3 * C3        # 784 (== dense_size[0])

# Lane-padded widths (multiples of 128 -> unmasked vector loads/stores).
LX = 128                   # x rows:      28 real lanes
L1 = 256                   # conv0 rows: 168 real lanes (28*6)
L2 = 256                   # conv1 rows: 224 real lanes (14*16)
L3 = 128                   # conv2 rows:  56 real lanes (14*4)
FLATP = H3 * L3            # 1792 padded flatten (784 real)
GEN_P = 896                # 7*128 padded decoder width (784 real)


# --------------------------------------------------------------------------- #
# Fused forward kernel.                                                        #
# --------------------------------------------------------------------------- #
def _vae_fused_kernel(x_ref, eps_ref,
                      m0_ref, b0_ref, m1_ref, b1_ref, m2_ref, b2_ref,
                      wd0_ref, bd0_ref, wlat_ref, blat_ref,
                      wdd0_ref, bdd0_ref, wdd1_ref, bdd1_ref,
                      wdd2_ref, bdd2_ref,
                      ml_ref, gen_ref,
                      a1_ref, a2_ref, a3_ref):
    tb = eps_ref.shape[0]

    def mm(lhs, w_ref):
        # bf16 x bf16 MXU matmul with f32 accumulation.
        return jnp.dot(lhs.astype(BF16), w_ref[...], preferred_element_type=F32)

    # ---- enConv0: one (H1*tb, 3*LX) x (3*LX, L1) matmul, ReLU ---------------- #
    lhs0 = jnp.concatenate(
        [x_ref[dy:dy + H1].reshape(H1 * tb, LX) for dy in range(3)], axis=-1)
    o1 = jnp.maximum(mm(lhs0, m0_ref) + b0_ref[...], 0.0)        # (H1*tb, L1)
    o1 = o1.reshape(H1, tb, L1)
    a1_ref[1:H1 + 1] = o1
    a1_ref[0] = o1[0]                    # vertical replicate padding (top)
    a1_ref[H1 + 1] = o1[H1 - 1]          # vertical replicate padding (bottom)

    # ---- enConv1 (stride 2): one (H2*tb, 3*L1) x (3*L1, L2) matmul, ReLU ----- #
    views = []
    for dy in range(3):
        blk = a1_ref[dy:dy + 2 * H2]                   # (28, tb, L1)
        v = blk.reshape(H2, 2, tb, L1)[:, 0]           # rows dy, dy+2, ..., dy+26
        views.append(v.reshape(H2 * tb, L1))
    lhs1 = jnp.concatenate(views, axis=-1)
    o2 = jnp.maximum(mm(lhs1, m1_ref) + b1_ref[...], 0.0)        # (H2*tb, L2)
    o2 = o2.reshape(H2, tb, L2)
    a2_ref[1:H2 + 1] = o2
    a2_ref[0] = o2[0]
    a2_ref[H2 + 1] = o2[H2 - 1]

    # ---- enConv2: one (H3*tb, 3*L2) x (3*L2, L3) matmul, ReLU, flatten ------- #
    lhs2 = jnp.concatenate(
        [a2_ref[dy:dy + H3].reshape(H3 * tb, L2) for dy in range(3)], axis=-1)
    o3 = jnp.maximum(mm(lhs2, m2_ref) + b2_ref[...], 0.0)        # (H3*tb, L3)
    o3 = o3.reshape(H3, tb, L3)
    for y in range(H3):                  # 14 lane-aligned single-vreg stores
        a3_ref[:, y * L3:(y + 1) * L3] = o3[y]

    # ---- enDense0 ------------------------------------------------------------- #
    h = jnp.maximum(mm(a3_ref[...], wd0_ref) + bd0_ref[...], 0.0)     # (tb, 128)

    # ---- merged latent heads: lanes [0:20]=mu, [128:148]=log_var, rest zero --- #
    ml = mm(h, wlat_ref) + blat_ref[...]                              # (tb, 256)
    ml_ref[...] = ml
    mu_blk = ml[:, :DENSE_H]
    lv_blk = ml[:, DENSE_H:]
    # NOTE: the reference multiplies eps by exp(log_var) (the *variance*, not the
    # std-dev exp(0.5*log_var)); reproduced exactly.  Padded lanes stay exactly 0
    # (0 + exp(0) * 0), and wdd0's padded rows are zero anyway.
    z = mu_blk + jnp.exp(lv_blk) * eps_ref[...]                       # (tb, 128)

    # ---- decoder --------------------------------------------------------------- #
    d = jnp.maximum(mm(z, wdd0_ref) + bdd0_ref[...], 0.0)             # (tb, 128)
    d = jnp.maximum(mm(d, wdd1_ref) + bdd1_ref[...], 0.0)             # (tb, 896)
    logits = mm(d, wdd2_ref) + bdd2_ref[...]                          # (tb, 896)

    # Numerically stable sigmoid: exp + approximate reciprocal on the EUP.
    e = jnp.exp(-jnp.abs(logits))
    r = pl.reciprocal(1.0 + e, approx=True)
    sig = jnp.where(logits >= 0.0, r, e * r)
    gen_ref[...] = jnp.clip(sig, 0.0, 1.0)


# --------------------------------------------------------------------------- #
# Wrapper.                                                                      #
# --------------------------------------------------------------------------- #
def _default_tile(n):
    for t in (128, 64, 32, 16, 8):
        if n % t == 0:
            return t
    raise ValueError("batch size must be a multiple of 8")


def vae_forward(kparams, x_nchw, eps, *, batch_tile=None):
    """mu, log_var, Gen_X = forward(x) with the fused Pallas kernel."""
    n = x_nchw.shape[0]
    tb = batch_tile if batch_tile is not None else _default_tile(n)
    assert tb % 8 == 0 and n % tb == 0, "batch tile must divide batch, multiple of 8"

    # Wrapper-side layout plumbing: row-major (H+2, N, 128) input with replicate row
    # padding and zero lane padding -> all in-kernel accesses are lane-dense and the
    # (H, tb, L) <-> (H*tb, L) reshapes are free.
    x = x_nchw.reshape(n, IMG_H, IMG_W).astype(F32)          # C_IN == 1
    xt = jnp.transpose(x, (1, 0, 2))                         # (28, N, 28)
    xt = jnp.concatenate([xt[:1], xt, xt[-1:]], axis=0)      # (30, N, 28) replicate
    x_pad = jnp.pad(xt, ((0, 0), (0, 0), (0, LX - IMG_W)))   # (30, N, 128)
    eps_pad = jnp.pad(eps.astype(F32), ((0, 0), (0, DENSE_H - Z_DIM)))   # (N, 128)

    weight_names = ("m0", "b0", "m1", "b1", "m2", "b2",
                    "wd0", "bd0", "wlat", "blat",
                    "wdd0", "bdd0", "wdd1", "bdd1", "wdd2", "bdd2")
    weights = [kparams[k] for k in weight_names]

    in_specs = ([pl.BlockSpec((IMG_H + 2, tb, LX), lambda b: (0, b, 0)),
                 pl.BlockSpec((tb, DENSE_H), lambda b: (b, 0))]
                + [pl.BlockSpec(w.shape, lambda b: (0, 0)) for w in weights])

    ml, gen = pl.pallas_call(
        _vae_fused_kernel,
        out_shape=(jax.ShapeDtypeStruct((n, 2 * DENSE_H), F32),   # [mu | 0 | log_var | 0]
                   jax.ShapeDtypeStruct((n, GEN_P), F32)),        # padded Gen_X
        grid=(n // tb,),
        in_specs=in_specs,
        out_specs=(pl.BlockSpec((tb, 2 * DENSE_H), lambda b: (b, 0)),
                   pl.BlockSpec((tb, GEN_P), lambda b: (b, 0))),
        scratch_shapes=[
            pltpu.VMEM((H1 + 2, tb, L1), F32),   # conv0 activations (+ replicate rows)
            pltpu.VMEM((H2 + 2, tb, L2), F32),   # conv1 activations (+ replicate rows)
            pltpu.VMEM((tb, FLATP), F32),        # conv2 activations, flattened
        ],
        compiler_params=pltpu.CompilerParams(
            dimension_semantics=("parallel",),           # both TCs on v7x
            vmem_limit_bytes=32 * 1024 * 1024),          # > v5e's 16 MiB default
    )(x_pad, eps_pad, *weights)

    mu = ml[:, :Z_DIM]
    log_var = ml[:, DENSE_H:DENSE_H + Z_DIM]
    gen_x = gen[:, :FLAT].reshape(n, 1, IMG_H, IMG_W)
    return mu, log_var, gen_x


# --------------------------------------------------------------------------- #
# One-time parameter preparation (all layout transforms hoisted to init).       #
# --------------------------------------------------------------------------- #
def _conv_band_stacked(w_oihw, stride, w_in, w_out, lane_in, lane_out):
    """Stacked band matrix (3*lane_in, lane_out) for a 3x3 replicate-padded conv:
    kernel-x taps + horizontal replicate pad + stride folded into columns, vertical
    taps stacked along K (matching the in-kernel lane-concat of the 3 shifted views)."""
    w = np.asarray(w_oihw, np.float32)                  # (cout, cin, 3, 3)
    cout, cin, kh, kw = w.shape
    m = np.zeros((kh, lane_in, lane_out), np.float32)
    for dy in range(kh):
        for xo in range(w_out):
            for dx in range(kw):
                xi = min(max(xo * stride + dx - 1, 0), w_in - 1)   # replicate pad in x
                m[dy, xi * cin:(xi + 1) * cin,
                  xo * cout:(xo + 1) * cout] += w[:, :, dy, dx].T
    return jnp.asarray(m.reshape(kh * lane_in, lane_out), BF16)


def _conv_bias_row(b, w_out, lane_out):
    b = np.asarray(b, np.float32)
    row = np.zeros((1, lane_out), np.float32)
    row[0, :w_out * b.shape[0]] = np.tile(b, w_out)      # padded lanes -> 0
    return jnp.asarray(row)


def prepare_params(p):
    """PyTorch-layout params -> fused-kernel layout (band mats, permutes, lane pads,
    bf16 casts).  Done once at init."""
    kp = {}
    kp["m0"] = _conv_band_stacked(p["c0_w"], 1, IMG_W, W1, LX, L1)   # (384, 256)
    kp["b0"] = _conv_bias_row(p["c0_b"], W1, L1)
    kp["m1"] = _conv_band_stacked(p["c1_w"], 2, W1, W2, L1, L2)      # (768, 256)
    kp["b1"] = _conv_bias_row(p["c1_b"], W2, L2)
    kp["m2"] = _conv_band_stacked(p["c2_w"], 1, W2, W3, L2, L3)      # (768, 128)
    kp["b2"] = _conv_bias_row(p["c2_b"], W3, L3)

    # enDense0: torch flattens NCHW (c, y, x); a3 is (y, x, c) with 128-lane-padded
    # rows -> permute + zero-pad the weight's input rows.
    wd0 = np.zeros((FLATP, DENSE_H), np.float32)
    td0 = np.asarray(p["d0_w"], np.float32)              # (128, 784)
    for y in range(H3):
        for x in range(W3):
            for c in range(C3):
                wd0[y * L3 + x * C3 + c, :] = td0[:, c * (H3 * W3) + y * W3 + x]
    kp["wd0"] = jnp.asarray(wd0, BF16)
    kp["bd0"] = jnp.asarray(np.asarray(p["d0_b"], np.float32).reshape(1, -1))

    # Merged, lane-padded latent heads: cols [0:20]=mu, [128:148]=log_var, rest 0.
    wlat = np.zeros((DENSE_H, 2 * DENSE_H), np.float32)
    wlat[:, :Z_DIM] = np.asarray(p["lm_w"], np.float32).T
    wlat[:, DENSE_H:DENSE_H + Z_DIM] = np.asarray(p["lv_w"], np.float32).T
    blat = np.zeros((1, 2 * DENSE_H), np.float32)
    blat[0, :Z_DIM] = np.asarray(p["lm_b"], np.float32)
    blat[0, DENSE_H:DENSE_H + Z_DIM] = np.asarray(p["lv_b"], np.float32)
    kp["wlat"] = jnp.asarray(wlat, BF16)
    kp["blat"] = jnp.asarray(blat)

    # Decoder: zero rows/cols on padded lanes keep them exactly zero downstream.
    wdd0 = np.zeros((DENSE_H, DENSE_H), np.float32)
    wdd0[:Z_DIM, :] = np.asarray(p["dd0_w"], np.float32).T
    kp["wdd0"] = jnp.asarray(wdd0, BF16)
    kp["bdd0"] = jnp.asarray(np.asarray(p["dd0_b"], np.float32).reshape(1, -1))

    wdd1 = np.zeros((DENSE_H, GEN_P), np.float32)
    wdd1[:, :FLAT] = np.asarray(p["dd1_w"], np.float32).T
    kp["wdd1"] = jnp.asarray(wdd1, BF16)
    bdd1 = np.zeros((1, GEN_P), np.float32)
    bdd1[0, :FLAT] = np.asarray(p["dd1_b"], np.float32)
    kp["bdd1"] = jnp.asarray(bdd1)

    wdd2 = np.zeros((GEN_P, GEN_P), np.float32)
    wdd2[:FLAT, :FLAT] = np.asarray(p["dd2_w"], np.float32).T
    kp["wdd2"] = jnp.asarray(wdd2, BF16)
    bdd2 = np.zeros((1, GEN_P), np.float32)
    bdd2[0, :FLAT] = np.asarray(p["dd2_b"], np.float32)
    kp["bdd2"] = jnp.asarray(bdd2)
    return kp


def init_params(key):
    """Random parameters in PyTorch layout (Linear: (out,in); Conv2d: (out,in,kh,kw))."""
    def dense(k, fan_in, fan_out):
        kw, kb = jax.random.split(k)
        lim = 1.0 / float(np.sqrt(fan_in))
        w = jax.random.uniform(kw, (fan_out, fan_in), minval=-lim, maxval=lim, dtype=F32)
        b = jax.random.uniform(kb, (fan_out,), minval=-lim, maxval=lim, dtype=F32)
        return w, b

    def conv(k, cin, cout, ksz=3):
        kw, kb = jax.random.split(k)
        lim = 1.0 / float(np.sqrt(cin * ksz * ksz))
        w = jax.random.uniform(kw, (cout, cin, ksz, ksz), minval=-lim, maxval=lim,
                               dtype=F32)
        b = jax.random.uniform(kb, (cout,), minval=-lim, maxval=lim, dtype=F32)
        return w, b

    ks = jax.random.split(key, 9)
    p = {}
    p["c0_w"], p["c0_b"] = conv(ks[0], C_IN, C1)            # enConv0
    p["c1_w"], p["c1_b"] = conv(ks[1], C1, C2)              # enConv1 (stride 2)
    p["c2_w"], p["c2_b"] = conv(ks[2], C2, C3)              # enConv2
    p["d0_w"], p["d0_b"] = dense(ks[3], FLAT, DENSE_H)      # enDense0
    p["lm_w"], p["lm_b"] = dense(ks[4], DENSE_H, Z_DIM)     # latent_mean
    p["lv_w"], p["lv_b"] = dense(ks[5], DENSE_H, Z_DIM)     # latent_log_var
    p["dd0_w"], p["dd0_b"] = dense(ks[6], Z_DIM, DENSE_H)   # deDense0
    p["dd1_w"], p["dd1_b"] = dense(ks[7], DENSE_H, FLAT)    # deDense1
    p["dd2_w"], p["dd2_b"] = dense(ks[8], FLAT, FLAT)       # deDense2
    return p


# --------------------------------------------------------------------------- #
# Pure-JAX f32 reference (for correctness checking only).                       #
# --------------------------------------------------------------------------- #
def vae_reference(p, x_nchw, eps):
    relu = lambda t: jnp.maximum(t, 0.0)

    def conv(t, w, b, stride):
        tp = jnp.pad(t, ((0, 0), (0, 0), (1, 1), (1, 1)), mode="edge")
        y = jax.lax.conv_general_dilated(
            tp, w, (stride, stride), "VALID",
            dimension_numbers=("NCHW", "OIHW", "NCHW"),
            precision=jax.lax.Precision.HIGHEST)
        return y + b.reshape(1, -1, 1, 1)

    out = relu(conv(x_nchw, p["c0_w"], p["c0_b"], 1))
    out = relu(conv(out, p["c1_w"], p["c1_b"], 2))
    out = relu(conv(out, p["c2_w"], p["c2_b"], 1))
    flat = out.reshape(out.shape[0], -1)
    h = relu(flat @ p["d0_w"].T + p["d0_b"])
    mu = h @ p["lm_w"].T + p["lm_b"]
    log_var = h @ p["lv_w"].T + p["lv_b"]
    z = mu + jnp.exp(log_var) * eps
    d = relu(z @ p["dd0_w"].T + p["dd0_b"])
    d = relu(d @ p["dd1_w"].T + p["dd1_b"])
    logits = d @ p["dd2_w"].T + p["dd2_b"]
    gen = jax.nn.sigmoid(logits).reshape(x_nchw.shape[0], 1, IMG_H, IMG_W)
    return mu, log_var, gen


def _assert_close(name, got, ref, rel=8e-2):
    # Kernel uses bf16 weights/activations on the MXU -> generous (but layout-bug
    # catching) tolerance vs. the f32 reference.
    scale = 1.0 + float(jnp.max(jnp.abs(ref)))
    err = float(jnp.max(jnp.abs(got - ref)))
    assert err <= rel * scale, f"{name}: max|err|={err:.5f} > tol={rel * scale:.5f}"


if __name__ == "__main__":
    key = jax.random.PRNGKey(0)
    kx, keps, kp = jax.random.split(key, 3)

    # image_shape=(1,28,28) is baked into dense_size=784=4*14*14, so spatial must stay
    # 28x28; keep the batch small (16) but a multiple of the 8-row sublane tile.
    N = 16
    x = jax.random.normal(kx, (N, 1, IMG_H, IMG_W), dtype=F32)
    # TODO(synk): torch.randn_like inside re_parameterize has no deterministic in-kernel
    # equivalent; the re-parameterisation noise is supplied as an explicit eps input.
    eps = jax.random.normal(keps, (N, Z_DIM), dtype=F32)

    torch_params = init_params(kp)
    kparams = prepare_params(torch_params)

    # batch_tile=8 -> grid=(2,) exercises the batch-parallel blocking path.
    fwd = jax.jit(lambda prm, xx, ee: vae_forward(prm, xx, ee, batch_tile=8))
    mu, log_var, gen_x = fwd(kparams, x, eps)
    jax.block_until_ready((mu, log_var, gen_x))

    assert mu.shape == (N, Z_DIM)
    assert log_var.shape == (N, Z_DIM)
    assert gen_x.shape == (N, 1, IMG_H, IMG_W)
    assert bool(jnp.all(jnp.isfinite(mu)))
    assert bool(jnp.all(jnp.isfinite(log_var)))
    assert bool(jnp.all(jnp.isfinite(gen_x)))
    assert bool(jnp.all((gen_x >= 0.0) & (gen_x <= 1.0)))      # sigmoid output range

    # Correctness vs. the pure-JAX f32 reference.
    mu_r, lv_r, gen_r = vae_reference(torch_params, x, eps)
    _assert_close("mu", mu, mu_r)
    _assert_close("log_var", log_var, lv_r)
    _assert_close("gen_x", gen_x, gen_r)
    print("KERNEL_OK")
</pallas_src>

<mosaic_0001>
module attributes {stable_mosaic.version = 11 : i64} {
  func.func @_vae_fused_kernel(%arg0: i32, %arg1: memref<30x8x128xf32, #tpu.memory_space<vmem>>, %arg2: memref<8x128xf32, #tpu.memory_space<vmem>>, %arg3: memref<384x256xbf16, #tpu.memory_space<vmem>>, %arg4: memref<1x256xf32, #tpu.memory_space<vmem>>, %arg5: memref<768x256xbf16, #tpu.memory_space<vmem>>, %arg6: memref<1x256xf32, #tpu.memory_space<vmem>>, %arg7: memref<768x128xbf16, #tpu.memory_space<vmem>>, %arg8: memref<1x128xf32, #tpu.memory_space<vmem>>, %arg9: memref<1792x128xbf16, #tpu.memory_space<vmem>>, %arg10: memref<1x128xf32, #tpu.memory_space<vmem>>, %arg11: memref<128x256xbf16, #tpu.memory_space<vmem>>, %arg12: memref<1x256xf32, #tpu.memory_space<vmem>>, %arg13: memref<128x128xbf16, #tpu.memory_space<vmem>>, %arg14: memref<1x128xf32, #tpu.memory_space<vmem>>, %arg15: memref<128x896xbf16, #tpu.memory_space<vmem>>, %arg16: memref<1x896xf32, #tpu.memory_space<vmem>>, %arg17: memref<896x896xbf16, #tpu.memory_space<vmem>>, %arg18: memref<1x896xf32, #tpu.memory_space<vmem>>, %arg19: memref<8x256xf32, #tpu.memory_space<vmem>>, %arg20: memref<8x896xf32, #tpu.memory_space<vmem>>, %arg21: memref<30x8x256xf32, #tpu.memory_space<vmem>>, %arg22: memref<16x8x256xf32, #tpu.memory_space<vmem>>, %arg23: memref<8x1792xf32, #tpu.memory_space<vmem>>) attributes {dimension_semantics = [#tpu.dimension_semantics<parallel>], iteration_bounds = array<i64: 2>, scalar_prefetch = 0 : i64, scratch_operands = 3 : i64, tpu.core_type = #tpu.core_type<tc>, window_params = [{transform_indices = @transform_0, window_bounds = array<i64: 30, 8, 128>}, {transform_indices = @transform_1, window_bounds = array<i64: 8, 128>}, {pipeline_mode = #tpu.pipeline_mode<synchronous>, transform_indices = @transform_2, window_bounds = array<i64: 384, 256>}, {pipeline_mode = #tpu.pipeline_mode<synchronous>, transform_indices = @transform_3, window_bounds = array<i64: 1, 256>}, {pipeline_mode = #tpu.pipeline_mode<synchronous>, transform_indices = @transform_4, window_bounds = array<i64: 768, 256>}, {pipeline_mode = #tpu.pipeline_mode<synchronous>, transform_indices = @transform_5, window_bounds = array<i64: 1, 256>}, {pipeline_mode = #tpu.pipeline_mode<synchronous>, transform_indices = @transform_6, window_bounds = array<i64: 768, 128>}, {pipeline_mode = #tpu.pipeline_mode<synchronous>, transform_indices = @transform_7, window_bounds = array<i64: 1, 128>}, {pipeline_mode = #tpu.pipeline_mode<synchronous>, transform_indices = @transform_8, window_bounds = array<i64: 1792, 128>}, {pipeline_mode = #tpu.pipeline_mode<synchronous>, transform_indices = @transform_9, window_bounds = array<i64: 1, 128>}, {pipeline_mode = #tpu.pipeline_mode<synchronous>, transform_indices = @transform_10, window_bounds = array<i64: 128, 256>}, {pipeline_mode = #tpu.pipeline_mode<synchronous>, transform_indices = @transform_11, window_bounds = array<i64: 1, 256>}, {pipeline_mode = #tpu.pipeline_mode<synchronous>, transform_indices = @transform_12, window_bounds = array<i64: 128, 128>}, {pipeline_mode = #tpu.pipeline_mode<synchronous>, transform_indices = @transform_13, window_bounds = array<i64: 1, 128>}, {pipeline_mode = #tpu.pipeline_mode<synchronous>, transform_indices = @transform_14, window_bounds = array<i64: 128, 896>}, {pipeline_mode = #tpu.pipeline_mode<synchronous>, transform_indices = @transform_15, window_bounds = array<i64: 1, 896>}, {pipeline_mode = #tpu.pipeline_mode<synchronous>, transform_indices = @transform_16, window_bounds = array<i64: 896, 896>}, {pipeline_mode = #tpu.pipeline_mode<synchronous>, transform_indices = @transform_17, window_bounds = array<i64: 1, 896>}, {transform_indices = @transform_18, window_bounds = array<i64: 8, 256>}, {transform_indices = @transform_19, window_bounds = array<i64: 8, 896>}]} {
    %c0 = arith.constant 0 : index
    %c0_0 = arith.constant 0 : index
    %c0_1 = arith.constant 0 : index
    %0 = vector.load %arg1[%c0, %c0_0, %c0_1] : memref<30x8x128xf32, #tpu.memory_space<vmem>>, vector<28x8x128xf32>
    %1 = vector.shape_cast %0 : vector<28x8x128xf32> to vector<224x128xf32>
    %c1 = arith.constant 1 : index
    %c0_2 = arith.constant 0 : index
    %c0_3 = arith.constant 0 : index
    %2 = vector.load %arg1[%c1, %c0_2, %c0_3] : memref<30x8x128xf32, #tpu.memory_space<vmem>>, vector<28x8x128xf32>
    %3 = vector.shape_cast %2 : vector<28x8x128xf32> to vector<224x128xf32>
    %c2 = arith.constant 2 : index
    %c0_4 = arith.constant 0 : index
    %c0_5 = arith.constant 0 : index
    %4 = vector.load %arg1[%c2, %c0_4, %c0_5] : memref<30x8x128xf32, #tpu.memory_space<vmem>>, vector<28x8x128xf32>
    %5 = vector.shape_cast %4 : vector<28x8x128xf32> to vector<224x128xf32>
    %6 = tpu.concatenate %1, %3, %5 in 1 : vector<224x128xf32>, vector<224x128xf32>, vector<224x128xf32> -> vector<224x384xf32>
    %7 = arith.truncf %6 : vector<224x384xf32> to vector<224x384xbf16>
    %c0_6 = arith.constant 0 : index
    %c0_7 = arith.constant 0 : index
    %8 = vector.load %arg3[%c0_6, %c0_7] : memref<384x256xbf16, #tpu.memory_space<vmem>>, vector<384x256xbf16>
    %cst = arith.constant dense<0.000000e+00> : vector<224x256xf32>
    %9 = tpu.matmul %7, %8, %cst {dimension_numbers = #tpu.dot_dimension_numbers<[1], [0], [0], [1], [0, 0, 1, 1], [], []>} : vector<224x384xbf16>, vector<384x256xbf16>, vector<224x256xf32> -> vector<224x256xf32>
    %c0_8 = arith.constant 0 : index
    %c0_9 = arith.constant 0 : index
    %10 = vector.load %arg4[%c0_8, %c0_9] : memref<1x256xf32, #tpu.memory_space<vmem>>, vector<1x256xf32>
    %11 = vector.broadcast %10 : vector<1x256xf32> to vector<224x256xf32>
    %12 = arith.addf %9, %11 : vector<224x256xf32>
    %cst_10 = arith.constant 0.000000e+00 : f32
    %13 = vector.broadcast %cst_10 : f32 to vector<224x256xf32>
    %14 = arith.maximumf %12, %13 : vector<224x256xf32>
    %15 = vector.shape_cast %14 : vector<224x256xf32> to vector<28x8x256xf32>
    %c1_11 = arith.constant 1 : index
    %c0_12 = arith.constant 0 : index
    %c0_13 = arith.constant 0 : index
    %16 = vector.load %arg21[%c1_11, %c0_12, %c0_13] : memref<30x8x256xf32, #tpu.memory_space<vmem>>, vector<28x8x256xf32>
    tpu.vector_store %arg21[%c1_11, %c0_12, %c0_13], %15 {strides = array<i32>} : memref<30x8x256xf32, #tpu.memory_space<vmem>>, vector<28x8x256xf32>,
    %17 = vector.extract_strided_slice %15 {offsets = [0, 0, 0], sizes = [1, 8, 256], strides = [1, 1, 1]} : vector<28x8x256xf32> to vector<1x8x256xf32>
    %18 = vector.shape_cast %17 : vector<1x8x256xf32> to vector<8x256xf32>
    %c0_14 = arith.constant 0 : index
    %c0_15 = arith.constant 0 : index
    %c0_16 = arith.constant 0 : index
    %19 = vector.load %arg21[%c0_14, %c0_15, %c0_16] : memref<30x8x256xf32, #tpu.memory_space<vmem>>, vector<1x8x256xf32>
    %20 = vector.shape_cast %19 : vector<1x8x256xf32> to vector<8x256xf32>
    %21 = vector.shape_cast %18 : vector<8x256xf32> to vector<1x8x256xf32>
    tpu.vector_store %arg21[%c0_14, %c0_15, %c0_16], %21 {strides = array<i32>} : memref<30x8x256xf32, #tpu.memory_space<vmem>>, vector<1x8x256xf32>,
    %22 = vector.extract_strided_slice %15 {offsets = [27, 0, 0], sizes = [1, 8, 256], strides = [1, 1, 1]} : vector<28x8x256xf32> to vector<1x8x256xf32>
    %23 = vector.shape_cast %22 : vector<1x8x256xf32> to vector<8x256xf32>
    %c29 = arith.constant 29 : index
    %c0_17 = arith.constant 0 : index
    %c0_18 = arith.constant 0 : index
    %24 = vector.load %arg21[%c29, %c0_17, %c0_18] : memref<30x8x256xf32, #tpu.memory_space<vmem>>, vector<1x8x256xf32>
    %25 = vector.shape_cast %24 : vector<1x8x256xf32> to vector<8x256xf32>
    %26 = vector.shape_cast %23 : vector<8x256xf32> to vector<1x8x256xf32>
    tpu.vector_store %arg21[%c29, %c0_17, %c0_18], %26 {strides = array<i32>} : memref<30x8x256xf32, #tpu.memory_space<vmem>>, vector<1x8x256xf32>,
    %c0_19 = arith.constant 0 : index
    %c0_20 = arith.constant 0 : index
    %c0_21 = arith.constant 0 : index
    %27 = vector.load %arg21[%c0_19, %c0_20, %c0_21] : memref<30x8x256xf32, #tpu.memory_space<vmem>>, vector<28x8x256xf32>
    %28 = vector.shape_cast %27 : vector<28x8x256xf32> to vector<14x2x8x256xf32>
    %29 = vector.extract_strided_slice %28 {offsets = [0, 0, 0, 0], sizes = [14, 1, 8, 256], strides = [1, 1, 1, 1]} : vector<14x2x8x256xf32> to vector<14x1x8x256xf32>
    %30 = vector.shape_cast %29 : vector<14x1x8x256xf32> to vector<14x8x256xf32>
    %31 = vector.shape_cast %30 : vector<14x8x256xf32> to vector<112x256xf32>
    %c1_22 = arith.constant 1 : index
    %c0_23 = arith.constant 0 : index
    %c0_24 = arith.constant 0 : index
    %32 = vector.load %arg21[%c1_22, %c0_23, %c0_24] : memref<30x8x256xf32, #tpu.memory_space<vmem>>, vector<28x8x256xf32>
    %33 = vector.shape_cast %32 : vector<28x8x256xf32> to vector<14x2x8x256xf32>
    %34 = vector.extract_strided_slice %33 {offsets = [0, 0, 0, 0], sizes = [14, 1, 8, 256], strides = [1, 1, 1, 1]} : vector<14x2x8x256xf32> to vector<14x1x8x256xf32>
    %35 = vector.shape_cast %34 : vector<14x1x8x256xf32> to vector<14x8x256xf32>
    %36 = vector.shape_cast %35 : vector<14x8x256xf32> to vector<112x256xf32>
    %c2_25 = arith.constant 2 : index
    %c0_26 = arith.constant 0 : index
    %c0_27 = arith.constant 0 : index
    %37 = vector.load %arg21[%c2_25, %c0_26, %c0_27] : memref<30x8x256xf32, #tpu.memory_space<vmem>>, vector<28x8x256xf32>
    %38 = vector.shape_cast %37 : vector<28x8x256xf32> to vector<14x2x8x256xf32>
    %39 = vector.extract_strided_slice %38 {offsets = [0, 0, 0, 0], sizes = [14, 1, 8, 256], strides = [1, 1, 1, 1]} : vector<14x2x8x256xf32> to vector<14x1x8x256xf32>
    %40 = vector.shape_cast %39 : vector<14x1x8x256xf32> to vector<14x8x256xf32>
    %41 = vector.shape_cast %40 : vector<14x8x256xf32> to vector<112x256xf32>
    %42 = tpu.concatenate %31, %36, %41 in 1 : vector<112x256xf32>, vector<112x256xf32>, vector<112x256xf32> -> vector<112x768xf32>
    %43 = arith.truncf %42 : vector<112x768xf32> to vector<112x768xbf16>
    %c0_28 = arith.constant 0 : index
    %c0_29 = arith.constant 0 : index
    %44 = vector.load %arg5[%c0_28, %c0_29] : memref<768x256xbf16, #tpu.memory_space<vmem>>, vector<768x256xbf16>
    %cst_30 = arith.constant dense<0.000000e+00> : vector<112x256xf32>
    %45 = tpu.matmul %43, %44, %cst_30 {dimension_numbers = #tpu.dot_dimension_numbers<[1], [0], [0], [1], [0, 0, 1, 1], [], []>} : vector<112x768xbf16>, vector<768x256xbf16>, vector<112x256xf32> -> vector<112x256xf32>
    %c0_31 = arith.constant 0 : index
    %c0_32 = arith.constant 0 : index
    %46 = vector.load %arg6[%c0_31, %c0_32] : memref<1x256xf32, #tpu.memory_space<vmem>>, vector<1x256xf32>
    %47 = vector.broadcast %46 : vector<1x256xf32> to vector<112x256xf32>
    %48 = arith.addf %45, %47 : vector<112x256xf32>
    %cst_33 = arith.constant 0.000000e+00 : f32
    %49 = vector.broadcast %cst_33 : f32 to vector<112x256xf32>
    %50 = arith.maximumf %48, %49 : vector<112x256xf32>
    %51 = vector.shape_cast %50 : vector<112x256xf32> to vector<14x8x256xf32>
    %c1_34 = arith.constant 1 : index
    %c0_35 = arith.constant 0 : index
    %c0_36 = arith.constant 0 : index
    %52 = vector.load %arg22[%c1_34, %c0_35, %c0_36] : memref<16x8x256xf32, #tpu.memory_space<vmem>>, vector<14x8x256xf32>
    tpu.vector_store %arg22[%c1_34, %c0_35, %c0_36], %51 {strides = array<i32>} : memref<16x8x256xf32, #tpu.memory_space<vmem>>, vector<14x8x256xf32>,
    %53 = vector.extract_strided_slice %51 {offsets = [0, 0, 0], sizes = [1, 8, 256], strides = [1, 1, 1]} : vector<14x8x256xf32> to vector<1x8x256xf32>
    %54 = vector.shape_cast %53 : vector<1x8x256xf32> to vector<8x256xf32>
    %c0_37 = arith.constant 0 : index
    %c0_38 = arith.constant 0 : index
    %c0_39 = arith.constant 0 : index
    %55 = vector.load %arg22[%c0_37, %c0_38, %c0_39] : memref<16x8x256xf32, #tpu.memory_space<vmem>>, vector<1x8x256xf32>
    %56 = vector.shape_cast %55 : vector<1x8x256xf32> to vector<8x256xf32>
    %57 = vector.shape_cast %54 : vector<8x256xf32> to vector<1x8x256xf32>
    tpu.vector_store %arg22[%c0_37, %c0_38, %c0_39], %57 {strides = array<i32>} : memref<16x8x256xf32, #tpu.memory_space<vmem>>, vector<1x8x256xf32>,
    %58 = vector.extract_strided_slice %51 {offsets = [13, 0, 0], sizes = [1, 8, 256], strides = [1, 1, 1]} : vector<14x8x256xf32> to vector<1x8x256xf32>
    %59 = vector.shape_cast %58 : vector<1x8x256xf32> to vector<8x256xf32>
    %c15 = arith.constant 15 : index
    %c0_40 = arith.constant 0 : index
    %c0_41 = arith.constant 0 : index
    %60 = vector.load %arg22[%c15, %c0_40, %c0_41] : memref<16x8x256xf32, #tpu.memory_space<vmem>>, vector<1x8x256xf32>
    %61 = vector.shape_cast %60 : vector<1x8x256xf32> to vector<8x256xf32>
    %62 = vector.shape_cast %59 : vector<8x256xf32> to vector<1x8x256xf32>
    tpu.vector_store %arg22[%c15, %c0_40, %c0_41], %62 {strides = array<i32>} : memref<16x8x256xf32, #tpu.memory_space<vmem>>, vector<1x8x256xf32>,
    %c0_42 = arith.constant 0 : index
    %c0_43 = arith.constant 0 : index
    %c0_44 = arith.constant 0 : index
    %63 = vector.load %arg22[%c0_42, %c0_43, %c0_44] : memref<16x8x256xf32, #tpu.memory_space<vmem>>, vector<14x8x256xf32>
    %64 = vector.shape_cast %63 : vector<14x8x256xf32> to vector<112x256xf32>
    %c1_45 = arith.constant 1 : index
    %c0_46 = arith.constant 0 : index
    %c0_47 = arith.constant 0 : index
    %65 = vector.load %arg22[%c1_45, %c0_46, %c0_47] : memref<16x8x256xf32, #tpu.memory_space<vmem>>, vector<14x8x256xf32>
    %66 = vector.shape_cast %65 : vector<14x8x256xf32> to vector<112x256xf32>
    %c2_48 = arith.constant 2 : index
    %c0_49 = arith.constant 0 : index
    %c0_50 = arith.constant 0 : index
    %67 = vector.load %arg22[%c2_48, %c0_49, %c0_50] : memref<16x8x256xf32, #tpu.memory_space<vmem>>, vector<14x8x256xf32>
    %68 = vector.shape_cast %67 : vector<14x8x256xf32> to vector<112x256xf32>
    %69 = tpu.concatenate %64, %66, %68 in 1 : vector<112x256xf32>, vector<112x256xf32>, vector<112x256xf32> -> vector<112x768xf32>
    %70 = arith.truncf %69 : vector<112x768xf32> to vector<112x768xbf16>
    %c0_51 = arith.constant 0 : index
    %c0_52 = arith.constant 0 : index
    %71 = vector.load %arg7[%c0_51, %c0_52] : memref<768x128xbf16, #tpu.memory_space<vmem>>, vector<768x128xbf16>
    %cst_53 = arith.constant dense<0.000000e+00> : vector<112x128xf32>
    %72 = tpu.matmul %70, %71, %cst_53 {dimension_numbers = #tpu.dot_dimension_numbers<[1], [0], [0], [1], [0, 0, 1, 1], [], []>} : vector<112x768xbf16>, vector<768x128xbf16>, vector<112x128xf32> -> vector<112x128xf32>
    %c0_54 = arith.constant 0 : index
    %c0_55 = arith.constant 0 : index
    %73 = vector.load %arg8[%c0_54, %c0_55] : memref<1x128xf32, #tpu.memory_space<vmem>>, vector<1x128xf32>
    %74 = vector.broadcast %73 : vector<1x128xf32> to vector<112x128xf32>
    %75 = arith.addf %72, %74 : vector<112x128xf32>
    %cst_56 = arith.constant 0.000000e+00 : f32
    %76 = vector.broadcast %cst_56 : f32 to vector<112x128xf32>
    %77 = arith.maximumf %75, %76 : vector<112x128xf32>
    %78 = vector.shape_cast %77 : vector<112x128xf32> to vector<14x8x128xf32>
    %79 = vector.extract_strided_slice %78 {offsets = [0, 0, 0], sizes = [1, 8, 128], strides = [1, 1, 1]} : vector<14x8x128xf32> to vector<1x8x128xf32>
    %80 = vector.shape_cast %79 : vector<1x8x128xf32> to vector<8x128xf32>
    %c0_57 = arith.constant 0 : index
    %c0_58 = arith.constant 0 : index
    %81 = vector.load %arg23[%c0_57, %c0_58] : memref<8x1792xf32, #tpu.memory_space<vmem>>, vector<8x128xf32>
    tpu.vector_store %arg23[%c0_57, %c0_58], %80 {strides = array<i32>} : memref<8x1792xf32, #tpu.memory_space<vmem>>, vector<8x128xf32>,
    %82 = vector.extract_strided_slice %78 {offsets = [1, 0, 0], sizes = [1, 8, 128], strides = [1, 1, 1]} : vector<14x8x128xf32> to vector<1x8x128xf32>
    %83 = vector.shape_cast %82 : vector<1x8x128xf32> to vector<8x128xf32>
    %c0_59 = arith.constant 0 : index
    %c128 = arith.constant 128 : index
    %84 = vector.load %arg23[%c0_59, %c128] : memref<8x1792xf32, #tpu.memory_space<vmem>>, vector<8x128xf32>
    tpu.vector_store %arg23[%c0_59, %c128], %83 {strides = array<i32>} : memref<8x1792xf32, #tpu.memory_space<vmem>>, vector<8x128xf32>,
    %85 = vector.extract_strided_slice %78 {offsets = [2, 0, 0], sizes = [1, 8, 128], strides = [1, 1, 1]} : vector<14x8x128xf32> to vector<1x8x128xf32>
    %86 = vector.shape_cast %85 : vector<1x8x128xf32> to vector<8x128xf32>
    %c0_60 = arith.constant 0 : index
    %c256 = arith.constant 256 : index
    %87 = vector.load %arg23[%c0_60, %c256] : memref<8x1792xf32, #tpu.memory_space<vmem>>, vector<8x128xf32>
    tpu.vector_store %arg23[%c0_60, %c256], %86 {strides = array<i32>} : memref<8x1792xf32, #tpu.memory_space<vmem>>, vector<8x128xf32>,
    %88 = vector.extract_strided_slice %78 {offsets = [3, 0, 0], sizes = [1, 8, 128], strides = [1, 1, 1]} : vector<14x8x128xf32> to vector<1x8x128xf32>
    %89 = vector.shape_cast %88 : vector<1x8x128xf32> to vector<8x128xf32>
    %c0_61 = arith.constant 0 : index
    %c384 = arith.constant 384 : index
    %90 = vector.load %arg23[%c0_61, %c384] : memref<8x1792xf32, #tpu.memory_space<vmem>>, vector<8x128xf32>
    tpu.vector_store %arg23[%c0_61, %c384], %89 {strides = array<i32>} : memref<8x1792xf32, #tpu.memory_space<vmem>>, vector<8x128xf32>,
    %91 = vector.extract_strided_slice %78 {offsets = [4, 0, 0], sizes = [1, 8, 128], strides = [1, 1, 1]} : vector<14x8x128xf32> to vector<1x8x128xf32>
    %92 = vector.shape_cast %91 : vector<1x8x128xf32> to vector<8x128xf32>
    %c0_62 = arith.constant 0 : index
    %c512 = arith.constant 512 : index
    %93 = vector.load %arg23[%c0_62, %c512] : memref<8x1792xf32, #tpu.memory_space<vmem>>, vector<8x128xf32>
    tpu.vector_store %arg23[%c0_62, %c512], %92 {strides = array<i32>} : memref<8x1792xf32, #tpu.memory_space<vmem>>, vector<8x128xf32>,
    %94 = vector.extract_strided_slice %78 {offsets = [5, 0, 0], sizes = [1, 8, 128], strides = [1, 1, 1]} : vector<14x8x128xf32> to vector<1x8x128xf32>
    %95 = vector.shape_cast %94 : vector<1x8x128xf32> to vector<8x128xf32>
    %c0_63 = arith.constant 0 : index
    %c640 = arith.constant 640 : index
    %96 = vector.load %arg23[%c0_63, %c640] : memref<8x1792xf32, #tpu.memory_space<vmem>>, vector<8x128xf32>
    tpu.vector_store %arg23[%c0_63, %c640], %95 {strides = array<i32>} : memref<8x1792xf32, #tpu.memory_space<vmem>>, vector<8x128xf32>,
    %97 = vector.extract_strided_slice %78 {offsets = [6, 0, 0], sizes = [1, 8, 128], strides = [1, 1, 1]} : vector<14x8x128xf32> to vector<1x8x128xf32>
    %98 = vector.shape_cast %97 : vector<1x8x128xf32> to vector<8x128xf32>
    %c0_64 = arith.constant 0 : index
    %c768 = arith.constant 768 : index
    %99 = vector.load %arg23[%c0_64, %c768] : memref<8x1792xf32, #tpu.memory_space<vmem>>, vector<8x128xf32>
    tpu.vector_store %arg23[%c0_64, %c768], %98 {strides = array<i32>} : memref<8x1792xf32, #tpu.memory_space<vmem>>, vector<8x128xf32>,
    %100 = vector.extract_strided_slice %78 {offsets = [7, 0, 0], sizes = [1, 8, 128], strides = [1, 1, 1]} : vector<14x8x128xf32> to vector<1x8x128xf32>
    %101 = vector.shape_cast %100 : vector<1x8x128xf32> to vector<8x128xf32>
    %c0_65 = arith.constant 0 : index
    %c896 = arith.constant 896 : index
    %102 = vector.load %arg23[%c0_65, %c896] : memref<8x1792xf32, #tpu.memory_space<vmem>>, vector<8x128xf32>
    tpu.vector_store %arg23[%c0_65, %c896], %101 {strides = array<i32>} : memref<8x1792xf32, #tpu.memory_space<vmem>>, vector<8x128xf32>,
    %103 = vector.extract_strided_slice %78 {offsets = [8, 0, 0], sizes = [1, 8, 128], strides = [1, 1, 1]} : vector<14x8x128xf32> to vector<1x8x128xf32>
    %104 = vector.shape_cast %103 : vector<1x8x128xf32> to vector<8x128xf32>
    %c0_66 = arith.constant 0 : index
    %c1024 = arith.constant 1024 : index
    %105 = vector.load %arg23[%c0_66, %c1024] : memref<8x1792xf32, #tpu.memory_space<vmem>>, vector<8x128xf32>
    tpu.vector_store %arg23[%c0_66, %c1024], %104 {strides = array<i32>} : memref<8x1792xf32, #tpu.memory_space<vmem>>, vector<8x128xf32>,
    %106 = vector.extract_strided_slice %78 {offsets = [9, 0, 0], sizes = [1, 8, 128], strides = [1, 1, 1]} : vector<14x8x128xf32> to vector<1x8x128xf32>
    %107 = vector.shape_cast %106 : vector<1x8x128xf32> to vector<8x128xf32>
    %c0_67 = arith.constant 0 : index
    %c1152 = arith.constant 1152 : index
    %108 = vector.load %arg23[%c0_67, %c1152] : memref<8x1792xf32, #tpu.memory_space<vmem>>, vector<8x128xf32>
    tpu.vector_store %arg23[%c0_67, %c1152], %107 {strides = array<i32>} : memref<8x1792xf32, #tpu.memory_space<vmem>>, vector<8x128xf32>,
    %109 = vector.extract_strided_slice %78 {offsets = [10, 0, 0], sizes = [1, 8, 128], strides = [1, 1, 1]} : vector<14x8x128xf32> to vector<1x8x128xf32>
    %110 = vector.shape_cast %109 : vector<1x8x128xf32> to vector<8x128xf32>
    %c0_68 = arith.constant 0 : index
    %c1280 = arith.constant 1280 : index
    %111 = vector.load %arg23[%c0_68, %c1280] : memref<8x1792xf32, #tpu.memory_space<vmem>>, vector<8x128xf32>
    tpu.vector_store %arg23[%c0_68, %c1280], %110 {strides = array<i32>} : memref<8x1792xf32, #tpu.memory_space<vmem>>, vector<8x128xf32>,
    %112 = vector.extract_strided_slice %78 {offsets = [11, 0, 0], sizes = [1, 8, 128], strides = [1, 1, 1]} : vector<14x8x128xf32> to vector<1x8x128xf32>
    %113 = vector.shape_cast %112 : vector<1x8x128xf32> to vector<8x128xf32>
    %c0_69 = arith.constant 0 : index
    %c1408 = arith.constant 1408 : index
    %114 = vector.load %arg23[%c0_69, %c1408] : memref<8x1792xf32, #tpu.memory_space<vmem>>, vector<8x128xf32>
    tpu.vector_store %arg23[%c0_69, %c1408], %113 {strides = array<i32>} : memref<8x1792xf32, #tpu.memory_space<vmem>>, vector<8x128xf32>,
    %115 = vector.extract_strided_slice %78 {offsets = [12, 0, 0], sizes = [1, 8, 128], strides = [1, 1, 1]} : vector<14x8x128xf32> to vector<1x8x128xf32>
    %116 = vector.shape_cast %115 : vector<1x8x128xf32> to vector<8x128xf32>
    %c0_70 = arith.constant 0 : index
    %c1536 = arith.constant 1536 : index
    %117 = vector.load %arg23[%c0_70, %c1536] : memref<8x1792xf32, #tpu.memory_space<vmem>>, vector<8x128xf32>
    tpu.vector_store %arg23[%c0_70, %c1536], %116 {strides = array<i32>} : memref<8x1792xf32, #tpu.memory_space<vmem>>, vector<8x128xf32>,
    %118 = vector.extract_strided_slice %78 {offsets = [13, 0, 0], sizes = [1, 8, 128], strides = [1, 1, 1]} : vector<14x8x128xf32> to vector<1x8x128xf32>
    %119 = vector.shape_cast %118 : vector<1x8x128xf32> to vector<8x128xf32>
    %c0_71 = arith.constant 0 : index
    %c1664 = arith.constant 1664 : index
    %120 = vector.load %arg23[%c0_71, %c1664] : memref<8x1792xf32, #tpu.memory_space<vmem>>, vector<8x128xf32>
    tpu.vector_store %arg23[%c0_71, %c1664], %119 {strides = array<i32>} : memref<8x1792xf32, #tpu.memory_space<vmem>>, vector<8x128xf32>,
    %c0_72 = arith.constant 0 : index
    %c0_73 = arith.constant 0 : index
    %121 = vector.load %arg23[%c0_72, %c0_73] : memref<8x1792xf32, #tpu.memory_space<vmem>>, vector<8x1792xf32>
    %122 = arith.truncf %121 : vector<8x1792xf32> to vector<8x1792xbf16>
    %c0_74 = arith.constant 0 : index
    %c0_75 = arith.constant 0 : index
    %123 = vector.load %arg9[%c0_74, %c0_75] : memref<1792x128xbf16, #tpu.memory_space<vmem>>, vector<1792x128xbf16>
    %cst_76 = arith.constant dense<0.000000e+00> : vector<8x128xf32>
    %124 = tpu.matmul %122, %123, %cst_76 {dimension_numbers = #tpu.dot_dimension_numbers<[1], [0], [0], [1], [0, 0, 1, 1], [], []>} : vector<8x1792xbf16>, vector<1792x128xbf16>, vector<8x128xf32> -> vector<8x128xf32>
    %c0_77 = arith.constant 0 : index
    %c0_78 = arith.constant 0 : index
    %125 = vector.load %arg10[%c0_77, %c0_78] : memref<1x128xf32, #tpu.memory_space<vmem>>, vector<1x128xf32>
    %126 = vector.broadcast %125 : vector<1x128xf32> to vector<8x128xf32>
    %127 = arith.addf %124, %126 : vector<8x128xf32>
    %cst_79 = arith.constant 0.000000e+00 : f32
    %128 = vector.broadcast %cst_79 : f32 to vector<8x128xf32>
    %129 = arith.maximumf %127, %128 : vector<8x128xf32>
    %130 = arith.truncf %129 : vector<8x128xf32> to vector<8x128xbf16>
    %c0_80 = arith.constant 0 : index
    %c0_81 = arith.constant 0 : index
    %131 = vector.load %arg11[%c0_80, %c0_81] : memref<128x256xbf16, #tpu.memory_space<vmem>>, vector<128x256xbf16>
    %cst_82 = arith.constant dense<0.000000e+00> : vector<8x256xf32>
    %132 = tpu.matmul %130, %131, %cst_82 {dimension_numbers = #tpu.dot_dimension_numbers<[1], [0], [0], [1], [0, 0, 1, 1], [], []>} : vector<8x128xbf16>, vector<128x256xbf16>, vector<8x256xf32> -> vector<8x256xf32>
    %c0_83 = arith.constant 0 : index
    %c0_84 = arith.constant 0 : index
    %133 = vector.load %arg12[%c0_83, %c0_84] : memref<1x256xf32, #tpu.memory_space<vmem>>, vector<1x256xf32>
    %134 = vector.broadcast %133 : vector<1x256xf32> to vector<8x256xf32>
    %135 = arith.addf %132, %134 : vector<8x256xf32>
    %c0_85 = arith.constant 0 : index
    %c0_86 = arith.constant 0 : index
    %136 = vector.load %arg19[%c0_85, %c0_86] : memref<8x256xf32, #tpu.memory_space<vmem>>, vector<8x256xf32>
    tpu.vector_store %arg19[%c0_85, %c0_86], %135 {strides = array<i32>} : memref<8x256xf32, #tpu.memory_space<vmem>>, vector<8x256xf32>,
    %137 = vector.extract_strided_slice %135 {offsets = [0, 0], sizes = [8, 128], strides = [1, 1]} : vector<8x256xf32> to vector<8x128xf32>
    %138 = vector.extract_strided_slice %135 {offsets = [0, 128], sizes = [8, 128], strides = [1, 1]} : vector<8x256xf32> to vector<8x128xf32>
    %139 = math.exp %138 : vector<8x128xf32>
    %c0_87 = arith.constant 0 : index
    %c0_88 = arith.constant 0 : index
    %140 = vector.load %arg2[%c0_87, %c0_88] : memref<8x128xf32, #tpu.memory_space<vmem>>, vector<8x128xf32>
    %141 = arith.mulf %139, %140 : vector<8x128xf32>
    %142 = arith.addf %137, %141 : vector<8x128xf32>
    %143 = arith.truncf %142 : vector<8x128xf32> to vector<8x128xbf16>
    %c0_89 = arith.constant 0 : index
    %c0_90 = arith.constant 0 : index
    %144 = vector.load %arg13[%c0_89, %c0_90] : memref<128x128xbf16, #tpu.memory_space<vmem>>, vector<128x128xbf16>
    %cst_91 = arith.constant dense<0.000000e+00> : vector<8x128xf32>
    %145 = tpu.matmul %143, %144, %cst_91 {dimension_numbers = #tpu.dot_dimension_numbers<[1], [0], [0], [1], [0, 0, 1, 1], [], []>} : vector<8x128xbf16>, vector<128x128xbf16>, vector<8x128xf32> -> vector<8x128xf32>
    %c0_92 = arith.constant 0 : index
    %c0_93 = arith.constant 0 : index
    %146 = vector.load %arg14[%c0_92, %c0_93] : memref<1x128xf32, #tpu.memory_space<vmem>>, vector<1x128xf32>
    %147 = vector.broadcast %146 : vector<1x128xf32> to vector<8x128xf32>
    %148 = arith.addf %145, %147 : vector<8x128xf32>
    %cst_94 = arith.constant 0.000000e+00 : f32
    %149 = vector.broadcast %cst_94 : f32 to vector<8x128xf32>
    %150 = arith.maximumf %148, %149 : vector<8x128xf32>
    %151 = arith.truncf %150 : vector<8x128xf32> to vector<8x128xbf16>
    %c0_95 = arith.constant 0 : index
    %c0_96 = arith.constant 0 : index
    %152 = vector.load %arg15[%c0_95, %c0_96] : memref<128x896xbf16, #tpu.memory_space<vmem>>, vector<128x896xbf16>
    %cst_97 = arith.constant dense<0.000000e+00> : vector<8x896xf32>
    %153 = tpu.matmul %151, %152, %cst_97 {dimension_numbers = #tpu.dot_dimension_numbers<[1], [0], [0], [1], [0, 0, 1, 1], [], []>} : vector<8x128xbf16>, vector<128x896xbf16>, vector<8x896xf32> -> vector<8x896xf32>
    %c0_98 = arith.constant 0 : index
    %c0_99 = arith.constant 0 : index
    %154 = vector.load %arg16[%c0_98, %c0_99] : memref<1x896xf32, #tpu.memory_space<vmem>>, vector<1x896xf32>
    %155 = vector.broadcast %154 : vector<1x896xf32> to vector<8x896xf32>
    %156 = arith.addf %153, %155 : vector<8x896xf32>
    %cst_100 = arith.constant 0.000000e+00 : f32
    %157 = vector.broadcast %cst_100 : f32 to vector<8x896xf32>
    %158 = arith.maximumf %156, %157 : vector<8x896xf32>
    %159 = arith.truncf %158 : vector<8x896xf32> to vector<8x896xbf16>
    %c0_101 = arith.constant 0 : index
    %c0_102 = arith.constant 0 : index
    %160 = vector.load %arg17[%c0_101, %c0_102] : memref<896x896xbf16, #tpu.memory_space<vmem>>, vector<896x896xbf16>
    %cst_103 = arith.constant dense<0.000000e+00> : vector<8x896xf32>
    %161 = tpu.matmul %159, %160, %cst_103 {dimension_numbers = #tpu.dot_dimension_numbers<[1], [0], [0], [1], [0, 0, 1, 1], [], []>} : vector<8x896xbf16>, vector<896x896xbf16>, vector<8x896xf32> -> vector<8x896xf32>
    %c0_104 = arith.constant 0 : index
    %c0_105 = arith.constant 0 : index
    %162 = vector.load %arg18[%c0_104, %c0_105] : memref<1x896xf32, #tpu.memory_space<vmem>>, vector<1x896xf32>
    %163 = vector.broadcast %162 : vector<1x896xf32> to vector<8x896xf32>
    %164 = arith.addf %161, %163 : vector<8x896xf32>
    %165 = math.absf %164 : vector<8x896xf32>
    %cst_106 = arith.constant 0.000000e+00 : f32
    %166 = vector.broadcast %cst_106 : f32 to vector<8x896xf32>
    %167 = arith.subf %166, %165 : vector<8x896xf32>
    %168 = math.exp %167 : vector<8x896xf32>
    %cst_107 = arith.constant 1.000000e+00 : f32
    %169 = vector.broadcast %cst_107 : f32 to vector<8x896xf32>
    %170 = arith.addf %169, %168 : vector<8x896xf32>
    %171 = tpu.reciprocal %170 {approx = true} : vector<8x896xf32> -> vector<8x896xf32>
    %cst_108 = arith.constant 0.000000e+00 : f32
    %172 = vector.broadcast %cst_108 : f32 to vector<8x896xf32>
    %173 = arith.cmpf oge, %164, %172 : vector<8x896xf32>
    %174 = arith.mulf %168, %171 : vector<8x896xf32>
    %175 = arith.select %173, %171, %174 : vector<8x896xi1>, vector<8x896xf32>
    %cst_109 = arith.constant 0.000000e+00 : f32
    %cst_110 = arith.constant 1.000000e+00 : f32
    %176 = vector.broadcast %cst_109 : f32 to vector<8x896xf32>
    %177 = arith.maximumf %176, %175 : vector<8x896xf32>
    %178 = vector.broadcast %cst_110 : f32 to vector<8x896xf32>
    %179 = arith.minimumf %178, %177 : vector<8x896xf32>
    %c0_111 = arith.constant 0 : index
    %c0_112 = arith.constant 0 : index
    %180 = vector.load %arg20[%c0_111, %c0_112] : memref<8x896xf32, #tpu.memory_space<vmem>>, vector<8x896xf32>
    tpu.vector_store %arg20[%c0_111, %c0_112], %179 {strides = array<i32>} : memref<8x896xf32, #tpu.memory_space<vmem>>, vector<8x896xf32>,
    return
  }
  func.func @transform_0(%arg0: i32) -> (i32, i32, i32) {
    %c0_i32 = arith.constant 0 : i32
    %c0_i32_0 = arith.constant 0 : i32
    %c0_i32_1 = arith.constant 0 : i32
    return %c0_i32, %arg0, %c0_i32_0 : i32, i32, i32
  }
  func.func @transform_1(%arg0: i32) -> (i32, i32) {
    %c0_i32 = arith.constant 0 : i32
    %c0_i32_0 = arith.constant 0 : i32
    return %arg0, %c0_i32 : i32, i32
  }
  func.func @transform_2(%arg0: i32) -> (i32, i32) {
    %c0_i32 = arith.constant 0 : i32
    %c0_i32_0 = arith.constant 0 : i32
    %c0_i32_1 = arith.constant 0 : i32
    return %c0_i32, %c0_i32_0 : i32, i32
  }
  func.func @transform_3(%arg0: i32) -> (i32, i32) {
    %c0_i32 = arith.constant 0 : i32
    %c0_i32_0 = arith.constant 0 : i32
    %c0_i32_1 = arith.constant 0 : i32
    return %c0_i32, %c0_i32_0 : i32, i32
  }
  func.func @transform_4(%arg0: i32) -> (i32, i32) {
    %c0_i32 = arith.constant 0 : i32
    %c0_i32_0 = arith.constant 0 : i32
    %c0_i32_1 = arith.constant 0 : i32
    return %c0_i32, %c0_i32_0 : i32, i32
  }
  func.func @transform_5(%arg0: i32) -> (i32, i32) {
    %c0_i32 = arith.constant 0 : i32
    %c0_i32_0 = arith.constant 0 : i32
    %c0_i32_1 = arith.constant 0 : i32
    return %c0_i32, %c0_i32_0 : i32, i32
  }
  func.func @transform_6(%arg0: i32) -> (i32, i32) {
    %c0_i32 = arith.constant 0 : i32
    %c0_i32_0 = arith.constant 0 : i32
    %c0_i32_1 = arith.constant 0 : i32
    return %c0_i32, %c0_i32_0 : i32, i32
  }
  func.func @transform_7(%arg0: i32) -> (i32, i32) {
    %c0_i32 = arith.constant 0 : i32
    %c0_i32_0 = arith.constant 0 : i32
    %c0_i32_1 = arith.constant 0 : i32
    return %c0_i32, %c0_i32_0 : i32, i32
  }
  func.func @transform_8(%arg0: i32) -> (i32, i32) {
    %c0_i32 = arith.constant 0 : i32
    %c0_i32_0 = arith.constant 0 : i32
    %c0_i32_1 = arith.constant 0 : i32
    return %c0_i32, %c0_i32_0 : i32, i32
  }
  func.func @transform_9(%arg0: i32) -> (i32, i32) {
    %c0_i32 = arith.constant 0 : i32
    %c0_i32_0 = arith.constant 0 : i32
    %c0_i32_1 = arith.constant 0 : i32
    return %c0_i32, %c0_i32_0 : i32, i32
  }
  func.func @transform_10(%arg0: i32) -> (i32, i32) {
    %c0_i32 = arith.constant 0 : i32
    %c0_i32_0 = arith.constant 0 : i32
    %c0_i32_1 = arith.constant 0 : i32
    return %c0_i32, %c0_i32_0 : i32, i32
  }
  func.func @transform_11(%arg0: i32) -> (i32, i32) {
    %c0_i32 = arith.constant 0 : i32
    %c0_i32_0 = arith.constant 0 : i32
    %c0_i32_1 = arith.constant 0 : i32
    return %c0_i32, %c0_i32_0 : i32, i32
  }
  func.func @transform_12(%arg0: i32) -> (i32, i32) {
    %c0_i32 = arith.constant 0 : i32
    %c0_i32_0 = arith.constant 0 : i32
    %c0_i32_1 = arith.constant 0 : i32
    return %c0_i32, %c0_i32_0 : i32, i32
  }
  func.func @transform_13(%arg0: i32) -> (i32, i32) {
    %c0_i32 = arith.constant 0 : i32
    %c0_i32_0 = arith.constant 0 : i32
    %c0_i32_1 = arith.constant 0 : i32
    return %c0_i32, %c0_i32_0 : i32, i32
  }
  func.func @transform_14(%arg0: i32) -> (i32, i32) {
    %c0_i32 = arith.constant 0 : i32
    %c0_i32_0 = arith.constant 0 : i32
    %c0_i32_1 = arith.constant 0 : i32
    return %c0_i32, %c0_i32_0 : i32, i32
  }
  func.func @transform_15(%arg0: i32) -> (i32, i32) {
    %c0_i32 = arith.constant 0 : i32
    %c0_i32_0 = arith.constant 0 : i32
    %c0_i32_1 = arith.constant 0 : i32
    return %c0_i32, %c0_i32_0 : i32, i32
  }
  func.func @transform_16(%arg0: i32) -> (i32, i32) {
    %c0_i32 = arith.constant 0 : i32
    %c0_i32_0 = arith.constant 0 : i32
    %c0_i32_1 = arith.constant 0 : i32
    return %c0_i32, %c0_i32_0 : i32, i32
  }
  func.func @transform_17(%arg0: i32) -> (i32, i32) {
    %c0_i32 = arith.constant 0 : i32
    %c0_i32_0 = arith.constant 0 : i32
    %c0_i32_1 = arith.constant 0 : i32
    return %c0_i32, %c0_i32_0 : i32, i32
  }
  func.func @transform_18(%arg0: i32) -> (i32, i32) {
    %c0_i32 = arith.constant 0 : i32
    %c0_i32_0 = arith.constant 0 : i32
    return %arg0, %c0_i32 : i32, i32
  }
  func.func @transform_19(%arg0: i32) -> (i32, i32) {
    %c0_i32 = arith.constant 0 : i32
    %c0_i32_0 = arith.constant 0 : i32
    return %arg0, %c0_i32 : i32, i32
  }
}

</mosaic_0001>

<llo_original>
// kernel: _lambda_.1
$region0: #{_lambda_.1}
  #allocation0 [shape = 'u32[]', space=smem, size = 0x4, offset = 0x4, fixed_abs, tag = 'smem constant byte address 0x4 - core index']
  #allocation1 [shape = 'u32[144,128]{1,0:T(1,128)}', space=vmem, size = 0x12000, scoped, tag = 'internal scratch']
  #allocation2 [shape = 'f32[30,8,256]{2,1,0:T(8,128)}', space=vmem, size = 0x3c000, scoped, tag = 'scratch operand']
  #allocation3 [shape = 'f32[16,8,256]{2,1,0:T(8,128)}', space=vmem, size = 0x20000, scoped, tag = 'scratch operand']
  #allocation4 [shape = 'f32[8,1792]{1,0:T(8,128)}', space=vmem, size = 0xe000, scoped, tag = 'scratch operand']
  %s0 = inlined_call_operand.vmem [shape: f32[30,16,128], index: 0, kind: input, shape index: {}]
  %s1 = inlined_call_operand.vmem [shape: f32[16,128], index: 1, kind: input, shape index: {}]
  %s2 = inlined_call_operand.hbm [shape: bf16[384,256], index: 2, kind: input, shape index: {}]
  %s3 = inlined_call_operand.hbm [shape: f32[1,256], index: 3, kind: input, shape index: {}]
  %s4 = inlined_call_operand.hbm [shape: bf16[768,256], index: 4, kind: input, shape index: {}]
  %s5 = inlined_call_operand.hbm [shape: f32[1,256], index: 5, kind: input, shape index: {}]
  %s6 = inlined_call_operand.hbm [shape: bf16[768,128], index: 6, kind: input, shape index: {}]
  %s7 = inlined_call_operand.hbm [shape: f32[1,128], index: 7, kind: input, shape index: {}]
  %s8 = inlined_call_operand.hbm [shape: bf16[1792,128], index: 8, kind: input, shape index: {}]
  %s9 = inlined_call_operand.hbm [shape: f32[1,128], index: 9, kind: input, shape index: {}]
  %s10 = inlined_call_operand.hbm [shape: bf16[128,256], index: 10, kind: input, shape index: {}]
  %s11 = inlined_call_operand.hbm [shape: f32[1,256], index: 11, kind: input, shape index: {}]
  %s12 = inlined_call_operand.hbm [shape: bf16[128,128], index: 12, kind: input, shape index: {}]
  %s13 = inlined_call_operand.hbm [shape: f32[1,128], index: 13, kind: input, shape index: {}]
  %s14 = inlined_call_operand.hbm [shape: bf16[128,896], index: 14, kind: input, shape index: {}]
  %s15 = inlined_call_operand.hbm [shape: f32[1,896], index: 15, kind: input, shape index: {}]
  %s16 = inlined_call_operand.hbm [shape: bf16[896,896], index: 16, kind: input, shape index: {}]
  %s17 = inlined_call_operand.hbm [shape: f32[1,896], index: 17, kind: input, shape index: {}]
  %s18 = inlined_call_operand.vmem [shape: f32[16,256], index: 18, kind: output, shape index: {0}]
  %s19 = inlined_call_operand.vmem [shape: f32[16,896], index: 19, kind: output, shape index: {1}]
  %20 = xla_tuple %s18, %s19
  %s21 = sld [smem:[#allocation0]]
  $region215: #{_lambda_.1} parent=0
    _
  %s23 = ssub.s32 1, %s21
  %s24 = scalar_select 0, %s23, %s21
  $region1: #{_lambda_.1} parent=0
    #allocation5 [shape = 'u8[245760]{0}', space=vmem, size = 0x3c000, scoped, tag = 'input window, operand 0']
    #allocation6 [shape = 'u8[196608]{0}', space=vmem, size = 0x30000, scoped, tag = 'input window, operand 2, single buffered']
    #allocation7 [shape = 's32[2]{0}', space=sflag, size = 0x8, scoped, tag = 'scoped memory for _lambda_.1']
    #allocation8 [shape = 'u8[1024]{0}', space=vmem, size = 0x400, scoped, tag = 'input window, operand 3, single buffered']
    #allocation9 [shape = 's32[1]{0}', space=sflag, size = 0x4, scoped, tag = 'scoped memory for _lambda_.1']
    #allocation10 [shape = 'u8[393216]{0}', space=vmem, size = 0x60000, scoped, tag = 'input window, operand 4, single buffered']
    #allocation11 [shape = 'u8[1024]{0}', space=vmem, size = 0x400, scoped, tag = 'input window, operand 5, single buffered']
    #allocation12 [shape = 's32[1]{0}', space=sflag, size = 0x4, scoped, tag = 'scoped memory for _lambda_.1']
    #allocation13 [shape = 'u8[196608]{0}', space=vmem, size = 0x30000, scoped, tag = 'input window, operand 6, single buffered']
    #allocation14 [shape = 'u8[512]{0}', space=vmem, size = 0x400, scoped, tag = 'input window, operand 7, single buffered']
    #allocation15 [shape = 's32[1]{0}', space=sflag, size = 0x4, scoped, tag = 'scoped memory for _lambda_.1']
    #allocation16 [shape = 'u8[458752]{0}', space=vmem, size = 0x70000, scoped, tag = 'input window, operand 8, single buffered']
    #allocation17 [shape = 'u8[512]{0}', space=vmem, size = 0x400, scoped, tag = 'input window, operand 9, single buffered']
    #allocation18 [shape = 's32[1]{0}', space=sflag, size = 0x4, scoped, tag = 'scoped memory for _lambda_.1']
    #allocation19 [shape = 'u8[65536]{0}', space=vmem, size = 0x10000, scoped, tag = 'input window, operand 10, single buffered']
    #allocation20 [shape = 'u8[1024]{0}', space=vmem, size = 0x400, scoped, tag = 'input window, operand 11, single buffered']
    #allocation21 [shape = 's32[1]{0}', space=sflag, size = 0x4, scoped, tag = 'scoped memory for _lambda_.1']
    #allocation22 [shape = 'u8[32768]{0}', space=vmem, size = 0x8000, scoped, tag = 'input window, operand 12, single buffered']
    #allocation23 [shape = 'u8[512]{0}', space=vmem, size = 0x400, scoped, tag = 'input window, operand 13, single buffered']
    #allocation24 [shape = 's32[1]{0}', space=sflag, size = 0x4, scoped, tag = 'scoped memory for _lambda_.1']
    #allocation25 [shape = 'u8[229376]{0}', space=vmem, size = 0x38000, scoped, tag = 'input window, operand 14, single buffered']
    #allocation26 [shape = 'u8[3584]{0}', space=vmem, size = 0x1000, scoped, tag = 'input window, operand 15, single buffered']
    #allocation27 [shape = 's32[1]{0}', space=sflag, size = 0x4, scoped, tag = 'scoped memory for _lambda_.1']
    #allocation28 [shape = 'u8[1605632]{0}', space=vmem, size = 0x188000, scoped, tag = 'input window, operand 16, single buffered']
    #allocation29 [shape = 'u8[3584]{0}', space=vmem, size = 0x1000, scoped, tag = 'input window, operand 17, single buffered']
    #allocation30 [shape = 's32[1]{0}', space=sflag, size = 0x4, scoped, tag = 'scoped memory for _lambda_.1']
    %25 = vsyncpa [#allocation7], 0
    %26 = vsyncpa [#allocation9], 0
    %27 = vsyncpa [#allocation12], 0
    %28 = vsyncpa [#allocation15], 0
    %29 = vsyncpa [#allocation18], 0
    %30 = vsyncpa [#allocation21], 0
    %31 = vsyncpa [#allocation24], 0
    %32 = vsyncpa [#allocation27], 0
    %33 = vsyncpa [#allocation30], 0
    loop: start=0, step=1, limit=4
    $region2: #{_lambda_.1} parent=1 // loop_pre_header
      _
    $region3: #{_lambda_.1} parent=1 // loop_header
      %s35 = sphi 0, %s39
      %p36 = scmp.ge.s32.totalorder %s35, 4
      %s45 = sphi 0, %s47
      %s48 = sphi 0, %s45
      %s49 = sphi 0, %s48
      %s65 = sphi 0, %s49
      %s71 = sphi 0, %s73
      %s74 = sphi 0, %s71
      %s75 = sphi 0, %s74
      %s91 = sphi 0, %s75
      %s95 = sphi 0, %s95
      %s97 = sphi 0, %s95
      %s98 = sphi 0, %s97
      %s112 = sphi 0, %s98
      %s116 = sphi 0, %s116
      %s118 = sphi 0, %s116
      %s119 = sphi 0, %s118
      %s133 = sphi 0, %s119
      %s137 = sphi 0, %s137
      %s139 = sphi 0, %s137
      %s140 = sphi 0, %s139
      %s154 = sphi 0, %s140
      %s158 = sphi 0, %s158
      %s160 = sphi 0, %s158
      %s161 = sphi 0, %s160
      %s175 = sphi 0, %s161
      %s179 = sphi 0, %s179
      %s181 = sphi 0, %s179
      %s182 = sphi 0, %s181
      %s196 = sphi 0, %s182
      %s200 = sphi 0, %s200
      %s202 = sphi 0, %s200
      %s203 = sphi 0, %s202
      %s217 = sphi 0, %s203
      %s221 = sphi 0, %s221
      %s223 = sphi 0, %s221
      %s224 = sphi 0, %s223
      %s238 = sphi 0, %s224
      %s242 = sphi 0, %s242
      %s244 = sphi 0, %s242
      %s245 = sphi 0, %s244
      %s259 = sphi 0, %s245
      %s263 = sphi 0, %s263
      %s265 = sphi 0, %s263
      %s266 = sphi 0, %s265
      %s280 = sphi 0, %s266
      %s284 = sphi 0, %s284
      %s286 = sphi 0, %s284
      %s287 = sphi 0, %s286
      %s301 = sphi 0, %s287
      %s305 = sphi 0, %s305
      %s307 = sphi 0, %s305
      %s308 = sphi 0, %s307
      %s322 = sphi 0, %s308
      %s326 = sphi 0, %s326
      %s328 = sphi 0, %s326
      %s329 = sphi 0, %s328
      %s343 = sphi 0, %s329
      %s347 = sphi 0, %s347
      %s349 = sphi 0, %s347
      %s350 = sphi 0, %s349
      %s364 = sphi 0, %s350
      %s368 = sphi 0, %s368
      %s370 = sphi 0, %s368
      %s371 = sphi 0, %s370
      %s385 = sphi 0, %s371
      %s389 = sphi 0, %s389
      %s391 = sphi 0, %s389
      %s392 = sphi 0, %s391
      %s406 = sphi 0, %s392
      %s410 = sphi 0, %s410
      %s412 = sphi 0, %s410
      %s413 = sphi 0, %s412
      %s427 = sphi 0, %s413
      %s433 = sphi 0, %s435
      %s436 = sphi 0, %s433
      %s437 = sphi 0, %s436
      %s453 = sphi 0, %s437
      %s459 = sphi 0, %s461
      %s462 = sphi 0, %s459
      %s463 = sphi 0, %s462
      %s479 = sphi 0, %s463
    $region4: #{_lambda_.1} parent=1 // loop_header_branch
      %38 = sbr.rel (%p36) target = $region8
    $region5: #{_lambda_.1} parent=1 // loop_body
      %s40 = ssub.s32 %s35, 1
      %s41 = ssub.s32 %s35, 2
      %s42 = sadd.s32 %s35, 1
      %s43 = ssub.s32 %s35, %s42
      %p44 = scmp.eq.s32.totalorder %s43, 0
      %s46 = sadd.s32 %s45, 1
      %s47 = scalar_select %p44, %s45, %s46
      %p50 = pneg %p44
      %p51 = scmp.eq.s32.totalorder %s35, 1
      %p52 = por %p50, %p51
      %p53 = scmp.ne.s32.totalorder %s45, %s48
      %p54 = scmp.eq.s32.totalorder %s35, 0
      %p55 = por %p53, %p54
      %p56 = scmp.ne.s32.totalorder %s45, %s48
      %p57 = scmp.eq.s32.totalorder %s40, 1
      %p58 = por %p56, %p57
      %p59 = scmp.ne.s32.totalorder %s48, %s49
      %p60 = scmp.eq.s32.totalorder %s40, 0
      %p61 = por %p59, %p60
      %p62 = scmp.ne.s32.totalorder %s48, %s49
      %p63 = scmp.eq.s32.totalorder %s41, 1
      %p64 = por %p62, %p63
      %p66 = scmp.ne.s32.totalorder %s49, %s65
      %p67 = scmp.eq.s32.totalorder %s41, 0
      %p68 = por %p66, %p67
      %s69 = ssub.s32 %s35, %s42
      %p70 = scmp.eq.s32.totalorder %s69, 0
      %s72 = sadd.s32 %s71, 1
      %s73 = scalar_select %p70, %s71, %s72
      %p76 = pneg %p70
      %p77 = scmp.eq.s32.totalorder %s35, 1
      %p78 = por %p76, %p77
      %p79 = scmp.ne.s32.totalorder %s71, %s74
      %p80 = scmp.eq.s32.totalorder %s35, 0
      %p81 = por %p79, %p80
      %p82 = scmp.ne.s32.totalorder %s71, %s74
      %p83 = scmp.eq.s32.totalorder %s40, 1
      %p84 = por %p82, %p83
      %p85 = scmp.ne.s32.totalorder %s74, %s75
      %p86 = scmp.eq.s32.totalorder %s40, 0
      %p87 = por %p85, %p86
      %p88 = scmp.ne.s32.totalorder %s74, %s75
      %p89 = scmp.eq.s32.totalorder %s41, 1
      %p90 = por %p88, %p89
      %p92 = scmp.ne.s32.totalorder %s75, %s91
      %p93 = scmp.eq.s32.totalorder %s41, 0
      %p94 = por %p92, %p93
      %s96 = sadd.s32 %s95, 1
      %p99 = scmp.eq.s32.totalorder %s35, 1
      %p100 = scmp.ne.s32.totalorder %s95, %s97
      %p101 = scmp.eq.s32.totalorder %s35, 0
      %p102 = por %p100, %p101
      %p103 = scmp.ne.s32.totalorder %s95, %s97
      %p104 = scmp.eq.s32.totalorder %s40, 1
      %p105 = por %p103, %p104
      %p106 = scmp.ne.s32.totalorder %s97, %s98
      %p107 = scmp.eq.s32.totalorder %s40, 0
      %p108 = por %p106, %p107
      %p109 = scmp.ne.s32.totalorder %s97, %s98
      %p110 = scmp.eq.s32.totalorder %s41, 1
      %p111 = por %p109, %p110
      %p113 = scmp.ne.s32.totalorder %s98, %s112
      %p114 = scmp.eq.s32.totalorder %s41, 0
      %p115 = por %p113, %p114
      %s117 = sadd.s32 %s116, 1
      %p120 = scmp.eq.s32.totalorder %s35, 1
      %p121 = scmp.ne.s32.totalorder %s116, %s118
      %p122 = scmp.eq.s32.totalorder %s35, 0
      %p123 = por %p121, %p122
      %p124 = scmp.ne.s32.totalorder %s116, %s118
      %p125 = scmp.eq.s32.totalorder %s40, 1
      %p126 = por %p124, %p125
      %p127 = scmp.ne.s32.totalorder %s118, %s119
      %p128 = scmp.eq.s32.totalorder %s40, 0
      %p129 = por %p127, %p128
      %p130 = scmp.ne.s32.totalorder %s118, %s119
      %p131 = scmp.eq.s32.totalorder %s41, 1
      %p132 = por %p130, %p131
      %p134 = scmp.ne.s32.totalorder %s119, %s133
      %p135 = scmp.eq.s32.totalorder %s41, 0
      %p136 = por %p134, %p135
      %s138 = sadd.s32 %s137, 1
      %p141 = scmp.eq.s32.totalorder %s35, 1
      %p142 = scmp.ne.s32.totalorder %s137, %s139
      %p143 = scmp.eq.s32.totalorder %s35, 0
      %p144 = por %p142, %p143
      %p145 = scmp.ne.s32.totalorder %s137, %s139
      %p146 = scmp.eq.s32.totalorder %s40, 1
      %p147 = por %p145, %p146
      %p148 = scmp.ne.s32.totalorder %s139, %s140
      %p149 = scmp.eq.s32.totalorder %s40, 0
      %p150 = por %p148, %p149
      %p151 = scmp.ne.s32.totalorder %s139, %s140
      %p152 = scmp.eq.s32.totalorder %s41, 1
      %p153 = por %p151, %p152
      %p155 = scmp.ne.s32.totalorder %s140, %s154
      %p156 = scmp.eq.s32.totalorder %s41, 0
      %p157 = por %p155, %p156
      %s159 = sadd.s32 %s158, 1
      %p162 = scmp.eq.s32.totalorder %s35, 1
      %p163 = scmp.ne.s32.totalorder %s158, %s160
      %p164 = scmp.eq.s32.totalorder %s35, 0
      %p165 = por %p163, %p164
      %p166 = scmp.ne.s32.totalorder %s158, %s160
      %p167 = scmp.eq.s32.totalorder %s40, 1
      %p168 = por %p166, %p167
      %p169 = scmp.ne.s32.totalorder %s160, %s161
      %p170 = scmp.eq.s32.totalorder %s40, 0
      %p171 = por %p169, %p170
      %p172 = scmp.ne.s32.totalorder %s160, %s161
      %p173 = scmp.eq.s32.totalorder %s41, 1
      %p174 = por %p172, %p173
      %p176 = scmp.ne.s32.totalorder %s161, %s175
      %p177 = scmp.eq.s32.totalorder %s41, 0
      %p178 = por %p176, %p177
      %s180 = sadd.s32 %s179, 1
      %p183 = scmp.eq.s32.totalorder %s35, 1
      %p184 = scmp.ne.s32.totalorder %s179, %s181
      %p185 = scmp.eq.s32.totalorder %s35, 0
      %p186 = por %p184, %p185
      %p187 = scmp.ne.s32.totalorder %s179, %s181
      %p188 = scmp.eq.s32.totalorder %s40, 1
      %p189 = por %p187, %p188
      %p190 = scmp.ne.s32.totalorder %s181, %s182
      %p191 = scmp.eq.s32.totalorder %s40, 0
      %p192 = por %p190, %p191
      %p193 = scmp.ne.s32.totalorder %s181, %s182
      %p194 = scmp.eq.s32.totalorder %s41, 1
      %p195 = por %p193, %p194
      %p197 = scmp.ne.s32.totalorder %s182, %s196
      %p198 = scmp.eq.s32.totalorder %s41, 0
      %p199 = por %p197, %p198
      %s201 = sadd.s32 %s200, 1
      %p204 = scmp.eq.s32.totalorder %s35, 1
      %p205 = scmp.ne.s32.totalorder %s200, %s202
      %p206 = scmp.eq.s32.totalorder %s35, 0
      %p207 = por %p205, %p206
      %p208 = scmp.ne.s32.totalorder %s200, %s202
      %p209 = scmp.eq.s32.totalorder %s40, 1
      %p210 = por %p208, %p209
      %p211 = scmp.ne.s32.totalorder %s202, %s203
      %p212 = scmp.eq.s32.totalorder %s40, 0
      %p213 = por %p211, %p212
      %p214 = scmp.ne.s32.totalorder %s202, %s203
      %p215 = scmp.eq.s32.totalorder %s41, 1
      %p216 = por %p214, %p215
      %p218 = scmp.ne.s32.totalorder %s203, %s217
      %p219 = scmp.eq.s32.totalorder %s41, 0
      %p220 = por %p218, %p219
      %s222 = sadd.s32 %s221, 1
      %p225 = scmp.eq.s32.totalorder %s35, 1
      %p226 = scmp.ne.s32.totalorder %s221, %s223
      %p227 = scmp.eq.s32.totalorder %s35, 0
      %p228 = por %p226, %p227
      %p229 = scmp.ne.s32.totalorder %s221, %s223
      %p230 = scmp.eq.s32.totalorder %s40, 1
      %p231 = por %p229, %p230
      %p232 = scmp.ne.s32.totalorder %s223, %s224
      %p233 = scmp.eq.s32.totalorder %s40, 0
      %p234 = por %p232, %p233
      %p235 = scmp.ne.s32.totalorder %s223, %s224
      %p236 = scmp.eq.s32.totalorder %s41, 1
      %p237 = por %p235, %p236
      %p239 = scmp.ne.s32.totalorder %s224, %s238
      %p240 = scmp.eq.s32.totalorder %s41, 0
      %p241 = por %p239, %p240
      %s243 = sadd.s32 %s242, 1
      %p246 = scmp.eq.s32.totalorder %s35, 1
      %p247 = scmp.ne.s32.totalorder %s242, %s244
      %p248 = scmp.eq.s32.totalorder %s35, 0
      %p249 = por %p247, %p248
      %p250 = scmp.ne.s32.totalorder %s242, %s244
      %p251 = scmp.eq.s32.totalorder %s40, 1
      %p252 = por %p250, %p251
      %p253 = scmp.ne.s32.totalorder %s244, %s245
      %p254 = scmp.eq.s32.totalorder %s40, 0
      %p255 = por %p253, %p254
      %p256 = scmp.ne.s32.totalorder %s244, %s245
      %p257 = scmp.eq.s32.totalorder %s41, 1
      %p258 = por %p256, %p257
      %p260 = scmp.ne.s32.totalorder %s245, %s259
      %p261 = scmp.eq.s32.totalorder %s41, 0
      %p262 = por %p260, %p261
      %s264 = sadd.s32 %s263, 1
      %p267 = scmp.eq.s32.totalorder %s35, 1
      %p268 = scmp.ne.s32.totalorder %s263, %s265
      %p269 = scmp.eq.s32.totalorder %s35, 0
      %p270 = por %p268, %p269
      %p271 = scmp.ne.s32.totalorder %s263, %s265
      %p272 = scmp.eq.s32.totalorder %s40, 1
      %p273 = por %p271, %p272
      %p274 = scmp.ne.s32.totalorder %s265, %s266
      %p275 = scmp.eq.s32.totalorder %s40, 0
      %p276 = por %p274, %p275
      %p277 = scmp.ne.s32.totalorder %s265, %s266
      %p278 = scmp.eq.s32.totalorder %s41, 1
      %p279 = por %p277, %p278
      %p281 = scmp.ne.s32.totalorder %s266, %s280
      %p282 = scmp.eq.s32.totalorder %s41, 0
      %p283 = por %p281, %p282
      %s285 = sadd.s32 %s284, 1
      %p288 = scmp.eq.s32.totalorder %s35, 1
      %p289 = scmp.ne.s32.totalorder %s284, %s286
      %p290 = scmp.eq.s32.totalorder %s35, 0
      %p291 = por %p289, %p290
      %p292 = scmp.ne.s32.totalorder %s284, %s286
      %p293 = scmp.eq.s32.totalorder %s40, 1
      %p294 = por %p292, %p293
      %p295 = scmp.ne.s32.totalorder %s286, %s287
      %p296 = scmp.eq.s32.totalorder %s40, 0
      %p297 = por %p295, %p296
      %p298 = scmp.ne.s32.totalorder %s286, %s287
      %p299 = scmp.eq.s32.totalorder %s41, 1
      %p300 = por %p298, %p299
      %p302 = scmp.ne.s32.totalorder %s287, %s301
      %p303 = scmp.eq.s32.totalorder %s41, 0
      %p304 = por %p302, %p303
      %s306 = sadd.s32 %s305, 1
      %p309 = scmp.eq.s32.totalorder %s35, 1
      %p310 = scmp.ne.s32.totalorder %s305, %s307
      %p311 = scmp.eq.s32.totalorder %s35, 0
      %p312 = por %p310, %p311
      %p313 = scmp.ne.s32.totalorder %s305, %s307
      %p314 = scmp.eq.s32.totalorder %s40, 1
      %p315 = por %p313, %p314
      %p316 = scmp.ne.s32.totalorder %s307, %s308
      %p317 = scmp.eq.s32.totalorder %s40, 0
      %p318 = por %p316, %p317
      %p319 = scmp.ne.s32.totalorder %s307, %s308
      %p320 = scmp.eq.s32.totalorder %s41, 1
      %p321 = por %p319, %p320
      %p323 = scmp.ne.s32.totalorder %s308, %s322
      %p324 = scmp.eq.s32.totalorder %s41, 0
      %p325 = por %p323, %p324
      %s327 = sadd.s32 %s326, 1
      %p330 = scmp.eq.s32.totalorder %s35, 1
      %p331 = scmp.ne.s32.totalorder %s326, %s328
      %p332 = scmp.eq.s32.totalorder %s35, 0
      %p333 = por %p331, %p332
      %p334 = scmp.ne.s32.totalorder %s326, %s328
      %p335 = scmp.eq.s32.totalorder %s40, 1
      %p336 = por %p334, %p335
      %p337 = scmp.ne.s32.totalorder %s328, %s329
      %p338 = scmp.eq.s32.totalorder %s40, 0
      %p339 = por %p337, %p338
      %p340 = scmp.ne.s32.totalorder %s328, %s329
      %p341 = scmp.eq.s32.totalorder %s41, 1
      %p342 = por %p340, %p341
      %p344 = scmp.ne.s32.totalorder %s329, %s343
      %p345 = scmp.eq.s32.totalorder %s41, 0
      %p346 = por %p344, %p345
      %s348 = sadd.s32 %s347, 1
      %p351 = scmp.eq.s32.totalorder %s35, 1
      %p352 = scmp.ne.s32.totalorder %s347, %s349
      %p353 = scmp.eq.s32.totalorder %s35, 0
      %p354 = por %p352, %p353
      %p355 = scmp.ne.s32.totalorder %s347, %s349
      %p356 = scmp.eq.s32.totalorder %s40, 1
      %p357 = por %p355, %p356
      %p358 = scmp.ne.s32.totalorder %s349, %s350
      %p359 = scmp.eq.s32.totalorder %s40, 0
      %p360 = por %p358, %p359
      %p361 = scmp.ne.s32.totalorder %s349, %s350
      %p362 = scmp.eq.s32.totalorder %s41, 1
      %p363 = por %p361, %p362
      %p365 = scmp.ne.s32.totalorder %s350, %s364
      %p366 = scmp.eq.s32.totalorder %s41, 0
      %p367 = por %p365, %p366
      %s369 = sadd.s32 %s368, 1
      %p372 = scmp.eq.s32.totalorder %s35, 1
      %p373 = scmp.ne.s32.totalorder %s368, %s370
      %p374 = scmp.eq.s32.totalorder %s35, 0
      %p375 = por %p373, %p374
      %p376 = scmp.ne.s32.totalorder %s368, %s370
      %p377 = scmp.eq.s32.totalorder %s40, 1
      %p378 = por %p376, %p377
      %p379 = scmp.ne.s32.totalorder %s370, %s371
      %p380 = scmp.eq.s32.totalorder %s40, 0
      %p381 = por %p379, %p380
      %p382 = scmp.ne.s32.totalorder %s370, %s371
      %p383 = scmp.eq.s32.totalorder %s41, 1
      %p384 = por %p382, %p383
      %p386 = scmp.ne.s32.totalorder %s371, %s385
      %p387 = scmp.eq.s32.totalorder %s41, 0
      %p388 = por %p386, %p387
      %s390 = sadd.s32 %s389, 1
      %p393 = scmp.eq.s32.totalorder %s35, 1
      %p394 = scmp.ne.s32.totalorder %s389, %s391
      %p395 = scmp.eq.s32.totalorder %s35, 0
      %p396 = por %p394, %p395
      %p397 = scmp.ne.s32.totalorder %s389, %s391
      %p398 = scmp.eq.s32.totalorder %s40, 1
      %p399 = por %p397, %p398
      %p400 = scmp.ne.s32.totalorder %s391, %s392
      %p401 = scmp.eq.s32.totalorder %s40, 0
      %p402 = por %p400, %p401
      %p403 = scmp.ne.s32.totalorder %s391, %s392
      %p404 = scmp.eq.s32.totalorder %s41, 1
      %p405 = por %p403, %p404
      %p407 = scmp.ne.s32.totalorder %s392, %s406
      %p408 = scmp.eq.s32.totalorder %s41, 0
      %p409 = por %p407, %p408
      %s411 = sadd.s32 %s410, 1
      %p414 = scmp.eq.s32.totalorder %s35, 1
      %p415 = scmp.ne.s32.totalorder %s410, %s412
      %p416 = scmp.eq.s32.totalorder %s35, 0
      %p417 = por %p415, %p416
      %p418 = scmp.ne.s32.totalorder %s410, %s412
      %p419 = scmp.eq.s32.totalorder %s40, 1
      %p420 = por %p418, %p419
      %p421 = scmp.ne.s32.totalorder %s412, %s413
      %p422 = scmp.eq.s32.totalorder %s40, 0
      %p423 = por %p421, %p422
      %p424 = scmp.ne.s32.totalorder %s412, %s413
      %p425 = scmp.eq.s32.totalorder %s41, 1
      %p426 = por %p424, %p425
      %p428 = scmp.ne.s32.totalorder %s413, %s427
      %p429 = scmp.eq.s32.totalorder %s41, 0
      %p430 = por %p428, %p429
      %s431 = ssub.s32 %s35, %s42
      %p432 = scmp.eq.s32.totalorder %s431, 0
      %s434 = sadd.s32 %s433, 1
      %s435 = scalar_select %p432, %s433, %s434
      %p438 = pneg %p432
      %p439 = scmp.eq.s32.totalorder %s35, 1
      %p440 = por %p438, %p439
      %p441 = scmp.ne.s32.totalorder %s433, %s436
      %p442 = scmp.eq.s32.totalorder %s35, 0
      %p443 = por %p441, %p442
      %p444 = scmp.ne.s32.totalorder %s433, %s436
      %p445 = scmp.eq.s32.totalorder %s40, 1
      %p446 = por %p444, %p445
      %p447 = scmp.ne.s32.totalorder %s436, %s437
      %p448 = scmp.eq.s32.totalorder %s40, 0
      %p449 = por %p447, %p448
      %p450 = scmp.ne.s32.totalorder %s436, %s437
      %p451 = scmp.eq.s32.totalorder %s41, 1
      %p452 = por %p450, %p451
      %p454 = scmp.ne.s32.totalorder %s437, %s453
      %p455 = scmp.eq.s32.totalorder %s41, 0
      %p456 = por %p454, %p455
      %s457 = ssub.s32 %s35, %s42
      %p458 = scmp.eq.s32.totalorder %s457, 0
      %s460 = sadd.s32 %s459, 1
      %s461 = scalar_select %p458, %s459, %s460
      %p464 = pneg %p458
      %p465 = scmp.eq.s32.totalorder %s35, 1
      %p466 = por %p464, %p465
      %p467 = scmp.ne.s32.totalorder %s459, %s462
      %p468 = scmp.eq.s32.totalorder %s35, 0
      %p469 = por %p467, %p468
      %p470 = scmp.ne.s32.totalorder %s459, %s462
      %p471 = scmp.eq.s32.totalorder %s40, 1
      %p472 = por %p470, %p471
      %p473 = scmp.ne.s32.totalorder %s462, %s463
      %p474 = scmp.eq.s32.totalorder %s40, 0
      %p475 = por %p473, %p474
      %p476 = scmp.ne.s32.totalorder %s462, %s463
      %p477 = scmp.eq.s32.totalorder %s41, 1
      %p478 = por %p476, %p477
      %p480 = scmp.ne.s32.totalorder %s463, %s479
      %p481 = scmp.eq.s32.totalorder %s41, 0
      %p482 = por %p480, %p481
      %p483 = scmp.le.s32.totalorder 1, %s35
      %p484 = scmp.lt.s32.totalorder %s35, 3
      %p485 = pnand %p483, %p484
      %p486 = pneg %p485
      // Predicated region
      $region9: #{_lambda_.1} parent=5 // pred_check
        _
      $region10: #{_lambda_.1} parent=5 // pred_check_branch
        %488 = sbr.rel (%p485) target = $region12
      $region11: #{_lambda_.1} parent=5 // pred_region
        %s489 = ssub.s32 %s35, 1
        // Predicated region
        $region13: #{_lambda_.1} parent=11 // pred_check
          %p490 = pneg %p108
        $region14: #{_lambda_.1} parent=11 // pred_check_branch
          %492 = sbr.rel (%p490) target = $region16
        $region15: #{_lambda_.1} parent=11 // pred_region
          %s494 = ssub.s32 6144, 6144
          %495 = vsyncadd [#allocation7], %s494
          %s496 = sshll.u32 [#allocation6], 4
          %s497 = int_to_ptr.vmem [resolvable:$true] %s496
          %502 = dma.hbm_to_vmem [thread:$0]  %s2, 6144, %s497, [#allocation7], 128, 128, 8
        $region16: #{_lambda_.1} parent=11 // pred_fallthru
          _
        // Predicated region
        $region17: #{_lambda_.1} parent=11 // pred_check
          %p503 = pneg %p129
        $region18: #{_lambda_.1} parent=11 // pred_check_branch
          %505 = sbr.rel (%p503) target = $region20
        $region19: #{_lambda_.1} parent=11 // pred_region
          %s507 = ssub.s32 32, 32
          %508 = vsyncadd [#allocation9], %s507
          %s510 = sshll.u32 [#allocation8], 4
          %s511 = int_to_ptr.vmem [resolvable:$true] %s510
          %513 = dma.hbm_to_vmem [thread:$0]  %s3, 32, %s511, [#allocation9]
        $region20: #{_lambda_.1} parent=11 // pred_fallthru
          _
        // Predicated region
        $region21: #{_lambda_.1} parent=11 // pred_check
          %p514 = pneg %p150
        $region22: #{_lambda_.1} parent=11 // pred_check_branch
          %516 = sbr.rel (%p514) target = $region24
        $region23: #{_lambda_.1} parent=11 // pred_region
          %s518 = ssub.s32 12288, 12288
          %519 = vsyncadd [#allocation9], %s518
          %s520 = sshll.u32 [#allocation10], 4
          %s521 = int_to_ptr.vmem [resolvable:$true] %s520
          %526 = dma.hbm_to_vmem [thread:$0]  %s4, 12288, %s521, [#allocation9], 128, 128, 8
        $region24: #{_lambda_.1} parent=11 // pred_fallthru
          _
        // Predicated region
        $region25: #{_lambda_.1} parent=11 // pred_check
          %p527 = pneg %p171
        $region26: #{_lambda_.1} parent=11 // pred_check_branch
          %529 = sbr.rel (%p527) target = $region28
        $region27: #{_lambda_.1} parent=11 // pred_region
          %s531 = ssub.s32 32, 32
          %532 = vsyncadd [#allocation12], %s531
          %s534 = sshll.u32 [#allocation11], 4
          %s535 = int_to_ptr.vmem [resolvable:$true] %s534
          %537 = dma.hbm_to_vmem [thread:$0]  %s5, 32, %s535, [#allocation12]
        $region28: #{_lambda_.1} parent=11 // pred_fallthru
          _
        // Predicated region
        $region29: #{_lambda_.1} parent=11 // pred_check
          %p538 = pneg %p192
        $region30: #{_lambda_.1} parent=11 // pred_check_branch
          %540 = sbr.rel (%p538) target = $region32
        $region31: #{_lambda_.1} parent=11 // pred_region
          %s542 = ssub.s32 6144, 6144
          %543 = vsyncadd [#allocation12], %s542
          %s544 = sshll.u32 [#allocation13], 4
          %s545 = int_to_ptr.vmem [resolvable:$true] %s544
          %550 = dma.hbm_to_vmem [thread:$0]  %s6, 6144, %s545, [#allocation12], 64, 64, 4
        $region32: #{_lambda_.1} parent=11 // pred_fallthru
          _
        // Predicated region
        $region33: #{_lambda_.1} parent=11 // pred_check
          %p551 = pneg %p213
        $region34: #{_lambda_.1} parent=11 // pred_check_branch
          %553 = sbr.rel (%p551) target = $region36
        $region35: #{_lambda_.1} parent=11 // pred_region
          %s555 = ssub.s32 16, 16
          %556 = vsyncadd [#allocation15], %s555
          %s558 = sshll.u32 [#allocation14], 4
          %s559 = int_to_ptr.vmem [resolvable:$true] %s558
          %561 = dma.hbm_to_vmem [thread:$0]  %s7, 16, %s559, [#allocation15]
        $region36: #{_lambda_.1} parent=11 // pred_fallthru
          _
        // Predicated region
        $region37: #{_lambda_.1} parent=11 // pred_check
          %p562 = pneg %p234
        $region38: #{_lambda_.1} parent=11 // pred_check_branch
          %564 = sbr.rel (%p562) target = $region40
        $region39: #{_lambda_.1} parent=11 // pred_region
          %s566 = ssub.s32 14336, 14336
          %567 = vsyncadd [#allocation15], %s566
          %s568 = sshll.u32 [#allocation16], 4
          %s569 = int_to_ptr.vmem [resolvable:$true] %s568
          %574 = dma.hbm_to_vmem [thread:$0]  %s8, 14336, %s569, [#allocation15], 64, 64, 4
        $region40: #{_lambda_.1} parent=11 // pred_fallthru
          _
        // Predicated region
        $region41: #{_lambda_.1} parent=11 // pred_check
          %p575 = pneg %p255
        $region42: #{_lambda_.1} parent=11 // pred_check_branch
          %577 = sbr.rel (%p575) target = $region44
        $region43: #{_lambda_.1} parent=11 // pred_region
          %s579 = ssub.s32 16, 16
          %580 = vsyncadd [#allocation18], %s579
          %s582 = sshll.u32 [#allocation17], 4
          %s583 = int_to_ptr.vmem [resolvable:$true] %s582
          %585 = dma.hbm_to_vmem [thread:$0]  %s9, 16, %s583, [#allocation18]
        $region44: #{_lambda_.1} parent=11 // pred_fallthru
          _
        // Predicated region
        $region45: #{_lambda_.1} parent=11 // pred_check
          %p586 = pneg %p276
        $region46: #{_lambda_.1} parent=11 // pred_check_branch
          %588 = sbr.rel (%p586) target = $region48
        $region47: #{_lambda_.1} parent=11 // pred_region
          %s590 = ssub.s32 2048, 2048
          %591 = vsyncadd [#allocation18], %s590
          %s592 = sshll.u32 [#allocation19], 4
          %s593 = int_to_ptr.vmem [resolvable:$true] %s592
          %598 = dma.hbm_to_vmem [thread:$0]  %s10, 2048, %s593, [#allocation18], 128, 128, 8
        $region48: #{_lambda_.1} parent=11 // pred_fallthru
          _
        // Predicated region
        $region49: #{_lambda_.1} parent=11 // pred_check
          %p599 = pneg %p297
        $region50: #{_lambda_.1} parent=11 // pred_check_branch
          %601 = sbr.rel (%p599) target = $region52
        $region51: #{_lambda_.1} parent=11 // pred_region
          %s603 = ssub.s32 32, 32
          %604 = vsyncadd [#allocation21], %s603
          %s606 = sshll.u32 [#allocation20], 4
          %s607 = int_to_ptr.vmem [resolvable:$true] %s606
          %609 = dma.hbm_to_vmem [thread:$0]  %s11, 32, %s607, [#allocation21]
        $region52: #{_lambda_.1} parent=11 // pred_fallthru
          _
        // Predicated region
        $region53: #{_lambda_.1} parent=11 // pred_check
          %p610 = pneg %p318
        $region54: #{_lambda_.1} parent=11 // pred_check_branch
          %612 = sbr.rel (%p610) target = $region56
        $region55: #{_lambda_.1} parent=11 // pred_region
          %s614 = ssub.s32 1024, 1024
          %615 = vsyncadd [#allocation21], %s614
          %s616 = sshll.u32 [#allocation22], 4
          %s617 = int_to_ptr.vmem [resolvable:$true] %s616
          %622 = dma.hbm_to_vmem [thread:$0]  %s12, 1024, %s617, [#allocation21], 64, 64, 4
        $region56: #{_lambda_.1} parent=11 // pred_fallthru
          _
        // Predicated region
        $region57: #{_lambda_.1} parent=11 // pred_check
          %p623 = pneg %p339
        $region58: #{_lambda_.1} parent=11 // pred_check_branch
          %625 = sbr.rel (%p623) target = $region60
        $region59: #{_lambda_.1} parent=11 // pred_region
          %s627 = ssub.s32 16, 16
          %628 = vsyncadd [#allocation24], %s627
          %s630 = sshll.u32 [#allocation23], 4
          %s631 = int_to_ptr.vmem [resolvable:$true] %s630
          %633 = dma.hbm_to_vmem [thread:$0]  %s13, 16, %s631, [#allocation24]
        $region60: #{_lambda_.1} parent=11 // pred_fallthru
          _
        // Predicated region
        $region61: #{_lambda_.1} parent=11 // pred_check
          %p634 = pneg %p360
        $region62: #{_lambda_.1} parent=11 // pred_check_branch
          %636 = sbr.rel (%p634) target = $region64
        $region63: #{_lambda_.1} parent=11 // pred_region
          %s638 = ssub.s32 7168, 7168
          %639 = vsyncadd [#allocation24], %s638
          %s640 = sshll.u32 [#allocation25], 4
          %s641 = int_to_ptr.vmem [resolvable:$true] %s640
          %646 = dma.hbm_to_vmem [thread:$0]  %s14, 7168, %s641, [#allocation24], 448, 448, 28
        $region64: #{_lambda_.1} parent=11 // pred_fallthru
          _
        // Predicated region
        $region65: #{_lambda_.1} parent=11 // pred_check
          %p647 = pneg %p381
        $region66: #{_lambda_.1} parent=11 // pred_check_branch
          %649 = sbr.rel (%p647) target = $region68
        $region67: #{_lambda_.1} parent=11 // pred_region
          %s651 = ssub.s32 112, 112
          %652 = vsyncadd [#allocation27], %s651
          %s654 = sshll.u32 [#allocation26], 4
          %s655 = int_to_ptr.vmem [resolvable:$true] %s654
          %657 = dma.hbm_to_vmem [thread:$0]  %s15, 112, %s655, [#allocation27]
        $region68: #{_lambda_.1} parent=11 // pred_fallthru
          _
        // Predicated region
        $region69: #{_lambda_.1} parent=11 // pred_check
          %p658 = pneg %p402
        $region70: #{_lambda_.1} parent=11 // pred_check_branch
          %660 = sbr.rel (%p658) target = $region72
        $region71: #{_lambda_.1} parent=11 // pred_region
          %s662 = ssub.s32 50176, 50176
          %663 = vsyncadd [#allocation27], %s662
          %s664 = sshll.u32 [#allocation28], 4
          %s665 = int_to_ptr.vmem [resolvable:$true] %s664
          %670 = dma.hbm_to_vmem [thread:$0]  %s16, 50176, %s665, [#allocation27], 448, 448, 28
        $region72: #{_lambda_.1} parent=11 // pred_fallthru
          _
        // Predicated region
        $region73: #{_lambda_.1} parent=11 // pred_check
          %p671 = pneg %p423
        $region74: #{_lambda_.1} parent=11 // pred_check_branch
          %673 = sbr.rel (%p671) target = $region76
        $region75: #{_lambda_.1} parent=11 // pred_region
          %s675 = ssub.s32 112, 112
          %676 = vsyncadd [#allocation30], %s675
          %s678 = sshll.u32 [#allocation29], 4
          %s679 = int_to_ptr.vmem [resolvable:$true] %s678
          %681 = dma.hbm_to_vmem [thread:$0]  %s17, 112, %s679, [#allocation30]
        $region76: #{_lambda_.1} parent=11 // pred_fallthru
          _
      $region12: #{_lambda_.1} parent=5 // pred_fallthru
        _
      %p682 = scmp.lt.s32.totalorder %s35, 2
      // Predicated region
      $region77: #{_lambda_.1} parent=5 // pred_check
        %p683 = pneg %p682
      $region78: #{_lambda_.1} parent=5 // pred_check_branch
        %685 = sbr.rel (%p683) target = $region80
      $region79: #{_lambda_.1} parent=5 // pred_region
        // Predicated region
        $region81: #{_lambda_.1} parent=79 // pred_check
          %p686 = pneg %p55
        $region82: #{_lambda_.1} parent=79 // pred_check_branch
          %688 = sbr.rel (%p686) target = $region84
        $region83: #{_lambda_.1} parent=79 // pred_region
          %s689 = sand.u32 %s45, 1
          %s690 = sand.u32 %s45, 1
          %s691 = smul.addr %s690, 240
          %s692 = scalar_lea.vmem [#allocation5], %s691
          %s693 = smul.addr %s35, 8
          %s694 = scalar_lea.vmem %s0, %s693
          // Predicated region
          $region85: #{_lambda_.1} parent=83 // pred_check
            _
          $region86: #{_lambda_.1} parent=83 // pred_check_branch
            %696 = sbr.rel (0) target = $region88
          $region87: #{_lambda_.1} parent=83 // pred_region
            // Predicated region
            $region89: #{_lambda_.1} parent=87 // pred_check
              _
            $region90: #{_lambda_.1} parent=87 // pred_check_branch
              %698 = sbr.rel (0) target = $region92
            $region91: #{_lambda_.1} parent=87 // pred_region
              // Predicated region
              $region104: #{_lambda_.1} parent=91 // pred_check
                _
              $region105: #{_lambda_.1} parent=91 // pred_check_branch
                %771 = sbr.rel (0) target = $region107
              $region106: #{_lambda_.1} parent=91 // pred_region
                loop: start=0, step=1, limit=1
                $region108: #{_lambda_.1} parent=106 // loop_pre_header
                  _
                $region109: #{_lambda_.1} parent=106 // loop_header
                  %s773 = sphi 0, %s777
                  %p774 = scmp.ge.s32.totalorder %s773, 1
                  %s778 = sphi %s694, %s694
                  %s779 = sphi %s692, %s692
                $region110: #{_lambda_.1} parent=106 // loop_header_branch
                  %776 = sbr.rel (%p774) target = $region114
                $region111: #{_lambda_.1} parent=106 // loop_body
                  %v780 = vld [vmem:[%s778] sm:$0xff]
                  %781 = vst [vmem:[%s779] sm:$0xff] %v780
                  %v782 = vld [vmem:[%s778 + $0x10] sm:$0xff]
                  %783 = vst [vmem:[%s779 + $0x8] sm:$0xff] %v782
                  %v784 = vld [vmem:[%s778 + $0x20] sm:$0xff]
                  %785 = vst [vmem:[%s779 + $0x10] sm:$0xff] %v784
                  %v786 = vld [vmem:[%s778 + $0x30] sm:$0xff]
                  %787 = vst [vmem:[%s779 + $0x18] sm:$0xff] %v786
                  %v788 = vld [vmem:[%s778 + $0x40] sm:$0xff]
                  %789 = vst [vmem:[%s779 + $0x20] sm:$0xff] %v788
                  %v790 = vld [vmem:[%s778 + $0x50] sm:$0xff]
                  %791 = vst [vmem:[%s779 + $0x28] sm:$0xff] %v790
                  %v792 = vld [vmem:[%s778 + $0x60] sm:$0xff]
                  %793 = vst [vmem:[%s779 + $0x30] sm:$0xff] %v792
                  %v794 = vld [vmem:[%s778 + $0x70] sm:$0xff]
                  %795 = vst [vmem:[%s779 + $0x38] sm:$0xff] %v794
                  %v796 = vld [vmem:[%s778 + $0x80] sm:$0xff]
                  %797 = vst [vmem:[%s779 + $0x40] sm:$0xff] %v796
                  %v798 = vld [vmem:[%s778 + $0x90] sm:$0xff]
                  %799 = vst [vmem:[%s779 + $0x48] sm:$0xff] %v798
                  %v800 = vld [vmem:[%s778 + $0xa0] sm:$0xff]
                  %801 = vst [vmem:[%s779 + $0x50] sm:$0xff] %v800
                  %v802 = vld [vmem:[%s778 + $0xb0] sm:$0xff]
                  %803 = vst [vmem:[%s779 + $0x58] sm:$0xff] %v802
                  %v804 = vld [vmem:[%s778 + $0xc0] sm:$0xff]
                  %805 = vst [vmem:[%s779 + $0x60] sm:$0xff] %v804
                  %v806 = vld [vmem:[%s778 + $0xd0] sm:$0xff]
                  %807 = vst [vmem:[%s779 + $0x68] sm:$0xff] %v806
                  %v808 = vld [vmem:[%s778 + $0xe0] sm:$0xff]
                  %809 = vst [vmem:[%s779 + $0x70] sm:$0xff] %v808
                  %v810 = vld [vmem:[%s778 + $0xf0] sm:$0xff]
                  %811 = vst [vmem:[%s779 + $0x78] sm:$0xff] %v810
                  %v812 = vld [vmem:[%s778 + $0x100] sm:$0xff]
                  %813 = vst [vmem:[%s779 + $0x80] sm:$0xff] %v812
                  %v814 = vld [vmem:[%s778 + $0x110] sm:$0xff]
                  %815 = vst [vmem:[%s779 + $0x88] sm:$0xff] %v814
                  %v816 = vld [vmem:[%s778 + $0x120] sm:$0xff]
                  %817 = vst [vmem:[%s779 + $0x90] sm:$0xff] %v816
                  %v818 = vld [vmem:[%s778 + $0x130] sm:$0xff]
                  %819 = vst [vmem:[%s779 + $0x98] sm:$0xff] %v818
                  %v820 = vld [vmem:[%s778 + $0x140] sm:$0xff]
                  %821 = vst [vmem:[%s779 + $0xa0] sm:$0xff] %v820
                  %v822 = vld [vmem:[%s778 + $0x150] sm:$0xff]
                  %823 = vst [vmem:[%s779 + $0xa8] sm:$0xff] %v822
                  %v824 = vld [vmem:[%s778 + $0x160] sm:$0xff]
                  %825 = vst [vmem:[%s779 + $0xb0] sm:$0xff] %v824
                  %v826 = vld [vmem:[%s778 + $0x170] sm:$0xff]
                  %827 = vst [vmem:[%s779 + $0xb8] sm:$0xff] %v826
                  %v828 = vld [vmem:[%s778 + $0x180] sm:$0xff]
                  %829 = vst [vmem:[%s779 + $0xc0] sm:$0xff] %v828
                  %v830 = vld [vmem:[%s778 + $0x190] sm:$0xff]
                  %831 = vst [vmem:[%s779 + $0xc8] sm:$0xff] %v830
                  %v832 = vld [vmem:[%s778 + $0x1a0] sm:$0xff]
                  %833 = vst [vmem:[%s779 + $0xd0] sm:$0xff] %v832
                  %v834 = vld [vmem:[%s778 + $0x1b0] sm:$0xff]
                  %835 = vst [vmem:[%s779 + $0xd8] sm:$0xff] %v834
                  %v836 = vld [vmem:[%s778 + $0x1c0] sm:$0xff]
                  %837 = vst [vmem:[%s779 + $0xe0] sm:$0xff] %v836
                  %v838 = vld [vmem:[%s778 + $0x1d0] sm:$0xff]
                  %839 = vst [vmem:[%s779 + $0xe8] sm:$0xff] %v838
                $region112: #{_lambda_.1} parent=106 // loop_footer
                  %s777 = sadd.s32 1, %s773
                $region113: #{_lambda_.1} parent=106 // loop_footer_branch
                  %772 = sbr.rel target = $region109
                $region114: #{_lambda_.1} parent=106 // loop_exit
                  _
              $region107: #{_lambda_.1} parent=91 // pred_fallthru
                _
              // Predicated region
              $region115: #{_lambda_.1} parent=91 // pred_check
                _
              $region116: #{_lambda_.1} parent=91 // pred_check_branch
                %841 = sbr.rel target = $region118
              $region117: #{_lambda_.1} parent=91 // pred_region
                _
              $region118: #{_lambda_.1} parent=91 // pred_fallthru
                _
            $region92: #{_lambda_.1} parent=87 // pred_fallthru
              _
            // Predicated region
            $region93: #{_lambda_.1} parent=87 // pred_check
              _
            $region94: #{_lambda_.1} parent=87 // pred_check_branch
              %700 = sbr.rel target = $region96
            $region95: #{_lambda_.1} parent=87 // pred_region
              loop: start=0, step=1, limit=1
              $region97: #{_lambda_.1} parent=95 // loop_pre_header
                _
              $region98: #{_lambda_.1} parent=95 // loop_header
                %s703 = sphi 0, %s707
                %p704 = scmp.ge.s32.totalorder %s703, 1
                %s708 = sphi %s694, %s694
                %s709 = sphi %s692, %s692
              $region99: #{_lambda_.1} parent=95 // loop_header_branch
                %706 = sbr.rel (%p704) target = $region103
              $region100: #{_lambda_.1} parent=95 // loop_body
                %v710 = vld [vmem:[%s708] sm:$0xff]
                %711 = vst [vmem:[%s709] sm:$0xff] %v710
                %v712 = vld [vmem:[%s708 + $0x10] sm:$0xff]
                %713 = vst [vmem:[%s709 + $0x8] sm:$0xff] %v712
                %v714 = vld [vmem:[%s708 + $0x20] sm:$0xff]
                %715 = vst [vmem:[%s709 + $0x10] sm:$0xff] %v714
                %v716 = vld [vmem:[%s708 + $0x30] sm:$0xff]
                %717 = vst [vmem:[%s709 + $0x18] sm:$0xff] %v716
                %v718 = vld [vmem:[%s708 + $0x40] sm:$0xff]
                %719 = vst [vmem:[%s709 + $0x20] sm:$0xff] %v718
                %v720 = vld [vmem:[%s708 + $0x50] sm:$0xff]
                %721 = vst [vmem:[%s709 + $0x28] sm:$0xff] %v720
                %v722 = vld [vmem:[%s708 + $0x60] sm:$0xff]
                %723 = vst [vmem:[%s709 + $0x30] sm:$0xff] %v722
                %v724 = vld [vmem:[%s708 + $0x70] sm:$0xff]
                %725 = vst [vmem:[%s709 + $0x38] sm:$0xff] %v724
                %v726 = vld [vmem:[%s708 + $0x80] sm:$0xff]
                %727 = vst [vmem:[%s709 + $0x40] sm:$0xff] %v726
                %v728 = vld [vmem:[%s708 + $0x90] sm:$0xff]
                %729 = vst [vmem:[%s709 + $0x48] sm:$0xff] %v728
                %v730 = vld [vmem:[%s708 + $0xa0] sm:$0xff]
                %731 = vst [vmem:[%s709 + $0x50] sm:$0xff] %v730
                %v732 = vld [vmem:[%s708 + $0xb0] sm:$0xff]
                %733 = vst [vmem:[%s709 + $0x58] sm:$0xff] %v732
                %v734 = vld [vmem:[%s708 + $0xc0] sm:$0xff]
                %735 = vst [vmem:[%s709 + $0x60] sm:$0xff] %v734
                %v736 = vld [vmem:[%s708 + $0xd0] sm:$0xff]
                %737 = vst [vmem:[%s709 + $0x68] sm:$0xff] %v736
                %v738 = vld [vmem:[%s708 + $0xe0] sm:$0xff]
                %739 = vst [vmem:[%s709 + $0x70] sm:$0xff] %v738
                %v740 = vld [vmem:[%s708 + $0xf0] sm:$0xff]
                %741 = vst [vmem:[%s709 + $0x78] sm:$0xff] %v740
                %v742 = vld [vmem:[%s708 + $0x100] sm:$0xff]
                %743 = vst [vmem:[%s709 + $0x80] sm:$0xff] %v742
                %v744 = vld [vmem:[%s708 + $0x110] sm:$0xff]
                %745 = vst [vmem:[%s709 + $0x88] sm:$0xff] %v744
                %v746 = vld [vmem:[%s708 + $0x120] sm:$0xff]
                %747 = vst [vmem:[%s709 + $0x90] sm:$0xff] %v746
                %v748 = vld [vmem:[%s708 + $0x130] sm:$0xff]
                %749 = vst [vmem:[%s709 + $0x98] sm:$0xff] %v748
                %v750 = vld [vmem:[%s708 + $0x140] sm:$0xff]
                %751 = vst [vmem:[%s709 + $0xa0] sm:$0xff] %v750
                %v752 = vld [vmem:[%s708 + $0x150] sm:$0xff]
                %753 = vst [vmem:[%s709 + $0xa8] sm:$0xff] %v752
                %v754 = vld [vmem:[%s708 + $0x160] sm:$0xff]
                %755 = vst [vmem:[%s709 + $0xb0] sm:$0xff] %v754
                %v756 = vld [vmem:[%s708 + $0x170] sm:$0xff]
                %757 = vst [vmem:[%s709 + $0xb8] sm:$0xff] %v756
                %v758 = vld [vmem:[%s708 + $0x180] sm:$0xff]
                %759 = vst [vmem:[%s709 + $0xc0] sm:$0xff] %v758
                %v760 = vld [vmem:[%s708 + $0x190] sm:$0xff]
                %761 = vst [vmem:[%s709 + $0xc8] sm:$0xff] %v760
                %v762 = vld [vmem:[%s708 + $0x1a0] sm:$0xff]
                %763 = vst [vmem:[%s709 + $0xd0] sm:$0xff] %v762
                %v764 = vld [vmem:[%s708 + $0x1b0] sm:$0xff]
                %765 = vst [vmem:[%s709 + $0xd8] sm:$0xff] %v764
                %v766 = vld [vmem:[%s708 + $0x1c0] sm:$0xff]
                %767 = vst [vmem:[%s709 + $0xe0] sm:$0xff] %v766
                %v768 = vld [vmem:[%s708 + $0x1d0] sm:$0xff]
                %769 = vst [vmem:[%s709 + $0xe8] sm:$0xff] %v768
              $region101: #{_lambda_.1} parent=95 // loop_footer
                %s707 = sadd.s32 1, %s703
              $region102: #{_lambda_.1} parent=95 // loop_footer_branch
                %702 = sbr.rel target = $region98
              $region103: #{_lambda_.1} parent=95 // loop_exit
                _
            $region96: #{_lambda_.1} parent=87 // pred_fallthru
              _
          $region88: #{_lambda_.1} parent=83 // pred_fallthru
            _
          %842 = vnop
        $region84: #{_lambda_.1} parent=79 // pred_fallthru
          _
        // Predicated region
        $region119: #{_lambda_.1} parent=79 // pred_check
          %p843 = pneg %p81
        $region120: #{_lambda_.1} parent=79 // pred_check_branch
          %845 = sbr.rel (%p843) target = $region122
        $region121: #{_lambda_.1} parent=79 // pred_region
          %p846 = scmp.lt.s32.totalorder %s35, 1
          %s847 = scalar_select %p846, %s35, 1
          %s848 = smul.addr %s847, 8
          %s849 = scalar_lea.vmem %s1, %s848
        $region122: #{_lambda_.1} parent=79 // pred_fallthru
          _
      $region80: #{_lambda_.1} parent=5 // pred_fallthru
        _
      %p850 = scmp.le.s32.totalorder 1, %s35
      %p851 = scmp.lt.s32.totalorder %s35, 3
      %p852 = pnand %p850, %p851
      %p853 = pneg %p852
      // Predicated region
      $region123: #{_lambda_.1} parent=5 // pred_check
        _
      $region124: #{_lambda_.1} parent=5 // pred_check_branch
        %855 = sbr.rel (%p852) target = $region126
      $region125: #{_lambda_.1} parent=5 // pred_region
        %s856 = ssub.s32 %s35, 1
        %s857 = sand.u32 %s48, 1
        %s858 = sand.u32 %s48, 1
        %s859 = smul.addr %s858, 240
        %s860 = scalar_lea.vmem [#allocation5], %s859
        // Predicated region
        $region127: #{_lambda_.1} parent=125 // pred_check
          %p861 = pneg %p61
        $region128: #{_lambda_.1} parent=125 // pred_check_branch
          %863 = sbr.rel (%p861) target = $region130
        $region129: #{_lambda_.1} parent=125 // pred_region
          _
        $region130: #{_lambda_.1} parent=125 // pred_fallthru
          _
        // Predicated region
        $region131: #{_lambda_.1} parent=125 // pred_check
          %p864 = pneg %p108
        $region132: #{_lambda_.1} parent=125 // pred_check_branch
          %866 = sbr.rel (%p864) target = $region134
        $region133: #{_lambda_.1} parent=125 // pred_region
          %867 = dma.done [#allocation7], 6144
        $region134: #{_lambda_.1} parent=125 // pred_fallthru
          _
        // Predicated region
        $region135: #{_lambda_.1} parent=125 // pred_check
          %p868 = pneg %p129
        $region136: #{_lambda_.1} parent=125 // pred_check_branch
          %870 = sbr.rel (%p868) target = $region138
        $region137: #{_lambda_.1} parent=125 // pred_region
          %871 = dma.done [#allocation9], 32
        $region138: #{_lambda_.1} parent=125 // pred_fallthru
          _
        // Predicated region
        $region139: #{_lambda_.1} parent=125 // pred_check
          %p872 = pneg %p150
        $region140: #{_lambda_.1} parent=125 // pred_check_branch
          %874 = sbr.rel (%p872) target = $region142
        $region141: #{_lambda_.1} parent=125 // pred_region
          %875 = dma.done [#allocation9], 12288
        $region142: #{_lambda_.1} parent=125 // pred_fallthru
          _
        // Predicated region
        $region143: #{_lambda_.1} parent=125 // pred_check
          %p876 = pneg %p171
        $region144: #{_lambda_.1} parent=125 // pred_check_branch
          %878 = sbr.rel (%p876) target = $region146
        $region145: #{_lambda_.1} parent=125 // pred_region
          %879 = dma.done [#allocation12], 32
        $region146: #{_lambda_.1} parent=125 // pred_fallthru
          _
        // Predicated region
        $region147: #{_lambda_.1} parent=125 // pred_check
          %p880 = pneg %p192
        $region148: #{_lambda_.1} parent=125 // pred_check_branch
          %882 = sbr.rel (%p880) target = $region150
        $region149: #{_lambda_.1} parent=125 // pred_region
          %883 = dma.done [#allocation12], 6144
        $region150: #{_lambda_.1} parent=125 // pred_fallthru
          _
        // Predicated region
        $region151: #{_lambda_.1} parent=125 // pred_check
          %p884 = pneg %p213
        $region152: #{_lambda_.1} parent=125 // pred_check_branch
          %886 = sbr.rel (%p884) target = $region154
        $region153: #{_lambda_.1} parent=125 // pred_region
          %887 = dma.done [#allocation15], 16
        $region154: #{_lambda_.1} parent=125 // pred_fallthru
          _
        // Predicated region
        $region155: #{_lambda_.1} parent=125 // pred_check
          %p888 = pneg %p234
        $region156: #{_lambda_.1} parent=125 // pred_check_branch
          %890 = sbr.rel (%p888) target = $region158
        $region157: #{_lambda_.1} parent=125 // pred_region
          %891 = dma.done [#allocation15], 14336
        $region158: #{_lambda_.1} parent=125 // pred_fallthru
          _
        // Predicated region
        $region159: #{_lambda_.1} parent=125 // pred_check
          %p892 = pneg %p255
        $region160: #{_lambda_.1} parent=125 // pred_check_branch
          %894 = sbr.rel (%p892) target = $region162
        $region161: #{_lambda_.1} parent=125 // pred_region
          %895 = dma.done [#allocation18], 16
        $region162: #{_lambda_.1} parent=125 // pred_fallthru
          _
        // Predicated region
        $region163: #{_lambda_.1} parent=125 // pred_check
          %p896 = pneg %p276
        $region164: #{_lambda_.1} parent=125 // pred_check_branch
          %898 = sbr.rel (%p896) target = $region166
        $region165: #{_lambda_.1} parent=125 // pred_region
          %899 = dma.done [#allocation18], 2048
        $region166: #{_lambda_.1} parent=125 // pred_fallthru
          _
        // Predicated region
        $region167: #{_lambda_.1} parent=125 // pred_check
          %p900 = pneg %p297
        $region168: #{_lambda_.1} parent=125 // pred_check_branch
          %902 = sbr.rel (%p900) target = $region170
        $region169: #{_lambda_.1} parent=125 // pred_region
          %903 = dma.done [#allocation21], 32
        $region170: #{_lambda_.1} parent=125 // pred_fallthru
          _
        // Predicated region
        $region171: #{_lambda_.1} parent=125 // pred_check
          %p904 = pneg %p318
        $region172: #{_lambda_.1} parent=125 // pred_check_branch
          %906 = sbr.rel (%p904) target = $region174
        $region173: #{_lambda_.1} parent=125 // pred_region
          %907 = dma.done [#allocation21], 1024
        $region174: #{_lambda_.1} parent=125 // pred_fallthru
          _
        // Predicated region
        $region175: #{_lambda_.1} parent=125 // pred_check
          %p908 = pneg %p339
        $region176: #{_lambda_.1} parent=125 // pred_check_branch
          %910 = sbr.rel (%p908) target = $region178
        $region177: #{_lambda_.1} parent=125 // pred_region
          %911 = dma.done [#allocation24], 16
        $region178: #{_lambda_.1} parent=125 // pred_fallthru
          _
        // Predicated region
        $region179: #{_lambda_.1} parent=125 // pred_check
          %p912 = pneg %p360
        $region180: #{_lambda_.1} parent=125 // pred_check_branch
          %914 = sbr.rel (%p912) target = $region182
        $region181: #{_lambda_.1} parent=125 // pred_region
          %915 = dma.done [#allocation24], 7168
        $region182: #{_lambda_.1} parent=125 // pred_fallthru
          _
        // Predicated region
        $region183: #{_lambda_.1} parent=125 // pred_check
          %p916 = pneg %p381
        $region184: #{_lambda_.1} parent=125 // pred_check_branch
          %918 = sbr.rel (%p916) target = $region186
        $region185: #{_lambda_.1} parent=125 // pred_region
          %919 = dma.done [#allocation27], 112
        $region186: #{_lambda_.1} parent=125 // pred_fallthru
          _
        // Predicated region
        $region187: #{_lambda_.1} parent=125 // pred_check
          %p920 = pneg %p402
        $region188: #{_lambda_.1} parent=125 // pred_check_branch
          %922 = sbr.rel (%p920) target = $region190
        $region189: #{_lambda_.1} parent=125 // pred_region
          %923 = dma.done [#allocation27], 50176
        $region190: #{_lambda_.1} parent=125 // pred_fallthru
          _
        // Predicated region
        $region191: #{_lambda_.1} parent=125 // pred_check
          %p924 = pneg %p423
        $region192: #{_lambda_.1} parent=125 // pred_check_branch
          %926 = sbr.rel (%p924) target = $region194
        $region193: #{_lambda_.1} parent=125 // pred_region
          %927 = dma.done [#allocation30], 112
        $region194: #{_lambda_.1} parent=125 // pred_fallthru
          _
        %s928 = sand.u32 %s48, 1
        %s929 = sand.u32 %s48, 1
        %s930 = smul.addr %s929, 240
        %s931 = scalar_lea.vmem [#allocation5], %s930
        %p932 = pneg %p61
        %p933 = pneg %p58
        %p934 = scmp.lt.s32.totalorder %s40, 1
        %s935 = scalar_select %p934, %s40, 1
        %s936 = smul.addr %s935, 8
        %s937 = scalar_lea.vmem %s1, %s936
        %p938 = pneg %p87
        %p939 = pneg %p84
        %p940 = pneg %p108
        %p941 = pneg %p105
        %p942 = pneg %p129
        %p943 = pneg %p126
        %p944 = pneg %p150
        %p945 = pneg %p147
        %p946 = pneg %p171
        %p947 = pneg %p168
        %p948 = pneg %p192
        %p949 = pneg %p189
        %p950 = pneg %p213
        %p951 = pneg %p210
        %p952 = pneg %p234
        %p953 = pneg %p231
        %p954 = pneg %p255
        %p955 = pneg %p252
        %p956 = pneg %p276
        %p957 = pneg %p273
        %p958 = pneg %p297
        %p959 = pneg %p294
        %p960 = pneg %p318
        %p961 = pneg %p315
        %p962 = pneg %p339
        %p963 = pneg %p336
        %p964 = pneg %p360
        %p965 = pneg %p357
        %p966 = pneg %p381
        %p967 = pneg %p378
        %p968 = pneg %p402
        %p969 = pneg %p399
        %p970 = pneg %p423
        %p971 = pneg %p420
        %p972 = pneg %p449
        %p973 = pneg %p446
        %p974 = scmp.lt.s32.totalorder %s40, 1
        %s975 = scalar_select %p974, %s40, 1
        %s976 = smul.addr %s975, 2
        %s977 = smul.addr %s976, 8
        %s978 = scalar_lea.vmem %s18, %s977
        %p979 = pneg %p475
        %p980 = pneg %p472
        %p981 = scmp.lt.s32.totalorder %s40, 1
        %s982 = scalar_select %p981, %s40, 1
        %s983 = smul.addr %s982, 7
        %s984 = smul.addr %s983, 8
        %s985 = scalar_lea.vmem %s19, %s984
        %p986 = scmp.lt.s32.totalorder %s40, 1
        %s987 = scalar_select %p986, %s40, 1
        %s988 = smul.addr %s987, 8
        %s989 = scalar_lea.vmem %s1, %s988
        %p990 = scmp.lt.s32.totalorder %s40, 1
        %s991 = scalar_select %p990, %s40, 1
        %s992 = smul.addr %s991, 2
        %s993 = smul.addr %s992, 8
        %s994 = scalar_lea.vmem %s18, %s993
        %p995 = scmp.lt.s32.totalorder %s40, 1
        %s996 = scalar_select %p995, %s40, 1
        %s997 = smul.addr %s996, 7
        %s998 = smul.addr %s997, 8
        %s999 = scalar_lea.vmem %s19, %s998
        %v1001 = vld [vmem:[%s860] sm:$0xff]
        %v1002 = vld [vmem:[%s860 + $0x8] sm:$0xff]
        %v1003 = vld [vmem:[%s860 + $0x10] sm:$0xff]
        %v1004 = vld [vmem:[%s860 + $0x18] sm:$0xff]
        %v1005 = vld [vmem:[%s860 + $0x20] sm:$0xff]
        %v1006 = vld [vmem:[%s860 + $0x28] sm:$0xff]
        %v1007 = vld [vmem:[%s860 + $0x30] sm:$0xff]
        %v1008 = vld [vmem:[%s860 + $0x38] sm:$0xff]
        %v1009 = vld [vmem:[%s860 + $0x40] sm:$0xff]
        %v1010 = vld [vmem:[%s860 + $0x48] sm:$0xff]
        %v1011 = vld [vmem:[%s860 + $0x50] sm:$0xff]
        %v1012 = vld [vmem:[%s860 + $0x58] sm:$0xff]
        %v1013 = vld [vmem:[%s860 + $0x60] sm:$0xff]
        %v1014 = vld [vmem:[%s860 + $0x68] sm:$0xff]
        %v1015 = vld [vmem:[%s860 + $0x70] sm:$0xff]
        %v1016 = vld [vmem:[%s860 + $0x78] sm:$0xff]
        %v1017 = vld [vmem:[%s860 + $0x80] sm:$0xff]
        %v1018 = vld [vmem:[%s860 + $0x88] sm:$0xff]
        %v1019 = vld [vmem:[%s860 + $0x90] sm:$0xff]
        %v1020 = vld [vmem:[%s860 + $0x98] sm:$0xff]
        %v1021 = vld [vmem:[%s860 + $0xa0] sm:$0xff]
        %v1022 = vld [vmem:[%s860 + $0xa8] sm:$0xff]
        %v1023 = vld [vmem:[%s860 + $0xb0] sm:$0xff]
        %v1024 = vld [vmem:[%s860 + $0xb8] sm:$0xff]
        %v1025 = vld [vmem:[%s860 + $0xc0] sm:$0xff]
        %v1026 = vld [vmem:[%s860 + $0xc8] sm:$0xff]
        %v1027 = vld [vmem:[%s860 + $0xd0] sm:$0xff]
        %v1028 = vld [vmem:[%s860 + $0xd8] sm:$0xff]
        %s1029 = scalar_lea.vmem %s860, 8 [#allocation5]
        %v1030 = vld [vmem:[%s1029] sm:$0xff]
        %v1031 = vld [vmem:[%s1029 + $0x8] sm:$0xff]
        %v1032 = vld [vmem:[%s1029 + $0x10] sm:$0xff]
        %v1033 = vld [vmem:[%s1029 + $0x18] sm:$0xff]
        %v1034 = vld [vmem:[%s1029 + $0x20] sm:$0xff]
        %v1035 = vld [vmem:[%s1029 + $0x28] sm:$0xff]
        %v1036 = vld [vmem:[%s1029 + $0x30] sm:$0xff]
        %v1037 = vld [vmem:[%s1029 + $0x38] sm:$0xff]
        %v1038 = vld [vmem:[%s1029 + $0x40] sm:$0xff]
        %v1039 = vld [vmem:[%s1029 + $0x48] sm:$0xff]
        %v1040 = vld [vmem:[%s1029 + $0x50] sm:$0xff]
        %v1041 = vld [vmem:[%s1029 + $0x58] sm:$0xff]
        %v1042 = vld [vmem:[%s1029 + $0x60] sm:$0xff]
        %v1043 = vld [vmem:[%s1029 + $0x68] sm:$0xff]
        %v1044 = vld [vmem:[%s1029 + $0x70] sm:$0xff]
        %v1045 = vld [vmem:[%s1029 + $0x78] sm:$0xff]
        %v1046 = vld [vmem:[%s1029 + $0x80] sm:$0xff]
        %v1047 = vld [vmem:[%s1029 + $0x88] sm:$0xff]
        %v1048 = vld [vmem:[%s1029 + $0x90] sm:$0xff]
        %v1049 = vld [vmem:[%s1029 + $0x98] sm:$0xff]
        %v1050 = vld [vmem:[%s1029 + $0xa0] sm:$0xff]
        %v1051 = vld [vmem:[%s1029 + $0xa8] sm:$0xff]
        %v1052 = vld [vmem:[%s1029 + $0xb0] sm:$0xff]
        %v1053 = vld [vmem:[%s1029 + $0xb8] sm:$0xff]
        %v1054 = vld [vmem:[%s1029 + $0xc0] sm:$0xff]
        %v1055 = vld [vmem:[%s1029 + $0xc8] sm:$0xff]
        %v1056 = vld [vmem:[%s1029 + $0xd0] sm:$0xff]
        %v1057 = vld [vmem:[%s1029 + $0xd8] sm:$0xff]
        %s1058 = scalar_lea.vmem %s860, 16 [#allocation5]
        %v1059 = vld [vmem:[%s1058] sm:$0xff]
        %v1060 = vld [vmem:[%s1058 + $0x8] sm:$0xff]
        %v1061 = vld [vmem:[%s1058 + $0x10] sm:$0xff]
        %v1062 = vld [vmem:[%s1058 + $0x18] sm:$0xff]
        %v1063 = vld [vmem:[%s1058 + $0x20] sm:$0xff]
        %v1064 = vld [vmem:[%s1058 + $0x28] sm:$0xff]
        %v1065 = vld [vmem:[%s1058 + $0x30] sm:$0xff]
        %v1066 = vld [vmem:[%s1058 + $0x38] sm:$0xff]
        %v1067 = vld [vmem:[%s1058 + $0x40] sm:$0xff]
        %v1068 = vld [vmem:[%s1058 + $0x48] sm:$0xff]
        %v1069 = vld [vmem:[%s1058 + $0x50] sm:$0xff]
        %v1070 = vld [vmem:[%s1058 + $0x58] sm:$0xff]
        %v1071 = vld [vmem:[%s1058 + $0x60] sm:$0xff]
        %v1072 = vld [vmem:[%s1058 + $0x68] sm:$0xff]
        %v1073 = vld [vmem:[%s1058 + $0x70] sm:$0xff]
        %v1074 = vld [vmem:[%s1058 + $0x78] sm:$0xff]
        %v1075 = vld [vmem:[%s1058 + $0x80] sm:$0xff]
        %v1076 = vld [vmem:[%s1058 + $0x88] sm:$0xff]
        %v1077 = vld [vmem:[%s1058 + $0x90] sm:$0xff]
        %v1078 = vld [vmem:[%s1058 + $0x98] sm:$0xff]
        %v1079 = vld [vmem:[%s1058 + $0xa0] sm:$0xff]
        %v1080 = vld [vmem:[%s1058 + $0xa8] sm:$0xff]
        %v1081 = vld [vmem:[%s1058 + $0xb0] sm:$0xff]
        %v1082 = vld [vmem:[%s1058 + $0xb8] sm:$0xff]
        %v1083 = vld [vmem:[%s1058 + $0xc0] sm:$0xff]
        %v1084 = vld [vmem:[%s1058 + $0xc8] sm:$0xff]
        %v1085 = vld [vmem:[%s1058 + $0xd0] sm:$0xff]
        %v1086 = vld [vmem:[%s1058 + $0xd8] sm:$0xff]
        %v1087 = vpack.c.bf16 %v1002, %v1001
        %v1088 = vpack.c.bf16 %v1031, %v1030
        %v1089 = vpack.c.bf16 %v1060, %v1059
        %v1090 = vpack.c.bf16 %v1004, %v1003
        %v1091 = vpack.c.bf16 %v1033, %v1032
        %v1092 = vpack.c.bf16 %v1062, %v1061
        %v1093 = vpack.c.bf16 %v1006, %v1005
        %v1094 = vpack.c.bf16 %v1035, %v1034
        %v1095 = vpack.c.bf16 %v1064, %v1063
        %v1096 = vpack.c.bf16 %v1008, %v1007
        %v1097 = vpack.c.bf16 %v1037, %v1036
        %v1098 = vpack.c.bf16 %v1066, %v1065
        %v1099 = vpack.c.bf16 %v1010, %v1009
        %v1100 = vpack.c.bf16 %v1039, %v1038
        %v1101 = vpack.c.bf16 %v1068, %v1067
        %v1102 = vpack.c.bf16 %v1012, %v1011
        %v1103 = vpack.c.bf16 %v1041, %v1040
        %v1104 = vpack.c.bf16 %v1070, %v1069
        %v1105 = vpack.c.bf16 %v1014, %v1013
        %v1106 = vpack.c.bf16 %v1043, %v1042
        %v1107 = vpack.c.bf16 %v1072, %v1071
        %v1108 = vpack.c.bf16 %v1016, %v1015
        %v1109 = vpack.c.bf16 %v1045, %v1044
        %v1110 = vpack.c.bf16 %v1074, %v1073
        %v1111 = vpack.c.bf16 %v1018, %v1017
        %v1112 = vpack.c.bf16 %v1047, %v1046
        %v1113 = vpack.c.bf16 %v1076, %v1075
        %v1114 = vpack.c.bf16 %v1020, %v1019
        %v1115 = vpack.c.bf16 %v1049, %v1048
        %v1116 = vpack.c.bf16 %v1078, %v1077
        %v1117 = vpack.c.bf16 %v1022, %v1021
        %v1118 = vpack.c.bf16 %v1051, %v1050
        %v1119 = vpack.c.bf16 %v1080, %v1079
        %v1120 = vpack.c.bf16 %v1024, %v1023
        %v1121 = vpack.c.bf16 %v1053, %v1052
        %v1122 = vpack.c.bf16 %v1082, %v1081
        %v1123 = vpack.c.bf16 %v1026, %v1025
        %v1124 = vpack.c.bf16 %v1055, %v1054
        %v1125 = vpack.c.bf16 %v1084, %v1083
        %v1126 = vpack.c.bf16 %v1028, %v1027
        %v1127 = vpack.c.bf16 %v1057, %v1056
        %v1128 = vpack.c.bf16 %v1086, %v1085
        %v1129 = vld [vmem:[#allocation6] sm:$0xff]
        %v1130 = vld [vmem:[#allocation6 + $0x8] sm:$0xff]
        %v1131 = vld [vmem:[#allocation6 + $0x10] sm:$0xff]
        %v1132 = vld [vmem:[#allocation6 + $0x18] sm:$0xff]
        %v1133 = vld [vmem:[#allocation6 + $0x20] sm:$0xff]
        %v1134 = vld [vmem:[#allocation6 + $0x28] sm:$0xff]
        %v1135 = vld [vmem:[#allocation6 + $0x30] sm:$0xff]
        %v1136 = vld [vmem:[#allocation6 + $0x38] sm:$0xff]
        %v1137 = vld [vmem:[#allocation6 + $0x40] sm:$0xff]
        %v1138 = vld [vmem:[#allocation6 + $0x48] sm:$0xff]
        %v1139 = vld [vmem:[#allocation6 + $0x50] sm:$0xff]
        %v1140 = vld [vmem:[#allocation6 + $0x58] sm:$0xff]
        %v1141 = vld [vmem:[#allocation6 + $0x60] sm:$0xff]
        %v1142 = vld [vmem:[#allocation6 + $0x68] sm:$0xff]
        %v1143 = vld [vmem:[#allocation6 + $0x70] sm:$0xff]
        %v1144 = vld [vmem:[#allocation6 + $0x78] sm:$0xff]
        %v1145 = vld [vmem:[#allocation6 + $0x80] sm:$0xff]
        %v1146 = vld [vmem:[#allocation6 + $0x88] sm:$0xff]
        %v1147 = vld [vmem:[#allocation6 + $0x90] sm:$0xff]
        %v1148 = vld [vmem:[#allocation6 + $0x98] sm:$0xff]
        %v1149 = vld [vmem:[#allocation6 + $0xa0] sm:$0xff]
        %v1150 = vld [vmem:[#allocation6 + $0xa8] sm:$0xff]
        %v1151 = vld [vmem:[#allocation6 + $0xb0] sm:$0xff]
        %v1152 = vld [vmem:[#allocation6 + $0xb8] sm:$0xff]
        %v1153 = vld [vmem:[#allocation6 + $0xc0] sm:$0xff]
        %v1154 = vld [vmem:[#allocation6 + $0xc8] sm:$0xff]
        %v1155 = vld [vmem:[#allocation6 + $0xd0] sm:$0xff]
        %v1156 = vld [vmem:[#allocation6 + $0xd8] sm:$0xff]
        %v1157 = vld [vmem:[#allocation6 + $0xe0] sm:$0xff]
        %v1158 = vld [vmem:[#allocation6 + $0xe8] sm:$0xff]
        %v1159 = vld [vmem:[#allocation6 + $0xf0] sm:$0xff]
        %v1160 = vld [vmem:[#allocation6 + $0xf8] sm:$0xff]
        %v1161 = vld [vmem:[#allocation6 + $0x100] sm:$0xff]
        %v1162 = vld [vmem:[#allocation6 + $0x108] sm:$0xff]
        %v1163 = vld [vmem:[#allocation6 + $0x110] sm:$0xff]
        %v1164 = vld [vmem:[#allocation6 + $0x118] sm:$0xff]
        %v1165 = vld [vmem:[#allocation6 + $0x120] sm:$0xff]
        %v1166 = vld [vmem:[#allocation6 + $0x128] sm:$0xff]
        %v1167 = vld [vmem:[#allocation6 + $0x130] sm:$0xff]
        %v1168 = vld [vmem:[#allocation6 + $0x138] sm:$0xff]
        %v1169 = vld [vmem:[#allocation6 + $0x140] sm:$0xff]
        %v1170 = vld [vmem:[#allocation6 + $0x148] sm:$0xff]
        %v1171 = vld [vmem:[#allocation6 + $0x150] sm:$0xff]
        %v1172 = vld [vmem:[#allocation6 + $0x158] sm:$0xff]
        %v1173 = vld [vmem:[#allocation6 + $0x160] sm:$0xff]
        %v1174 = vld [vmem:[#allocation6 + $0x168] sm:$0xff]
        %v1175 = vld [vmem:[#allocation6 + $0x170] sm:$0xff]
        %v1176 = vld [vmem:[#allocation6 + $0x178] sm:$0xff]
        %v1177 = vld [vmem:[#allocation8] sm:$0x3]
        %v1179 = vlaneseq
        %v1180 = vshrl.u32 %v1179, 7
        %v1181 = vsub.s32 0, %v1180
        %v1182 = vrot.slane %v1177, %v1181
        %v1183 = vlaneseq
        %v1184 = vshrl.u32 %v1183, 7
        %v1185 = vsub.s32 1, %v1184
        %v1186 = vrot.slane %v1177, %v1185
        %v1237 = vunpack.c.l.b16 %v1129
        %v1238 = vunpack.c.h.b16 %v1129
        %v1239 = vunpack.c.l.b16 %v1130
        %v1240 = vunpack.c.h.b16 %v1130
        %v1241 = vunpack.c.l.b16 %v1131
        %v1242 = vunpack.c.h.b16 %v1131
        %v1243 = vunpack.c.l.b16 %v1132
        %v1244 = vunpack.c.h.b16 %v1132
        %v1245 = vunpack.c.l.b16 %v1133
        %v1246 = vunpack.c.h.b16 %v1133
        %v1247 = vunpack.c.l.b16 %v1134
        %v1248 = vunpack.c.h.b16 %v1134
        %v1249 = vunpack.c.l.b16 %v1135
        %v1250 = vunpack.c.h.b16 %v1135
        %v1251 = vunpack.c.l.b16 %v1136
        %v1252 = vunpack.c.h.b16 %v1136
        %v1253 = vunpack.c.l.b16 %v1137
        %v1254 = vunpack.c.h.b16 %v1137
        %v1255 = vunpack.c.l.b16 %v1138
        %v1256 = vunpack.c.h.b16 %v1138
        %v1257 = vunpack.c.l.b16 %v1139
        %v1258 = vunpack.c.h.b16 %v1139
        %v1259 = vunpack.c.l.b16 %v1140
        %v1260 = vunpack.c.h.b16 %v1140
        %v1261 = vunpack.c.l.b16 %v1141
        %v1262 = vunpack.c.h.b16 %v1141
        %v1263 = vunpack.c.l.b16 %v1142
        %v1264 = vunpack.c.h.b16 %v1142
        %v1265 = vunpack.c.l.b16 %v1143
        %v1266 = vunpack.c.h.b16 %v1143
        %v1267 = vunpack.c.l.b16 %v1144
        %v1268 = vunpack.c.h.b16 %v1144
        %v1269 = vunpack.c.l.b16 %v1145
        %v1270 = vunpack.c.h.b16 %v1145
        %v1271 = vunpack.c.l.b16 %v1146
        %v1272 = vunpack.c.h.b16 %v1146
        %v1273 = vunpack.c.l.b16 %v1147
        %v1274 = vunpack.c.h.b16 %v1147
        %v1275 = vunpack.c.l.b16 %v1148
        %v1276 = vunpack.c.h.b16 %v1148
        %v1277 = vunpack.c.l.b16 %v1149
        %v1278 = vunpack.c.h.b16 %v1149
        %v1279 = vunpack.c.l.b16 %v1150
        %v1280 = vunpack.c.h.b16 %v1150
        %v1281 = vunpack.c.l.b16 %v1151
        %v1282 = vunpack.c.h.b16 %v1151
        %v1283 = vunpack.c.l.b16 %v1152
        %v1284 = vunpack.c.h.b16 %v1152
        %v1285 = vunpack.c.l.b16 %v1153
        %v1286 = vunpack.c.h.b16 %v1153
        %v1287 = vunpack.c.l.b16 %v1154
        %v1288 = vunpack.c.h.b16 %v1154
        %v1289 = vunpack.c.l.b16 %v1155
        %v1290 = vunpack.c.h.b16 %v1155
        %v1291 = vunpack.c.l.b16 %v1156
        %v1292 = vunpack.c.h.b16 %v1156
        %v1293 = vunpack.c.l.b16 %v1157
        %v1294 = vunpack.c.h.b16 %v1157
        %v1295 = vunpack.c.l.b16 %v1158
        %v1296 = vunpack.c.h.b16 %v1158
        %v1297 = vunpack.c.l.b16 %v1159
        %v1298 = vunpack.c.h.b16 %v1159
        %v1299 = vunpack.c.l.b16 %v1160
        %v1300 = vunpack.c.h.b16 %v1160
        %v1301 = vunpack.c.l.b16 %v1161
        %v1302 = vunpack.c.h.b16 %v1161
        %v1303 = vunpack.c.l.b16 %v1162
        %v1304 = vunpack.c.h.b16 %v1162
        %v1305 = vunpack.c.l.b16 %v1163
        %v1306 = vunpack.c.h.b16 %v1163
        %v1307 = vunpack.c.l.b16 %v1164
        %v1308 = vunpack.c.h.b16 %v1164
        %v1309 = vunpack.c.l.b16 %v1165
        %v1310 = vunpack.c.h.b16 %v1165
        %v1311 = vunpack.c.l.b16 %v1166
        %v1312 = vunpack.c.h.b16 %v1166
        %v1313 = vunpack.c.l.b16 %v1167
        %v1314 = vunpack.c.h.b16 %v1167
        %v1315 = vunpack.c.l.b16 %v1168
        %v1316 = vunpack.c.h.b16 %v1168
        %v1317 = vunpack.c.l.b16 %v1169
        %v1318 = vunpack.c.h.b16 %v1169
        %v1319 = vunpack.c.l.b16 %v1170
        %v1320 = vunpack.c.h.b16 %v1170
        %v1321 = vunpack.c.l.b16 %v1171
        %v1322 = vunpack.c.h.b16 %v1171
        %v1323 = vunpack.c.l.b16 %v1172
        %v1324 = vunpack.c.h.b16 %v1172
        %v1325 = vunpack.c.l.b16 %v1173
        %v1326 = vunpack.c.h.b16 %v1173
        %v1327 = vunpack.c.l.b16 %v1174
        %v1328 = vunpack.c.h.b16 %v1174
        %v1329 = vunpack.c.l.b16 %v1175
        %v1330 = vunpack.c.h.b16 %v1175
        %v1331 = vunpack.c.l.b16 %v1176
        %v1332 = vunpack.c.h.b16 %v1176
        %v1333 = vpack.c.b16 %v1239, %v1237
        %v1334 = vpack.c.b16 %v1240, %v1238
        %v1335 = vpack.c.b16 %v1243, %v1241
        %v1336 = vpack.c.b16 %v1244, %v1242
        %v1337 = vpack.c.b16 %v1247, %v1245
        %v1338 = vpack.c.b16 %v1248, %v1246
        %v1339 = vpack.c.b16 %v1251, %v1249
        %v1340 = vpack.c.b16 %v1252, %v1250
        %v1341 = vpack.c.b16 %v1255, %v1253
        %v1342 = vpack.c.b16 %v1256, %v1254
        %v1343 = vpack.c.b16 %v1259, %v1257
        %v1344 = vpack.c.b16 %v1260, %v1258
        %v1345 = vpack.c.b16 %v1263, %v1261
        %v1346 = vpack.c.b16 %v1264, %v1262
        %v1347 = vpack.c.b16 %v1267, %v1265
        %v1348 = vpack.c.b16 %v1268, %v1266
        %v1349 = vpack.c.b16 %v1271, %v1269
        %v1350 = vpack.c.b16 %v1272, %v1270
        %v1351 = vpack.c.b16 %v1275, %v1273
        %v1352 = vpack.c.b16 %v1276, %v1274
        %v1353 = vpack.c.b16 %v1279, %v1277
        %v1354 = vpack.c.b16 %v1280, %v1278
        %v1355 = vpack.c.b16 %v1283, %v1281
        %v1356 = vpack.c.b16 %v1284, %v1282
        %v1357 = vpack.c.b16 %v1287, %v1285
        %v1358 = vpack.c.b16 %v1288, %v1286
        %v1359 = vpack.c.b16 %v1291, %v1289
        %v1360 = vpack.c.b16 %v1292, %v1290
        %v1361 = vpack.c.b16 %v1295, %v1293
        %v1362 = vpack.c.b16 %v1296, %v1294
        %v1363 = vpack.c.b16 %v1299, %v1297
        %v1364 = vpack.c.b16 %v1300, %v1298
        %v1365 = vpack.c.b16 %v1303, %v1301
        %v1366 = vpack.c.b16 %v1304, %v1302
        %v1367 = vpack.c.b16 %v1307, %v1305
        %v1368 = vpack.c.b16 %v1308, %v1306
        %v1369 = vpack.c.b16 %v1311, %v1309
        %v1370 = vpack.c.b16 %v1312, %v1310
        %v1371 = vpack.c.b16 %v1315, %v1313
        %v1372 = vpack.c.b16 %v1316, %v1314
        %v1373 = vpack.c.b16 %v1319, %v1317
        %v1374 = vpack.c.b16 %v1320, %v1318
        %v1375 = vpack.c.b16 %v1323, %v1321
        %v1376 = vpack.c.b16 %v1324, %v1322
        %v1377 = vpack.c.b16 %v1327, %v1325
        %v1378 = vpack.c.b16 %v1328, %v1326
        %v1379 = vpack.c.b16 %v1331, %v1329
        %v1380 = vpack.c.b16 %v1332, %v1330
        %1429 = vmatprep.subr.bf16.mxu0 %v1334
        %1430 = vmatpush1.bf16.msra.mxu0 %v1333
        %1431 = vmatprep.subr.bf16.mxu0 %v1336
        %1432 = vmatpush1.bf16.msra.mxu0 %v1335
        %1433 = vmatprep.subr.bf16.mxu0 %v1338
        %1434 = vmatpush1.bf16.msra.mxu0 %v1337
        %1435 = vmatprep.subr.bf16.mxu0 %v1340
        %1436 = vmatpush1.bf16.msra.mxu0 %v1339
        %1437 = vmatprep.subr.bf16.mxu0 %v1342
        %1438 = vmatpush1.bf16.msra.mxu0 %v1341
        %1439 = vmatprep.subr.bf16.mxu0 %v1344
        %1440 = vmatpush1.bf16.msra.mxu0 %v1343
        %1441 = vmatprep.subr.bf16.mxu0 %v1346
        %1442 = vmatpush1.bf16.msra.mxu0 %v1345
        %1443 = vmatprep.subr.bf16.mxu0 %v1348
        %1444 = vmatpush1.bf16.msra.mxu0 %v1347
        %1445 = vmatprep.subr.bf16.mxu0 %v1350
        %1446 = vmatpush1.bf16.msra.mxu0 %v1349
        %1447 = vmatprep.subr.bf16.mxu0 %v1352
        %1448 = vmatpush1.bf16.msra.mxu0 %v1351
        %1449 = vmatprep.subr.bf16.mxu0 %v1354
        %1450 = vmatpush1.bf16.msra.mxu0 %v1353
        %1451 = vmatprep.subr.bf16.mxu0 %v1356
        %1452 = vmatpush1.bf16.msra.mxu0 %v1355
        %1453 = vmatprep.subr.bf16.mxu0 %v1358
        %1454 = vmatpush1.bf16.msra.mxu0 %v1357
        %1455 = vmatprep.subr.bf16.mxu0 %v1360
        %1456 = vmatpush1.bf16.msra.mxu0 %v1359
        %1457 = vmatprep.subr.bf16.mxu0 %v1362
        %1458 = vmatpush1.bf16.msra.mxu0 %v1361
        %1459 = vmatprep.subr.bf16.mxu0 %v1364
        %1460 = vmatpush1.bf16.msra.mxu0 %v1363
        %1461 = vmatprep.mubr.bf16.mxu0 %v1088
        %1462 = vmatmul.mubr.bf16.gmra.mrb[0].mxu0 %v1087
        %v1463 = vpop.f32.mrb[0].mxu0
        %v1464 = vadd.f32 %v1182, %v1463
        %v1465 = vpop.f32.mrb[0].mxu0
        %v1466 = vadd.f32 %v1186, %v1465
        %v1467 = vpop.f32.mrb[0].mxu0
        %v1468 = vadd.f32 %v1182, %v1467
        %v1469 = vpop.f32.mrb[0].mxu0
        %v1470 = vadd.f32 %v1186, %v1469
        %1471 = vmatprep.mubr.bf16.mxu0 %v1091
        %1472 = vmatmul.mubr.bf16.gmra.mrb[0].mxu0 %v1090
        %v1473 = vpop.f32.mrb[0].mxu0
        %v1474 = vadd.f32 %v1182, %v1473
        %v1475 = vpop.f32.mrb[0].mxu0
        %v1476 = vadd.f32 %v1186, %v1475
        %v1477 = vpop.f32.mrb[0].mxu0
        %v1478 = vadd.f32 %v1182, %v1477
        %v1479 = vpop.f32.mrb[0].mxu0
        %v1480 = vadd.f32 %v1186, %v1479
        %1481 = vmatprep.mubr.bf16.mxu0 %v1094
        %1482 = vmatmul.mubr.bf16.gmra.mrb[0].mxu0 %v1093
        %v1483 = vpop.f32.mrb[0].mxu0
        %v1484 = vadd.f32 %v1182, %v1483
        %v1485 = vpop.f32.mrb[0].mxu0
        %v1486 = vadd.f32 %v1186, %v1485
        %v1487 = vpop.f32.mrb[0].mxu0
        %v1488 = vadd.f32 %v1182, %v1487
        %v1489 = vpop.f32.mrb[0].mxu0
        %v1490 = vadd.f32 %v1186, %v1489
        %1491 = vmatprep.mubr.bf16.mxu0 %v1097
        %1492 = vmatmul.mubr.bf16.gmra.mrb[0].mxu0 %v1096
        %v1493 = vpop.f32.mrb[0].mxu0
        %v1494 = vadd.f32 %v1182, %v1493
        %v1495 = vpop.f32.mrb[0].mxu0
        %v1496 = vadd.f32 %v1186, %v1495
        %v1497 = vpop.f32.mrb[0].mxu0
        %v1498 = vadd.f32 %v1182, %v1497
        %v1499 = vpop.f32.mrb[0].mxu0
        %v1500 = vadd.f32 %v1186, %v1499
        %1501 = vmatprep.mubr.bf16.mxu0 %v1100
        %1502 = vmatmul.mubr.bf16.gmra.mrb[0].mxu0 %v1099
        %v1503 = vpop.f32.mrb[0].mxu0
        %v1504 = vadd.f32 %v1182, %v1503
        %v1505 = vpop.f32.mrb[0].mxu0
        %v1506 = vadd.f32 %v1186, %v1505
        %v1507 = vpop.f32.mrb[0].mxu0
        %v1508 = vadd.f32 %v1182, %v1507
        %v1509 = vpop.f32.mrb[0].mxu0
        %v1510 = vadd.f32 %v1186, %v1509
        %1511 = vmatprep.mubr.bf16.mxu0 %v1103
        %1512 = vmatmul.mubr.bf16.gmra.mrb[0].mxu0 %v1102
        %v1513 = vpop.f32.mrb[0].mxu0
        %v1514 = vadd.f32 %v1182, %v1513
        %v1515 = vpop.f32.mrb[0].mxu0
        %v1516 = vadd.f32 %v1186, %v1515
        %v1517 = vpop.f32.mrb[0].mxu0
        %v1518 = vadd.f32 %v1182, %v1517
        %v1519 = vpop.f32.mrb[0].mxu0
        %v1520 = vadd.f32 %v1186, %v1519
        %1521 = vmatprep.mubr.bf16.mxu0 %v1106
        %1522 = vmatmul.mubr.bf16.gmra.mrb[0].mxu0 %v1105
        %v1523 = vpop.f32.mrb[0].mxu0
        %v1524 = vadd.f32 %v1182, %v1523
        %v1525 = vpop.f32.mrb[0].mxu0
        %v1526 = vadd.f32 %v1186, %v1525
        %v1527 = vpop.f32.mrb[0].mxu0
        %v1528 = vadd.f32 %v1182, %v1527
        %v1529 = vpop.f32.mrb[0].mxu0
        %v1530 = vadd.f32 %v1186, %v1529
        %1531 = vmatprep.mubr.bf16.mxu0 %v1109
        %1532 = vmatmul.mubr.bf16.gmra.mrb[0].mxu0 %v1108
        %v1533 = vpop.f32.mrb[0].mxu0
        %v1534 = vadd.f32 %v1182, %v1533
        %v1535 = vpop.f32.mrb[0].mxu0
        %v1536 = vadd.f32 %v1186, %v1535
        %v1537 = vpop.f32.mrb[0].mxu0
        %v1538 = vadd.f32 %v1182, %v1537
        %v1539 = vpop.f32.mrb[0].mxu0
        %v1540 = vadd.f32 %v1186, %v1539
        %1541 = vmatprep.mubr.bf16.mxu0 %v1112
        %1542 = vmatmul.mubr.bf16.gmra.mrb[0].mxu0 %v1111
        %v1543 = vpop.f32.mrb[0].mxu0
        %v1544 = vadd.f32 %v1182, %v1543
        %v1545 = vpop.f32.mrb[0].mxu0
        %v1546 = vadd.f32 %v1186, %v1545
        %v1547 = vpop.f32.mrb[0].mxu0
        %v1548 = vadd.f32 %v1182, %v1547
        %v1549 = vpop.f32.mrb[0].mxu0
        %v1550 = vadd.f32 %v1186, %v1549
        %1551 = vmatprep.mubr.bf16.mxu0 %v1115
        %1552 = vmatmul.mubr.bf16.gmra.mrb[0].mxu0 %v1114
        %v1553 = vpop.f32.mrb[0].mxu0
        %v1554 = vadd.f32 %v1182, %v1553
        %v1555 = vpop.f32.mrb[0].mxu0
        %v1556 = vadd.f32 %v1186, %v1555
        %v1557 = vpop.f32.mrb[0].mxu0
        %v1558 = vadd.f32 %v1182, %v1557
        %v1559 = vpop.f32.mrb[0].mxu0
        %v1560 = vadd.f32 %v1186, %v1559
        %1561 = vmatprep.mubr.bf16.mxu0 %v1118
        %1562 = vmatmul.mubr.bf16.gmra.mrb[0].mxu0 %v1117
        %v1563 = vpop.f32.mrb[0].mxu0
        %v1564 = vadd.f32 %v1182, %v1563
        %v1565 = vpop.f32.mrb[0].mxu0
        %v1566 = vadd.f32 %v1186, %v1565
        %v1567 = vpop.f32.mrb[0].mxu0
        %v1568 = vadd.f32 %v1182, %v1567
        %v1569 = vpop.f32.mrb[0].mxu0
        %v1570 = vadd.f32 %v1186, %v1569
        %1571 = vmatprep.mubr.bf16.mxu0 %v1121
        %1572 = vmatmul.mubr.bf16.gmra.mrb[0].mxu0 %v1120
        %v1573 = vpop.f32.mrb[0].mxu0
        %v1574 = vadd.f32 %v1182, %v1573
        %v1575 = vpop.f32.mrb[0].mxu0
        %v1576 = vadd.f32 %v1186, %v1575
        %v1577 = vpop.f32.mrb[0].mxu0
        %v1578 = vadd.f32 %v1182, %v1577
        %v1579 = vpop.f32.mrb[0].mxu0
        %v1580 = vadd.f32 %v1186, %v1579
        %1581 = vmatprep.mubr.bf16.mxu0 %v1124
        %1582 = vmatmul.mubr.bf16.gmra.mrb[0].mxu0 %v1123
        %v1583 = vpop.f32.mrb[0].mxu0
        %v1584 = vadd.f32 %v1182, %v1583
        %v1585 = vpop.f32.mrb[0].mxu0
        %v1586 = vadd.f32 %v1186, %v1585
        %v1587 = vpop.f32.mrb[0].mxu0
        %v1588 = vadd.f32 %v1182, %v1587
        %v1589 = vpop.f32.mrb[0].mxu0
        %v1590 = vadd.f32 %v1186, %v1589
        %1591 = vmatprep.mubr.bf16.mxu0 %v1127
        %1592 = vmatmul.mubr.bf16.gmra.mrb[0].mxu0 %v1126
        %v1593 = vpop.f32.mrb[0].mxu0
        %v1594 = vadd.f32 %v1182, %v1593
        %v1595 = vpop.f32.mrb[0].mxu0
        %v1596 = vadd.f32 %v1186, %v1595
        %v1597 = vpop.f32.mrb[0].mxu0
        %v1598 = vadd.f32 %v1182, %v1597
        %v1599 = vpop.f32.mrb[0].mxu0
        %v1600 = vadd.f32 %v1186, %v1599
        %1601 = vdwg.mxu0
        %1602 = vmatprep.subr.bf16.mxu0 %v1366
        %1603 = vmatpush1.bf16.msra.mxu0 %v1365
        %1604 = vmatprep.subr.bf16.mxu0 %v1368
        %1605 = vmatpush1.bf16.msra.mxu0 %v1367
        %1606 = vmatprep.subr.bf16.mxu0 %v1370
        %1607 = vmatpush1.bf16.msra.mxu0 %v1369
        %1608 = vmatprep.subr.bf16.mxu0 %v1372
        %1609 = vmatpush1.bf16.msra.mxu0 %v1371
        %1610 = vmatprep.subr.bf16.mxu0 %v1374
        %1611 = vmatpush1.bf16.msra.mxu0 %v1373
        %1612 = vmatprep.subr.bf16.mxu0 %v1376
        %1613 = vmatpush1.bf16.msra.mxu0 %v1375
        %1614 = vmatprep.subr.bf16.mxu0 %v1378
        %1615 = vmatpush1.bf16.msra.mxu0 %v1377
        %1616 = vmatprep.subr.bf16.mxu0 %v1380
        %1617 = vmatpush1.bf16.msra.mxu0 %v1379
        %1618 = vmatprep.subr.bf16.mxu0 0
        %1619 = vmatpush1.bf16.msra.mxu0 0
        %1620 = vmatprep.subr.bf16.mxu0 0
        %1621 = vmatpush1.bf16.msra.mxu0 0
        %1622 = vmatprep.subr.bf16.mxu0 0
        %1623 = vmatpush1.bf16.msra.mxu0 0
        %1624 = vmatprep.subr.bf16.mxu0 0
        %1625 = vmatpush1.bf16.msra.mxu0 0
        %1626 = vmatprep.subr.bf16.mxu0 0
        %1627 = vmatpush1.bf16.msra.mxu0 0
        %1628 = vmatprep.subr.bf16.mxu0 0
        %1629 = vmatpush1.bf16.msra.mxu0 0
        %1630 = vmatprep.subr.bf16.mxu0 0
        %1631 = vmatpush1.bf16.msra.mxu0 0
        %1632 = vmatprep.subr.bf16.mxu0 0
        %1633 = vmatpush1.bf16.msra.mxu0 0
        %1634 = vmatprep.mubr.bf16.mxu0 0
        %1635 = vmatmul.mubr.bf16.gmra.mrb[0].mxu0 %v1089
        %v1636 = vpop.f32.mrb[0].mxu0
        %v1637 = vadd.f32 %v1464, %v1636
        %v1638 = vpop.f32.mrb[0].mxu0
        %v1639 = vadd.f32 %v1466, %v1638
        %v1640 = vpop.f32.mrb[0].mxu0
        %v1641 = vadd.f32 %v1468, %v1640
        %v1642 = vpop.f32.mrb[0].mxu0
        %v1643 = vadd.f32 %v1470, %v1642
        %1644 = vmatprep.mubr.bf16.mxu0 0
        %1645 = vmatmul.mubr.bf16.gmra.mrb[0].mxu0 %v1092
        %v1646 = vpop.f32.mrb[0].mxu0
        %v1647 = vadd.f32 %v1474, %v1646
        %v1648 = vpop.f32.mrb[0].mxu0
        %v1649 = vadd.f32 %v1476, %v1648
        %v1650 = vpop.f32.mrb[0].mxu0
        %v1651 = vadd.f32 %v1478, %v1650
        %v1652 = vpop.f32.mrb[0].mxu0
        %v1653 = vadd.f32 %v1480, %v1652
        %1654 = vmatprep.mubr.bf16.mxu0 0
        %1655 = vmatmul.mubr.bf16.gmra.mrb[0].mxu0 %v1095
        %v1656 = vpop.f32.mrb[0].mxu0
        %v1657 = vadd.f32 %v1484, %v1656
        %v1658 = vpop.f32.mrb[0].mxu0
        %v1659 = vadd.f32 %v1486, %v1658
        %v1660 = vpop.f32.mrb[0].mxu0
        %v1661 = vadd.f32 %v1488, %v1660
        %v1662 = vpop.f32.mrb[0].mxu0
        %v1663 = vadd.f32 %v1490, %v1662
        %1664 = vmatprep.mubr.bf16.mxu0 0
        %1665 = vmatmul.mubr.bf16.gmra.mrb[0].mxu0 %v1098
        %v1666 = vpop.f32.mrb[0].mxu0
        %v1667 = vadd.f32 %v1494, %v1666
        %v1668 = vpop.f32.mrb[0].mxu0
        %v1669 = vadd.f32 %v1496, %v1668
        %v1670 = vpop.f32.mrb[0].mxu0
        %v1671 = vadd.f32 %v1498, %v1670
        %v1672 = vpop.f32.mrb[0].mxu0
        %v1673 = vadd.f32 %v1500, %v1672
        %1674 = vmatprep.mubr.bf16.mxu0 0
        %1675 = vmatmul.mubr.bf16.gmra.mrb[0].mxu0 %v1101
        %v1676 = vpop.f32.mrb[0].mxu0
        %v1677 = vadd.f32 %v1504, %v1676
        %v1678 = vpop.f32.mrb[0].mxu0
        %v1679 = vadd.f32 %v1506, %v1678
        %v1680 = vpop.f32.mrb[0].mxu0
        %v1681 = vadd.f32 %v1508, %v1680
        %v1682 = vpop.f32.mrb[0].mxu0
        %v1683 = vadd.f32 %v1510, %v1682
        %1684 = vmatprep.mubr.bf16.mxu0 0
        %1685 = vmatmul.mubr.bf16.gmra.mrb[0].mxu0 %v1104
        %v1686 = vpop.f32.mrb[0].mxu0
        %v1687 = vadd.f32 %v1514, %v1686
        %v1688 = vpop.f32.mrb[0].mxu0
        %v1689 = vadd.f32 %v1516, %v1688
        %v1690 = vpop.f32.mrb[0].mxu0
        %v1691 = vadd.f32 %v1518, %v1690
        %v1692 = vpop.f32.mrb[0].mxu0
        %v1693 = vadd.f32 %v1520, %v1692
        %1694 = vmatprep.mubr.bf16.mxu0 0
        %1695 = vmatmul.mubr.bf16.gmra.mrb[0].mxu0 %v1107
        %v1696 = vpop.f32.mrb[0].mxu0
        %v1697 = vadd.f32 %v1524, %v1696
        %v1698 = vpop.f32.mrb[0].mxu0
        %v1699 = vadd.f32 %v1526, %v1698
        %v1700 = vpop.f32.mrb[0].mxu0
        %v1701 = vadd.f32 %v1528, %v1700
        %v1702 = vpop.f32.mrb[0].mxu0
        %v1703 = vadd.f32 %v1530, %v1702
        %1704 = vmatprep.mubr.bf16.mxu0 0
        %1705 = vmatmul.mubr.bf16.gmra.mrb[0].mxu0 %v1110
        %v1706 = vpop.f32.mrb[0].mxu0
        %v1707 = vadd.f32 %v1534, %v1706
        %v1708 = vpop.f32.mrb[0].mxu0
        %v1709 = vadd.f32 %v1536, %v1708
        %v1710 = vpop.f32.mrb[0].mxu0
        %v1711 = vadd.f32 %v1538, %v1710
        %v1712 = vpop.f32.mrb[0].mxu0
        %v1713 = vadd.f32 %v1540, %v1712
        %1714 = vmatprep.mubr.bf16.mxu0 0
        %1715 = vmatmul.mubr.bf16.gmra.mrb[0].mxu0 %v1113
        %v1716 = vpop.f32.mrb[0].mxu0
        %v1717 = vadd.f32 %v1544, %v1716
        %v1718 = vpop.f32.mrb[0].mxu0
        %v1719 = vadd.f32 %v1546, %v1718
        %v1720 = vpop.f32.mrb[0].mxu0
        %v1721 = vadd.f32 %v1548, %v1720
        %v1722 = vpop.f32.mrb[0].mxu0
        %v1723 = vadd.f32 %v1550, %v1722
        %1724 = vmatprep.mubr.bf16.mxu0 0
        %1725 = vmatmul.mubr.bf16.gmra.mrb[0].mxu0 %v1116
        %v1726 = vpop.f32.mrb[0].mxu0
        %v1727 = vadd.f32 %v1554, %v1726
        %v1728 = vpop.f32.mrb[0].mxu0
        %v1729 = vadd.f32 %v1556, %v1728
        %v1730 = vpop.f32.mrb[0].mxu0
        %v1731 = vadd.f32 %v1558, %v1730
        %v1732 = vpop.f32.mrb[0].mxu0
        %v1733 = vadd.f32 %v1560, %v1732
        %1734 = vmatprep.mubr.bf16.mxu0 0
        %1735 = vmatmul.mubr.bf16.gmra.mrb[0].mxu0 %v1119
        %v1736 = vpop.f32.mrb[0].mxu0
        %v1737 = vadd.f32 %v1564, %v1736
        %v1738 = vpop.f32.mrb[0].mxu0
        %v1739 = vadd.f32 %v1566, %v1738
        %v1740 = vpop.f32.mrb[0].mxu0
        %v1741 = vadd.f32 %v1568, %v1740
        %v1742 = vpop.f32.mrb[0].mxu0
        %v1743 = vadd.f32 %v1570, %v1742
        %1744 = vmatprep.mubr.bf16.mxu0 0
        %1745 = vmatmul.mubr.bf16.gmra.mrb[0].mxu0 %v1122
        %v1746 = vpop.f32.mrb[0].mxu0
        %v1747 = vadd.f32 %v1574, %v1746
        %v1748 = vpop.f32.mrb[0].mxu0
        %v1749 = vadd.f32 %v1576, %v1748
        %v1750 = vpop.f32.mrb[0].mxu0
        %v1751 = vadd.f32 %v1578, %v1750
        %v1752 = vpop.f32.mrb[0].mxu0
        %v1753 = vadd.f32 %v1580, %v1752
        %1754 = vmatprep.mubr.bf16.mxu0 0
        %1755 = vmatmul.mubr.bf16.gmra.mrb[0].mxu0 %v1125
        %v1756 = vpop.f32.mrb[0].mxu0
        %v1757 = vadd.f32 %v1584, %v1756
        %v1758 = vpop.f32.mrb[0].mxu0
        %v1759 = vadd.f32 %v1586, %v1758
        %v1760 = vpop.f32.mrb[0].mxu0
        %v1761 = vadd.f32 %v1588, %v1760
        %v1762 = vpop.f32.mrb[0].mxu0
        %v1763 = vadd.f32 %v1590, %v1762
        %1764 = vmatprep.mubr.bf16.mxu0 0
        %1765 = vmatmul.mubr.bf16.gmra.mrb[0].mxu0 %v1128
        %v1766 = vpop.f32.mrb[0].mxu0
        %v1767 = vadd.f32 %v1594, %v1766
        %v1768 = vpop.f32.mrb[0].mxu0
        %v1769 = vadd.f32 %v1596, %v1768
        %v1770 = vpop.f32.mrb[0].mxu0
        %v1771 = vadd.f32 %v1598, %v1770
        %v1772 = vpop.f32.mrb[0].mxu0
        %v1773 = vadd.f32 %v1600, %v1772
        %1774 = vdwg.mxu0
        %v1775 = vmax.f32 %v1637, 0.0
        %v1776 = vmax.f32 %v1639, 0.0
        %v1777 = vmax.f32 %v1641, 0.0
        %v1778 = vmax.f32 %v1643, 0.0
        %v1779 = vmax.f32 %v1647, 0.0
        %v1780 = vmax.f32 %v1649, 0.0
        %v1781 = vmax.f32 %v1651, 0.0
        %v1782 = vmax.f32 %v1653, 0.0
        %v1783 = vmax.f32 %v1657, 0.0
        %v1784 = vmax.f32 %v1659, 0.0
        %v1785 = vmax.f32 %v1661, 0.0
        %v1786 = vmax.f32 %v1663, 0.0
        %v1787 = vmax.f32 %v1667, 0.0
        %v1788 = vmax.f32 %v1669, 0.0
        %v1789 = vmax.f32 %v1671, 0.0
        %v1790 = vmax.f32 %v1673, 0.0
        %v1791 = vmax.f32 %v1677, 0.0
        %v1792 = vmax.f32 %v1679, 0.0
        %v1793 = vmax.f32 %v1681, 0.0
        %v1794 = vmax.f32 %v1683, 0.0
        %v1795 = vmax.f32 %v1687, 0.0
        %v1796 = vmax.f32 %v1689, 0.0
        %v1797 = vmax.f32 %v1691, 0.0
        %v1798 = vmax.f32 %v1693, 0.0
        %v1799 = vmax.f32 %v1697, 0.0
        %v1800 = vmax.f32 %v1699, 0.0
        %v1801 = vmax.f32 %v1701, 0.0
        %v1802 = vmax.f32 %v1703, 0.0
        %v1803 = vmax.f32 %v1707, 0.0
        %v1804 = vmax.f32 %v1709, 0.0
        %v1805 = vmax.f32 %v1711, 0.0
        %v1806 = vmax.f32 %v1713, 0.0
        %v1807 = vmax.f32 %v1717, 0.0
        %v1808 = vmax.f32 %v1719, 0.0
        %v1809 = vmax.f32 %v1721, 0.0
        %v1810 = vmax.f32 %v1723, 0.0
        %v1811 = vmax.f32 %v1727, 0.0
        %v1812 = vmax.f32 %v1729, 0.0
        %v1813 = vmax.f32 %v1731, 0.0
        %v1814 = vmax.f32 %v1733, 0.0
        %v1815 = vmax.f32 %v1737, 0.0
        %v1816 = vmax.f32 %v1739, 0.0
        %v1817 = vmax.f32 %v1741, 0.0
        %v1818 = vmax.f32 %v1743, 0.0
        %v1819 = vmax.f32 %v1747, 0.0
        %v1820 = vmax.f32 %v1749, 0.0
        %v1821 = vmax.f32 %v1751, 0.0
        %v1822 = vmax.f32 %v1753, 0.0
        %v1823 = vmax.f32 %v1757, 0.0
        %v1824 = vmax.f32 %v1759, 0.0
        %v1825 = vmax.f32 %v1761, 0.0
        %v1826 = vmax.f32 %v1763, 0.0
        %v1827 = vmax.f32 %v1767, 0.0
        %v1828 = vmax.f32 %v1769, 0.0
        %v1829 = vmax.f32 %v1771, 0.0
        %v1830 = vmax.f32 %v1773, 0.0
        %s1831 = scalar_lea.vmem [#allocation2], 16
        %1832 = vst [vmem:[%s1831] sm:$0xff] %v1775
        %1833 = vst [vmem:[%s1831 + $0x8] sm:$0xff] %v1776
        %1834 = vst [vmem:[%s1831 + $0x10] sm:$0xff] %v1777
        %1835 = vst [vmem:[%s1831 + $0x18] sm:$0xff] %v1778
        %1836 = vst [vmem:[%s1831 + $0x20] sm:$0xff] %v1779
        %1837 = vst [vmem:[%s1831 + $0x28] sm:$0xff] %v1780
        %1838 = vst [vmem:[%s1831 + $0x30] sm:$0xff] %v1781
        %1839 = vst [vmem:[%s1831 + $0x38] sm:$0xff] %v1782
        %1840 = vst [vmem:[%s1831 + $0x40] sm:$0xff] %v1783
        %1841 = vst [vmem:[%s1831 + $0x48] sm:$0xff] %v1784
        %1842 = vst [vmem:[%s1831 + $0x50] sm:$0xff] %v1785
        %1843 = vst [vmem:[%s1831 + $0x58] sm:$0xff] %v1786
        %1844 = vst [vmem:[%s1831 + $0x60] sm:$0xff] %v1787
        %1845 = vst [vmem:[%s1831 + $0x68] sm:$0xff] %v1788
        %1846 = vst [vmem:[%s1831 + $0x70] sm:$0xff] %v1789
        %1847 = vst [vmem:[%s1831 + $0x78] sm:$0xff] %v1790
        %1848 = vst [vmem:[%s1831 + $0x80] sm:$0xff] %v1791
        %1849 = vst [vmem:[%s1831 + $0x88] sm:$0xff] %v1792
        %1850 = vst [vmem:[%s1831 + $0x90] sm:$0xff] %v1793
        %1851 = vst [vmem:[%s1831 + $0x98] sm:$0xff] %v1794
        %1852 = vst [vmem:[%s1831 + $0xa0] sm:$0xff] %v1795
        %1853 = vst [vmem:[%s1831 + $0xa8] sm:$0xff] %v1796
        %1854 = vst [vmem:[%s1831 + $0xb0] sm:$0xff] %v1797
        %1855 = vst [vmem:[%s1831 + $0xb8] sm:$0xff] %v1798
        %1856 = vst [vmem:[%s1831 + $0xc0] sm:$0xff] %v1799
        %1857 = vst [vmem:[%s1831 + $0xc8] sm:$0xff] %v1800
        %1858 = vst [vmem:[%s1831 + $0xd0] sm:$0xff] %v1801
        %1859 = vst [vmem:[%s1831 + $0xd8] sm:$0xff] %v1802
        %1860 = vst [vmem:[%s1831 + $0xe0] sm:$0xff] %v1803
        %1861 = vst [vmem:[%s1831 + $0xe8] sm:$0xff] %v1804
        %1862 = vst [vmem:[%s1831 + $0xf0] sm:$0xff] %v1805
        %1863 = vst [vmem:[%s1831 + $0xf8] sm:$0xff] %v1806
        %1864 = vst [vmem:[%s1831 + $0x100] sm:$0xff] %v1807
        %1865 = vst [vmem:[%s1831 + $0x108] sm:$0xff] %v1808
        %1866 = vst [vmem:[%s1831 + $0x110] sm:$0xff] %v1809
        %1867 = vst [vmem:[%s1831 + $0x118] sm:$0xff] %v1810
        %1868 = vst [vmem:[%s1831 + $0x120] sm:$0xff] %v1811
        %1869 = vst [vmem:[%s1831 + $0x128] sm:$0xff] %v1812
        %1870 = vst [vmem:[%s1831 + $0x130] sm:$0xff] %v1813
        %1871 = vst [vmem:[%s1831 + $0x138] sm:$0xff] %v1814
        %1872 = vst [vmem:[%s1831 + $0x140] sm:$0xff] %v1815
        %1873 = vst [vmem:[%s1831 + $0x148] sm:$0xff] %v1816
        %1874 = vst [vmem:[%s1831 + $0x150] sm:$0xff] %v1817
        %1875 = vst [vmem:[%s1831 + $0x158] sm:$0xff] %v1818
        %1876 = vst [vmem:[%s1831 + $0x160] sm:$0xff] %v1819
        %1877 = vst [vmem:[%s1831 + $0x168] sm:$0xff] %v1820
        %1878 = vst [vmem:[%s1831 + $0x170] sm:$0xff] %v1821
        %1879 = vst [vmem:[%s1831 + $0x178] sm:$0xff] %v1822
        %1880 = vst [vmem:[%s1831 + $0x180] sm:$0xff] %v1823
        %1881 = vst [vmem:[%s1831 + $0x188] sm:$0xff] %v1824
        %1882 = vst [vmem:[%s1831 + $0x190] sm:$0xff] %v1825
        %1883 = vst [vmem:[%s1831 + $0x198] sm:$0xff] %v1826
        %1884 = vst [vmem:[%s1831 + $0x1a0] sm:$0xff] %v1827
        %1885 = vst [vmem:[%s1831 + $0x1a8] sm:$0xff] %v1828
        %1886 = vst [vmem:[%s1831 + $0x1b0] sm:$0xff] %v1829
        %1887 = vst [vmem:[%s1831 + $0x1b8] sm:$0xff] %v1830
        %1888 = vst [vmem:[#allocation2] sm:$0xff] %v1775
        %1889 = vst [vmem:[#allocation2 + $0x8] sm:$0xff] %v1776
        %s1890 = scalar_lea.vmem [#allocation2], 464
        %1891 = vst [vmem:[%s1890] sm:$0xff] %v1829
        %1892 = vst [vmem:[%s1890 + $0x8] sm:$0xff] %v1830
        %v1893 = vld [vmem:[#allocation2] sm:$0xff]
        %v1894 = vld [vmem:[#allocation2 + $0x8] sm:$0xff]
        %v1895 = vld [vmem:[#allocation2 + $0x20] sm:$0xff]
        %v1896 = vld [vmem:[#allocation2 + $0x28] sm:$0xff]
        %v1897 = vld [vmem:[#allocation2 + $0x40] sm:$0xff]
        %v1898 = vld [vmem:[#allocation2 + $0x48] sm:$0xff]
        %v1899 = vld [vmem:[#allocation2 + $0x60] sm:$0xff]
        %v1900 = vld [vmem:[#allocation2 + $0x68] sm:$0xff]
        %v1901 = vld [vmem:[#allocation2 + $0x80] sm:$0xff]
        %v1902 = vld [vmem:[#allocation2 + $0x88] sm:$0xff]
        %v1903 = vld [vmem:[#allocation2 + $0xa0] sm:$0xff]
        %v1904 = vld [vmem:[#allocation2 + $0xa8] sm:$0xff]
        %v1905 = vld [vmem:[#allocation2 + $0xc0] sm:$0xff]
        %v1906 = vld [vmem:[#allocation2 + $0xc8] sm:$0xff]
        %v1907 = vld [vmem:[#allocation2 + $0xe0] sm:$0xff]
        %v1908 = vld [vmem:[#allocation2 + $0xe8] sm:$0xff]
        %v1909 = vld [vmem:[#allocation2 + $0x100] sm:$0xff]
        %v1910 = vld [vmem:[#allocation2 + $0x108] sm:$0xff]
        %v1911 = vld [vmem:[#allocation2 + $0x120] sm:$0xff]
        %v1912 = vld [vmem:[#allocation2 + $0x128] sm:$0xff]
        %v1913 = vld [vmem:[#allocation2 + $0x140] sm:$0xff]
        %v1914 = vld [vmem:[#allocation2 + $0x148] sm:$0xff]
        %v1915 = vld [vmem:[#allocation2 + $0x160] sm:$0xff]
        %v1916 = vld [vmem:[#allocation2 + $0x168] sm:$0xff]
        %v1917 = vld [vmem:[#allocation2 + $0x180] sm:$0xff]
        %v1918 = vld [vmem:[#allocation2 + $0x188] sm:$0xff]
        %v1919 = vld [vmem:[#allocation2 + $0x1a0] sm:$0xff]
        %v1920 = vld [vmem:[#allocation2 + $0x1a8] sm:$0xff]
        %v1921 = vld [vmem:[%s1831] sm:$0xff]
        %v1922 = vld [vmem:[%s1831 + $0x8] sm:$0xff]
        %v1923 = vld [vmem:[%s1831 + $0x20] sm:$0xff]
        %v1924 = vld [vmem:[%s1831 + $0x28] sm:$0xff]
        %v1925 = vld [vmem:[%s1831 + $0x40] sm:$0xff]
        %v1926 = vld [vmem:[%s1831 + $0x48] sm:$0xff]
        %v1927 = vld [vmem:[%s1831 + $0x60] sm:$0xff]
        %v1928 = vld [vmem:[%s1831 + $0x68] sm:$0xff]
        %v1929 = vld [vmem:[%s1831 + $0x80] sm:$0xff]
        %v1930 = vld [vmem:[%s1831 + $0x88] sm:$0xff]
        %v1931 = vld [vmem:[%s1831 + $0xa0] sm:$0xff]
        %v1932 = vld [vmem:[%s1831 + $0xa8] sm:$0xff]
        %v1933 = vld [vmem:[%s1831 + $0xc0] sm:$0xff]
        %v1934 = vld [vmem:[%s1831 + $0xc8] sm:$0xff]
        %v1935 = vld [vmem:[%s1831 + $0xe0] sm:$0xff]
        %v1936 = vld [vmem:[%s1831 + $0xe8] sm:$0xff]
        %v1937 = vld [vmem:[%s1831 + $0x100] sm:$0xff]
        %v1938 = vld [vmem:[%s1831 + $0x108] sm:$0xff]
        %v1939 = vld [vmem:[%s1831 + $0x120] sm:$0xff]
        %v1940 = vld [vmem:[%s1831 + $0x128] sm:$0xff]
        %v1941 = vld [vmem:[%s1831 + $0x140] sm:$0xff]
        %v1942 = vld [vmem:[%s1831 + $0x148] sm:$0xff]
        %v1943 = vld [vmem:[%s1831 + $0x160] sm:$0xff]
        %v1944 = vld [vmem:[%s1831 + $0x168] sm:$0xff]
        %v1945 = vld [vmem:[%s1831 + $0x180] sm:$0xff]
        %v1946 = vld [vmem:[%s1831 + $0x188] sm:$0xff]
        %v1947 = vld [vmem:[%s1831 + $0x1a0] sm:$0xff]
        %v1948 = vld [vmem:[%s1831 + $0x1a8] sm:$0xff]
        %s1949 = scalar_lea.vmem [#allocation2], 32
        %v1950 = vld [vmem:[%s1949] sm:$0xff]
        %v1951 = vld [vmem:[%s1949 + $0x8] sm:$0xff]
        %v1952 = vld [vmem:[%s1949 + $0x20] sm:$0xff]
        %v1953 = vld [vmem:[%s1949 + $0x28] sm:$0xff]
        %v1954 = vld [vmem:[%s1949 + $0x40] sm:$0xff]
        %v1955 = vld [vmem:[%s1949 + $0x48] sm:$0xff]
        %v1956 = vld [vmem:[%s1949 + $0x60] sm:$0xff]
        %v1957 = vld [vmem:[%s1949 + $0x68] sm:$0xff]
        %v1958 = vld [vmem:[%s1949 + $0x80] sm:$0xff]
        %v1959 = vld [vmem:[%s1949 + $0x88] sm:$0xff]
        %v1960 = vld [vmem:[%s1949 + $0xa0] sm:$0xff]
        %v1961 = vld [vmem:[%s1949 + $0xa8] sm:$0xff]
        %v1962 = vld [vmem:[%s1949 + $0xc0] sm:$0xff]
        %v1963 = vld [vmem:[%s1949 + $0xc8] sm:$0xff]
        %v1964 = vld [vmem:[%s1949 + $0xe0] sm:$0xff]
        %v1965 = vld [vmem:[%s1949 + $0xe8] sm:$0xff]
        %v1966 = vld [vmem:[%s1949 + $0x100] sm:$0xff]
        %v1967 = vld [vmem:[%s1949 + $0x108] sm:$0xff]
        %v1968 = vld [vmem:[%s1949 + $0x120] sm:$0xff]
        %v1969 = vld [vmem:[%s1949 + $0x128] sm:$0xff]
        %v1970 = vld [vmem:[%s1949 + $0x140] sm:$0xff]
        %v1971 = vld [vmem:[%s1949 + $0x148] sm:$0xff]
        %v1972 = vld [vmem:[%s1949 + $0x160] sm:$0xff]
        %v1973 = vld [vmem:[%s1949 + $0x168] sm:$0xff]
        %v1974 = vld [vmem:[%s1949 + $0x180] sm:$0xff]
        %v1975 = vld [vmem:[%s1949 + $0x188] sm:$0xff]
        %v1976 = vld [vmem:[%s1949 + $0x1a0] sm:$0xff]
        %v1977 = vld [vmem:[%s1949 + $0x1a8] sm:$0xff]
        %v1978 = vpack.c.bf16 %v1895, %v1893
        %v1979 = vpack.c.bf16 %v1896, %v1894
        %v1980 = vpack.c.bf16 %v1923, %v1921
        %v1981 = vpack.c.bf16 %v1924, %v1922
        %v1982 = vpack.c.bf16 %v1952, %v1950
        %v1983 = vpack.c.bf16 %v1953, %v1951
        %v1984 = vpack.c.bf16 %v1899, %v1897
        %v1985 = vpack.c.bf16 %v1900, %v1898
        %v1986 = vpack.c.bf16 %v1927, %v1925
        %v1987 = vpack.c.bf16 %v1928, %v1926
        %v1988 = vpack.c.bf16 %v1956, %v1954
        %v1989 = vpack.c.bf16 %v1957, %v1955
        %v1990 = vpack.c.bf16 %v1903, %v1901
        %v1991 = vpack.c.bf16 %v1904, %v1902
        %v1992 = vpack.c.bf16 %v1931, %v1929
        %v1993 = vpack.c.bf16 %v1932, %v1930
        %v1994 = vpack.c.bf16 %v1960, %v1958
        %v1995 = vpack.c.bf16 %v1961, %v1959
        %v1996 = vpack.c.bf16 %v1907, %v1905
        %v1997 = vpack.c.bf16 %v1908, %v1906
        %v1998 = vpack.c.bf16 %v1935, %v1933
        %v1999 = vpack.c.bf16 %v1936, %v1934
        %v2000 = vpack.c.bf16 %v1964, %v1962
        %v2001 = vpack.c.bf16 %v1965, %v1963
        %v2002 = vpack.c.bf16 %v1911, %v1909
        %v2003 = vpack.c.bf16 %v1912, %v1910
        %v2004 = vpack.c.bf16 %v1939, %v1937
        %v2005 = vpack.c.bf16 %v1940, %v1938
        %v2006 = vpack.c.bf16 %v1968, %v1966
        %v2007 = vpack.c.bf16 %v1969, %v1967
        %v2008 = vpack.c.bf16 %v1915, %v1913
        %v2009 = vpack.c.bf16 %v1916, %v1914
        %v2010 = vpack.c.bf16 %v1943, %v1941
        %v2011 = vpack.c.bf16 %v1944, %v1942
        %v2012 = vpack.c.bf16 %v1972, %v1970
        %v2013 = vpack.c.bf16 %v1973, %v1971
        %v2014 = vpack.c.bf16 %v1919, %v1917
        %v2015 = vpack.c.bf16 %v1920, %v1918
        %v2016 = vpack.c.bf16 %v1947, %v1945
        %v2017 = vpack.c.bf16 %v1948, %v1946
        %v2018 = vpack.c.bf16 %v1976, %v1974
        %v2019 = vpack.c.bf16 %v1977, %v1975
        %v2020 = vld [vmem:[#allocation10] sm:$0xff]
        %v2021 = vld [vmem:[#allocation10 + $0x8] sm:$0xff]
        %v2022 = vld [vmem:[#allocation10 + $0x10] sm:$0xff]
        %v2023 = vld [vmem:[#allocation10 + $0x18] sm:$0xff]
        %v2024 = vld [vmem:[#allocation10 + $0x20] sm:$0xff]
        %v2025 = vld [vmem:[#allocation10 + $0x28] sm:$0xff]
        %v2026 = vld [vmem:[#allocation10 + $0x30] sm:$0xff]
        %v2027 = vld [vmem:[#allocation10 + $0x38] sm:$0xff]
        %v2028 = vld [vmem:[#allocation10 + $0x40] sm:$0xff]
        %v2029 = vld [vmem:[#allocation10 + $0x48] sm:$0xff]
        %v2030 = vld [vmem:[#allocation10 + $0x50] sm:$0xff]
        %v2031 = vld [vmem:[#allocation10 + $0x58] sm:$0xff]
        %v2032 = vld [vmem:[#allocation10 + $0x60] sm:$0xff]
        %v2033 = vld [vmem:[#allocation10 + $0x68] sm:$0xff]
        %v2034 = vld [vmem:[#allocation10 + $0x70] sm:$0xff]
        %v2035 = vld [vmem:[#allocation10 + $0x78] sm:$0xff]
        %v2036 = vld [vmem:[#allocation10 + $0x80] sm:$0xff]
        %v2037 = vld [vmem:[#allocation10 + $0x88] sm:$0xff]
        %v2038 = vld [vmem:[#allocation10 + $0x90] sm:$0xff]
        %v2039 = vld [vmem:[#allocation10 + $0x98] sm:$0xff]
        %v2040 = vld [vmem:[#allocation10 + $0xa0] sm:$0xff]
        %v2041 = vld [vmem:[#allocation10 + $0xa8] sm:$0xff]
        %v2042 = vld [vmem:[#allocation10 + $0xb0] sm:$0xff]
        %v2043 = vld [vmem:[#allocation10 + $0xb8] sm:$0xff]
        %v2044 = vld [vmem:[#allocation10 + $0xc0] sm:$0xff]
        %v2045 = vld [vmem:[#allocation10 + $0xc8] sm:$0xff]
        %v2046 = vld [vmem:[#allocation10 + $0xd0] sm:$0xff]
        %v2047 = vld [vmem:[#allocation10 + $0xd8] sm:$0xff]
        %v2048 = vld [vmem:[#allocation10 + $0xe0] sm:$0xff]
        %v2049 = vld [vmem:[#allocation10 + $0xe8] sm:$0xff]
        %v2050 = vld [vmem:[#allocation10 + $0xf0] sm:$0xff]
        %v2051 = vld [vmem:[#allocation10 + $0xf8] sm:$0xff]
        %v2052 = vld [vmem:[#allocation10 + $0x100] sm:$0xff]
        %v2053 = vld [vmem:[#allocation10 + $0x108] sm:$0xff]
        %v2054 = vld [vmem:[#allocation10 + $0x110] sm:$0xff]
        %v2055 = vld [vmem:[#allocation10 + $0x118] sm:$0xff]
        %v2056 = vld [vmem:[#allocation10 + $0x120] sm:$0xff]
        %v2057 = vld [vmem:[#allocation10 + $0x128] sm:$0xff]
        %v2058 = vld [vmem:[#allocation10 + $0x130] sm:$0xff]
        %v2059 = vld [vmem:[#allocation10 + $0x138] sm:$0xff]
        %v2060 = vld [vmem:[#allocation10 + $0x140] sm:$0xff]
        %v2061 = vld [vmem:[#allocation10 + $0x148] sm:$0xff]
        %v2062 = vld [vmem:[#allocation10 + $0x150] sm:$0xff]
        %v2063 = vld [vmem:[#allocation10 + $0x158] sm:$0xff]
        %v2064 = vld [vmem:[#allocation10 + $0x160] sm:$0xff]
        %v2065 = vld [vmem:[#allocation10 + $0x168] sm:$0xff]
        %v2066 = vld [vmem:[#allocation10 + $0x170] sm:$0xff]
        %v2067 = vld [vmem:[#allocation10 + $0x178] sm:$0xff]
        %v2068 = vld [vmem:[#allocation10 + $0x180] sm:$0xff]
        %v2069 = vld [vmem:[#allocation10 + $0x188] sm:$0xff]
        %v2070 = vld [vmem:[#allocation10 + $0x190] sm:$0xff]
        %v2071 = vld [vmem:[#allocation10 + $0x198] sm:$0xff]
        %v2072 = vld [vmem:[#allocation10 + $0x1a0] sm:$0xff]
        %v2073 = vld [vmem:[#allocation10 + $0x1a8] sm:$0xff]
        %v2074 = vld [vmem:[#allocation10 + $0x1b0] sm:$0xff]
        %v2075 = vld [vmem:[#allocation10 + $0x1b8] sm:$0xff]
        %v2076 = vld [vmem:[#allocation10 + $0x1c0] sm:$0xff]
        %v2077 = vld [vmem:[#allocation10 + $0x1c8] sm:$0xff]
        %v2078 = vld [vmem:[#allocation10 + $0x1d0] sm:$0xff]
        %v2079 = vld [vmem:[#allocation10 + $0x1d8] sm:$0xff]
        %v2080 = vld [vmem:[#allocation10 + $0x1e0] sm:$0xff]
        %v2081 = vld [vmem:[#allocation10 + $0x1e8] sm:$0xff]
        %v2082 = vld [vmem:[#allocation10 + $0x1f0] sm:$0xff]
        %v2083 = vld [vmem:[#allocation10 + $0x1f8] sm:$0xff]
        %v2084 = vld [vmem:[#allocation10 + $0x200] sm:$0xff]
        %v2085 = vld [vmem:[#allocation10 + $0x208] sm:$0xff]
        %v2086 = vld [vmem:[#allocation10 + $0x210] sm:$0xff]
        %v2087 = vld [vmem:[#allocation10 + $0x218] sm:$0xff]
        %v2088 = vld [vmem:[#allocation10 + $0x220] sm:$0xff]
        %v2089 = vld [vmem:[#allocation10 + $0x228] sm:$0xff]
        %v2090 = vld [vmem:[#allocation10 + $0x230] sm:$0xff]
        %v2091 = vld [vmem:[#allocation10 + $0x238] sm:$0xff]
        %v2092 = vld [vmem:[#allocation10 + $0x240] sm:$0xff]
        %v2093 = vld [vmem:[#allocation10 + $0x248] sm:$0xff]
        %v2094 = vld [vmem:[#allocation10 + $0x250] sm:$0xff]
        %v2095 = vld [vmem:[#allocation10 + $0x258] sm:$0xff]
        %v2096 = vld [vmem:[#allocation10 + $0x260] sm:$0xff]
        %v2097 = vld [vmem:[#allocation10 + $0x268] sm:$0xff]
        %v2098 = vld [vmem:[#allocation10 + $0x270] sm:$0xff]
        %v2099 = vld [vmem:[#allocation10 + $0x278] sm:$0xff]
        %v2100 = vld [vmem:[#allocation10 + $0x280] sm:$0xff]
        %v2101 = vld [vmem:[#allocation10 + $0x288] sm:$0xff]
        %v2102 = vld [vmem:[#allocation10 + $0x290] sm:$0xff]
        %v2103 = vld [vmem:[#allocation10 + $0x298] sm:$0xff]
        %v2104 = vld [vmem:[#allocation10 + $0x2a0] sm:$0xff]
        %v2105 = vld [vmem:[#allocation10 + $0x2a8] sm:$0xff]
        %v2106 = vld [vmem:[#allocation10 + $0x2b0] sm:$0xff]
        %v2107 = vld [vmem:[#allocation10 + $0x2b8] sm:$0xff]
        %v2108 = vld [vmem:[#allocation10 + $0x2c0] sm:$0xff]
        %v2109 = vld [vmem:[#allocation10 + $0x2c8] sm:$0xff]
        %v2110 = vld [vmem:[#allocation10 + $0x2d0] sm:$0xff]
        %v2111 = vld [vmem:[#allocation10 + $0x2d8] sm:$0xff]
        %v2112 = vld [vmem:[#allocation10 + $0x2e0] sm:$0xff]
        %v2113 = vld [vmem:[#allocation10 + $0x2e8] sm:$0xff]
        %v2114 = vld [vmem:[#allocation10 + $0x2f0] sm:$0xff]
        %v2115 = vld [vmem:[#allocation10 + $0x2f8] sm:$0xff]
        %v2116 = vld [vmem:[#allocation11] sm:$0x3]
        %v2118 = vlaneseq
        %v2119 = vshrl.u32 %v2118, 7
        %v2120 = vsub.s32 0, %v2119
        %v2121 = vrot.slane %v2116, %v2120
        %v2122 = vlaneseq
        %v2123 = vshrl.u32 %v2122, 7
        %v2124 = vsub.s32 1, %v2123
        %v2125 = vrot.slane %v2116, %v2124
        %v2224 = vunpack.c.l.b16 %v2020
        %v2225 = vunpack.c.h.b16 %v2020
        %v2226 = vunpack.c.l.b16 %v2021
        %v2227 = vunpack.c.h.b16 %v2021
        %v2228 = vunpack.c.l.b16 %v2022
        %v2229 = vunpack.c.h.b16 %v2022
        %v2230 = vunpack.c.l.b16 %v2023
        %v2231 = vunpack.c.h.b16 %v2023
        %v2232 = vunpack.c.l.b16 %v2024
        %v2233 = vunpack.c.h.b16 %v2024
        %v2234 = vunpack.c.l.b16 %v2025
        %v2235 = vunpack.c.h.b16 %v2025
        %v2236 = vunpack.c.l.b16 %v2026
        %v2237 = vunpack.c.h.b16 %v2026
        %v2238 = vunpack.c.l.b16 %v2027
        %v2239 = vunpack.c.h.b16 %v2027
        %v2240 = vunpack.c.l.b16 %v2028
        %v2241 = vunpack.c.h.b16 %v2028
        %v2242 = vunpack.c.l.b16 %v2029
        %v2243 = vunpack.c.h.b16 %v2029
        %v2244 = vunpack.c.l.b16 %v2030
        %v2245 = vunpack.c.h.b16 %v2030
        %v2246 = vunpack.c.l.b16 %v2031
        %v2247 = vunpack.c.h.b16 %v2031
        %v2248 = vunpack.c.l.b16 %v2032
        %v2249 = vunpack.c.h.b16 %v2032
        %v2250 = vunpack.c.l.b16 %v2033
        %v2251 = vunpack.c.h.b16 %v2033
        %v2252 = vunpack.c.l.b16 %v2034
        %v2253 = vunpack.c.h.b16 %v2034
        %v2254 = vunpack.c.l.b16 %v2035
        %v2255 = vunpack.c.h.b16 %v2035
        %v2256 = vunpack.c.l.b16 %v2036
        %v2257 = vunpack.c.h.b16 %v2036
        %v2258 = vunpack.c.l.b16 %v2037
        %v2259 = vunpack.c.h.b16 %v2037
        %v2260 = vunpack.c.l.b16 %v2038
        %v2261 = vunpack.c.h.b16 %v2038
        %v2262 = vunpack.c.l.b16 %v2039
        %v2263 = vunpack.c.h.b16 %v2039
        %v2264 = vunpack.c.l.b16 %v2040
        %v2265 = vunpack.c.h.b16 %v2040
        %v2266 = vunpack.c.l.b16 %v2041
        %v2267 = vunpack.c.h.b16 %v2041
        %v2268 = vunpack.c.l.b16 %v2042
        %v2269 = vunpack.c.h.b16 %v2042
        %v2270 = vunpack.c.l.b16 %v2043
        %v2271 = vunpack.c.h.b16 %v2043
        %v2272 = vunpack.c.l.b16 %v2044
        %v2273 = vunpack.c.h.b16 %v2044
        %v2274 = vunpack.c.l.b16 %v2045
        %v2275 = vunpack.c.h.b16 %v2045
        %v2276 = vunpack.c.l.b16 %v2046
        %v2277 = vunpack.c.h.b16 %v2046
        %v2278 = vunpack.c.l.b16 %v2047
        %v2279 = vunpack.c.h.b16 %v2047
        %v2280 = vunpack.c.l.b16 %v2048
        %v2281 = vunpack.c.h.b16 %v2048
        %v2282 = vunpack.c.l.b16 %v2049
        %v2283 = vunpack.c.h.b16 %v2049
        %v2284 = vunpack.c.l.b16 %v2050
        %v2285 = vunpack.c.h.b16 %v2050
        %v2286 = vunpack.c.l.b16 %v2051
        %v2287 = vunpack.c.h.b16 %v2051
        %v2288 = vunpack.c.l.b16 %v2052
        %v2289 = vunpack.c.h.b16 %v2052
        %v2290 = vunpack.c.l.b16 %v2053
        %v2291 = vunpack.c.h.b16 %v2053
        %v2292 = vunpack.c.l.b16 %v2054
        %v2293 = vunpack.c.h.b16 %v2054
        %v2294 = vunpack.c.l.b16 %v2055
        %v2295 = vunpack.c.h.b16 %v2055
        %v2296 = vunpack.c.l.b16 %v2056
        %v2297 = vunpack.c.h.b16 %v2056
        %v2298 = vunpack.c.l.b16 %v2057
        %v2299 = vunpack.c.h.b16 %v2057
        %v2300 = vunpack.c.l.b16 %v2058
        %v2301 = vunpack.c.h.b16 %v2058
        %v2302 = vunpack.c.l.b16 %v2059
        %v2303 = vunpack.c.h.b16 %v2059
        %v2304 = vunpack.c.l.b16 %v2060
        %v2305 = vunpack.c.h.b16 %v2060
        %v2306 = vunpack.c.l.b16 %v2061
        %v2307 = vunpack.c.h.b16 %v2061
        %v2308 = vunpack.c.l.b16 %v2062
        %v2309 = vunpack.c.h.b16 %v2062
        %v2310 = vunpack.c.l.b16 %v2063
        %v2311 = vunpack.c.h.b16 %v2063
        %v2312 = vunpack.c.l.b16 %v2064
        %v2313 = vunpack.c.h.b16 %v2064
        %v2314 = vunpack.c.l.b16 %v2065
        %v2315 = vunpack.c.h.b16 %v2065
        %v2316 = vunpack.c.l.b16 %v2066
        %v2317 = vunpack.c.h.b16 %v2066
        %v2318 = vunpack.c.l.b16 %v2067
        %v2319 = vunpack.c.h.b16 %v2067
        %v2320 = vunpack.c.l.b16 %v2068
        %v2321 = vunpack.c.h.b16 %v2068
        %v2322 = vunpack.c.l.b16 %v2069
        %v2323 = vunpack.c.h.b16 %v2069
        %v2324 = vunpack.c.l.b16 %v2070
        %v2325 = vunpack.c.h.b16 %v2070
        %v2326 = vunpack.c.l.b16 %v2071
        %v2327 = vunpack.c.h.b16 %v2071
        %v2328 = vunpack.c.l.b16 %v2072
        %v2329 = vunpack.c.h.b16 %v2072
        %v2330 = vunpack.c.l.b16 %v2073
        %v2331 = vunpack.c.h.b16 %v2073
        %v2332 = vunpack.c.l.b16 %v2074
        %v2333 = vunpack.c.h.b16 %v2074
        %v2334 = vunpack.c.l.b16 %v2075
        %v2335 = vunpack.c.h.b16 %v2075
        %v2336 = vunpack.c.l.b16 %v2076
        %v2337 = vunpack.c.h.b16 %v2076
        %v2338 = vunpack.c.l.b16 %v2077
        %v2339 = vunpack.c.h.b16 %v2077
        %v2340 = vunpack.c.l.b16 %v2078
        %v2341 = vunpack.c.h.b16 %v2078
        %v2342 = vunpack.c.l.b16 %v2079
        %v2343 = vunpack.c.h.b16 %v2079
        %v2344 = vunpack.c.l.b16 %v2080
        %v2345 = vunpack.c.h.b16 %v2080
        %v2346 = vunpack.c.l.b16 %v2081
        %v2347 = vunpack.c.h.b16 %v2081
        %v2348 = vunpack.c.l.b16 %v2082
        %v2349 = vunpack.c.h.b16 %v2082
        %v2350 = vunpack.c.l.b16 %v2083
        %v2351 = vunpack.c.h.b16 %v2083
        %v2352 = vunpack.c.l.b16 %v2084
        %v2353 = vunpack.c.h.b16 %v2084
        %v2354 = vunpack.c.l.b16 %v2085
        %v2355 = vunpack.c.h.b16 %v2085
        %v2356 = vunpack.c.l.b16 %v2086
        %v2357 = vunpack.c.h.b16 %v2086
        %v2358 = vunpack.c.l.b16 %v2087
        %v2359 = vunpack.c.h.b16 %v2087
        %v2360 = vunpack.c.l.b16 %v2088
        %v2361 = vunpack.c.h.b16 %v2088
        %v2362 = vunpack.c.l.b16 %v2089
        %v2363 = vunpack.c.h.b16 %v2089
        %v2364 = vunpack.c.l.b16 %v2090
        %v2365 = vunpack.c.h.b16 %v2090
        %v2366 = vunpack.c.l.b16 %v2091
        %v2367 = vunpack.c.h.b16 %v2091
        %v2368 = vunpack.c.l.b16 %v2092
        %v2369 = vunpack.c.h.b16 %v2092
        %v2370 = vunpack.c.l.b16 %v2093
        %v2371 = vunpack.c.h.b16 %v2093
        %v2372 = vunpack.c.l.b16 %v2094
        %v2373 = vunpack.c.h.b16 %v2094
        %v2374 = vunpack.c.l.b16 %v2095
        %v2375 = vunpack.c.h.b16 %v2095
        %v2376 = vunpack.c.l.b16 %v2096
        %v2377 = vunpack.c.h.b16 %v2096
        %v2378 = vunpack.c.l.b16 %v2097
        %v2379 = vunpack.c.h.b16 %v2097
        %v2380 = vunpack.c.l.b16 %v2098
        %v2381 = vunpack.c.h.b16 %v2098
        %v2382 = vunpack.c.l.b16 %v2099
        %v2383 = vunpack.c.h.b16 %v2099
        %v2384 = vunpack.c.l.b16 %v2100
        %v2385 = vunpack.c.h.b16 %v2100
        %v2386 = vunpack.c.l.b16 %v2101
        %v2387 = vunpack.c.h.b16 %v2101
        %v2388 = vunpack.c.l.b16 %v2102
        %v2389 = vunpack.c.h.b16 %v2102
        %v2390 = vunpack.c.l.b16 %v2103
        %v2391 = vunpack.c.h.b16 %v2103
        %v2392 = vunpack.c.l.b16 %v2104
        %v2393 = vunpack.c.h.b16 %v2104
        %v2394 = vunpack.c.l.b16 %v2105
        %v2395 = vunpack.c.h.b16 %v2105
        %v2396 = vunpack.c.l.b16 %v2106
        %v2397 = vunpack.c.h.b16 %v2106
        %v2398 = vunpack.c.l.b16 %v2107
        %v2399 = vunpack.c.h.b16 %v2107
        %v2400 = vunpack.c.l.b16 %v2108
        %v2401 = vunpack.c.h.b16 %v2108
        %v2402 = vunpack.c.l.b16 %v2109
        %v2403 = vunpack.c.h.b16 %v2109
        %v2404 = vunpack.c.l.b16 %v2110
        %v2405 = vunpack.c.h.b16 %v2110
        %v2406 = vunpack.c.l.b16 %v2111
        %v2407 = vunpack.c.h.b16 %v2111
        %v2408 = vunpack.c.l.b16 %v2112
        %v2409 = vunpack.c.h.b16 %v2112
        %v2410 = vunpack.c.l.b16 %v2113
        %v2411 = vunpack.c.h.b16 %v2113
        %v2412 = vunpack.c.l.b16 %v2114
        %v2413 = vunpack.c.h.b16 %v2114
        %v2414 = vunpack.c.l.b16 %v2115
        %v2415 = vunpack.c.h.b16 %v2115
        %v2416 = vpack.c.b16 %v2226, %v2224
        %v2417 = vpack.c.b16 %v2227, %v2225
        %v2418 = vpack.c.b16 %v2230, %v2228
        %v2419 = vpack.c.b16 %v2231, %v2229
        %v2420 = vpack.c.b16 %v2234, %v2232
        %v2421 = vpack.c.b16 %v2235, %v2233
        %v2422 = vpack.c.b16 %v2238, %v2236
        %v2423 = vpack.c.b16 %v2239, %v2237
        %v2424 = vpack.c.b16 %v2242, %v2240
        %v2425 = vpack.c.b16 %v2243, %v2241
        %v2426 = vpack.c.b16 %v2246, %v2244
        %v2427 = vpack.c.b16 %v2247, %v2245
        %v2428 = vpack.c.b16 %v2250, %v2248
        %v2429 = vpack.c.b16 %v2251, %v2249
        %v2430 = vpack.c.b16 %v2254, %v2252
        %v2431 = vpack.c.b16 %v2255, %v2253
        %v2432 = vpack.c.b16 %v2258, %v2256
        %v2433 = vpack.c.b16 %v2259, %v2257
        %v2434 = vpack.c.b16 %v2262, %v2260
        %v2435 = vpack.c.b16 %v2263, %v2261
        %v2436 = vpack.c.b16 %v2266, %v2264
        %v2437 = vpack.c.b16 %v2267, %v2265
        %v2438 = vpack.c.b16 %v2270, %v2268
        %v2439 = vpack.c.b16 %v2271, %v2269
        %v2440 = vpack.c.b16 %v2274, %v2272
        %v2441 = vpack.c.b16 %v2275, %v2273
        %v2442 = vpack.c.b16 %v2278, %v2276
        %v2443 = vpack.c.b16 %v2279, %v2277
        %v2444 = vpack.c.b16 %v2282, %v2280
        %v2445 = vpack.c.b16 %v2283, %v2281
        %v2446 = vpack.c.b16 %v2286, %v2284
        %v2447 = vpack.c.b16 %v2287, %v2285
        %v2448 = vpack.c.b16 %v2290, %v2288
        %v2449 = vpack.c.b16 %v2291, %v2289
        %v2450 = vpack.c.b16 %v2294, %v2292
        %v2451 = vpack.c.b16 %v2295, %v2293
        %v2452 = vpack.c.b16 %v2298, %v2296
        %v2453 = vpack.c.b16 %v2299, %v2297
        %v2454 = vpack.c.b16 %v2302, %v2300
        %v2455 = vpack.c.b16 %v2303, %v2301
        %v2456 = vpack.c.b16 %v2306, %v2304
        %v2457 = vpack.c.b16 %v2307, %v2305
        %v2458 = vpack.c.b16 %v2310, %v2308
        %v2459 = vpack.c.b16 %v2311, %v2309
        %v2460 = vpack.c.b16 %v2314, %v2312
        %v2461 = vpack.c.b16 %v2315, %v2313
        %v2462 = vpack.c.b16 %v2318, %v2316
        %v2463 = vpack.c.b16 %v2319, %v2317
        %v2464 = vpack.c.b16 %v2322, %v2320
        %v2465 = vpack.c.b16 %v2323, %v2321
        %v2466 = vpack.c.b16 %v2326, %v2324
        %v2467 = vpack.c.b16 %v2327, %v2325
        %v2468 = vpack.c.b16 %v2330, %v2328
        %v2469 = vpack.c.b16 %v2331, %v2329
        %v2470 = vpack.c.b16 %v2334, %v2332
        %v2471 = vpack.c.b16 %v2335, %v2333
        %v2472 = vpack.c.b16 %v2338, %v2336
        %v2473 = vpack.c.b16 %v2339, %v2337
        %v2474 = vpack.c.b16 %v2342, %v2340
        %v2475 = vpack.c.b16 %v2343, %v2341
        %v2476 = vpack.c.b16 %v2346, %v2344
        %v2477 = vpack.c.b16 %v2347, %v2345
        %v2478 = vpack.c.b16 %v2350, %v2348
        %v2479 = vpack.c.b16 %v2351, %v2349
        %v2480 = vpack.c.b16 %v2354, %v2352
        %v2481 = vpack.c.b16 %v2355, %v2353
        %v2482 = vpack.c.b16 %v2358, %v2356
        %v2483 = vpack.c.b16 %v2359, %v2357
        %v2484 = vpack.c.b16 %v2362, %v2360
        %v2485 = vpack.c.b16 %v2363, %v2361
        %v2486 = vpack.c.b16 %v2366, %v2364
        %v2487 = vpack.c.b16 %v2367, %v2365
        %v2488 = vpack.c.b16 %v2370, %v2368
        %v2489 = vpack.c.b16 %v2371, %v2369
        %v2490 = vpack.c.b16 %v2374, %v2372
        %v2491 = vpack.c.b16 %v2375, %v2373
        %v2492 = vpack.c.b16 %v2378, %v2376
        %v2493 = vpack.c.b16 %v2379, %v2377
        %v2494 = vpack.c.b16 %v2382, %v2380
        %v2495 = vpack.c.b16 %v2383, %v2381
        %v2496 = vpack.c.b16 %v2386, %v2384
        %v2497 = vpack.c.b16 %v2387, %v2385
        %v2498 = vpack.c.b16 %v2390, %v2388
        %v2499 = vpack.c.b16 %v2391, %v2389
        %v2500 = vpack.c.b16 %v2394, %v2392
        %v2501 = vpack.c.b16 %v2395, %v2393
        %v2502 = vpack.c.b16 %v2398, %v2396
        %v2503 = vpack.c.b16 %v2399, %v2397
        %v2504 = vpack.c.b16 %v2402, %v2400
        %v2505 = vpack.c.b16 %v2403, %v2401
        %v2506 = vpack.c.b16 %v2406, %v2404
        %v2507 = vpack.c.b16 %v2407, %v2405
        %v2508 = vpack.c.b16 %v2410, %v2408
        %v2509 = vpack.c.b16 %v2411, %v2409
        %v2510 = vpack.c.b16 %v2414, %v2412
        %v2511 = vpack.c.b16 %v2415, %v2413
        %2608 = vmatprep.subr.bf16.mxu0 %v2417
        %2609 = vmatpush1.bf16.msra.mxu0 %v2416
        %2610 = vmatprep.subr.bf16.mxu0 %v2419
        %2611 = vmatpush1.bf16.msra.mxu0 %v2418
        %2612 = vmatprep.subr.bf16.mxu0 %v2421
        %2613 = vmatpush1.bf16.msra.mxu0 %v2420
        %2614 = vmatprep.subr.bf16.mxu0 %v2423
        %2615 = vmatpush1.bf16.msra.mxu0 %v2422
        %2616 = vmatprep.subr.bf16.mxu0 %v2425
        %2617 = vmatpush1.bf16.msra.mxu0 %v2424
        %2618 = vmatprep.subr.bf16.mxu0 %v2427
        %2619 = vmatpush1.bf16.msra.mxu0 %v2426
        %2620 = vmatprep.subr.bf16.mxu0 %v2429
        %2621 = vmatpush1.bf16.msra.mxu0 %v2428
        %2622 = vmatprep.subr.bf16.mxu0 %v2431
        %2623 = vmatpush1.bf16.msra.mxu0 %v2430
        %2624 = vmatprep.subr.bf16.mxu0 %v2433
        %2625 = vmatpush1.bf16.msra.mxu0 %v2432
        %2626 = vmatprep.subr.bf16.mxu0 %v2435
        %2627 = vmatpush1.bf16.msra.mxu0 %v2434
        %2628 = vmatprep.subr.bf16.mxu0 %v2437
        %2629 = vmatpush1.bf16.msra.mxu0 %v2436
        %2630 = vmatprep.subr.bf16.mxu0 %v2439
        %2631 = vmatpush1.bf16.msra.mxu0 %v2438
        %2632 = vmatprep.subr.bf16.mxu0 %v2441
        %2633 = vmatpush1.bf16.msra.mxu0 %v2440
        %2634 = vmatprep.subr.bf16.mxu0 %v2443
        %2635 = vmatpush1.bf16.msra.mxu0 %v2442
        %2636 = vmatprep.subr.bf16.mxu0 %v2445
        %2637 = vmatpush1.bf16.msra.mxu0 %v2444
        %2638 = vmatprep.subr.bf16.mxu0 %v2447
        %2639 = vmatpush1.bf16.msra.mxu0 %v2446
        %2640 = vmatprep.mubr.bf16.mxu0 %v1979
        %2641 = vmatmul.mubr.bf16.gmra.mrb[0].mxu0 %v1978
        %v2642 = vpop.f32.mrb[0].mxu0
        %v2643 = vadd.f32 %v2121, %v2642
        %v2644 = vpop.f32.mrb[0].mxu0
        %v2645 = vadd.f32 %v2125, %v2644
        %v2646 = vpop.f32.mrb[0].mxu0
        %v2647 = vadd.f32 %v2121, %v2646
        %v2648 = vpop.f32.mrb[0].mxu0
        %v2649 = vadd.f32 %v2125, %v2648
        %2650 = vmatprep.mubr.bf16.mxu0 %v1985
        %2651 = vmatmul.mubr.bf16.gmra.mrb[0].mxu0 %v1984
        %v2652 = vpop.f32.mrb[0].mxu0
        %v2653 = vadd.f32 %v2121, %v2652
        %v2654 = vpop.f32.mrb[0].mxu0
        %v2655 = vadd.f32 %v2125, %v2654
        %v2656 = vpop.f32.mrb[0].mxu0
        %v2657 = vadd.f32 %v2121, %v2656
        %v2658 = vpop.f32.mrb[0].mxu0
        %v2659 = vadd.f32 %v2125, %v2658
        %2660 = vmatprep.mubr.bf16.mxu0 %v1991
        %2661 = vmatmul.mubr.bf16.gmra.mrb[0].mxu0 %v1990
        %v2662 = vpop.f32.mrb[0].mxu0
        %v2663 = vadd.f32 %v2121, %v2662
        %v2664 = vpop.f32.mrb[0].mxu0
        %v2665 = vadd.f32 %v2125, %v2664
        %v2666 = vpop.f32.mrb[0].mxu0
        %v2667 = vadd.f32 %v2121, %v2666
        %v2668 = vpop.f32.mrb[0].mxu0
        %v2669 = vadd.f32 %v2125, %v2668
        %2670 = vmatprep.mubr.bf16.mxu0 %v1997
        %2671 = vmatmul.mubr.bf16.gmra.mrb[0].mxu0 %v1996
        %v2672 = vpop.f32.mrb[0].mxu0
        %v2673 = vadd.f32 %v2121, %v2672
        %v2674 = vpop.f32.mrb[0].mxu0
        %v2675 = vadd.f32 %v2125, %v2674
        %v2676 = vpop.f32.mrb[0].mxu0
        %v2677 = vadd.f32 %v2121, %v2676
        %v2678 = vpop.f32.mrb[0].mxu0
        %v2679 = vadd.f32 %v2125, %v2678
        %2680 = vmatprep.mubr.bf16.mxu0 %v2003
        %2681 = vmatmul.mubr.bf16.gmra.mrb[0].mxu0 %v2002
        %v2682 = vpop.f32.mrb[0].mxu0
        %v2683 = vadd.f32 %v2121, %v2682
        %v2684 = vpop.f32.mrb[0].mxu0
        %v2685 = vadd.f32 %v2125, %v2684
        %v2686 = vpop.f32.mrb[0].mxu0
        %v2687 = vadd.f32 %v2121, %v2686
        %v2688 = vpop.f32.mrb[0].mxu0
        %v2689 = vadd.f32 %v2125, %v2688
        %2690 = vmatprep.mubr.bf16.mxu0 %v2009
        %2691 = vmatmul.mubr.bf16.gmra.mrb[0].mxu0 %v2008
        %v2692 = vpop.f32.mrb[0].mxu0
        %v2693 = vadd.f32 %v2121, %v2692
        %v2694 = vpop.f32.mrb[0].mxu0
        %v2695 = vadd.f32 %v2125, %v2694
        %v2696 = vpop.f32.mrb[0].mxu0
        %v2697 = vadd.f32 %v2121, %v2696
        %v2698 = vpop.f32.mrb[0].mxu0
        %v2699 = vadd.f32 %v2125, %v2698
        %2700 = vmatprep.mubr.bf16.mxu0 %v2015
        %2701 = vmatmul.mubr.bf16.gmra.mrb[0].mxu0 %v2014
        %v2702 = vpop.f32.mrb[0].mxu0
        %v2703 = vadd.f32 %v2121, %v2702
        %v2704 = vpop.f32.mrb[0].mxu0
        %v2705 = vadd.f32 %v2125, %v2704
        %v2706 = vpop.f32.mrb[0].mxu0
        %v2707 = vadd.f32 %v2121, %v2706
        %v2708 = vpop.f32.mrb[0].mxu0
        %v2709 = vadd.f32 %v2125, %v2708
        %2710 = vdwg.mxu0
        %2711 = vmatprep.subr.bf16.mxu0 %v2449
        %2712 = vmatpush1.bf16.msra.mxu0 %v2448
        %2713 = vmatprep.subr.bf16.mxu0 %v2451
        %2714 = vmatpush1.bf16.msra.mxu0 %v2450
        %2715 = vmatprep.subr.bf16.mxu0 %v2453
        %2716 = vmatpush1.bf16.msra.mxu0 %v2452
        %2717 = vmatprep.subr.bf16.mxu0 %v2455
        %2718 = vmatpush1.bf16.msra.mxu0 %v2454
        %2719 = vmatprep.subr.bf16.mxu0 %v2457
        %2720 = vmatpush1.bf16.msra.mxu0 %v2456
        %2721 = vmatprep.subr.bf16.mxu0 %v2459
        %2722 = vmatpush1.bf16.msra.mxu0 %v2458
        %2723 = vmatprep.subr.bf16.mxu0 %v2461
        %2724 = vmatpush1.bf16.msra.mxu0 %v2460
        %2725 = vmatprep.subr.bf16.mxu0 %v2463
        %2726 = vmatpush1.bf16.msra.mxu0 %v2462
        %2727 = vmatprep.subr.bf16.mxu0 %v2465
        %2728 = vmatpush1.bf16.msra.mxu0 %v2464
        %2729 = vmatprep.subr.bf16.mxu0 %v2467
        %2730 = vmatpush1.bf16.msra.mxu0 %v2466
        %2731 = vmatprep.subr.bf16.mxu0 %v2469
        %2732 = vmatpush1.bf16.msra.mxu0 %v2468
        %2733 = vmatprep.subr.bf16.mxu0 %v2471
        %2734 = vmatpush1.bf16.msra.mxu0 %v2470
        %2735 = vmatprep.subr.bf16.mxu0 %v2473
        %2736 = vmatpush1.bf16.msra.mxu0 %v2472
        %2737 = vmatprep.subr.bf16.mxu0 %v2475
        %2738 = vmatpush1.bf16.msra.mxu0 %v2474
        %2739 = vmatprep.subr.bf16.mxu0 %v2477
        %2740 = vmatpush1.bf16.msra.mxu0 %v2476
        %2741 = vmatprep.subr.bf16.mxu0 %v2479
        %2742 = vmatpush1.bf16.msra.mxu0 %v2478
        %2743 = vmatprep.mubr.bf16.mxu0 %v1981
        %2744 = vmatmul.mubr.bf16.gmra.mrb[0].mxu0 %v1980
        %v2745 = vpop.f32.mrb[0].mxu0
        %v2746 = vadd.f32 %v2643, %v2745
        %v2747 = vpop.f32.mrb[0].mxu0
        %v2748 = vadd.f32 %v2645, %v2747
        %v2749 = vpop.f32.mrb[0].mxu0
        %v2750 = vadd.f32 %v2647, %v2749
        %v2751 = vpop.f32.mrb[0].mxu0
        %v2752 = vadd.f32 %v2649, %v2751
        %2753 = vmatprep.mubr.bf16.mxu0 %v1987
        %2754 = vmatmul.mubr.bf16.gmra.mrb[0].mxu0 %v1986
        %v2755 = vpop.f32.mrb[0].mxu0
        %v2756 = vadd.f32 %v2653, %v2755
        %v2757 = vpop.f32.mrb[0].mxu0
        %v2758 = vadd.f32 %v2655, %v2757
        %v2759 = vpop.f32.mrb[0].mxu0
        %v2760 = vadd.f32 %v2657, %v2759
        %v2761 = vpop.f32.mrb[0].mxu0
        %v2762 = vadd.f32 %v2659, %v2761
        %2763 = vmatprep.mubr.bf16.mxu0 %v1993
        %2764 = vmatmul.mubr.bf16.gmra.mrb[0].mxu0 %v1992
        %v2765 = vpop.f32.mrb[0].mxu0
        %v2766 = vadd.f32 %v2663, %v2765
        %v2767 = vpop.f32.mrb[0].mxu0
        %v2768 = vadd.f32 %v2665, %v2767
        %v2769 = vpop.f32.mrb[0].mxu0
        %v2770 = vadd.f32 %v2667, %v2769
        %v2771 = vpop.f32.mrb[0].mxu0
        %v2772 = vadd.f32 %v2669, %v2771
        %2773 = vmatprep.mubr.bf16.mxu0 %v1999
        %2774 = vmatmul.mubr.bf16.gmra.mrb[0].mxu0 %v1998
        %v2775 = vpop.f32.mrb[0].mxu0
        %v2776 = vadd.f32 %v2673, %v2775
        %v2777 = vpop.f32.mrb[0].mxu0
        %v2778 = vadd.f32 %v2675, %v2777
        %v2779 = vpop.f32.mrb[0].mxu0
        %v2780 = vadd.f32 %v2677, %v2779
        %v2781 = vpop.f32.mrb[0].mxu0
        %v2782 = vadd.f32 %v2679, %v2781
        %2783 = vmatprep.mubr.bf16.mxu0 %v2005
        %2784 = vmatmul.mubr.bf16.gmra.mrb[0].mxu0 %v2004
        %v2785 = vpop.f32.mrb[0].mxu0
        %v2786 = vadd.f32 %v2683, %v2785
        %v2787 = vpop.f32.mrb[0].mxu0
        %v2788 = vadd.f32 %v2685, %v2787
        %v2789 = vpop.f32.mrb[0].mxu0
        %v2790 = vadd.f32 %v2687, %v2789
        %v2791 = vpop.f32.mrb[0].mxu0
        %v2792 = vadd.f32 %v2689, %v2791
        %2793 = vmatprep.mubr.bf16.mxu0 %v2011
        %2794 = vmatmul.mubr.bf16.gmra.mrb[0].mxu0 %v2010
        %v2795 = vpop.f32.mrb[0].mxu0
        %v2796 = vadd.f32 %v2693, %v2795
        %v2797 = vpop.f32.mrb[0].mxu0
        %v2798 = vadd.f32 %v2695, %v2797
        %v2799 = vpop.f32.mrb[0].mxu0
        %v2800 = vadd.f32 %v2697, %v2799
        %v2801 = vpop.f32.mrb[0].mxu0
        %v2802 = vadd.f32 %v2699, %v2801
        %2803 = vmatprep.mubr.bf16.mxu0 %v2017
        %2804 = vmatmul.mubr.bf16.gmra.mrb[0].mxu0 %v2016
        %v2805 = vpop.f32.mrb[0].mxu0
        %v2806 = vadd.f32 %v2703, %v2805
        %v2807 = vpop.f32.mrb[0].mxu0
        %v2808 = vadd.f32 %v2705, %v2807
        %v2809 = vpop.f32.mrb[0].mxu0
        %v2810 = vadd.f32 %v2707, %v2809
        %v2811 = vpop.f32.mrb[0].mxu0
        %v2812 = vadd.f32 %v2709, %v2811
        %2813 = vdwg.mxu0
        %2814 = vmatprep.subr.bf16.mxu0 %v2481
        %2815 = vmatpush1.bf16.msra.mxu0 %v2480
        %2816 = vmatprep.subr.bf16.mxu0 %v2483
        %2817 = vmatpush1.bf16.msra.mxu0 %v2482
        %2818 = vmatprep.subr.bf16.mxu0 %v2485
        %2819 = vmatpush1.bf16.msra.mxu0 %v2484
        %2820 = vmatprep.subr.bf16.mxu0 %v2487
        %2821 = vmatpush1.bf16.msra.mxu0 %v2486
        %2822 = vmatprep.subr.bf16.mxu0 %v2489
        %2823 = vmatpush1.bf16.msra.mxu0 %v2488
        %2824 = vmatprep.subr.bf16.mxu0 %v2491
        %2825 = vmatpush1.bf16.msra.mxu0 %v2490
        %2826 = vmatprep.subr.bf16.mxu0 %v2493
        %2827 = vmatpush1.bf16.msra.mxu0 %v2492
        %2828 = vmatprep.subr.bf16.mxu0 %v2495
        %2829 = vmatpush1.bf16.msra.mxu0 %v2494
        %2830 = vmatprep.subr.bf16.mxu0 %v2497
        %2831 = vmatpush1.bf16.msra.mxu0 %v2496
        %2832 = vmatprep.subr.bf16.mxu0 %v2499
        %2833 = vmatpush1.bf16.msra.mxu0 %v2498
        %2834 = vmatprep.subr.bf16.mxu0 %v2501
        %2835 = vmatpush1.bf16.msra.mxu0 %v2500
        %2836 = vmatprep.subr.bf16.mxu0 %v2503
        %2837 = vmatpush1.bf16.msra.mxu0 %v2502
        %2838 = vmatprep.subr.bf16.mxu0 %v2505
        %2839 = vmatpush1.bf16.msra.mxu0 %v2504
        %2840 = vmatprep.subr.bf16.mxu0 %v2507
        %2841 = vmatpush1.bf16.msra.mxu0 %v2506
        %2842 = vmatprep.subr.bf16.mxu0 %v2509
        %2843 = vmatpush1.bf16.msra.mxu0 %v2508
        %2844 = vmatprep.subr.bf16.mxu0 %v2511
        %2845 = vmatpush1.bf16.msra.mxu0 %v2510
        %2846 = vmatprep.mubr.bf16.mxu0 %v1983
        %2847 = vmatmul.mubr.bf16.gmra.mrb[0].mxu0 %v1982
        %v2848 = vpop.f32.mrb[0].mxu0
        %v2849 = vadd.f32 %v2746, %v2848
        %v2850 = vpop.f32.mrb[0].mxu0
        %v2851 = vadd.f32 %v2748, %v2850
        %v2852 = vpop.f32.mrb[0].mxu0
        %v2853 = vadd.f32 %v2750, %v2852
        %v2854 = vpop.f32.mrb[0].mxu0
        %v2855 = vadd.f32 %v2752, %v2854
        %2856 = vmatprep.mubr.bf16.mxu0 %v1989
        %2857 = vmatmul.mubr.bf16.gmra.mrb[0].mxu0 %v1988
        %v2858 = vpop.f32.mrb[0].mxu0
        %v2859 = vadd.f32 %v2756, %v2858
        %v2860 = vpop.f32.mrb[0].mxu0
        %v2861 = vadd.f32 %v2758, %v2860
        %v2862 = vpop.f32.mrb[0].mxu0
        %v2863 = vadd.f32 %v2760, %v2862
        %v2864 = vpop.f32.mrb[0].mxu0
        %v2865 = vadd.f32 %v2762, %v2864
        %2866 = vmatprep.mubr.bf16.mxu0 %v1995
        %2867 = vmatmul.mubr.bf16.gmra.mrb[0].mxu0 %v1994
        %v2868 = vpop.f32.mrb[0].mxu0
        %v2869 = vadd.f32 %v2766, %v2868
        %v2870 = vpop.f32.mrb[0].mxu0
        %v2871 = vadd.f32 %v2768, %v2870
        %v2872 = vpop.f32.mrb[0].mxu0
        %v2873 = vadd.f32 %v2770, %v2872
        %v2874 = vpop.f32.mrb[0].mxu0
        %v2875 = vadd.f32 %v2772, %v2874
        %2876 = vmatprep.mubr.bf16.mxu0 %v2001
        %2877 = vmatmul.mubr.bf16.gmra.mrb[0].mxu0 %v2000
        %v2878 = vpop.f32.mrb[0].mxu0
        %v2879 = vadd.f32 %v2776, %v2878
        %v2880 = vpop.f32.mrb[0].mxu0
        %v2881 = vadd.f32 %v2778, %v2880
        %v2882 = vpop.f32.mrb[0].mxu0
        %v2883 = vadd.f32 %v2780, %v2882
        %v2884 = vpop.f32.mrb[0].mxu0
        %v2885 = vadd.f32 %v2782, %v2884
        %2886 = vmatprep.mubr.bf16.mxu0 %v2007
        %2887 = vmatmul.mubr.bf16.gmra.mrb[0].mxu0 %v2006
        %v2888 = vpop.f32.mrb[0].mxu0
        %v2889 = vadd.f32 %v2786, %v2888
        %v2890 = vpop.f32.mrb[0].mxu0
        %v2891 = vadd.f32 %v2788, %v2890
        %v2892 = vpop.f32.mrb[0].mxu0
        %v2893 = vadd.f32 %v2790, %v2892
        %v2894 = vpop.f32.mrb[0].mxu0
        %v2895 = vadd.f32 %v2792, %v2894
        %2896 = vmatprep.mubr.bf16.mxu0 %v2013
        %2897 = vmatmul.mubr.bf16.gmra.mrb[0].mxu0 %v2012
        %v2898 = vpop.f32.mrb[0].mxu0
        %v2899 = vadd.f32 %v2796, %v2898
        %v2900 = vpop.f32.mrb[0].mxu0
        %v2901 = vadd.f32 %v2798, %v2900
        %v2902 = vpop.f32.mrb[0].mxu0
        %v2903 = vadd.f32 %v2800, %v2902
        %v2904 = vpop.f32.mrb[0].mxu0
        %v2905 = vadd.f32 %v2802, %v2904
        %2906 = vmatprep.mubr.bf16.mxu0 %v2019
        %2907 = vmatmul.mubr.bf16.gmra.mrb[0].mxu0 %v2018
        %v2908 = vpop.f32.mrb[0].mxu0
        %v2909 = vadd.f32 %v2806, %v2908
        %v2910 = vpop.f32.mrb[0].mxu0
        %v2911 = vadd.f32 %v2808, %v2910
        %v2912 = vpop.f32.mrb[0].mxu0
        %v2913 = vadd.f32 %v2810, %v2912
        %v2914 = vpop.f32.mrb[0].mxu0
        %v2915 = vadd.f32 %v2812, %v2914
        %2916 = vdwg.mxu0
        %v2917 = vmax.f32 %v2849, 0.0
        %v2918 = vmax.f32 %v2851, 0.0
        %v2919 = vmax.f32 %v2853, 0.0
        %v2920 = vmax.f32 %v2855, 0.0
        %v2921 = vmax.f32 %v2859, 0.0
        %v2922 = vmax.f32 %v2861, 0.0
        %v2923 = vmax.f32 %v2863, 0.0
        %v2924 = vmax.f32 %v2865, 0.0
        %v2925 = vmax.f32 %v2869, 0.0
        %v2926 = vmax.f32 %v2871, 0.0
        %v2927 = vmax.f32 %v2873, 0.0
        %v2928 = vmax.f32 %v2875, 0.0
        %v2929 = vmax.f32 %v2879, 0.0
        %v2930 = vmax.f32 %v2881, 0.0
        %v2931 = vmax.f32 %v2883, 0.0
        %v2932 = vmax.f32 %v2885, 0.0
        %v2933 = vmax.f32 %v2889, 0.0
        %v2934 = vmax.f32 %v2891, 0.0
        %v2935 = vmax.f32 %v2893, 0.0
        %v2936 = vmax.f32 %v2895, 0.0
        %v2937 = vmax.f32 %v2899, 0.0
        %v2938 = vmax.f32 %v2901, 0.0
        %v2939 = vmax.f32 %v2903, 0.0
        %v2940 = vmax.f32 %v2905, 0.0
        %v2941 = vmax.f32 %v2909, 0.0
        %v2942 = vmax.f32 %v2911, 0.0
        %v2943 = vmax.f32 %v2913, 0.0
        %v2944 = vmax.f32 %v2915, 0.0
        %s2945 = scalar_lea.vmem [#allocation3], 16
        %2946 = vst [vmem:[%s2945] sm:$0xff] %v2917
        %2947 = vst [vmem:[%s2945 + $0x8] sm:$0xff] %v2918
        %2948 = vst [vmem:[%s2945 + $0x10] sm:$0xff] %v2919
        %2949 = vst [vmem:[%s2945 + $0x18] sm:$0xff] %v2920
        %2950 = vst [vmem:[%s2945 + $0x20] sm:$0xff] %v2921
        %2951 = vst [vmem:[%s2945 + $0x28] sm:$0xff] %v2922
        %2952 = vst [vmem:[%s2945 + $0x30] sm:$0xff] %v2923
        %2953 = vst [vmem:[%s2945 + $0x38] sm:$0xff] %v2924
        %2954 = vst [vmem:[%s2945 + $0x40] sm:$0xff] %v2925
        %2955 = vst [vmem:[%s2945 + $0x48] sm:$0xff] %v2926
        %2956 = vst [vmem:[%s2945 + $0x50] sm:$0xff] %v2927
        %2957 = vst [vmem:[%s2945 + $0x58] sm:$0xff] %v2928
        %2958 = vst [vmem:[%s2945 + $0x60] sm:$0xff] %v2929
        %2959 = vst [vmem:[%s2945 + $0x68] sm:$0xff] %v2930
        %2960 = vst [vmem:[%s2945 + $0x70] sm:$0xff] %v2931
        %2961 = vst [vmem:[%s2945 + $0x78] sm:$0xff] %v2932
        %2962 = vst [vmem:[%s2945 + $0x80] sm:$0xff] %v2933
        %2963 = vst [vmem:[%s2945 + $0x88] sm:$0xff] %v2934
        %2964 = vst [vmem:[%s2945 + $0x90] sm:$0xff] %v2935
        %2965 = vst [vmem:[%s2945 + $0x98] sm:$0xff] %v2936
        %2966 = vst [vmem:[%s2945 + $0xa0] sm:$0xff] %v2937
        %2967 = vst [vmem:[%s2945 + $0xa8] sm:$0xff] %v2938
        %2968 = vst [vmem:[%s2945 + $0xb0] sm:$0xff] %v2939
        %2969 = vst [vmem:[%s2945 + $0xb8] sm:$0xff] %v2940
        %2970 = vst [vmem:[%s2945 + $0xc0] sm:$0xff] %v2941
        %2971 = vst [vmem:[%s2945 + $0xc8] sm:$0xff] %v2942
        %2972 = vst [vmem:[%s2945 + $0xd0] sm:$0xff] %v2943
        %2973 = vst [vmem:[%s2945 + $0xd8] sm:$0xff] %v2944
        %2974 = vst [vmem:[#allocation3] sm:$0xff] %v2917
        %2975 = vst [vmem:[#allocation3 + $0x8] sm:$0xff] %v2918
        %s2976 = scalar_lea.vmem [#allocation3], 240
        %2977 = vst [vmem:[%s2976] sm:$0xff] %v2943
        %2978 = vst [vmem:[%s2976 + $0x8] sm:$0xff] %v2944
        %v2979 = vld [vmem:[#allocation3] sm:$0xff]
        %v2980 = vld [vmem:[#allocation3 + $0x8] sm:$0xff]
        %v2981 = vld [vmem:[#allocation3 + $0x10] sm:$0xff]
        %v2982 = vld [vmem:[#allocation3 + $0x18] sm:$0xff]
        %v2983 = vld [vmem:[#allocation3 + $0x20] sm:$0xff]
        %v2984 = vld [vmem:[#allocation3 + $0x28] sm:$0xff]
        %v2985 = vld [vmem:[#allocation3 + $0x30] sm:$0xff]
        %v2986 = vld [vmem:[#allocation3 + $0x38] sm:$0xff]
        %v2987 = vld [vmem:[#allocation3 + $0x40] sm:$0xff]
        %v2988 = vld [vmem:[#allocation3 + $0x48] sm:$0xff]
        %v2989 = vld [vmem:[#allocation3 + $0x50] sm:$0xff]
        %v2990 = vld [vmem:[#allocation3 + $0x58] sm:$0xff]
        %v2991 = vld [vmem:[#allocation3 + $0x60] sm:$0xff]
        %v2992 = vld [vmem:[#allocation3 + $0x68] sm:$0xff]
        %v2993 = vld [vmem:[#allocation3 + $0x70] sm:$0xff]
        %v2994 = vld [vmem:[#allocation3 + $0x78] sm:$0xff]
        %v2995 = vld [vmem:[#allocation3 + $0x80] sm:$0xff]
        %v2996 = vld [vmem:[#allocation3 + $0x88] sm:$0xff]
        %v2997 = vld [vmem:[#allocation3 + $0x90] sm:$0xff]
        %v2998 = vld [vmem:[#allocation3 + $0x98] sm:$0xff]
        %v2999 = vld [vmem:[#allocation3 + $0xa0] sm:$0xff]
        %v3000 = vld [vmem:[#allocation3 + $0xa8] sm:$0xff]
        %v3001 = vld [vmem:[#allocation3 + $0xb0] sm:$0xff]
        %v3002 = vld [vmem:[#allocation3 + $0xb8] sm:$0xff]
        %v3003 = vld [vmem:[#allocation3 + $0xc0] sm:$0xff]
        %v3004 = vld [vmem:[#allocation3 + $0xc8] sm:$0xff]
        %v3005 = vld [vmem:[#allocation3 + $0xd0] sm:$0xff]
        %v3006 = vld [vmem:[#allocation3 + $0xd8] sm:$0xff]
        %v3007 = vld [vmem:[%s2945] sm:$0xff]
        %v3008 = vld [vmem:[%s2945 + $0x8] sm:$0xff]
        %v3009 = vld [vmem:[%s2945 + $0x10] sm:$0xff]
        %v3010 = vld [vmem:[%s2945 + $0x18] sm:$0xff]
        %v3011 = vld [vmem:[%s2945 + $0x20] sm:$0xff]
        %v3012 = vld [vmem:[%s2945 + $0x28] sm:$0xff]
        %v3013 = vld [vmem:[%s2945 + $0x30] sm:$0xff]
        %v3014 = vld [vmem:[%s2945 + $0x38] sm:$0xff]
        %v3015 = vld [vmem:[%s2945 + $0x40] sm:$0xff]
        %v3016 = vld [vmem:[%s2945 + $0x48] sm:$0xff]
        %v3017 = vld [vmem:[%s2945 + $0x50] sm:$0xff]
        %v3018 = vld [vmem:[%s2945 + $0x58] sm:$0xff]
        %v3019 = vld [vmem:[%s2945 + $0x60] sm:$0xff]
        %v3020 = vld [vmem:[%s2945 + $0x68] sm:$0xff]
        %v3021 = vld [vmem:[%s2945 + $0x70] sm:$0xff]
        %v3022 = vld [vmem:[%s2945 + $0x78] sm:$0xff]
        %v3023 = vld [vmem:[%s2945 + $0x80] sm:$0xff]
        %v3024 = vld [vmem:[%s2945 + $0x88] sm:$0xff]
        %v3025 = vld [vmem:[%s2945 + $0x90] sm:$0xff]
        %v3026 = vld [vmem:[%s2945 + $0x98] sm:$0xff]
        %v3027 = vld [vmem:[%s2945 + $0xa0] sm:$0xff]
        %v3028 = vld [vmem:[%s2945 + $0xa8] sm:$0xff]
        %v3029 = vld [vmem:[%s2945 + $0xb0] sm:$0xff]
        %v3030 = vld [vmem:[%s2945 + $0xb8] sm:$0xff]
        %v3031 = vld [vmem:[%s2945 + $0xc0] sm:$0xff]
        %v3032 = vld [vmem:[%s2945 + $0xc8] sm:$0xff]
        %v3033 = vld [vmem:[%s2945 + $0xd0] sm:$0xff]
        %v3034 = vld [vmem:[%s2945 + $0xd8] sm:$0xff]
        %s3035 = scalar_lea.vmem [#allocation3], 32
        %v3036 = vld [vmem:[%s3035] sm:$0xff]
        %v3037 = vld [vmem:[%s3035 + $0x8] sm:$0xff]
        %v3038 = vld [vmem:[%s3035 + $0x10] sm:$0xff]
        %v3039 = vld [vmem:[%s3035 + $0x18] sm:$0xff]
        %v3040 = vld [vmem:[%s3035 + $0x20] sm:$0xff]
        %v3041 = vld [vmem:[%s3035 + $0x28] sm:$0xff]
        %v3042 = vld [vmem:[%s3035 + $0x30] sm:$0xff]
        %v3043 = vld [vmem:[%s3035 + $0x38] sm:$0xff]
        %v3044 = vld [vmem:[%s3035 + $0x40] sm:$0xff]
        %v3045 = vld [vmem:[%s3035 + $0x48] sm:$0xff]
        %v3046 = vld [vmem:[%s3035 + $0x50] sm:$0xff]
        %v3047 = vld [vmem:[%s3035 + $0x58] sm:$0xff]
        %v3048 = vld [vmem:[%s3035 + $0x60] sm:$0xff]
        %v3049 = vld [vmem:[%s3035 + $0x68] sm:$0xff]
        %v3050 = vld [vmem:[%s3035 + $0x70] sm:$0xff]
        %v3051 = vld [vmem:[%s3035 + $0x78] sm:$0xff]
        %v3052 = vld [vmem:[%s3035 + $0x80] sm:$0xff]
        %v3053 = vld [vmem:[%s3035 + $0x88] sm:$0xff]
        %v3054 = vld [vmem:[%s3035 + $0x90] sm:$0xff]
        %v3055 = vld [vmem:[%s3035 + $0x98] sm:$0xff]
        %v3056 = vld [vmem:[%s3035 + $0xa0] sm:$0xff]
        %v3057 = vld [vmem:[%s3035 + $0xa8] sm:$0xff]
        %v3058 = vld [vmem:[%s3035 + $0xb0] sm:$0xff]
        %v3059 = vld [vmem:[%s3035 + $0xb8] sm:$0xff]
        %v3060 = vld [vmem:[%s3035 + $0xc0] sm:$0xff]
        %v3061 = vld [vmem:[%s3035 + $0xc8] sm:$0xff]
        %v3062 = vld [vmem:[%s3035 + $0xd0] sm:$0xff]
        %v3063 = vld [vmem:[%s3035 + $0xd8] sm:$0xff]
        %v3064 = vpack.c.bf16 %v2981, %v2979
        %v3065 = vpack.c.bf16 %v2982, %v2980
        %v3066 = vpack.c.bf16 %v3009, %v3007
        %v3067 = vpack.c.bf16 %v3010, %v3008
        %v3068 = vpack.c.bf16 %v3038, %v3036
        %v3069 = vpack.c.bf16 %v3039, %v3037
        %v3070 = vpack.c.bf16 %v2985, %v2983
        %v3071 = vpack.c.bf16 %v2986, %v2984
        %v3072 = vpack.c.bf16 %v3013, %v3011
        %v3073 = vpack.c.bf16 %v3014, %v3012
        %v3074 = vpack.c.bf16 %v3042, %v3040
        %v3075 = vpack.c.bf16 %v3043, %v3041
        %v3076 = vpack.c.bf16 %v2989, %v2987
        %v3077 = vpack.c.bf16 %v2990, %v2988
        %v3078 = vpack.c.bf16 %v3017, %v3015
        %v3079 = vpack.c.bf16 %v3018, %v3016
        %v3080 = vpack.c.bf16 %v3046, %v3044
        %v3081 = vpack.c.bf16 %v3047, %v3045
        %v3082 = vpack.c.bf16 %v2993, %v2991
        %v3083 = vpack.c.bf16 %v2994, %v2992
        %v3084 = vpack.c.bf16 %v3021, %v3019
        %v3085 = vpack.c.bf16 %v3022, %v3020
        %v3086 = vpack.c.bf16 %v3050, %v3048
        %v3087 = vpack.c.bf16 %v3051, %v3049
        %v3088 = vpack.c.bf16 %v2997, %v2995
        %v3089 = vpack.c.bf16 %v2998, %v2996
        %v3090 = vpack.c.bf16 %v3025, %v3023
        %v3091 = vpack.c.bf16 %v3026, %v3024
        %v3092 = vpack.c.bf16 %v3054, %v3052
        %v3093 = vpack.c.bf16 %v3055, %v3053
        %v3094 = vpack.c.bf16 %v3001, %v2999
        %v3095 = vpack.c.bf16 %v3002, %v3000
        %v3096 = vpack.c.bf16 %v3029, %v3027
        %v3097 = vpack.c.bf16 %v3030, %v3028
        %v3098 = vpack.c.bf16 %v3058, %v3056
        %v3099 = vpack.c.bf16 %v3059, %v3057
        %v3100 = vpack.c.bf16 %v3005, %v3003
        %v3101 = vpack.c.bf16 %v3006, %v3004
        %v3102 = vpack.c.bf16 %v3033, %v3031
        %v3103 = vpack.c.bf16 %v3034, %v3032
        %v3104 = vpack.c.bf16 %v3062, %v3060
        %v3105 = vpack.c.bf16 %v3063, %v3061
        %v3106 = vld [vmem:[#allocation13] sm:$0xf]
        %v3107 = vld [vmem:[#allocation13 + $0x4] sm:$0xf]
        %v3108 = vld [vmem:[#allocation13 + $0x8] sm:$0xf]
        %v3109 = vld [vmem:[#allocation13 + $0xc] sm:$0xf]
        %v3110 = vld [vmem:[#allocation13 + $0x10] sm:$0xf]
        %v3111 = vld [vmem:[#allocation13 + $0x14] sm:$0xf]
        %v3112 = vld [vmem:[#allocation13 + $0x18] sm:$0xf]
        %v3113 = vld [vmem:[#allocation13 + $0x1c] sm:$0xf]
        %v3114 = vld [vmem:[#allocation13 + $0x20] sm:$0xf]
        %v3115 = vld [vmem:[#allocation13 + $0x24] sm:$0xf]
        %v3116 = vld [vmem:[#allocation13 + $0x28] sm:$0xf]
        %v3117 = vld [vmem:[#allocation13 + $0x2c] sm:$0xf]
        %v3118 = vld [vmem:[#allocation13 + $0x30] sm:$0xf]
        %v3119 = vld [vmem:[#allocation13 + $0x34] sm:$0xf]
        %v3120 = vld [vmem:[#allocation13 + $0x38] sm:$0xf]
        %v3121 = vld [vmem:[#allocation13 + $0x3c] sm:$0xf]
        %v3122 = vld [vmem:[#allocation13 + $0x40] sm:$0xf]
        %v3123 = vld [vmem:[#allocation13 + $0x44] sm:$0xf]
        %v3124 = vld [vmem:[#allocation13 + $0x48] sm:$0xf]
        %v3125 = vld [vmem:[#allocation13 + $0x4c] sm:$0xf]
        %v3126 = vld [vmem:[#allocation13 + $0x50] sm:$0xf]
        %v3127 = vld [vmem:[#allocation13 + $0x54] sm:$0xf]
        %v3128 = vld [vmem:[#allocation13 + $0x58] sm:$0xf]
        %v3129 = vld [vmem:[#allocation13 + $0x5c] sm:$0xf]
        %v3130 = vld [vmem:[#allocation13 + $0x60] sm:$0xf]
        %v3131 = vld [vmem:[#allocation13 + $0x64] sm:$0xf]
        %v3132 = vld [vmem:[#allocation13 + $0x68] sm:$0xf]
        %v3133 = vld [vmem:[#allocation13 + $0x6c] sm:$0xf]
        %v3134 = vld [vmem:[#allocation13 + $0x70] sm:$0xf]
        %v3135 = vld [vmem:[#allocation13 + $0x74] sm:$0xf]
        %v3136 = vld [vmem:[#allocation13 + $0x78] sm:$0xf]
        %v3137 = vld [vmem:[#allocation13 + $0x7c] sm:$0xf]
        %v3138 = vld [vmem:[#allocation13 + $0x80] sm:$0xf]
        %v3139 = vld [vmem:[#allocation13 + $0x84] sm:$0xf]
        %v3140 = vld [vmem:[#allocation13 + $0x88] sm:$0xf]
        %v3141 = vld [vmem:[#allocation13 + $0x8c] sm:$0xf]
        %v3142 = vld [vmem:[#allocation13 + $0x90] sm:$0xf]
        %v3143 = vld [vmem:[#allocation13 + $0x94] sm:$0xf]
        %v3144 = vld [vmem:[#allocation13 + $0x98] sm:$0xf]
        %v3145 = vld [vmem:[#allocation13 + $0x9c] sm:$0xf]
        %v3146 = vld [vmem:[#allocation13 + $0xa0] sm:$0xf]
        %v3147 = vld [vmem:[#allocation13 + $0xa4] sm:$0xf]
        %v3148 = vld [vmem:[#allocation13 + $0xa8] sm:$0xf]
        %v3149 = vld [vmem:[#allocation13 + $0xac] sm:$0xf]
        %v3150 = vld [vmem:[#allocation13 + $0xb0] sm:$0xf]
        %v3151 = vld [vmem:[#allocation13 + $0xb4] sm:$0xf]
        %v3152 = vld [vmem:[#allocation13 + $0xb8] sm:$0xf]
        %v3153 = vld [vmem:[#allocation13 + $0xbc] sm:$0xf]
        %v3154 = vld [vmem:[#allocation13 + $0xc0] sm:$0xf]
        %v3155 = vld [vmem:[#allocation13 + $0xc4] sm:$0xf]
        %v3156 = vld [vmem:[#allocation13 + $0xc8] sm:$0xf]
        %v3157 = vld [vmem:[#allocation13 + $0xcc] sm:$0xf]
        %v3158 = vld [vmem:[#allocation13 + $0xd0] sm:$0xf]
        %v3159 = vld [vmem:[#allocation13 + $0xd4] sm:$0xf]
        %v3160 = vld [vmem:[#allocation13 + $0xd8] sm:$0xf]
        %v3161 = vld [vmem:[#allocation13 + $0xdc] sm:$0xf]
        %v3162 = vld [vmem:[#allocation13 + $0xe0] sm:$0xf]
        %v3163 = vld [vmem:[#allocation13 + $0xe4] sm:$0xf]
        %v3164 = vld [vmem:[#allocation13 + $0xe8] sm:$0xf]
        %v3165 = vld [vmem:[#allocation13 + $0xec] sm:$0xf]
        %v3166 = vld [vmem:[#allocation13 + $0xf0] sm:$0xf]
        %v3167 = vld [vmem:[#allocation13 + $0xf4] sm:$0xf]
        %v3168 = vld [vmem:[#allocation13 + $0xf8] sm:$0xf]
        %v3169 = vld [vmem:[#allocation13 + $0xfc] sm:$0xf]
        %v3170 = vld [vmem:[#allocation13 + $0x100] sm:$0xf]
        %v3171 = vld [vmem:[#allocation13 + $0x104] sm:$0xf]
        %v3172 = vld [vmem:[#allocation13 + $0x108] sm:$0xf]
        %v3173 = vld [vmem:[#allocation13 + $0x10c] sm:$0xf]
        %v3174 = vld [vmem:[#allocation13 + $0x110] sm:$0xf]
        %v3175 = vld [vmem:[#allocation13 + $0x114] sm:$0xf]
        %v3176 = vld [vmem:[#allocation13 + $0x118] sm:$0xf]
        %v3177 = vld [vmem:[#allocation13 + $0x11c] sm:$0xf]
        %v3178 = vld [vmem:[#allocation13 + $0x120] sm:$0xf]
        %v3179 = vld [vmem:[#allocation13 + $0x124] sm:$0xf]
        %v3180 = vld [vmem:[#allocation13 + $0x128] sm:$0xf]
        %v3181 = vld [vmem:[#allocation13 + $0x12c] sm:$0xf]
        %v3182 = vld [vmem:[#allocation13 + $0x130] sm:$0xf]
        %v3183 = vld [vmem:[#allocation13 + $0x134] sm:$0xf]
        %v3184 = vld [vmem:[#allocation13 + $0x138] sm:$0xf]
        %v3185 = vld [vmem:[#allocation13 + $0x13c] sm:$0xf]
        %v3186 = vld [vmem:[#allocation13 + $0x140] sm:$0xf]
        %v3187 = vld [vmem:[#allocation13 + $0x144] sm:$0xf]
        %v3188 = vld [vmem:[#allocation13 + $0x148] sm:$0xf]
        %v3189 = vld [vmem:[#allocation13 + $0x14c] sm:$0xf]
        %v3190 = vld [vmem:[#allocation13 + $0x150] sm:$0xf]
        %v3191 = vld [vmem:[#allocation13 + $0x154] sm:$0xf]
        %v3192 = vld [vmem:[#allocation13 + $0x158] sm:$0xf]
        %v3193 = vld [vmem:[#allocation13 + $0x15c] sm:$0xf]
        %v3194 = vld [vmem:[#allocation13 + $0x160] sm:$0xf]
        %v3195 = vld [vmem:[#allocation13 + $0x164] sm:$0xf]
        %v3196 = vld [vmem:[#allocation13 + $0x168] sm:$0xf]
        %v3197 = vld [vmem:[#allocation13 + $0x16c] sm:$0xf]
        %v3198 = vld [vmem:[#allocation13 + $0x170] sm:$0xf]
        %v3199 = vld [vmem:[#allocation13 + $0x174] sm:$0xf]
        %v3200 = vld [vmem:[#allocation13 + $0x178] sm:$0xf]
        %v3201 = vld [vmem:[#allocation13 + $0x17c] sm:$0xf]
        %v3202 = vld [vmem:[#allocation14] sm:$0x1]
        %v3204 = vlaneseq
        %v3205 = vshrl.u32 %v3204, 7
        %v3206 = vsub.s32 0, %v3205
        %v3207 = vrot.slane %v3202, %v3206
        %v3305 = vunpack.c.l.b16 %v3106
        %v3306 = vunpack.c.l.b16 %v3107
        %v3307 = vunpack.c.l.b16 %v3108
        %v3308 = vunpack.c.l.b16 %v3109
        %v3309 = vunpack.c.l.b16 %v3110
        %v3310 = vunpack.c.l.b16 %v3111
        %v3311 = vunpack.c.l.b16 %v3112
        %v3312 = vunpack.c.l.b16 %v3113
        %v3313 = vunpack.c.l.b16 %v3114
        %v3314 = vunpack.c.l.b16 %v3115
        %v3315 = vunpack.c.l.b16 %v3116
        %v3316 = vunpack.c.l.b16 %v3117
        %v3317 = vunpack.c.l.b16 %v3118
        %v3318 = vunpack.c.l.b16 %v3119
        %v3319 = vunpack.c.l.b16 %v3120
        %v3320 = vunpack.c.l.b16 %v3121
        %v3321 = vunpack.c.l.b16 %v3122
        %v3322 = vunpack.c.l.b16 %v3123
        %v3323 = vunpack.c.l.b16 %v3124
        %v3324 = vunpack.c.l.b16 %v3125
        %v3325 = vunpack.c.l.b16 %v3126
        %v3326 = vunpack.c.l.b16 %v3127
        %v3327 = vunpack.c.l.b16 %v3128
        %v3328 = vunpack.c.l.b16 %v3129
        %v3329 = vunpack.c.l.b16 %v3130
        %v3330 = vunpack.c.l.b16 %v3131
        %v3331 = vunpack.c.l.b16 %v3132
        %v3332 = vunpack.c.l.b16 %v3133
        %v3333 = vunpack.c.l.b16 %v3134
        %v3334 = vunpack.c.l.b16 %v3135
        %v3335 = vunpack.c.l.b16 %v3136
        %v3336 = vunpack.c.l.b16 %v3137
        %v3337 = vunpack.c.l.b16 %v3138
        %v3338 = vunpack.c.l.b16 %v3139
        %v3339 = vunpack.c.l.b16 %v3140
        %v3340 = vunpack.c.l.b16 %v3141
        %v3341 = vunpack.c.l.b16 %v3142
        %v3342 = vunpack.c.l.b16 %v3143
        %v3343 = vunpack.c.l.b16 %v3144
        %v3344 = vunpack.c.l.b16 %v3145
        %v3345 = vunpack.c.l.b16 %v3146
        %v3346 = vunpack.c.l.b16 %v3147
        %v3347 = vunpack.c.l.b16 %v3148
        %v3348 = vunpack.c.l.b16 %v3149
        %v3349 = vunpack.c.l.b16 %v3150
        %v3350 = vunpack.c.l.b16 %v3151
        %v3351 = vunpack.c.l.b16 %v3152
        %v3352 = vunpack.c.l.b16 %v3153
        %v3353 = vunpack.c.l.b16 %v3154
        %v3354 = vunpack.c.l.b16 %v3155
        %v3355 = vunpack.c.l.b16 %v3156
        %v3356 = vunpack.c.l.b16 %v3157
        %v3357 = vunpack.c.l.b16 %v3158
        %v3358 = vunpack.c.l.b16 %v3159
        %v3359 = vunpack.c.l.b16 %v3160
        %v3360 = vunpack.c.l.b16 %v3161
        %v3361 = vunpack.c.l.b16 %v3162
        %v3362 = vunpack.c.l.b16 %v3163
        %v3363 = vunpack.c.l.b16 %v3164
        %v3364 = vunpack.c.l.b16 %v3165
        %v3365 = vunpack.c.l.b16 %v3166
        %v3366 = vunpack.c.l.b16 %v3167
        %v3367 = vunpack.c.l.b16 %v3168
        %v3368 = vunpack.c.l.b16 %v3169
        %v3369 = vunpack.c.l.b16 %v3170
        %v3370 = vunpack.c.l.b16 %v3171
        %v3371 = vunpack.c.l.b16 %v3172
        %v3372 = vunpack.c.l.b16 %v3173
        %v3373 = vunpack.c.l.b16 %v3174
        %v3374 = vunpack.c.l.b16 %v3175
        %v3375 = vunpack.c.l.b16 %v3176
        %v3376 = vunpack.c.l.b16 %v3177
        %v3377 = vunpack.c.l.b16 %v3178
        %v3378 = vunpack.c.l.b16 %v3179
        %v3379 = vunpack.c.l.b16 %v3180
        %v3380 = vunpack.c.l.b16 %v3181
        %v3381 = vunpack.c.l.b16 %v3182
        %v3382 = vunpack.c.l.b16 %v3183
        %v3383 = vunpack.c.l.b16 %v3184
        %v3384 = vunpack.c.l.b16 %v3185
        %v3385 = vunpack.c.l.b16 %v3186
        %v3386 = vunpack.c.l.b16 %v3187
        %v3387 = vunpack.c.l.b16 %v3188
        %v3388 = vunpack.c.l.b16 %v3189
        %v3389 = vunpack.c.l.b16 %v3190
        %v3390 = vunpack.c.l.b16 %v3191
        %v3391 = vunpack.c.l.b16 %v3192
        %v3392 = vunpack.c.l.b16 %v3193
        %v3393 = vunpack.c.l.b16 %v3194
        %v3394 = vunpack.c.l.b16 %v3195
        %v3395 = vunpack.c.l.b16 %v3196
        %v3396 = vunpack.c.l.b16 %v3197
        %v3397 = vunpack.c.l.b16 %v3198
        %v3398 = vunpack.c.l.b16 %v3199
        %v3399 = vunpack.c.l.b16 %v3200
        %v3400 = vunpack.c.l.b16 %v3201
        %v3401 = vpack.c.b16 %v3306, %v3305
        %v3402 = vpack.c.b16 %v3308, %v3307
        %v3403 = vpack.c.b16 %v3310, %v3309
        %v3404 = vpack.c.b16 %v3312, %v3311
        %v3405 = vpack.c.b16 %v3314, %v3313
        %v3406 = vpack.c.b16 %v3316, %v3315
        %v3407 = vpack.c.b16 %v3318, %v3317
        %v3408 = vpack.c.b16 %v3320, %v3319
        %v3409 = vpack.c.b16 %v3322, %v3321
        %v3410 = vpack.c.b16 %v3324, %v3323
        %v3411 = vpack.c.b16 %v3326, %v3325
        %v3412 = vpack.c.b16 %v3328, %v3327
        %v3413 = vpack.c.b16 %v3330, %v3329
        %v3414 = vpack.c.b16 %v3332, %v3331
        %v3415 = vpack.c.b16 %v3334, %v3333
        %v3416 = vpack.c.b16 %v3336, %v3335
        %v3417 = vpack.c.b16 %v3338, %v3337
        %v3418 = vpack.c.b16 %v3340, %v3339
        %v3419 = vpack.c.b16 %v3342, %v3341
        %v3420 = vpack.c.b16 %v3344, %v3343
        %v3421 = vpack.c.b16 %v3346, %v3345
        %v3422 = vpack.c.b16 %v3348, %v3347
        %v3423 = vpack.c.b16 %v3350, %v3349
        %v3424 = vpack.c.b16 %v3352, %v3351
        %v3425 = vpack.c.b16 %v3354, %v3353
        %v3426 = vpack.c.b16 %v3356, %v3355
        %v3427 = vpack.c.b16 %v3358, %v3357
        %v3428 = vpack.c.b16 %v3360, %v3359
        %v3429 = vpack.c.b16 %v3362, %v3361
        %v3430 = vpack.c.b16 %v3364, %v3363
        %v3431 = vpack.c.b16 %v3366, %v3365
        %v3432 = vpack.c.b16 %v3368, %v3367
        %v3433 = vpack.c.b16 %v3370, %v3369
        %v3434 = vpack.c.b16 %v3372, %v3371
        %v3435 = vpack.c.b16 %v3374, %v3373
        %v3436 = vpack.c.b16 %v3376, %v3375
        %v3437 = vpack.c.b16 %v3378, %v3377
        %v3438 = vpack.c.b16 %v3380, %v3379
        %v3439 = vpack.c.b16 %v3382, %v3381
        %v3440 = vpack.c.b16 %v3384, %v3383
        %v3441 = vpack.c.b16 %v3386, %v3385
        %v3442 = vpack.c.b16 %v3388, %v3387
        %v3443 = vpack.c.b16 %v3390, %v3389
        %v3444 = vpack.c.b16 %v3392, %v3391
        %v3445 = vpack.c.b16 %v3394, %v3393
        %v3446 = vpack.c.b16 %v3396, %v3395
        %v3447 = vpack.c.b16 %v3398, %v3397
        %v3448 = vpack.c.b16 %v3400, %v3399
        %3497 = vmatprep.subr.bf16.mxu0 0
        %3498 = vmatpush1.bf16.msra.mxu0 %v3401
        %3499 = vmatprep.subr.bf16.mxu0 0
        %3500 = vmatpush1.bf16.msra.mxu0 %v3402
        %3501 = vmatprep.subr.bf16.mxu0 0
        %3502 = vmatpush1.bf16.msra.mxu0 %v3403
        %3503 = vmatprep.subr.bf16.mxu0 0
        %3504 = vmatpush1.bf16.msra.mxu0 %v3404
        %3505 = vmatprep.subr.bf16.mxu0 0
        %3506 = vmatpush1.bf16.msra.mxu0 %v3405
        %3507 = vmatprep.subr.bf16.mxu0 0
        %3508 = vmatpush1.bf16.msra.mxu0 %v3406
        %3509 = vmatprep.subr.bf16.mxu0 0
        %3510 = vmatpush1.bf16.msra.mxu0 %v3407
        %3511 = vmatprep.subr.bf16.mxu0 0
        %3512 = vmatpush1.bf16.msra.mxu0 %v3408
        %3513 = vmatprep.subr.bf16.mxu0 0
        %3514 = vmatpush1.bf16.msra.mxu0 %v3409
        %3515 = vmatprep.subr.bf16.mxu0 0
        %3516 = vmatpush1.bf16.msra.mxu0 %v3410
        %3517 = vmatprep.subr.bf16.mxu0 0
        %3518 = vmatpush1.bf16.msra.mxu0 %v3411
        %3519 = vmatprep.subr.bf16.mxu0 0
        %3520 = vmatpush1.bf16.msra.mxu0 %v3412
        %3521 = vmatprep.subr.bf16.mxu0 0
        %3522 = vmatpush1.bf16.msra.mxu0 %v3413
        %3523 = vmatprep.subr.bf16.mxu0 0
        %3524 = vmatpush1.bf16.msra.mxu0 %v3414
        %3525 = vmatprep.subr.bf16.mxu0 0
        %3526 = vmatpush1.bf16.msra.mxu0 %v3415
        %3527 = vmatprep.subr.bf16.mxu0 0
        %3528 = vmatpush1.bf16.msra.mxu0 %v3416
        %3529 = vmatprep.mubr.bf16.mxu0 %v3065
        %3530 = vmatmul.mubr.bf16.gmra.mrb[0].mxu0 %v3064
        %v3531 = vpop.f32.mrb[0].mxu0
        %v3532 = vadd.f32 %v3207, %v3531
        %v3533 = vpop.f32.mrb[0].mxu0
        %v3534 = vpop.f32.mrb[0].mxu0
        %v3535 = vadd.f32 %v3207, %v3534
        %v3536 = vpop.f32.mrb[0].mxu0
        %3537 = vmatprep.mubr.bf16.mxu0 %v3071
        %3538 = vmatmul.mubr.bf16.gmra.mrb[0].mxu0 %v3070
        %v3539 = vpop.f32.mrb[0].mxu0
        %v3540 = vadd.f32 %v3207, %v3539
        %v3541 = vpop.f32.mrb[0].mxu0
        %v3542 = vpop.f32.mrb[0].mxu0
        %v3543 = vadd.f32 %v3207, %v3542
        %v3544 = vpop.f32.mrb[0].mxu0
        %3545 = vmatprep.mubr.bf16.mxu0 %v3077
        %3546 = vmatmul.mubr.bf16.gmra.mrb[0].mxu0 %v3076
        %v3547 = vpop.f32.mrb[0].mxu0
        %v3548 = vadd.f32 %v3207, %v3547
        %v3549 = vpop.f32.mrb[0].mxu0
        %v3550 = vpop.f32.mrb[0].mxu0
        %v3551 = vadd.f32 %v3207, %v3550
        %v3552 = vpop.f32.mrb[0].mxu0
        %3553 = vmatprep.mubr.bf16.mxu0 %v3083
        %3554 = vmatmul.mubr.bf16.gmra.mrb[0].mxu0 %v3082
        %v3555 = vpop.f32.mrb[0].mxu0
        %v3556 = vadd.f32 %v3207, %v3555
        %v3557 = vpop.f32.mrb[0].mxu0
        %v3558 = vpop.f32.mrb[0].mxu0
        %v3559 = vadd.f32 %v3207, %v3558
        %v3560 = vpop.f32.mrb[0].mxu0
        %3561 = vmatprep.mubr.bf16.mxu0 %v3089
        %3562 = vmatmul.mubr.bf16.gmra.mrb[0].mxu0 %v3088
        %v3563 = vpop.f32.mrb[0].mxu0
        %v3564 = vadd.f32 %v3207, %v3563
        %v3565 = vpop.f32.mrb[0].mxu0
        %v3566 = vpop.f32.mrb[0].mxu0
        %v3567 = vadd.f32 %v3207, %v3566
        %v3568 = vpop.f32.mrb[0].mxu0
        %3569 = vmatprep.mubr.bf16.mxu0 %v3095
        %3570 = vmatmul.mubr.bf16.gmra.mrb[0].mxu0 %v3094
        %v3571 = vpop.f32.mrb[0].mxu0
        %v3572 = vadd.f32 %v3207, %v3571
        %v3573 = vpop.f32.mrb[0].mxu0
        %v3574 = vpop.f32.mrb[0].mxu0
        %v3575 = vadd.f32 %v3207, %v3574
        %v3576 = vpop.f32.mrb[0].mxu0
        %3577 = vmatprep.mubr.bf16.mxu0 %v3101
        %3578 = vmatmul.mubr.bf16.gmra.mrb[0].mxu0 %v3100
        %v3579 = vpop.f32.mrb[0].mxu0
        %v3580 = vadd.f32 %v3207, %v3579
        %v3581 = vpop.f32.mrb[0].mxu0
        %v3582 = vpop.f32.mrb[0].mxu0
        %v3583 = vadd.f32 %v3207, %v3582
        %v3584 = vpop.f32.mrb[0].mxu0
        %3585 = vdwg.mxu0
        %3586 = vmatprep.subr.bf16.mxu0 0
        %3587 = vmatpush1.bf16.msra.mxu0 %v3417
        %3588 = vmatprep.subr.bf16.mxu0 0
        %3589 = vmatpush1.bf16.msra.mxu0 %v3418
        %3590 = vmatprep.subr.bf16.mxu0 0
        %3591 = vmatpush1.bf16.msra.mxu0 %v3419
        %3592 = vmatprep.subr.bf16.mxu0 0
        %3593 = vmatpush1.bf16.msra.mxu0 %v3420
        %3594 = vmatprep.subr.bf16.mxu0 0
        %3595 = vmatpush1.bf16.msra.mxu0 %v3421
        %3596 = vmatprep.subr.bf16.mxu0 0
        %3597 = vmatpush1.bf16.msra.mxu0 %v3422
        %3598 = vmatprep.subr.bf16.mxu0 0
        %3599 = vmatpush1.bf16.msra.mxu0 %v3423
        %3600 = vmatprep.subr.bf16.mxu0 0
        %3601 = vmatpush1.bf16.msra.mxu0 %v3424
        %3602 = vmatprep.subr.bf16.mxu0 0
        %3603 = vmatpush1.bf16.msra.mxu0 %v3425
        %3604 = vmatprep.subr.bf16.mxu0 0
        %3605 = vmatpush1.bf16.msra.mxu0 %v3426
        %3606 = vmatprep.subr.bf16.mxu0 0
        %3607 = vmatpush1.bf16.msra.mxu0 %v3427
        %3608 = vmatprep.subr.bf16.mxu0 0
        %3609 = vmatpush1.bf16.msra.mxu0 %v3428
        %3610 = vmatprep.subr.bf16.mxu0 0
        %3611 = vmatpush1.bf16.msra.mxu0 %v3429
        %3612 = vmatprep.subr.bf16.mxu0 0
        %3613 = vmatpush1.bf16.msra.mxu0 %v3430
        %3614 = vmatprep.subr.bf16.mxu0 0
        %3615 = vmatpush1.bf16.msra.mxu0 %v3431
        %3616 = vmatprep.subr.bf16.mxu0 0
        %3617 = vmatpush1.bf16.msra.mxu0 %v3432
        %3618 = vmatprep.mubr.bf16.mxu0 %v3067
        %3619 = vmatmul.mubr.bf16.gmra.mrb[0].mxu0 %v3066
        %v3620 = vpop.f32.mrb[0].mxu0
        %v3621 = vadd.f32 %v3532, %v3620
        %v3622 = vpop.f32.mrb[0].mxu0
        %v3623 = vpop.f32.mrb[0].mxu0
        %v3624 = vadd.f32 %v3535, %v3623
        %v3625 = vpop.f32.mrb[0].mxu0
        %3626 = vmatprep.mubr.bf16.mxu0 %v3073
        %3627 = vmatmul.mubr.bf16.gmra.mrb[0].mxu0 %v3072
        %v3628 = vpop.f32.mrb[0].mxu0
        %v3629 = vadd.f32 %v3540, %v3628
        %v3630 = vpop.f32.mrb[0].mxu0
        %v3631 = vpop.f32.mrb[0].mxu0
        %v3632 = vadd.f32 %v3543, %v3631
        %v3633 = vpop.f32.mrb[0].mxu0
        %3634 = vmatprep.mubr.bf16.mxu0 %v3079
        %3635 = vmatmul.mubr.bf16.gmra.mrb[0].mxu0 %v3078
        %v3636 = vpop.f32.mrb[0].mxu0
        %v3637 = vadd.f32 %v3548, %v3636
        %v3638 = vpop.f32.mrb[0].mxu0
        %v3639 = vpop.f32.mrb[0].mxu0
        %v3640 = vadd.f32 %v3551, %v3639
        %v3641 = vpop.f32.mrb[0].mxu0
        %3642 = vmatprep.mubr.bf16.mxu0 %v3085
        %3643 = vmatmul.mubr.bf16.gmra.mrb[0].mxu0 %v3084
        %v3644 = vpop.f32.mrb[0].mxu0
        %v3645 = vadd.f32 %v3556, %v3644
        %v3646 = vpop.f32.mrb[0].mxu0
        %v3647 = vpop.f32.mrb[0].mxu0
        %v3648 = vadd.f32 %v3559, %v3647
        %v3649 = vpop.f32.mrb[0].mxu0
        %3650 = vmatprep.mubr.bf16.mxu0 %v3091
        %3651 = vmatmul.mubr.bf16.gmra.mrb[0].mxu0 %v3090
        %v3652 = vpop.f32.mrb[0].mxu0
        %v3653 = vadd.f32 %v3564, %v3652
        %v3654 = vpop.f32.mrb[0].mxu0
        %v3655 = vpop.f32.mrb[0].mxu0
        %v3656 = vadd.f32 %v3567, %v3655
        %v3657 = vpop.f32.mrb[0].mxu0
        %3658 = vmatprep.mubr.bf16.mxu0 %v3097
        %3659 = vmatmul.mubr.bf16.gmra.mrb[0].mxu0 %v3096
        %v3660 = vpop.f32.mrb[0].mxu0
        %v3661 = vadd.f32 %v3572, %v3660
        %v3662 = vpop.f32.mrb[0].mxu0
        %v3663 = vpop.f32.mrb[0].mxu0
        %v3664 = vadd.f32 %v3575, %v3663
        %v3665 = vpop.f32.mrb[0].mxu0
        %3666 = vmatprep.mubr.bf16.mxu0 %v3103
        %3667 = vmatmul.mubr.bf16.gmra.mrb[0].mxu0 %v3102
        %v3668 = vpop.f32.mrb[0].mxu0
        %v3669 = vadd.f32 %v3580, %v3668
        %v3670 = vpop.f32.mrb[0].mxu0
        %v3671 = vpop.f32.mrb[0].mxu0
        %v3672 = vadd.f32 %v3583, %v3671
        %v3673 = vpop.f32.mrb[0].mxu0
        %3674 = vdwg.mxu0
        %3675 = vmatprep.subr.bf16.mxu0 0
        %3676 = vmatpush1.bf16.msra.mxu0 %v3433
        %3677 = vmatprep.subr.bf16.mxu0 0
        %3678 = vmatpush1.bf16.msra.mxu0 %v3434
        %3679 = vmatprep.subr.bf16.mxu0 0
        %3680 = vmatpush1.bf16.msra.mxu0 %v3435
        %3681 = vmatprep.subr.bf16.mxu0 0
        %3682 = vmatpush1.bf16.msra.mxu0 %v3436
        %3683 = vmatprep.subr.bf16.mxu0 0
        %3684 = vmatpush1.bf16.msra.mxu0 %v3437
        %3685 = vmatprep.subr.bf16.mxu0 0
        %3686 = vmatpush1.bf16.msra.mxu0 %v3438
        %3687 = vmatprep.subr.bf16.mxu0 0
        %3688 = vmatpush1.bf16.msra.mxu0 %v3439
        %3689 = vmatprep.subr.bf16.mxu0 0
        %3690 = vmatpush1.bf16.msra.mxu0 %v3440
        %3691 = vmatprep.subr.bf16.mxu0 0
        %3692 = vmatpush1.bf16.msra.mxu0 %v3441
        %3693 = vmatprep.subr.bf16.mxu0 0
        %3694 = vmatpush1.bf16.msra.mxu0 %v3442
        %3695 = vmatprep.subr.bf16.mxu0 0
        %3696 = vmatpush1.bf16.msra.mxu0 %v3443
        %3697 = vmatprep.subr.bf16.mxu0 0
        %3698 = vmatpush1.bf16.msra.mxu0 %v3444
        %3699 = vmatprep.subr.bf16.mxu0 0
        %3700 = vmatpush1.bf16.msra.mxu0 %v3445
        %3701 = vmatprep.subr.bf16.mxu0 0
        %3702 = vmatpush1.bf16.msra.mxu0 %v3446
        %3703 = vmatprep.subr.bf16.mxu0 0
        %3704 = vmatpush1.bf16.msra.mxu0 %v3447
        %3705 = vmatprep.subr.bf16.mxu0 0
        %3706 = vmatpush1.bf16.msra.mxu0 %v3448
        %3707 = vmatprep.mubr.bf16.mxu0 %v3069
        %3708 = vmatmul.mubr.bf16.gmra.mrb[0].mxu0 %v3068
        %v3709 = vpop.f32.mrb[0].mxu0
        %v3710 = vadd.f32 %v3621, %v3709
        %v3711 = vpop.f32.mrb[0].mxu0
        %v3712 = vpop.f32.mrb[0].mxu0
        %v3713 = vadd.f32 %v3624, %v3712
        %v3714 = vpop.f32.mrb[0].mxu0
        %3715 = vmatprep.mubr.bf16.mxu0 %v3075
        %3716 = vmatmul.mubr.bf16.gmra.mrb[0].mxu0 %v3074
        %v3717 = vpop.f32.mrb[0].mxu0
        %v3718 = vadd.f32 %v3629, %v3717
        %v3719 = vpop.f32.mrb[0].mxu0
        %v3720 = vpop.f32.mrb[0].mxu0
        %v3721 = vadd.f32 %v3632, %v3720
        %v3722 = vpop.f32.mrb[0].mxu0
        %3723 = vmatprep.mubr.bf16.mxu0 %v3081
        %3724 = vmatmul.mubr.bf16.gmra.mrb[0].mxu0 %v3080
        %v3725 = vpop.f32.mrb[0].mxu0
        %v3726 = vadd.f32 %v3637, %v3725
        %v3727 = vpop.f32.mrb[0].mxu0
        %v3728 = vpop.f32.mrb[0].mxu0
        %v3729 = vadd.f32 %v3640, %v3728
        %v3730 = vpop.f32.mrb[0].mxu0
        %3731 = vmatprep.mubr.bf16.mxu0 %v3087
        %3732 = vmatmul.mubr.bf16.gmra.mrb[0].mxu0 %v3086
        %v3733 = vpop.f32.mrb[0].mxu0
        %v3734 = vadd.f32 %v3645, %v3733
        %v3735 = vpop.f32.mrb[0].mxu0
        %v3736 = vpop.f32.mrb[0].mxu0
        %v3737 = vadd.f32 %v3648, %v3736
        %v3738 = vpop.f32.mrb[0].mxu0
        %3739 = vmatprep.mubr.bf16.mxu0 %v3093
        %3740 = vmatmul.mubr.bf16.gmra.mrb[0].mxu0 %v3092
        %v3741 = vpop.f32.mrb[0].mxu0
        %v3742 = vadd.f32 %v3653, %v3741
        %v3743 = vpop.f32.mrb[0].mxu0
        %v3744 = vpop.f32.mrb[0].mxu0
        %v3745 = vadd.f32 %v3656, %v3744
        %v3746 = vpop.f32.mrb[0].mxu0
        %3747 = vmatprep.mubr.bf16.mxu0 %v3099
        %3748 = vmatmul.mubr.bf16.gmra.mrb[0].mxu0 %v3098
        %v3749 = vpop.f32.mrb[0].mxu0
        %v3750 = vadd.f32 %v3661, %v3749
        %v3751 = vpop.f32.mrb[0].mxu0
        %v3752 = vpop.f32.mrb[0].mxu0
        %v3753 = vadd.f32 %v3664, %v3752
        %v3754 = vpop.f32.mrb[0].mxu0
        %3755 = vmatprep.mubr.bf16.mxu0 %v3105
        %3756 = vmatmul.mubr.bf16.gmra.mrb[0].mxu0 %v3104
        %v3757 = vpop.f32.mrb[0].mxu0
        %v3758 = vadd.f32 %v3669, %v3757
        %v3759 = vpop.f32.mrb[0].mxu0
        %v3760 = vpop.f32.mrb[0].mxu0
        %v3761 = vadd.f32 %v3672, %v3760
        %v3762 = vpop.f32.mrb[0].mxu0
        %3763 = vdwg.mxu0
        %v3764 = vmax.f32 %v3710, 0.0
        %v3765 = vmax.f32 %v3713, 0.0
        %v3766 = vmax.f32 %v3718, 0.0
        %v3767 = vmax.f32 %v3721, 0.0
        %v3768 = vmax.f32 %v3726, 0.0
        %v3769 = vmax.f32 %v3729, 0.0
        %v3770 = vmax.f32 %v3734, 0.0
        %v3771 = vmax.f32 %v3737, 0.0
        %v3772 = vmax.f32 %v3742, 0.0
        %v3773 = vmax.f32 %v3745, 0.0
        %v3774 = vmax.f32 %v3750, 0.0
        %v3775 = vmax.f32 %v3753, 0.0
        %v3776 = vmax.f32 %v3758, 0.0
        %v3777 = vmax.f32 %v3761, 0.0
        %3778 = vst [vmem:[#allocation4] sm:$0xff] %v3764
        %3779 = vst [vmem:[#allocation4 + $0x8] sm:$0xff] %v3765
        %3780 = vst [vmem:[#allocation4 + $0x10] sm:$0xff] %v3766
        %3781 = vst [vmem:[#allocation4 + $0x18] sm:$0xff] %v3767
        %3782 = vst [vmem:[#allocation4 + $0x20] sm:$0xff] %v3768
        %3783 = vst [vmem:[#allocation4 + $0x28] sm:$0xff] %v3769
        %3784 = vst [vmem:[#allocation4 + $0x30] sm:$0xff] %v3770
        %3785 = vst [vmem:[#allocation4 + $0x38] sm:$0xff] %v3771
        %3786 = vst [vmem:[#allocation4 + $0x40] sm:$0xff] %v3772
        %3787 = vst [vmem:[#allocation4 + $0x48] sm:$0xff] %v3773
        %3788 = vst [vmem:[#allocation4 + $0x50] sm:$0xff] %v3774
        %3789 = vst [vmem:[#allocation4 + $0x58] sm:$0xff] %v3775
        %3790 = vst [vmem:[#allocation4 + $0x60] sm:$0xff] %v3776
        %3791 = vst [vmem:[#allocation4 + $0x68] sm:$0xff] %v3777
        %v3792 = vld [vmem:[#allocation4] sm:$0xff]
        %v3793 = vld [vmem:[#allocation4 + $0x8] sm:$0xff]
        %v3794 = vld [vmem:[#allocation4 + $0x10] sm:$0xff]
        %v3795 = vld [vmem:[#allocation4 + $0x18] sm:$0xff]
        %v3796 = vld [vmem:[#allocation4 + $0x20] sm:$0xff]
        %v3797 = vld [vmem:[#allocation4 + $0x28] sm:$0xff]
        %v3798 = vld [vmem:[#allocation4 + $0x30] sm:$0xff]
        %v3799 = vld [vmem:[#allocation4 + $0x38] sm:$0xff]
        %v3800 = vld [vmem:[#allocation4 + $0x40] sm:$0xff]
        %v3801 = vld [vmem:[#allocation4 + $0x48] sm:$0xff]
        %v3802 = vld [vmem:[#allocation4 + $0x50] sm:$0xff]
        %v3803 = vld [vmem:[#allocation4 + $0x58] sm:$0xff]
        %v3804 = vld [vmem:[#allocation4 + $0x60] sm:$0xff]
        %v3805 = vld [vmem:[#allocation4 + $0x68] sm:$0xff]
        %v3806 = vpack.c.bf16 %v3792, %v3792
        %v3807 = vpack.c.bf16 %v3793, %v3793
        %v3808 = vpack.c.bf16 %v3794, %v3794
        %v3809 = vpack.c.bf16 %v3795, %v3795
        %v3810 = vpack.c.bf16 %v3796, %v3796
        %v3811 = vpack.c.bf16 %v3797, %v3797
        %v3812 = vpack.c.bf16 %v3798, %v3798
        %v3813 = vpack.c.bf16 %v3799, %v3799
        %v3814 = vpack.c.bf16 %v3800, %v3800
        %v3815 = vpack.c.bf16 %v3801, %v3801
        %v3816 = vpack.c.bf16 %v3802, %v3802
        %v3817 = vpack.c.bf16 %v3803, %v3803
        %v3818 = vpack.c.bf16 %v3804, %v3804
        %v3819 = vpack.c.bf16 %v3805, %v3805
        %v3820 = vld [vmem:[#allocation16] sm:$0xf]
        %v3821 = vld [vmem:[#allocation16 + $0x4] sm:$0xf]
        %v3822 = vld [vmem:[#allocation16 + $0x8] sm:$0xf]
        %v3823 = vld [vmem:[#allocation16 + $0xc] sm:$0xf]
        %v3824 = vld [vmem:[#allocation16 + $0x10] sm:$0xf]
        %v3825 = vld [vmem:[#allocation16 + $0x14] sm:$0xf]
        %v3826 = vld [vmem:[#allocation16 + $0x18] sm:$0xf]
        %v3827 = vld [vmem:[#allocation16 + $0x1c] sm:$0xf]
        %v3828 = vld [vmem:[#allocation16 + $0x20] sm:$0xf]
        %v3829 = vld [vmem:[#allocation16 + $0x24] sm:$0xf]
        %v3830 = vld [vmem:[#allocation16 + $0x28] sm:$0xf]
        %v3831 = vld [vmem:[#allocation16 + $0x2c] sm:$0xf]
        %v3832 = vld [vmem:[#allocation16 + $0x30] sm:$0xf]
        %v3833 = vld [vmem:[#allocation16 + $0x34] sm:$0xf]
        %v3834 = vld [vmem:[#allocation16 + $0x38] sm:$0xf]
        %v3835 = vld [vmem:[#allocation16 + $0x3c] sm:$0xf]
        %v3836 = vld [vmem:[#allocation16 + $0x40] sm:$0xf]
        %v3837 = vld [vmem:[#allocation16 + $0x44] sm:$0xf]
        %v3838 = vld [vmem:[#allocation16 + $0x48] sm:$0xf]
        %v3839 = vld [vmem:[#allocation16 + $0x4c] sm:$0xf]
        %v3840 = vld [vmem:[#allocation16 + $0x50] sm:$0xf]
        %v3841 = vld [vmem:[#allocation16 + $0x54] sm:$0xf]
        %v3842 = vld [vmem:[#allocation16 + $0x58] sm:$0xf]
        %v3843 = vld [vmem:[#allocation16 + $0x5c] sm:$0xf]
        %v3844 = vld [vmem:[#allocation16 + $0x60] sm:$0xf]
        %v3845 = vld [vmem:[#allocation16 + $0x64] sm:$0xf]
        %v3846 = vld [vmem:[#allocation16 + $0x68] sm:$0xf]
        %v3847 = vld [vmem:[#allocation16 + $0x6c] sm:$0xf]
        %v3848 = vld [vmem:[#allocation16 + $0x70] sm:$0xf]
        %v3849 = vld [vmem:[#allocation16 + $0x74] sm:$0xf]
        %v3850 = vld [vmem:[#allocation16 + $0x78] sm:$0xf]
        %v3851 = vld [vmem:[#allocation16 + $0x7c] sm:$0xf]
        %v3852 = vld [vmem:[#allocation16 + $0x80] sm:$0xf]
        %v3853 = vld [vmem:[#allocation16 + $0x84] sm:$0xf]
        %v3854 = vld [vmem:[#allocation16 + $0x88] sm:$0xf]
        %v3855 = vld [vmem:[#allocation16 + $0x8c] sm:$0xf]
        %v3856 = vld [vmem:[#allocation16 + $0x90] sm:$0xf]
        %v3857 = vld [vmem:[#allocation16 + $0x94] sm:$0xf]
        %v3858 = vld [vmem:[#allocation16 + $0x98] sm:$0xf]
        %v3859 = vld [vmem:[#allocation16 + $0x9c] sm:$0xf]
        %v3860 = vld [vmem:[#allocation16 + $0xa0] sm:$0xf]
        %v3861 = vld [vmem:[#allocation16 + $0xa4] sm:$0xf]
        %v3862 = vld [vmem:[#allocation16 + $0xa8] sm:$0xf]
        %v3863 = vld [vmem:[#allocation16 + $0xac] sm:$0xf]
        %v3864 = vld [vmem:[#allocation16 + $0xb0] sm:$0xf]
        %v3865 = vld [vmem:[#allocation16 + $0xb4] sm:$0xf]
        %v3866 = vld [vmem:[#allocation16 + $0xb8] sm:$0xf]
        %v3867 = vld [vmem:[#allocation16 + $0xbc] sm:$0xf]
        %v3868 = vld [vmem:[#allocation16 + $0xc0] sm:$0xf]
        %v3869 = vld [vmem:[#allocation16 + $0xc4] sm:$0xf]
        %v3870 = vld [vmem:[#allocation16 + $0xc8] sm:$0xf]
        %v3871 = vld [vmem:[#allocation16 + $0xcc] sm:$0xf]
        %v3872 = vld [vmem:[#allocation16 + $0xd0] sm:$0xf]
        %v3873 = vld [vmem:[#allocation16 + $0xd4] sm:$0xf]
        %v3874 = vld [vmem:[#allocation16 + $0xd8] sm:$0xf]
        %v3875 = vld [vmem:[#allocation16 + $0xdc] sm:$0xf]
        %v3876 = vld [vmem:[#allocation16 + $0xe0] sm:$0xf]
        %v3877 = vld [vmem:[#allocation16 + $0xe4] sm:$0xf]
        %v3878 = vld [vmem:[#allocation16 + $0xe8] sm:$0xf]
        %v3879 = vld [vmem:[#allocation16 + $0xec] sm:$0xf]
        %v3880 = vld [vmem:[#allocation16 + $0xf0] sm:$0xf]
        %v3881 = vld [vmem:[#allocation16 + $0xf4] sm:$0xf]
        %v3882 = vld [vmem:[#allocation16 + $0xf8] sm:$0xf]
        %v3883 = vld [vmem:[#allocation16 + $0xfc] sm:$0xf]
        %v3884 = vld [vmem:[#allocation16 + $0x100] sm:$0xf]
        %v3885 = vld [vmem:[#allocation16 + $0x104] sm:$0xf]
        %v3886 = vld [vmem:[#allocation16 + $0x108] sm:$0xf]
        %v3887 = vld [vmem:[#allocation16 + $0x10c] sm:$0xf]
        %v3888 = vld [vmem:[#allocation16 + $0x110] sm:$0xf]
        %v3889 = vld [vmem:[#allocation16 + $0x114] sm:$0xf]
        %v3890 = vld [vmem:[#allocation16 + $0x118] sm:$0xf]
        %v3891 = vld [vmem:[#allocation16 + $0x11c] sm:$0xf]
        %v3892 = vld [vmem:[#allocation16 + $0x120] sm:$0xf]
        %v3893 = vld [vmem:[#allocation16 + $0x124] sm:$0xf]
        %v3894 = vld [vmem:[#allocation16 + $0x128] sm:$0xf]
        %v3895 = vld [vmem:[#allocation16 + $0x12c] sm:$0xf]
        %v3896 = vld [vmem:[#allocation16 + $0x130] sm:$0xf]
        %v3897 = vld [vmem:[#allocation16 + $0x134] sm:$0xf]
        %v3898 = vld [vmem:[#allocation16 + $0x138] sm:$0xf]
        %v3899 = vld [vmem:[#allocation16 + $0x13c] sm:$0xf]
        %v3900 = vld [vmem:[#allocation16 + $0x140] sm:$0xf]
        %v3901 = vld [vmem:[#allocation16 + $0x144] sm:$0xf]
        %v3902 = vld [vmem:[#allocation16 + $0x148] sm:$0xf]
        %v3903 = vld [vmem:[#allocation16 + $0x14c] sm:$0xf]
        %v3904 = vld [vmem:[#allocation16 + $0x150] sm:$0xf]
        %v3905 = vld [vmem:[#allocation16 + $0x154] sm:$0xf]
        %v3906 = vld [vmem:[#allocation16 + $0x158] sm:$0xf]
        %v3907 = vld [vmem:[#allocation16 + $0x15c] sm:$0xf]
        %v3908 = vld [vmem:[#allocation16 + $0x160] sm:$0xf]
        %v3909 = vld [vmem:[#allocation16 + $0x164] sm:$0xf]
        %v3910 = vld [vmem:[#allocation16 + $0x168] sm:$0xf]
        %v3911 = vld [vmem:[#allocation16 + $0x16c] sm:$0xf]
        %v3912 = vld [vmem:[#allocation16 + $0x170] sm:$0xf]
        %v3913 = vld [vmem:[#allocation16 + $0x174] sm:$0xf]
        %v3914 = vld [vmem:[#allocation16 + $0x178] sm:$0xf]
        %v3915 = vld [vmem:[#allocation16 + $0x17c] sm:$0xf]
        %v3916 = vld [vmem:[#allocation16 + $0x180] sm:$0xf]
        %v3917 = vld [vmem:[#allocation16 + $0x184] sm:$0xf]
        %v3918 = vld [vmem:[#allocation16 + $0x188] sm:$0xf]
        %v3919 = vld [vmem:[#allocation16 + $0x18c] sm:$0xf]
        %v3920 = vld [vmem:[#allocation16 + $0x190] sm:$0xf]
        %v3921 = vld [vmem:[#allocation16 + $0x194] sm:$0xf]
        %v3922 = vld [vmem:[#allocation16 + $0x198] sm:$0xf]
        %v3923 = vld [vmem:[#allocation16 + $0x19c] sm:$0xf]
        %v3924 = vld [vmem:[#allocation16 + $0x1a0] sm:$0xf]
        %v3925 = vld [vmem:[#allocation16 + $0x1a4] sm:$0xf]
        %v3926 = vld [vmem:[#allocation16 + $0x1a8] sm:$0xf]
        %v3927 = vld [vmem:[#allocation16 + $0x1ac] sm:$0xf]
        %v3928 = vld [vmem:[#allocation16 + $0x1b0] sm:$0xf]
        %v3929 = vld [vmem:[#allocation16 + $0x1b4] sm:$0xf]
        %v3930 = vld [vmem:[#allocation16 + $0x1b8] sm:$0xf]
        %v3931 = vld [vmem:[#allocation16 + $0x1bc] sm:$0xf]
        %v3932 = vld [vmem:[#allocation16 + $0x1c0] sm:$0xf]
        %v3933 = vld [vmem:[#allocation16 + $0x1c4] sm:$0xf]
        %v3934 = vld [vmem:[#allocation16 + $0x1c8] sm:$0xf]
        %v3935 = vld [vmem:[#allocation16 + $0x1cc] sm:$0xf]
        %v3936 = vld [vmem:[#allocation16 + $0x1d0] sm:$0xf]
        %v3937 = vld [vmem:[#allocation16 + $0x1d4] sm:$0xf]
        %v3938 = vld [vmem:[#allocation16 + $0x1d8] sm:$0xf]
        %v3939 = vld [vmem:[#allocation16 + $0x1dc] sm:$0xf]
        %v3940 = vld [vmem:[#allocation16 + $0x1e0] sm:$0xf]
        %v3941 = vld [vmem:[#allocation16 + $0x1e4] sm:$0xf]
        %v3942 = vld [vmem:[#allocation16 + $0x1e8] sm:$0xf]
        %v3943 = vld [vmem:[#allocation16 + $0x1ec] sm:$0xf]
        %v3944 = vld [vmem:[#allocation16 + $0x1f0] sm:$0xf]
        %v3945 = vld [vmem:[#allocation16 + $0x1f4] sm:$0xf]
        %v3946 = vld [vmem:[#allocation16 + $0x1f8] sm:$0xf]
        %v3947 = vld [vmem:[#allocation16 + $0x1fc] sm:$0xf]
        %v3948 = vld [vmem:[#allocation16 + $0x200] sm:$0xf]
        %v3949 = vld [vmem:[#allocation16 + $0x204] sm:$0xf]
        %v3950 = vld [vmem:[#allocation16 + $0x208] sm:$0xf]
        %v3951 = vld [vmem:[#allocation16 + $0x20c] sm:$0xf]
        %v3952 = vld [vmem:[#allocation16 + $0x210] sm:$0xf]
        %v3953 = vld [vmem:[#allocation16 + $0x214] sm:$0xf]
        %v3954 = vld [vmem:[#allocation16 + $0x218] sm:$0xf]
        %v3955 = vld [vmem:[#allocation16 + $0x21c] sm:$0xf]
        %v3956 = vld [vmem:[#allocation16 + $0x220] sm:$0xf]
        %v3957 = vld [vmem:[#allocation16 + $0x224] sm:$0xf]
        %v3958 = vld [vmem:[#allocation16 + $0x228] sm:$0xf]
        %v3959 = vld [vmem:[#allocation16 + $0x22c] sm:$0xf]
        %v3960 = vld [vmem:[#allocation16 + $0x230] sm:$0xf]
        %v3961 = vld [vmem:[#allocation16 + $0x234] sm:$0xf]
        %v3962 = vld [vmem:[#allocation16 + $0x238] sm:$0xf]
        %v3963 = vld [vmem:[#allocation16 + $0x23c] sm:$0xf]
        %v3964 = vld [vmem:[#allocation16 + $0x240] sm:$0xf]
        %v3965 = vld [vmem:[#allocation16 + $0x244] sm:$0xf]
        %v3966 = vld [vmem:[#allocation16 + $0x248] sm:$0xf]
        %v3967 = vld [vmem:[#allocation16 + $0x24c] sm:$0xf]
        %v3968 = vld [vmem:[#allocation16 + $0x250] sm:$0xf]
        %v3969 = vld [vmem:[#allocation16 + $0x254] sm:$0xf]
        %v3970 = vld [vmem:[#allocation16 + $0x258] sm:$0xf]
        %v3971 = vld [vmem:[#allocation16 + $0x25c] sm:$0xf]
        %v3972 = vld [vmem:[#allocation16 + $0x260] sm:$0xf]
        %v3973 = vld [vmem:[#allocation16 + $0x264] sm:$0xf]
        %v3974 = vld [vmem:[#allocation16 + $0x268] sm:$0xf]
        %v3975 = vld [vmem:[#allocation16 + $0x26c] sm:$0xf]
        %v3976 = vld [vmem:[#allocation16 + $0x270] sm:$0xf]
        %v3977 = vld [vmem:[#allocation16 + $0x274] sm:$0xf]
        %v3978 = vld [vmem:[#allocation16 + $0x278] sm:$0xf]
        %v3979 = vld [vmem:[#allocation16 + $0x27c] sm:$0xf]
        %v3980 = vld [vmem:[#allocation16 + $0x280] sm:$0xf]
        %v3981 = vld [vmem:[#allocation16 + $0x284] sm:$0xf]
        %v3982 = vld [vmem:[#allocation16 + $0x288] sm:$0xf]
        %v3983 = vld [vmem:[#allocation16 + $0x28c] sm:$0xf]
        %v3984 = vld [vmem:[#allocation16 + $0x290] sm:$0xf]
        %v3985 = vld [vmem:[#allocation16 + $0x294] sm:$0xf]
        %v3986 = vld [vmem:[#allocation16 + $0x298] sm:$0xf]
        %v3987 = vld [vmem:[#allocation16 + $0x29c] sm:$0xf]
        %v3988 = vld [vmem:[#allocation16 + $0x2a0] sm:$0xf]
        %v3989 = vld [vmem:[#allocation16 + $0x2a4] sm:$0xf]
        %v3990 = vld [vmem:[#allocation16 + $0x2a8] sm:$0xf]
        %v3991 = vld [vmem:[#allocation16 + $0x2ac] sm:$0xf]
        %v3992 = vld [vmem:[#allocation16 + $0x2b0] sm:$0xf]
        %v3993 = vld [vmem:[#allocation16 + $0x2b4] sm:$0xf]
        %v3994 = vld [vmem:[#allocation16 + $0x2b8] sm:$0xf]
        %v3995 = vld [vmem:[#allocation16 + $0x2bc] sm:$0xf]
        %v3996 = vld [vmem:[#allocation16 + $0x2c0] sm:$0xf]
        %v3997 = vld [vmem:[#allocation16 + $0x2c4] sm:$0xf]
        %v3998 = vld [vmem:[#allocation16 + $0x2c8] sm:$0xf]
        %v3999 = vld [vmem:[#allocation16 + $0x2cc] sm:$0xf]
        %v4000 = vld [vmem:[#allocation16 + $0x2d0] sm:$0xf]
        %v4001 = vld [vmem:[#allocation16 + $0x2d4] sm:$0xf]
        %v4002 = vld [vmem:[#allocation16 + $0x2d8] sm:$0xf]
        %v4003 = vld [vmem:[#allocation16 + $0x2dc] sm:$0xf]
        %v4004 = vld [vmem:[#allocation16 + $0x2e0] sm:$0xf]
        %v4005 = vld [vmem:[#allocation16 + $0x2e4] sm:$0xf]
        %v4006 = vld [vmem:[#allocation16 + $0x2e8] sm:$0xf]
        %v4007 = vld [vmem:[#allocation16 + $0x2ec] sm:$0xf]
        %v4008 = vld [vmem:[#allocation16 + $0x2f0] sm:$0xf]
        %v4009 = vld [vmem:[#allocation16 + $0x2f4] sm:$0xf]
        %v4010 = vld [vmem:[#allocation16 + $0x2f8] sm:$0xf]
        %v4011 = vld [vmem:[#allocation16 + $0x2fc] sm:$0xf]
        %v4012 = vld [vmem:[#allocation16 + $0x300] sm:$0xf]
        %v4013 = vld [vmem:[#allocation16 + $0x304] sm:$0xf]
        %v4014 = vld [vmem:[#allocation16 + $0x308] sm:$0xf]
        %v4015 = vld [vmem:[#allocation16 + $0x30c] sm:$0xf]
        %v4016 = vld [vmem:[#allocation16 + $0x310] sm:$0xf]
        %v4017 = vld [vmem:[#allocation16 + $0x314] sm:$0xf]
        %v4018 = vld [vmem:[#allocation16 + $0x318] sm:$0xf]
        %v4019 = vld [vmem:[#allocation16 + $0x31c] sm:$0xf]
        %v4020 = vld [vmem:[#allocation16 + $0x320] sm:$0xf]
        %v4021 = vld [vmem:[#allocation16 + $0x324] sm:$0xf]
        %v4022 = vld [vmem:[#allocation16 + $0x328] sm:$0xf]
        %v4023 = vld [vmem:[#allocation16 + $0x32c] sm:$0xf]
        %v4024 = vld [vmem:[#allocation16 + $0x330] sm:$0xf]
        %v4025 = vld [vmem:[#allocation16 + $0x334] sm:$0xf]
        %v4026 = vld [vmem:[#allocation16 + $0x338] sm:$0xf]
        %v4027 = vld [vmem:[#allocation16 + $0x33c] sm:$0xf]
        %v4028 = vld [vmem:[#allocation16 + $0x340] sm:$0xf]
        %v4029 = vld [vmem:[#allocation16 + $0x344] sm:$0xf]
        %v4030 = vld [vmem:[#allocation16 + $0x348] sm:$0xf]
        %v4031 = vld [vmem:[#allocation16 + $0x34c] sm:$0xf]
        %v4032 = vld [vmem:[#allocation16 + $0x350] sm:$0xf]
        %v4033 = vld [vmem:[#allocation16 + $0x354] sm:$0xf]
        %v4034 = vld [vmem:[#allocation16 + $0x358] sm:$0xf]
        %v4035 = vld [vmem:[#allocation16 + $0x35c] sm:$0xf]
        %v4036 = vld [vmem:[#allocation16 + $0x360] sm:$0xf]
        %v4037 = vld [vmem:[#allocation16 + $0x364] sm:$0xf]
        %v4038 = vld [vmem:[#allocation16 + $0x368] sm:$0xf]
        %v4039 = vld [vmem:[#allocation16 + $0x36c] sm:$0xf]
        %v4040 = vld [vmem:[#allocation16 + $0x370] sm:$0xf]
        %v4041 = vld [vmem:[#allocation16 + $0x374] sm:$0xf]
        %v4042 = vld [vmem:[#allocation16 + $0x378] sm:$0xf]
        %v4043 = vld [vmem:[#allocation16 + $0x37c] sm:$0xf]
        %v4044 = vld [vmem:[#allocation17] sm:$0x1]
        %v4046 = vlaneseq
        %v4047 = vshrl.u32 %v4046, 7
        %v4048 = vsub.s32 0, %v4047
        %v4049 = vrot.slane %v4044, %v4048
        %v4275 = vunpack.c.l.b16 %v3820
        %v4276 = vunpack.c.l.b16 %v3821
        %v4277 = vunpack.c.l.b16 %v3822
        %v4278 = vunpack.c.l.b16 %v3823
        %v4279 = vunpack.c.l.b16 %v3824
        %v4280 = vunpack.c.l.b16 %v3825
        %v4281 = vunpack.c.l.b16 %v3826
        %v4282 = vunpack.c.l.b16 %v3827
        %v4283 = vunpack.c.l.b16 %v3828
        %v4284 = vunpack.c.l.b16 %v3829
        %v4285 = vunpack.c.l.b16 %v3830
        %v4286 = vunpack.c.l.b16 %v3831
        %v4287 = vunpack.c.l.b16 %v3832
        %v4288 = vunpack.c.l.b16 %v3833
        %v4289 = vunpack.c.l.b16 %v3834
        %v4290 = vunpack.c.l.b16 %v3835
        %v4291 = vunpack.c.l.b16 %v3836
        %v4292 = vunpack.c.l.b16 %v3837
        %v4293 = vunpack.c.l.b16 %v3838
        %v4294 = vunpack.c.l.b16 %v3839
        %v4295 = vunpack.c.l.b16 %v3840
        %v4296 = vunpack.c.l.b16 %v3841
        %v4297 = vunpack.c.l.b16 %v3842
        %v4298 = vunpack.c.l.b16 %v3843
        %v4299 = vunpack.c.l.b16 %v3844
        %v4300 = vunpack.c.l.b16 %v3845
        %v4301 = vunpack.c.l.b16 %v3846
        %v4302 = vunpack.c.l.b16 %v3847
        %v4303 = vunpack.c.l.b16 %v3848
        %v4304 = vunpack.c.l.b16 %v3849
        %v4305 = vunpack.c.l.b16 %v3850
        %v4306 = vunpack.c.l.b16 %v3851
        %v4307 = vunpack.c.l.b16 %v3852
        %v4308 = vunpack.c.l.b16 %v3853
        %v4309 = vunpack.c.l.b16 %v3854
        %v4310 = vunpack.c.l.b16 %v3855
        %v4311 = vunpack.c.l.b16 %v3856
        %v4312 = vunpack.c.l.b16 %v3857
        %v4313 = vunpack.c.l.b16 %v3858
        %v4314 = vunpack.c.l.b16 %v3859
        %v4315 = vunpack.c.l.b16 %v3860
        %v4316 = vunpack.c.l.b16 %v3861
        %v4317 = vunpack.c.l.b16 %v3862
        %v4318 = vunpack.c.l.b16 %v3863
        %v4319 = vunpack.c.l.b16 %v3864
        %v4320 = vunpack.c.l.b16 %v3865
        %v4321 = vunpack.c.l.b16 %v3866
        %v4322 = vunpack.c.l.b16 %v3867
        %v4323 = vunpack.c.l.b16 %v3868
        %v4324 = vunpack.c.l.b16 %v3869
        %v4325 = vunpack.c.l.b16 %v3870
        %v4326 = vunpack.c.l.b16 %v3871
        %v4327 = vunpack.c.l.b16 %v3872
        %v4328 = vunpack.c.l.b16 %v3873
        %v4329 = vunpack.c.l.b16 %v3874
        %v4330 = vunpack.c.l.b16 %v3875
        %v4331 = vunpack.c.l.b16 %v3876
        %v4332 = vunpack.c.l.b16 %v3877
        %v4333 = vunpack.c.l.b16 %v3878
        %v4334 = vunpack.c.l.b16 %v3879
        %v4335 = vunpack.c.l.b16 %v3880
        %v4336 = vunpack.c.l.b16 %v3881
        %v4337 = vunpack.c.l.b16 %v3882
        %v4338 = vunpack.c.l.b16 %v3883
        %v4339 = vunpack.c.l.b16 %v3884
        %v4340 = vunpack.c.l.b16 %v3885
        %v4341 = vunpack.c.l.b16 %v3886
        %v4342 = vunpack.c.l.b16 %v3887
        %v4343 = vunpack.c.l.b16 %v3888
        %v4344 = vunpack.c.l.b16 %v3889
        %v4345 = vunpack.c.l.b16 %v3890
        %v4346 = vunpack.c.l.b16 %v3891
        %v4347 = vunpack.c.l.b16 %v3892
        %v4348 = vunpack.c.l.b16 %v3893
        %v4349 = vunpack.c.l.b16 %v3894
        %v4350 = vunpack.c.l.b16 %v3895
        %v4351 = vunpack.c.l.b16 %v3896
        %v4352 = vunpack.c.l.b16 %v3897
        %v4353 = vunpack.c.l.b16 %v3898
        %v4354 = vunpack.c.l.b16 %v3899
        %v4355 = vunpack.c.l.b16 %v3900
        %v4356 = vunpack.c.l.b16 %v3901
        %v4357 = vunpack.c.l.b16 %v3902
        %v4358 = vunpack.c.l.b16 %v3903
        %v4359 = vunpack.c.l.b16 %v3904
        %v4360 = vunpack.c.l.b16 %v3905
        %v4361 = vunpack.c.l.b16 %v3906
        %v4362 = vunpack.c.l.b16 %v3907
        %v4363 = vunpack.c.l.b16 %v3908
        %v4364 = vunpack.c.l.b16 %v3909
        %v4365 = vunpack.c.l.b16 %v3910
        %v4366 = vunpack.c.l.b16 %v3911
        %v4367 = vunpack.c.l.b16 %v3912
        %v4368 = vunpack.c.l.b16 %v3913
        %v4369 = vunpack.c.l.b16 %v3914
        %v4370 = vunpack.c.l.b16 %v3915
        %v4371 = vunpack.c.l.b16 %v3916
        %v4372 = vunpack.c.l.b16 %v3917
        %v4373 = vunpack.c.l.b16 %v3918
        %v4374 = vunpack.c.l.b16 %v3919
        %v4375 = vunpack.c.l.b16 %v3920
        %v4376 = vunpack.c.l.b16 %v3921
        %v4377 = vunpack.c.l.b16 %v3922
        %v4378 = vunpack.c.l.b16 %v3923
        %v4379 = vunpack.c.l.b16 %v3924
        %v4380 = vunpack.c.l.b16 %v3925
        %v4381 = vunpack.c.l.b16 %v3926
        %v4382 = vunpack.c.l.b16 %v3927
        %v4383 = vunpack.c.l.b16 %v3928
        %v4384 = vunpack.c.l.b16 %v3929
        %v4385 = vunpack.c.l.b16 %v3930
        %v4386 = vunpack.c.l.b16 %v3931
        %v4387 = vunpack.c.l.b16 %v3932
        %v4388 = vunpack.c.l.b16 %v3933
        %v4389 = vunpack.c.l.b16 %v3934
        %v4390 = vunpack.c.l.b16 %v3935
        %v4391 = vunpack.c.l.b16 %v3936
        %v4392 = vunpack.c.l.b16 %v3937
        %v4393 = vunpack.c.l.b16 %v3938
        %v4394 = vunpack.c.l.b16 %v3939
        %v4395 = vunpack.c.l.b16 %v3940
        %v4396 = vunpack.c.l.b16 %v3941
        %v4397 = vunpack.c.l.b16 %v3942
        %v4398 = vunpack.c.l.b16 %v3943
        %v4399 = vunpack.c.l.b16 %v3944
        %v4400 = vunpack.c.l.b16 %v3945
        %v4401 = vunpack.c.l.b16 %v3946
        %v4402 = vunpack.c.l.b16 %v3947
        %v4403 = vunpack.c.l.b16 %v3948
        %v4404 = vunpack.c.l.b16 %v3949
        %v4405 = vunpack.c.l.b16 %v3950
        %v4406 = vunpack.c.l.b16 %v3951
        %v4407 = vunpack.c.l.b16 %v3952
        %v4408 = vunpack.c.l.b16 %v3953
        %v4409 = vunpack.c.l.b16 %v3954
        %v4410 = vunpack.c.l.b16 %v3955
        %v4411 = vunpack.c.l.b16 %v3956
        %v4412 = vunpack.c.l.b16 %v3957
        %v4413 = vunpack.c.l.b16 %v3958
        %v4414 = vunpack.c.l.b16 %v3959
        %v4415 = vunpack.c.l.b16 %v3960
        %v4416 = vunpack.c.l.b16 %v3961
        %v4417 = vunpack.c.l.b16 %v3962
        %v4418 = vunpack.c.l.b16 %v3963
        %v4419 = vunpack.c.l.b16 %v3964
        %v4420 = vunpack.c.l.b16 %v3965
        %v4421 = vunpack.c.l.b16 %v3966
        %v4422 = vunpack.c.l.b16 %v3967
        %v4423 = vunpack.c.l.b16 %v3968
        %v4424 = vunpack.c.l.b16 %v3969
        %v4425 = vunpack.c.l.b16 %v3970
        %v4426 = vunpack.c.l.b16 %v3971
        %v4427 = vunpack.c.l.b16 %v3972
        %v4428 = vunpack.c.l.b16 %v3973
        %v4429 = vunpack.c.l.b16 %v3974
        %v4430 = vunpack.c.l.b16 %v3975
        %v4431 = vunpack.c.l.b16 %v3976
        %v4432 = vunpack.c.l.b16 %v3977
        %v4433 = vunpack.c.l.b16 %v3978
        %v4434 = vunpack.c.l.b16 %v3979
        %v4435 = vunpack.c.l.b16 %v3980
        %v4436 = vunpack.c.l.b16 %v3981
        %v4437 = vunpack.c.l.b16 %v3982
        %v4438 = vunpack.c.l.b16 %v3983
        %v4439 = vunpack.c.l.b16 %v3984
        %v4440 = vunpack.c.l.b16 %v3985
        %v4441 = vunpack.c.l.b16 %v3986
        %v4442 = vunpack.c.l.b16 %v3987
        %v4443 = vunpack.c.l.b16 %v3988
        %v4444 = vunpack.c.l.b16 %v3989
        %v4445 = vunpack.c.l.b16 %v3990
        %v4446 = vunpack.c.l.b16 %v3991
        %v4447 = vunpack.c.l.b16 %v3992
        %v4448 = vunpack.c.l.b16 %v3993
        %v4449 = vunpack.c.l.b16 %v3994
        %v4450 = vunpack.c.l.b16 %v3995
        %v4451 = vunpack.c.l.b16 %v3996
        %v4452 = vunpack.c.l.b16 %v3997
        %v4453 = vunpack.c.l.b16 %v3998
        %v4454 = vunpack.c.l.b16 %v3999
        %v4455 = vunpack.c.l.b16 %v4000
        %v4456 = vunpack.c.l.b16 %v4001
        %v4457 = vunpack.c.l.b16 %v4002
        %v4458 = vunpack.c.l.b16 %v4003
        %v4459 = vunpack.c.l.b16 %v4004
        %v4460 = vunpack.c.l.b16 %v4005
        %v4461 = vunpack.c.l.b16 %v4006
        %v4462 = vunpack.c.l.b16 %v4007
        %v4463 = vunpack.c.l.b16 %v4008
        %v4464 = vunpack.c.l.b16 %v4009
        %v4465 = vunpack.c.l.b16 %v4010
        %v4466 = vunpack.c.l.b16 %v4011
        %v4467 = vunpack.c.l.b16 %v4012
        %v4468 = vunpack.c.l.b16 %v4013
        %v4469 = vunpack.c.l.b16 %v4014
        %v4470 = vunpack.c.l.b16 %v4015
        %v4471 = vunpack.c.l.b16 %v4016
        %v4472 = vunpack.c.l.b16 %v4017
        %v4473 = vunpack.c.l.b16 %v4018
        %v4474 = vunpack.c.l.b16 %v4019
        %v4475 = vunpack.c.l.b16 %v4020
        %v4476 = vunpack.c.l.b16 %v4021
        %v4477 = vunpack.c.l.b16 %v4022
        %v4478 = vunpack.c.l.b16 %v4023
        %v4479 = vunpack.c.l.b16 %v4024
        %v4480 = vunpack.c.l.b16 %v4025
        %v4481 = vunpack.c.l.b16 %v4026
        %v4482 = vunpack.c.l.b16 %v4027
        %v4483 = vunpack.c.l.b16 %v4028
        %v4484 = vunpack.c.l.b16 %v4029
        %v4485 = vunpack.c.l.b16 %v4030
        %v4486 = vunpack.c.l.b16 %v4031
        %v4487 = vunpack.c.l.b16 %v4032
        %v4488 = vunpack.c.l.b16 %v4033
        %v4489 = vunpack.c.l.b16 %v4034
        %v4490 = vunpack.c.l.b16 %v4035
        %v4491 = vunpack.c.l.b16 %v4036
        %v4492 = vunpack.c.l.b16 %v4037
        %v4493 = vunpack.c.l.b16 %v4038
        %v4494 = vunpack.c.l.b16 %v4039
        %v4495 = vunpack.c.l.b16 %v4040
        %v4496 = vunpack.c.l.b16 %v4041
        %v4497 = vunpack.c.l.b16 %v4042
        %v4498 = vunpack.c.l.b16 %v4043
        %v4499 = vpack.c.b16 %v4276, %v4275
        %v4500 = vpack.c.b16 %v4278, %v4277
        %v4501 = vpack.c.b16 %v4280, %v4279
        %v4502 = vpack.c.b16 %v4282, %v4281
        %v4503 = vpack.c.b16 %v4284, %v4283
        %v4504 = vpack.c.b16 %v4286, %v4285
        %v4505 = vpack.c.b16 %v4288, %v4287
        %v4506 = vpack.c.b16 %v4290, %v4289
        %v4507 = vpack.c.b16 %v4292, %v4291
        %v4508 = vpack.c.b16 %v4294, %v4293
        %v4509 = vpack.c.b16 %v4296, %v4295
        %v4510 = vpack.c.b16 %v4298, %v4297
        %v4511 = vpack.c.b16 %v4300, %v4299
        %v4512 = vpack.c.b16 %v4302, %v4301
        %v4513 = vpack.c.b16 %v4304, %v4303
        %v4514 = vpack.c.b16 %v4306, %v4305
        %v4515 = vpack.c.b16 %v4308, %v4307
        %v4516 = vpack.c.b16 %v4310, %v4309
        %v4517 = vpack.c.b16 %v4312, %v4311
        %v4518 = vpack.c.b16 %v4314, %v4313
        %v4519 = vpack.c.b16 %v4316, %v4315
        %v4520 = vpack.c.b16 %v4318, %v4317
        %v4521 = vpack.c.b16 %v4320, %v4319
        %v4522 = vpack.c.b16 %v4322, %v4321
        %v4523 = vpack.c.b16 %v4324, %v4323
        %v4524 = vpack.c.b16 %v4326, %v4325
        %v4525 = vpack.c.b16 %v4328, %v4327
        %v4526 = vpack.c.b16 %v4330, %v4329
        %v4527 = vpack.c.b16 %v4332, %v4331
        %v4528 = vpack.c.b16 %v4334, %v4333
        %v4529 = vpack.c.b16 %v4336, %v4335
        %v4530 = vpack.c.b16 %v4338, %v4337
        %v4531 = vpack.c.b16 %v4340, %v4339
        %v4532 = vpack.c.b16 %v4342, %v4341
        %v4533 = vpack.c.b16 %v4344, %v4343
        %v4534 = vpack.c.b16 %v4346, %v4345
        %v4535 = vpack.c.b16 %v4348, %v4347
        %v4536 = vpack.c.b16 %v4350, %v4349
        %v4537 = vpack.c.b16 %v4352, %v4351
        %v4538 = vpack.c.b16 %v4354, %v4353
        %v4539 = vpack.c.b16 %v4356, %v4355
        %v4540 = vpack.c.b16 %v4358, %v4357
        %v4541 = vpack.c.b16 %v4360, %v4359
        %v4542 = vpack.c.b16 %v4362, %v4361
        %v4543 = vpack.c.b16 %v4364, %v4363
        %v4544 = vpack.c.b16 %v4366, %v4365
        %v4545 = vpack.c.b16 %v4368, %v4367
        %v4546 = vpack.c.b16 %v4370, %v4369
        %v4547 = vpack.c.b16 %v4372, %v4371
        %v4548 = vpack.c.b16 %v4374, %v4373
        %v4549 = vpack.c.b16 %v4376, %v4375
        %v4550 = vpack.c.b16 %v4378, %v4377
        %v4551 = vpack.c.b16 %v4380, %v4379
        %v4552 = vpack.c.b16 %v4382, %v4381
        %v4553 = vpack.c.b16 %v4384, %v4383
        %v4554 = vpack.c.b16 %v4386, %v4385
        %v4555 = vpack.c.b16 %v4388, %v4387
        %v4556 = vpack.c.b16 %v4390, %v4389
        %v4557 = vpack.c.b16 %v4392, %v4391
        %v4558 = vpack.c.b16 %v4394, %v4393
        %v4559 = vpack.c.b16 %v4396, %v4395
        %v4560 = vpack.c.b16 %v4398, %v4397
        %v4561 = vpack.c.b16 %v4400, %v4399
        %v4562 = vpack.c.b16 %v4402, %v4401
        %v4563 = vpack.c.b16 %v4404, %v4403
        %v4564 = vpack.c.b16 %v4406, %v4405
        %v4565 = vpack.c.b16 %v4408, %v4407
        %v4566 = vpack.c.b16 %v4410, %v4409
        %v4567 = vpack.c.b16 %v4412, %v4411
        %v4568 = vpack.c.b16 %v4414, %v4413
        %v4569 = vpack.c.b16 %v4416, %v4415
        %v4570 = vpack.c.b16 %v4418, %v4417
        %v4571 = vpack.c.b16 %v4420, %v4419
        %v4572 = vpack.c.b16 %v4422, %v4421
        %v4573 = vpack.c.b16 %v4424, %v4423
        %v4574 = vpack.c.b16 %v4426, %v4425
        %v4575 = vpack.c.b16 %v4428, %v4427
        %v4576 = vpack.c.b16 %v4430, %v4429
        %v4577 = vpack.c.b16 %v4432, %v4431
        %v4578 = vpack.c.b16 %v4434, %v4433
        %v4579 = vpack.c.b16 %v4436, %v4435
        %v4580 = vpack.c.b16 %v4438, %v4437
        %v4581 = vpack.c.b16 %v4440, %v4439
        %v4582 = vpack.c.b16 %v4442, %v4441
        %v4583 = vpack.c.b16 %v4444, %v4443
        %v4584 = vpack.c.b16 %v4446, %v4445
        %v4585 = vpack.c.b16 %v4448, %v4447
        %v4586 = vpack.c.b16 %v4450, %v4449
        %v4587 = vpack.c.b16 %v4452, %v4451
        %v4588 = vpack.c.b16 %v4454, %v4453
        %v4589 = vpack.c.b16 %v4456, %v4455
        %v4590 = vpack.c.b16 %v4458, %v4457
        %v4591 = vpack.c.b16 %v4460, %v4459
        %v4592 = vpack.c.b16 %v4462, %v4461
        %v4593 = vpack.c.b16 %v4464, %v4463
        %v4594 = vpack.c.b16 %v4466, %v4465
        %v4595 = vpack.c.b16 %v4468, %v4467
        %v4596 = vpack.c.b16 %v4470, %v4469
        %v4597 = vpack.c.b16 %v4472, %v4471
        %v4598 = vpack.c.b16 %v4474, %v4473
        %v4599 = vpack.c.b16 %v4476, %v4475
        %v4600 = vpack.c.b16 %v4478, %v4477
        %v4601 = vpack.c.b16 %v4480, %v4479
        %v4602 = vpack.c.b16 %v4482, %v4481
        %v4603 = vpack.c.b16 %v4484, %v4483
        %v4604 = vpack.c.b16 %v4486, %v4485
        %v4605 = vpack.c.b16 %v4488, %v4487
        %v4606 = vpack.c.b16 %v4490, %v4489
        %v4607 = vpack.c.b16 %v4492, %v4491
        %v4608 = vpack.c.b16 %v4494, %v4493
        %v4609 = vpack.c.b16 %v4496, %v4495
        %v4610 = vpack.c.b16 %v4498, %v4497
        %4723 = vmatprep.subr.bf16.mxu0 0
        %4724 = vmatpush1.bf16.msra.mxu0 %v4499
        %4725 = vmatprep.subr.bf16.mxu0 0
        %4726 = vmatpush1.bf16.msra.mxu0 %v4500
        %4727 = vmatprep.subr.bf16.mxu0 0
        %4728 = vmatpush1.bf16.msra.mxu0 %v4501
        %4729 = vmatprep.subr.bf16.mxu0 0
        %4730 = vmatpush1.bf16.msra.mxu0 %v4502
        %4731 = vmatprep.subr.bf16.mxu0 0
        %4732 = vmatpush1.bf16.msra.mxu0 %v4503
        %4733 = vmatprep.subr.bf16.mxu0 0
        %4734 = vmatpush1.bf16.msra.mxu0 %v4504
        %4735 = vmatprep.subr.bf16.mxu0 0
        %4736 = vmatpush1.bf16.msra.mxu0 %v4505
        %4737 = vmatprep.subr.bf16.mxu0 0
        %4738 = vmatpush1.bf16.msra.mxu0 %v4506
        %4739 = vmatprep.subr.bf16.mxu0 0
        %4740 = vmatpush1.bf16.msra.mxu0 %v4507
        %4741 = vmatprep.subr.bf16.mxu0 0
        %4742 = vmatpush1.bf16.msra.mxu0 %v4508
        %4743 = vmatprep.subr.bf16.mxu0 0
        %4744 = vmatpush1.bf16.msra.mxu0 %v4509
        %4745 = vmatprep.subr.bf16.mxu0 0
        %4746 = vmatpush1.bf16.msra.mxu0 %v4510
        %4747 = vmatprep.subr.bf16.mxu0 0
        %4748 = vmatpush1.bf16.msra.mxu0 %v4511
        %4749 = vmatprep.subr.bf16.mxu0 0
        %4750 = vmatpush1.bf16.msra.mxu0 %v4512
        %4751 = vmatprep.subr.bf16.mxu0 0
        %4752 = vmatpush1.bf16.msra.mxu0 %v4513
        %4753 = vmatprep.subr.bf16.mxu0 0
        %4754 = vmatpush1.bf16.msra.mxu0 %v4514
        %4755 = vmatprep.mubr.bf16.mxu0 %v3807
        %4756 = vmatmul.mubr.bf16.gmra.mrb[0].mxu0 %v3806
        %v4757 = vpop.f32.mrb[0].mxu0
        %v4758 = vadd.f32 %v4049, %v4757
        %v4759 = vpop.f32.mrb[0].mxu0
        %v4760 = vpop.f32.mrb[0].mxu0
        %v4761 = vpop.f32.mrb[0].mxu0
        %4762 = vdwg.mxu0
        %4763 = vmatprep.subr.bf16.mxu0 0
        %4764 = vmatpush1.bf16.msra.mxu0 %v4515
        %4765 = vmatprep.subr.bf16.mxu0 0
        %4766 = vmatpush1.bf16.msra.mxu0 %v4516
        %4767 = vmatprep.subr.bf16.mxu0 0
        %4768 = vmatpush1.bf16.msra.mxu0 %v4517
        %4769 = vmatprep.subr.bf16.mxu0 0
        %4770 = vmatpush1.bf16.msra.mxu0 %v4518
        %4771 = vmatprep.subr.bf16.mxu0 0
        %4772 = vmatpush1.bf16.msra.mxu0 %v4519
        %4773 = vmatprep.subr.bf16.mxu0 0
        %4774 = vmatpush1.bf16.msra.mxu0 %v4520
        %4775 = vmatprep.subr.bf16.mxu0 0
        %4776 = vmatpush1.bf16.msra.mxu0 %v4521
        %4777 = vmatprep.subr.bf16.mxu0 0
        %4778 = vmatpush1.bf16.msra.mxu0 %v4522
        %4779 = vmatprep.subr.bf16.mxu0 0
        %4780 = vmatpush1.bf16.msra.mxu0 %v4523
        %4781 = vmatprep.subr.bf16.mxu0 0
        %4782 = vmatpush1.bf16.msra.mxu0 %v4524
        %4783 = vmatprep.subr.bf16.mxu0 0
        %4784 = vmatpush1.bf16.msra.mxu0 %v4525
        %4785 = vmatprep.subr.bf16.mxu0 0
        %4786 = vmatpush1.bf16.msra.mxu0 %v4526
        %4787 = vmatprep.subr.bf16.mxu0 0
        %4788 = vmatpush1.bf16.msra.mxu0 %v4527
        %4789 = vmatprep.subr.bf16.mxu0 0
        %4790 = vmatpush1.bf16.msra.mxu0 %v4528
        %4791 = vmatprep.subr.bf16.mxu0 0
        %4792 = vmatpush1.bf16.msra.mxu0 %v4529
        %4793 = vmatprep.subr.bf16.mxu0 0
        %4794 = vmatpush1.bf16.msra.mxu0 %v4530
        %4795 = vmatprep.mubr.bf16.mxu0 %v3809
        %4796 = vmatmul.mubr.bf16.gmra.mrb[0].mxu0 %v3808
        %v4797 = vpop.f32.mrb[0].mxu0
        %v4798 = vadd.f32 %v4758, %v4797
        %v4799 = vpop.f32.mrb[0].mxu0
        %v4800 = vpop.f32.mrb[0].mxu0
        %v4801 = vpop.f32.mrb[0].mxu0
        %4802 = vdwg.mxu0
        %4803 = vmatprep.subr.bf16.mxu0 0
        %4804 = vmatpush1.bf16.msra.mxu0 %v4531
        %4805 = vmatprep.subr.bf16.mxu0 0
        %4806 = vmatpush1.bf16.msra.mxu0 %v4532
        %4807 = vmatprep.subr.bf16.mxu0 0
        %4808 = vmatpush1.bf16.msra.mxu0 %v4533
        %4809 = vmatprep.subr.bf16.mxu0 0
        %4810 = vmatpush1.bf16.msra.mxu0 %v4534
        %4811 = vmatprep.subr.bf16.mxu0 0
        %4812 = vmatpush1.bf16.msra.mxu0 %v4535
        %4813 = vmatprep.subr.bf16.mxu0 0
        %4814 = vmatpush1.bf16.msra.mxu0 %v4536
        %4815 = vmatprep.subr.bf16.mxu0 0
        %4816 = vmatpush1.bf16.msra.mxu0 %v4537
        %4817 = vmatprep.subr.bf16.mxu0 0
        %4818 = vmatpush1.bf16.msra.mxu0 %v4538
        %4819 = vmatprep.subr.bf16.mxu0 0
        %4820 = vmatpush1.bf16.msra.mxu0 %v4539
        %4821 = vmatprep.subr.bf16.mxu0 0
        %4822 = vmatpush1.bf16.msra.mxu0 %v4540
        %4823 = vmatprep.subr.bf16.mxu0 0
        %4824 = vmatpush1.bf16.msra.mxu0 %v4541
        %4825 = vmatprep.subr.bf16.mxu0 0
        %4826 = vmatpush1.bf16.msra.mxu0 %v4542
        %4827 = vmatprep.subr.bf16.mxu0 0
        %4828 = vmatpush1.bf16.msra.mxu0 %v4543
        %4829 = vmatprep.subr.bf16.mxu0 0
        %4830 = vmatpush1.bf16.msra.mxu0 %v4544
        %4831 = vmatprep.subr.bf16.mxu0 0
        %4832 = vmatpush1.bf16.msra.mxu0 %v4545
        %4833 = vmatprep.subr.bf16.mxu0 0
        %4834 = vmatpush1.bf16.msra.mxu0 %v4546
        %4835 = vmatprep.mubr.bf16.mxu0 %v3811
        %4836 = vmatmul.mubr.bf16.gmra.mrb[0].mxu0 %v3810
        %v4837 = vpop.f32.mrb[0].mxu0
        %v4838 = vadd.f32 %v4798, %v4837
        %v4839 = vpop.f32.mrb[0].mxu0
        %v4840 = vpop.f32.mrb[0].mxu0
        %v4841 = vpop.f32.mrb[0].mxu0
        %4842 = vdwg.mxu0
        %4843 = vmatprep.subr.bf16.mxu0 0
        %4844 = vmatpush1.bf16.msra.mxu0 %v4547
        %4845 = vmatprep.subr.bf16.mxu0 0
        %4846 = vmatpush1.bf16.msra.mxu0 %v4548
        %4847 = vmatprep.subr.bf16.mxu0 0
        %4848 = vmatpush1.bf16.msra.mxu0 %v4549
        %4849 = vmatprep.subr.bf16.mxu0 0
        %4850 = vmatpush1.bf16.msra.mxu0 %v4550
        %4851 = vmatprep.subr.bf16.mxu0 0
        %4852 = vmatpush1.bf16.msra.mxu0 %v4551
        %4853 = vmatprep.subr.bf16.mxu0 0
        %4854 = vmatpush1.bf16.msra.mxu0 %v4552
        %4855 = vmatprep.subr.bf16.mxu0 0
        %4856 = vmatpush1.bf16.msra.mxu0 %v4553
        %4857 = vmatprep.subr.bf16.mxu0 0
        %4858 = vmatpush1.bf16.msra.mxu0 %v4554
        %4859 = vmatprep.subr.bf16.mxu0 0
        %4860 = vmatpush1.bf16.msra.mxu0 %v4555
        %4861 = vmatprep.subr.bf16.mxu0 0
        %4862 = vmatpush1.bf16.msra.mxu0 %v4556
        %4863 = vmatprep.subr.bf16.mxu0 0
        %4864 = vmatpush1.bf16.msra.mxu0 %v4557
        %4865 = vmatprep.subr.bf16.mxu0 0
        %4866 = vmatpush1.bf16.msra.mxu0 %v4558
        %4867 = vmatprep.subr.bf16.mxu0 0
        %4868 = vmatpush1.bf16.msra.mxu0 %v4559
        %4869 = vmatprep.subr.bf16.mxu0 0
        %4870 = vmatpush1.bf16.msra.mxu0 %v4560
        %4871 = vmatprep.subr.bf16.mxu0 0
        %4872 = vmatpush1.bf16.msra.mxu0 %v4561
        %4873 = vmatprep.subr.bf16.mxu0 0
        %4874 = vmatpush1.bf16.msra.mxu0 %v4562
        %4875 = vmatprep.mubr.bf16.mxu0 %v3813
        %4876 = vmatmul.mubr.bf16.gmra.mrb[0].mxu0 %v3812
        %v4877 = vpop.f32.mrb[0].mxu0
        %v4878 = vadd.f32 %v4838, %v4877
        %v4879 = vpop.f32.mrb[0].mxu0
        %v4880 = vpop.f32.mrb[0].mxu0
        %v4881 = vpop.f32.mrb[0].mxu0
        %4882 = vdwg.mxu0
        %4883 = vmatprep.subr.bf16.mxu0 0
        %4884 = vmatpush1.bf16.msra.mxu0 %v4563
        %4885 = vmatprep.subr.bf16.mxu0 0
        %4886 = vmatpush1.bf16.msra.mxu0 %v4564
        %4887 = vmatprep.subr.bf16.mxu0 0
        %4888 = vmatpush1.bf16.msra.mxu0 %v4565
        %4889 = vmatprep.subr.bf16.mxu0 0
        %4890 = vmatpush1.bf16.msra.mxu0 %v4566
        %4891 = vmatprep.subr.bf16.mxu0 0
        %4892 = vmatpush1.bf16.msra.mxu0 %v4567
        %4893 = vmatprep.subr.bf16.mxu0 0
        %4894 = vmatpush1.bf16.msra.mxu0 %v4568
        %4895 = vmatprep.subr.bf16.mxu0 0
        %4896 = vmatpush1.bf16.msra.mxu0 %v4569
        %4897 = vmatprep.subr.bf16.mxu0 0
        %4898 = vmatpush1.bf16.msra.mxu0 %v4570
        %4899 = vmatprep.subr.bf16.mxu0 0
        %4900 = vmatpush1.bf16.msra.mxu0 %v4571
        %4901 = vmatprep.subr.bf16.mxu0 0
        %4902 = vmatpush1.bf16.msra.mxu0 %v4572
        %4903 = vmatprep.subr.bf16.mxu0 0
        %4904 = vmatpush1.bf16.msra.mxu0 %v4573
        %4905 = vmatprep.subr.bf16.mxu0 0
        %4906 = vmatpush1.bf16.msra.mxu0 %v4574
        %4907 = vmatprep.subr.bf16.mxu0 0
        %4908 = vmatpush1.bf16.msra.mxu0 %v4575
        %4909 = vmatprep.subr.bf16.mxu0 0
        %4910 = vmatpush1.bf16.msra.mxu0 %v4576
        %4911 = vmatprep.subr.bf16.mxu0 0
        %4912 = vmatpush1.bf16.msra.mxu0 %v4577
        %4913 = vmatprep.subr.bf16.mxu0 0
        %4914 = vmatpush1.bf16.msra.mxu0 %v4578
        %4915 = vmatprep.mubr.bf16.mxu0 %v3815
        %4916 = vmatmul.mubr.bf16.gmra.mrb[0].mxu0 %v3814
        %v4917 = vpop.f32.mrb[0].mxu0
        %v4918 = vadd.f32 %v4878, %v4917
        %v4919 = vpop.f32.mrb[0].mxu0
        %v4920 = vpop.f32.mrb[0].mxu0
        %v4921 = vpop.f32.mrb[0].mxu0
        %4922 = vdwg.mxu0
        %4923 = vmatprep.subr.bf16.mxu0 0
        %4924 = vmatpush1.bf16.msra.mxu0 %v4579
        %4925 = vmatprep.subr.bf16.mxu0 0
        %4926 = vmatpush1.bf16.msra.mxu0 %v4580
        %4927 = vmatprep.subr.bf16.mxu0 0
        %4928 = vmatpush1.bf16.msra.mxu0 %v4581
        %4929 = vmatprep.subr.bf16.mxu0 0
        %4930 = vmatpush1.bf16.msra.mxu0 %v4582
        %4931 = vmatprep.subr.bf16.mxu0 0
        %4932 = vmatpush1.bf16.msra.mxu0 %v4583
        %4933 = vmatprep.subr.bf16.mxu0 0
        %4934 = vmatpush1.bf16.msra.mxu0 %v4584
        %4935 = vmatprep.subr.bf16.mxu0 0
        %4936 = vmatpush1.bf16.msra.mxu0 %v4585
        %4937 = vmatprep.subr.bf16.mxu0 0
        %4938 = vmatpush1.bf16.msra.mxu0 %v4586
        %4939 = vmatprep.subr.bf16.mxu0 0
        %4940 = vmatpush1.bf16.msra.mxu0 %v4587
        %4941 = vmatprep.subr.bf16.mxu0 0
        %4942 = vmatpush1.bf16.msra.mxu0 %v4588
        %4943 = vmatprep.subr.bf16.mxu0 0
        %4944 = vmatpush1.bf16.msra.mxu0 %v4589
        %4945 = vmatprep.subr.bf16.mxu0 0
        %4946 = vmatpush1.bf16.msra.mxu0 %v4590
        %4947 = vmatprep.subr.bf16.mxu0 0
        %4948 = vmatpush1.bf16.msra.mxu0 %v4591
        %4949 = vmatprep.subr.bf16.mxu0 0
        %4950 = vmatpush1.bf16.msra.mxu0 %v4592
        %4951 = vmatprep.subr.bf16.mxu0 0
        %4952 = vmatpush1.bf16.msra.mxu0 %v4593
        %4953 = vmatprep.subr.bf16.mxu0 0
        %4954 = vmatpush1.bf16.msra.mxu0 %v4594
        %4955 = vmatprep.mubr.bf16.mxu0 %v3817
        %4956 = vmatmul.mubr.bf16.gmra.mrb[0].mxu0 %v3816
        %v4957 = vpop.f32.mrb[0].mxu0
        %v4958 = vadd.f32 %v4918, %v4957
        %v4959 = vpop.f32.mrb[0].mxu0
        %v4960 = vpop.f32.mrb[0].mxu0
        %v4961 = vpop.f32.mrb[0].mxu0
        %4962 = vdwg.mxu0
        %4963 = vmatprep.subr.bf16.mxu0 0
        %4964 = vmatpush1.bf16.msra.mxu0 %v4595
        %4965 = vmatprep.subr.bf16.mxu0 0
        %4966 = vmatpush1.bf16.msra.mxu0 %v4596
        %4967 = vmatprep.subr.bf16.mxu0 0
        %4968 = vmatpush1.bf16.msra.mxu0 %v4597
        %4969 = vmatprep.subr.bf16.mxu0 0
        %4970 = vmatpush1.bf16.msra.mxu0 %v4598
        %4971 = vmatprep.subr.bf16.mxu0 0
        %4972 = vmatpush1.bf16.msra.mxu0 %v4599
        %4973 = vmatprep.subr.bf16.mxu0 0
        %4974 = vmatpush1.bf16.msra.mxu0 %v4600
        %4975 = vmatprep.subr.bf16.mxu0 0
        %4976 = vmatpush1.bf16.msra.mxu0 %v4601
        %4977 = vmatprep.subr.bf16.mxu0 0
        %4978 = vmatpush1.bf16.msra.mxu0 %v4602
        %4979 = vmatprep.subr.bf16.mxu0 0
        %4980 = vmatpush1.bf16.msra.mxu0 %v4603
        %4981 = vmatprep.subr.bf16.mxu0 0
        %4982 = vmatpush1.bf16.msra.mxu0 %v4604
        %4983 = vmatprep.subr.bf16.mxu0 0
        %4984 = vmatpush1.bf16.msra.mxu0 %v4605
        %4985 = vmatprep.subr.bf16.mxu0 0
        %4986 = vmatpush1.bf16.msra.mxu0 %v4606
        %4987 = vmatprep.subr.bf16.mxu0 0
        %4988 = vmatpush1.bf16.msra.mxu0 %v4607
        %4989 = vmatprep.subr.bf16.mxu0 0
        %4990 = vmatpush1.bf16.msra.mxu0 %v4608
        %4991 = vmatprep.subr.bf16.mxu0 0
        %4992 = vmatpush1.bf16.msra.mxu0 %v4609
        %4993 = vmatprep.subr.bf16.mxu0 0
        %4994 = vmatpush1.bf16.msra.mxu0 %v4610
        %4995 = vmatprep.mubr.bf16.mxu0 %v3819
        %4996 = vmatmul.mubr.bf16.gmra.mrb[0].mxu0 %v3818
        %v4997 = vpop.f32.mrb[0].mxu0
        %v4998 = vadd.f32 %v4958, %v4997
        %v4999 = vpop.f32.mrb[0].mxu0
        %v5000 = vpop.f32.mrb[0].mxu0
        %v5001 = vpop.f32.mrb[0].mxu0
        %5002 = vdwg.mxu0
        %v5003 = vmax.f32 %v4998, 0.0
        %v5004 = vpack.c.bf16 %v5003, %v5003
        %v5005 = vld [vmem:[#allocation19] sm:$0xff]
        %v5006 = vld [vmem:[#allocation19 + $0x8] sm:$0xff]
        %v5007 = vld [vmem:[#allocation19 + $0x10] sm:$0xff]
        %v5008 = vld [vmem:[#allocation19 + $0x18] sm:$0xff]
        %v5009 = vld [vmem:[#allocation19 + $0x20] sm:$0xff]
        %v5010 = vld [vmem:[#allocation19 + $0x28] sm:$0xff]
        %v5011 = vld [vmem:[#allocation19 + $0x30] sm:$0xff]
        %v5012 = vld [vmem:[#allocation19 + $0x38] sm:$0xff]
        %v5013 = vld [vmem:[#allocation19 + $0x40] sm:$0xff]
        %v5014 = vld [vmem:[#allocation19 + $0x48] sm:$0xff]
        %v5015 = vld [vmem:[#allocation19 + $0x50] sm:$0xff]
        %v5016 = vld [vmem:[#allocation19 + $0x58] sm:$0xff]
        %v5017 = vld [vmem:[#allocation19 + $0x60] sm:$0xff]
        %v5018 = vld [vmem:[#allocation19 + $0x68] sm:$0xff]
        %v5019 = vld [vmem:[#allocation19 + $0x70] sm:$0xff]
        %v5020 = vld [vmem:[#allocation19 + $0x78] sm:$0xff]
        %v5021 = vld [vmem:[#allocation20] sm:$0x3]
        %v5023 = vlaneseq
        %v5024 = vshrl.u32 %v5023, 7
        %v5025 = vsub.s32 0, %v5024
        %v5026 = vrot.slane %v5021, %v5025
        %v5027 = vlaneseq
        %v5028 = vshrl.u32 %v5027, 7
        %v5029 = vsub.s32 1, %v5028
        %v5030 = vrot.slane %v5021, %v5029
        %v5049 = vunpack.c.l.b16 %v5005
        %v5050 = vunpack.c.h.b16 %v5005
        %v5051 = vunpack.c.l.b16 %v5006
        %v5052 = vunpack.c.h.b16 %v5006
        %v5053 = vunpack.c.l.b16 %v5007
        %v5054 = vunpack.c.h.b16 %v5007
        %v5055 = vunpack.c.l.b16 %v5008
        %v5056 = vunpack.c.h.b16 %v5008
        %v5057 = vunpack.c.l.b16 %v5009
        %v5058 = vunpack.c.h.b16 %v5009
        %v5059 = vunpack.c.l.b16 %v5010
        %v5060 = vunpack.c.h.b16 %v5010
        %v5061 = vunpack.c.l.b16 %v5011
        %v5062 = vunpack.c.h.b16 %v5011
        %v5063 = vunpack.c.l.b16 %v5012
        %v5064 = vunpack.c.h.b16 %v5012
        %v5065 = vunpack.c.l.b16 %v5013
        %v5066 = vunpack.c.h.b16 %v5013
        %v5067 = vunpack.c.l.b16 %v5014
        %v5068 = vunpack.c.h.b16 %v5014
        %v5069 = vunpack.c.l.b16 %v5015
        %v5070 = vunpack.c.h.b16 %v5015
        %v5071 = vunpack.c.l.b16 %v5016
        %v5072 = vunpack.c.h.b16 %v5016
        %v5073 = vunpack.c.l.b16 %v5017
        %v5074 = vunpack.c.h.b16 %v5017
        %v5075 = vunpack.c.l.b16 %v5018
        %v5076 = vunpack.c.h.b16 %v5018
        %v5077 = vunpack.c.l.b16 %v5019
        %v5078 = vunpack.c.h.b16 %v5019
        %v5079 = vunpack.c.l.b16 %v5020
        %v5080 = vunpack.c.h.b16 %v5020
        %v5081 = vpack.c.b16 %v5051, %v5049
        %v5082 = vpack.c.b16 %v5052, %v5050
        %v5083 = vpack.c.b16 %v5055, %v5053
        %v5084 = vpack.c.b16 %v5056, %v5054
        %v5085 = vpack.c.b16 %v5059, %v5057
        %v5086 = vpack.c.b16 %v5060, %v5058
        %v5087 = vpack.c.b16 %v5063, %v5061
        %v5088 = vpack.c.b16 %v5064, %v5062
        %v5089 = vpack.c.b16 %v5067, %v5065
        %v5090 = vpack.c.b16 %v5068, %v5066
        %v5091 = vpack.c.b16 %v5071, %v5069
        %v5092 = vpack.c.b16 %v5072, %v5070
        %v5093 = vpack.c.b16 %v5075, %v5073
        %v5094 = vpack.c.b16 %v5076, %v5074
        %v5095 = vpack.c.b16 %v5079, %v5077
        %v5096 = vpack.c.b16 %v5080, %v5078
        %5113 = vmatprep.subr.bf16.mxu0 %v5082
        %5114 = vmatpush1.bf16.msra.mxu0 %v5081
        %5115 = vmatprep.subr.bf16.mxu0 %v5084
        %5116 = vmatpush1.bf16.msra.mxu0 %v5083
        %5117 = vmatprep.subr.bf16.mxu0 %v5086
        %5118 = vmatpush1.bf16.msra.mxu0 %v5085
        %5119 = vmatprep.subr.bf16.mxu0 %v5088
        %5120 = vmatpush1.bf16.msra.mxu0 %v5087
        %5121 = vmatprep.subr.bf16.mxu0 %v5090
        %5122 = vmatpush1.bf16.msra.mxu0 %v5089
        %5123 = vmatprep.subr.bf16.mxu0 %v5092
        %5124 = vmatpush1.bf16.msra.mxu0 %v5091
        %5125 = vmatprep.subr.bf16.mxu0 %v5094
        %5126 = vmatpush1.bf16.msra.mxu0 %v5093
        %5127 = vmatprep.subr.bf16.mxu0 %v5096
        %5128 = vmatpush1.bf16.msra.mxu0 %v5095
        %5129 = vmatprep.subr.bf16.mxu0 0
        %5130 = vmatpush1.bf16.msra.mxu0 0
        %5131 = vmatprep.subr.bf16.mxu0 0
        %5132 = vmatpush1.bf16.msra.mxu0 0
        %5133 = vmatprep.subr.bf16.mxu0 0
        %5134 = vmatpush1.bf16.msra.mxu0 0
        %5135 = vmatprep.subr.bf16.mxu0 0
        %5136 = vmatpush1.bf16.msra.mxu0 0
        %5137 = vmatprep.subr.bf16.mxu0 0
        %5138 = vmatpush1.bf16.msra.mxu0 0
        %5139 = vmatprep.subr.bf16.mxu0 0
        %5140 = vmatpush1.bf16.msra.mxu0 0
        %5141 = vmatprep.subr.bf16.mxu0 0
        %5142 = vmatpush1.bf16.msra.mxu0 0
        %5143 = vmatprep.subr.bf16.mxu0 0
        %5144 = vmatpush1.bf16.msra.mxu0 0
        %5145 = vmatprep.mubr.bf16.mxu0 0
        %5146 = vmatmul.mubr.bf16.gmra.mrb[0].mxu0 %v5004
        %v5147 = vpop.f32.mrb[0].mxu0
        %v5148 = vadd.f32 %v5026, %v5147
        %v5149 = vpop.f32.mrb[0].mxu0
        %v5150 = vadd.f32 %v5030, %v5149
        %v5151 = vpop.f32.mrb[0].mxu0
        %v5152 = vpop.f32.mrb[0].mxu0
        %5153 = vdwg.mxu0
        %5154 = vst [vmem:[%s994] sm:$0xff] %v5148
        %5155 = vst [vmem:[%s994 + $0x8] sm:$0xff] %v5150
        %v5156 = vmul.f32 %v5150, 1.442695
        %v5157 = vpow.pop %v5156
        %v5158 = vld [vmem:[%s989] sm:$0xff]
        %v5159 = vmul.f32 %v5157, %v5158
        %v5160 = vadd.f32 %v5148, %v5159
        %v5161 = vpack.c.bf16 %v5160, %v5160
        %v5162 = vld [vmem:[#allocation22] sm:$0xf]
        %v5163 = vld [vmem:[#allocation22 + $0x4] sm:$0xf]
        %v5164 = vld [vmem:[#allocation22 + $0x8] sm:$0xf]
        %v5165 = vld [vmem:[#allocation22 + $0xc] sm:$0xf]
        %v5166 = vld [vmem:[#allocation22 + $0x10] sm:$0xf]
        %v5167 = vld [vmem:[#allocation22 + $0x14] sm:$0xf]
        %v5168 = vld [vmem:[#allocation22 + $0x18] sm:$0xf]
        %v5169 = vld [vmem:[#allocation22 + $0x1c] sm:$0xf]
        %v5170 = vld [vmem:[#allocation22 + $0x20] sm:$0xf]
        %v5171 = vld [vmem:[#allocation22 + $0x24] sm:$0xf]
        %v5172 = vld [vmem:[#allocation22 + $0x28] sm:$0xf]
        %v5173 = vld [vmem:[#allocation22 + $0x2c] sm:$0xf]
        %v5174 = vld [vmem:[#allocation22 + $0x30] sm:$0xf]
        %v5175 = vld [vmem:[#allocation22 + $0x34] sm:$0xf]
        %v5176 = vld [vmem:[#allocation22 + $0x38] sm:$0xf]
        %v5177 = vld [vmem:[#allocation22 + $0x3c] sm:$0xf]
        %v5178 = vld [vmem:[#allocation23] sm:$0x1]
        %v5180 = vlaneseq
        %v5181 = vshrl.u32 %v5180, 7
        %v5182 = vsub.s32 0, %v5181
        %v5183 = vrot.slane %v5178, %v5182
        %v5201 = vunpack.c.l.b16 %v5162
        %v5202 = vunpack.c.l.b16 %v5163
        %v5203 = vunpack.c.l.b16 %v5164
        %v5204 = vunpack.c.l.b16 %v5165
        %v5205 = vunpack.c.l.b16 %v5166
        %v5206 = vunpack.c.l.b16 %v5167
        %v5207 = vunpack.c.l.b16 %v5168
        %v5208 = vunpack.c.l.b16 %v5169
        %v5209 = vunpack.c.l.b16 %v5170
        %v5210 = vunpack.c.l.b16 %v5171
        %v5211 = vunpack.c.l.b16 %v5172
        %v5212 = vunpack.c.l.b16 %v5173
        %v5213 = vunpack.c.l.b16 %v5174
        %v5214 = vunpack.c.l.b16 %v5175
        %v5215 = vunpack.c.l.b16 %v5176
        %v5216 = vunpack.c.l.b16 %v5177
        %v5217 = vpack.c.b16 %v5202, %v5201
        %v5218 = vpack.c.b16 %v5204, %v5203
        %v5219 = vpack.c.b16 %v5206, %v5205
        %v5220 = vpack.c.b16 %v5208, %v5207
        %v5221 = vpack.c.b16 %v5210, %v5209
        %v5222 = vpack.c.b16 %v5212, %v5211
        %v5223 = vpack.c.b16 %v5214, %v5213
        %v5224 = vpack.c.b16 %v5216, %v5215
        %5233 = vmatprep.subr.bf16.mxu0 0
        %5234 = vmatpush1.bf16.msra.mxu0 %v5217
        %5235 = vmatprep.subr.bf16.mxu0 0
        %5236 = vmatpush1.bf16.msra.mxu0 %v5218
        %5237 = vmatprep.subr.bf16.mxu0 0
        %5238 = vmatpush1.bf16.msra.mxu0 %v5219
        %5239 = vmatprep.subr.bf16.mxu0 0
        %5240 = vmatpush1.bf16.msra.mxu0 %v5220
        %5241 = vmatprep.subr.bf16.mxu0 0
        %5242 = vmatpush1.bf16.msra.mxu0 %v5221
        %5243 = vmatprep.subr.bf16.mxu0 0
        %5244 = vmatpush1.bf16.msra.mxu0 %v5222
        %5245 = vmatprep.subr.bf16.mxu0 0
        %5246 = vmatpush1.bf16.msra.mxu0 %v5223
        %5247 = vmatprep.subr.bf16.mxu0 0
        %5248 = vmatpush1.bf16.msra.mxu0 %v5224
        %5249 = vmatprep.subr.bf16.mxu0 0
        %5250 = vmatpush1.bf16.msra.mxu0 0
        %5251 = vmatprep.subr.bf16.mxu0 0
        %5252 = vmatpush1.bf16.msra.mxu0 0
        %5253 = vmatprep.subr.bf16.mxu0 0
        %5254 = vmatpush1.bf16.msra.mxu0 0
        %5255 = vmatprep.subr.bf16.mxu0 0
        %5256 = vmatpush1.bf16.msra.mxu0 0
        %5257 = vmatprep.subr.bf16.mxu0 0
        %5258 = vmatpush1.bf16.msra.mxu0 0
        %5259 = vmatprep.subr.bf16.mxu0 0
        %5260 = vmatpush1.bf16.msra.mxu0 0
        %5261 = vmatprep.subr.bf16.mxu0 0
        %5262 = vmatpush1.bf16.msra.mxu0 0
        %5263 = vmatprep.subr.bf16.mxu0 0
        %5264 = vmatpush1.bf16.msra.mxu0 0
        %5265 = vmatprep.mubr.bf16.mxu0 0
        %5266 = vmatmul.mubr.bf16.gmra.mrb[0].mxu0 %v5161
        %v5267 = vpop.f32.mrb[0].mxu0
        %v5268 = vadd.f32 %v5183, %v5267
        %v5269 = vpop.f32.mrb[0].mxu0
        %v5270 = vpop.f32.mrb[0].mxu0
        %v5271 = vpop.f32.mrb[0].mxu0
        %5272 = vdwg.mxu0
        %v5273 = vmax.f32 %v5268, 0.0
        %v5274 = vpack.c.bf16 %v5273, %v5273
        %v5275 = vld [vmem:[#allocation25] sm:$0xff]
        %v5276 = vld [vmem:[#allocation25 + $0x8] sm:$0xff]
        %v5277 = vld [vmem:[#allocation25 + $0x10] sm:$0xff]
        %v5278 = vld [vmem:[#allocation25 + $0x18] sm:$0xf]
        %v5279 = vld [vmem:[#allocation25 + $0x1c] sm:$0xff]
        %v5280 = vld [vmem:[#allocation25 + $0x24] sm:$0xff]
        %v5281 = vld [vmem:[#allocation25 + $0x2c] sm:$0xff]
        %v5282 = vld [vmem:[#allocation25 + $0x34] sm:$0xf]
        %v5283 = vld [vmem:[#allocation25 + $0x38] sm:$0xff]
        %v5284 = vld [vmem:[#allocation25 + $0x40] sm:$0xff]
        %v5285 = vld [vmem:[#allocation25 + $0x48] sm:$0xff]
        %v5286 = vld [vmem:[#allocation25 + $0x50] sm:$0xf]
        %v5287 = vld [vmem:[#allocation25 + $0x54] sm:$0xff]
        %v5288 = vld [vmem:[#allocation25 + $0x5c] sm:$0xff]
        %v5289 = vld [vmem:[#allocation25 + $0x64] sm:$0xff]
        %v5290 = vld [vmem:[#allocation25 + $0x6c] sm:$0xf]
        %v5291 = vld [vmem:[#allocation25 + $0x70] sm:$0xff]
        %v5292 = vld [vmem:[#allocation25 + $0x78] sm:$0xff]
        %v5293 = vld [vmem:[#allocation25 + $0x80] sm:$0xff]
        %v5294 = vld [vmem:[#allocation25 + $0x88] sm:$0xf]
        %v5295 = vld [vmem:[#allocation25 + $0x8c] sm:$0xff]
        %v5296 = vld [vmem:[#allocation25 + $0x94] sm:$0xff]
        %v5297 = vld [vmem:[#allocation25 + $0x9c] sm:$0xff]
        %v5298 = vld [vmem:[#allocation25 + $0xa4] sm:$0xf]
        %v5299 = vld [vmem:[#allocation25 + $0xa8] sm:$0xff]
        %v5300 = vld [vmem:[#allocation25 + $0xb0] sm:$0xff]
        %v5301 = vld [vmem:[#allocation25 + $0xb8] sm:$0xff]
        %v5302 = vld [vmem:[#allocation25 + $0xc0] sm:$0xf]
        %v5303 = vld [vmem:[#allocation25 + $0xc4] sm:$0xff]
        %v5304 = vld [vmem:[#allocation25 + $0xcc] sm:$0xff]
        %v5305 = vld [vmem:[#allocation25 + $0xd4] sm:$0xff]
        %v5306 = vld [vmem:[#allocation25 + $0xdc] sm:$0xf]
        %v5307 = vld [vmem:[#allocation25 + $0xe0] sm:$0xff]
        %v5308 = vld [vmem:[#allocation25 + $0xe8] sm:$0xff]
        %v5309 = vld [vmem:[#allocation25 + $0xf0] sm:$0xff]
        %v5310 = vld [vmem:[#allocation25 + $0xf8] sm:$0xf]
        %v5311 = vld [vmem:[#allocation25 + $0xfc] sm:$0xff]
        %v5312 = vld [vmem:[#allocation25 + $0x104] sm:$0xff]
        %v5313 = vld [vmem:[#allocation25 + $0x10c] sm:$0xff]
        %v5314 = vld [vmem:[#allocation25 + $0x114] sm:$0xf]
        %v5315 = vld [vmem:[#allocation25 + $0x118] sm:$0xff]
        %v5316 = vld [vmem:[#allocation25 + $0x120] sm:$0xff]
        %v5317 = vld [vmem:[#allocation25 + $0x128] sm:$0xff]
        %v5318 = vld [vmem:[#allocation25 + $0x130] sm:$0xf]
        %v5319 = vld [vmem:[#allocation25 + $0x134] sm:$0xff]
        %v5320 = vld [vmem:[#allocation25 + $0x13c] sm:$0xff]
        %v5321 = vld [vmem:[#allocation25 + $0x144] sm:$0xff]
        %v5322 = vld [vmem:[#allocation25 + $0x14c] sm:$0xf]
        %v5323 = vld [vmem:[#allocation25 + $0x150] sm:$0xff]
        %v5324 = vld [vmem:[#allocation25 + $0x158] sm:$0xff]
        %v5325 = vld [vmem:[#allocation25 + $0x160] sm:$0xff]
        %v5326 = vld [vmem:[#allocation25 + $0x168] sm:$0xf]
        %v5327 = vld [vmem:[#allocation25 + $0x16c] sm:$0xff]
        %v5328 = vld [vmem:[#allocation25 + $0x174] sm:$0xff]
        %v5329 = vld [vmem:[#allocation25 + $0x17c] sm:$0xff]
        %v5330 = vld [vmem:[#allocation25 + $0x184] sm:$0xf]
        %v5331 = vld [vmem:[#allocation25 + $0x188] sm:$0xff]
        %v5332 = vld [vmem:[#allocation25 + $0x190] sm:$0xff]
        %v5333 = vld [vmem:[#allocation25 + $0x198] sm:$0xff]
        %v5334 = vld [vmem:[#allocation25 + $0x1a0] sm:$0xf]
        %v5335 = vld [vmem:[#allocation25 + $0x1a4] sm:$0xff]
        %v5336 = vld [vmem:[#allocation25 + $0x1ac] sm:$0xff]
        %v5337 = vld [vmem:[#allocation25 + $0x1b4] sm:$0xff]
        %v5338 = vld [vmem:[#allocation25 + $0x1bc] sm:$0xf]
        %v5339 = vld [vmem:[#allocation26] sm:$0xff]
        %v5341 = vlaneseq
        %v5342 = vshrl.u32 %v5341, 7
        %v5343 = vsub.s32 0, %v5342
        %v5344 = vrot.slane %v5339, %v5343
        %v5345 = vlaneseq
        %v5346 = vshrl.u32 %v5345, 7
        %v5347 = vsub.s32 1, %v5346
        %v5348 = vrot.slane %v5339, %v5347
        %v5349 = vlaneseq
        %v5350 = vshrl.u32 %v5349, 7
        %v5351 = vsub.s32 2, %v5350
        %v5352 = vrot.slane %v5339, %v5351
        %v5353 = vlaneseq
        %v5354 = vshrl.u32 %v5353, 7
        %v5355 = vsub.s32 3, %v5354
        %v5356 = vrot.slane %v5339, %v5355
        %v5357 = vlaneseq
        %v5358 = vshrl.u32 %v5357, 7
        %v5359 = vsub.s32 4, %v5358
        %v5360 = vrot.slane %v5339, %v5359
        %v5361 = vlaneseq
        %v5362 = vshrl.u32 %v5361, 7
        %v5363 = vsub.s32 5, %v5362
        %v5364 = vrot.slane %v5339, %v5363
        %v5365 = vlaneseq
        %v5366 = vshrl.u32 %v5365, 7
        %v5367 = vsub.s32 6, %v5366
        %v5368 = vrot.slane %v5339, %v5367
        %v5440 = vunpack.c.l.b16 %v5275
        %v5441 = vunpack.c.h.b16 %v5275
        %v5442 = vunpack.c.l.b16 %v5276
        %v5443 = vunpack.c.h.b16 %v5276
        %v5444 = vunpack.c.l.b16 %v5277
        %v5445 = vunpack.c.h.b16 %v5277
        %v5446 = vunpack.c.l.b16 %v5278
        %v5447 = vunpack.c.l.b16 %v5279
        %v5448 = vunpack.c.h.b16 %v5279
        %v5449 = vunpack.c.l.b16 %v5280
        %v5450 = vunpack.c.h.b16 %v5280
        %v5451 = vunpack.c.l.b16 %v5281
        %v5452 = vunpack.c.h.b16 %v5281
        %v5453 = vunpack.c.l.b16 %v5282
        %v5454 = vunpack.c.l.b16 %v5283
        %v5455 = vunpack.c.h.b16 %v5283
        %v5456 = vunpack.c.l.b16 %v5284
        %v5457 = vunpack.c.h.b16 %v5284
        %v5458 = vunpack.c.l.b16 %v5285
        %v5459 = vunpack.c.h.b16 %v5285
        %v5460 = vunpack.c.l.b16 %v5286
        %v5461 = vunpack.c.l.b16 %v5287
        %v5462 = vunpack.c.h.b16 %v5287
        %v5463 = vunpack.c.l.b16 %v5288
        %v5464 = vunpack.c.h.b16 %v5288
        %v5465 = vunpack.c.l.b16 %v5289
        %v5466 = vunpack.c.h.b16 %v5289
        %v5467 = vunpack.c.l.b16 %v5290
        %v5468 = vunpack.c.l.b16 %v5291
        %v5469 = vunpack.c.h.b16 %v5291
        %v5470 = vunpack.c.l.b16 %v5292
        %v5471 = vunpack.c.h.b16 %v5292
        %v5472 = vunpack.c.l.b16 %v5293
        %v5473 = vunpack.c.h.b16 %v5293
        %v5474 = vunpack.c.l.b16 %v5294
        %v5475 = vunpack.c.l.b16 %v5295
        %v5476 = vunpack.c.h.b16 %v5295
        %v5477 = vunpack.c.l.b16 %v5296
        %v5478 = vunpack.c.h.b16 %v5296
        %v5479 = vunpack.c.l.b16 %v5297
        %v5480 = vunpack.c.h.b16 %v5297
        %v5481 = vunpack.c.l.b16 %v5298
        %v5482 = vunpack.c.l.b16 %v5299
        %v5483 = vunpack.c.h.b16 %v5299
        %v5484 = vunpack.c.l.b16 %v5300
        %v5485 = vunpack.c.h.b16 %v5300
        %v5486 = vunpack.c.l.b16 %v5301
        %v5487 = vunpack.c.h.b16 %v5301
        %v5488 = vunpack.c.l.b16 %v5302
        %v5489 = vunpack.c.l.b16 %v5303
        %v5490 = vunpack.c.h.b16 %v5303
        %v5491 = vunpack.c.l.b16 %v5304
        %v5492 = vunpack.c.h.b16 %v5304
        %v5493 = vunpack.c.l.b16 %v5305
        %v5494 = vunpack.c.h.b16 %v5305
        %v5495 = vunpack.c.l.b16 %v5306
        %v5496 = vunpack.c.l.b16 %v5307
        %v5497 = vunpack.c.h.b16 %v5307
        %v5498 = vunpack.c.l.b16 %v5308
        %v5499 = vunpack.c.h.b16 %v5308
        %v5500 = vunpack.c.l.b16 %v5309
        %v5501 = vunpack.c.h.b16 %v5309
        %v5502 = vunpack.c.l.b16 %v5310
        %v5503 = vunpack.c.l.b16 %v5311
        %v5504 = vunpack.c.h.b16 %v5311
        %v5505 = vunpack.c.l.b16 %v5312
        %v5506 = vunpack.c.h.b16 %v5312
        %v5507 = vunpack.c.l.b16 %v5313
        %v5508 = vunpack.c.h.b16 %v5313
        %v5509 = vunpack.c.l.b16 %v5314
        %v5510 = vunpack.c.l.b16 %v5315
        %v5511 = vunpack.c.h.b16 %v5315
        %v5512 = vunpack.c.l.b16 %v5316
        %v5513 = vunpack.c.h.b16 %v5316
        %v5514 = vunpack.c.l.b16 %v5317
        %v5515 = vunpack.c.h.b16 %v5317
        %v5516 = vunpack.c.l.b16 %v5318
        %v5517 = vunpack.c.l.b16 %v5319
        %v5518 = vunpack.c.h.b16 %v5319
        %v5519 = vunpack.c.l.b16 %v5320
        %v5520 = vunpack.c.h.b16 %v5320
        %v5521 = vunpack.c.l.b16 %v5321
        %v5522 = vunpack.c.h.b16 %v5321
        %v5523 = vunpack.c.l.b16 %v5322
        %v5524 = vunpack.c.l.b16 %v5323
        %v5525 = vunpack.c.h.b16 %v5323
        %v5526 = vunpack.c.l.b16 %v5324
        %v5527 = vunpack.c.h.b16 %v5324
        %v5528 = vunpack.c.l.b16 %v5325
        %v5529 = vunpack.c.h.b16 %v5325
        %v5530 = vunpack.c.l.b16 %v5326
        %v5531 = vunpack.c.l.b16 %v5327
        %v5532 = vunpack.c.h.b16 %v5327
        %v5533 = vunpack.c.l.b16 %v5328
        %v5534 = vunpack.c.h.b16 %v5328
        %v5535 = vunpack.c.l.b16 %v5329
        %v5536 = vunpack.c.h.b16 %v5329
        %v5537 = vunpack.c.l.b16 %v5330
        %v5538 = vunpack.c.l.b16 %v5331
        %v5539 = vunpack.c.h.b16 %v5331
        %v5540 = vunpack.c.l.b16 %v5332
        %v5541 = vunpack.c.h.b16 %v5332
        %v5542 = vunpack.c.l.b16 %v5333
        %v5543 = vunpack.c.h.b16 %v5333
        %v5544 = vunpack.c.l.b16 %v5334
        %v5545 = vunpack.c.l.b16 %v5335
        %v5546 = vunpack.c.h.b16 %v5335
        %v5547 = vunpack.c.l.b16 %v5336
        %v5548 = vunpack.c.h.b16 %v5336
        %v5549 = vunpack.c.l.b16 %v5337
        %v5550 = vunpack.c.h.b16 %v5337
        %v5551 = vunpack.c.l.b16 %v5338
        %v5552 = vpack.c.b16 %v5447, %v5440
        %v5553 = vpack.c.b16 %v5448, %v5441
        %v5554 = vpack.c.b16 %v5449, %v5442
        %v5555 = vpack.c.b16 %v5450, %v5443
        %v5556 = vpack.c.b16 %v5451, %v5444
        %v5557 = vpack.c.b16 %v5452, %v5445
        %v5558 = vpack.c.b16 %v5453, %v5446
        %v5559 = vpack.c.b16 %v5461, %v5454
        %v5560 = vpack.c.b16 %v5462, %v5455
        %v5561 = vpack.c.b16 %v5463, %v5456
        %v5562 = vpack.c.b16 %v5464, %v5457
        %v5563 = vpack.c.b16 %v5465, %v5458
        %v5564 = vpack.c.b16 %v5466, %v5459
        %v5565 = vpack.c.b16 %v5467, %v5460
        %v5566 = vpack.c.b16 %v5475, %v5468
        %v5567 = vpack.c.b16 %v5476, %v5469
        %v5568 = vpack.c.b16 %v5477, %v5470
        %v5569 = vpack.c.b16 %v5478, %v5471
        %v5570 = vpack.c.b16 %v5479, %v5472
        %v5571 = vpack.c.b16 %v5480, %v5473
        %v5572 = vpack.c.b16 %v5481, %v5474
        %v5573 = vpack.c.b16 %v5489, %v5482
        %v5574 = vpack.c.b16 %v5490, %v5483
        %v5575 = vpack.c.b16 %v5491, %v5484
        %v5576 = vpack.c.b16 %v5492, %v5485
        %v5577 = vpack.c.b16 %v5493, %v5486
        %v5578 = vpack.c.b16 %v5494, %v5487
        %v5579 = vpack.c.b16 %v5495, %v5488
        %v5580 = vpack.c.b16 %v5503, %v5496
        %v5581 = vpack.c.b16 %v5504, %v5497
        %v5582 = vpack.c.b16 %v5505, %v5498
        %v5583 = vpack.c.b16 %v5506, %v5499
        %v5584 = vpack.c.b16 %v5507, %v5500
        %v5585 = vpack.c.b16 %v5508, %v5501
        %v5586 = vpack.c.b16 %v5509, %v5502
        %v5587 = vpack.c.b16 %v5517, %v5510
        %v5588 = vpack.c.b16 %v5518, %v5511
        %v5589 = vpack.c.b16 %v5519, %v5512
        %v5590 = vpack.c.b16 %v5520, %v5513
        %v5591 = vpack.c.b16 %v5521, %v5514
        %v5592 = vpack.c.b16 %v5522, %v5515
        %v5593 = vpack.c.b16 %v5523, %v5516
        %v5594 = vpack.c.b16 %v5531, %v5524
        %v5595 = vpack.c.b16 %v5532, %v5525
        %v5596 = vpack.c.b16 %v5533, %v5526
        %v5597 = vpack.c.b16 %v5534, %v5527
        %v5598 = vpack.c.b16 %v5535, %v5528
        %v5599 = vpack.c.b16 %v5536, %v5529
        %v5600 = vpack.c.b16 %v5537, %v5530
        %v5601 = vpack.c.b16 %v5545, %v5538
        %v5602 = vpack.c.b16 %v5546, %v5539
        %v5603 = vpack.c.b16 %v5547, %v5540
        %v5604 = vpack.c.b16 %v5548, %v5541
        %v5605 = vpack.c.b16 %v5549, %v5542
        %v5606 = vpack.c.b16 %v5550, %v5543
        %v5607 = vpack.c.b16 %v5551, %v5544
        %5664 = vmatprep.subr.bf16.mxu0 %v5553
        %5665 = vmatpush1.bf16.msra.mxu0 %v5552
        %5666 = vmatprep.subr.bf16.mxu0 %v5560
        %5667 = vmatpush1.bf16.msra.mxu0 %v5559
        %5668 = vmatprep.subr.bf16.mxu0 %v5567
        %5669 = vmatpush1.bf16.msra.mxu0 %v5566
        %5670 = vmatprep.subr.bf16.mxu0 %v5574
        %5671 = vmatpush1.bf16.msra.mxu0 %v5573
        %5672 = vmatprep.subr.bf16.mxu0 %v5581
        %5673 = vmatpush1.bf16.msra.mxu0 %v5580
        %5674 = vmatprep.subr.bf16.mxu0 %v5588
        %5675 = vmatpush1.bf16.msra.mxu0 %v5587
        %5676 = vmatprep.subr.bf16.mxu0 %v5595
        %5677 = vmatpush1.bf16.msra.mxu0 %v5594
        %5678 = vmatprep.subr.bf16.mxu0 %v5602
        %5679 = vmatpush1.bf16.msra.mxu0 %v5601
        %5680 = vmatprep.subr.bf16.mxu0 0
        %5681 = vmatpush1.bf16.msra.mxu0 0
        %5682 = vmatprep.subr.bf16.mxu0 0
        %5683 = vmatpush1.bf16.msra.mxu0 0
        %5684 = vmatprep.subr.bf16.mxu0 0
        %5685 = vmatpush1.bf16.msra.mxu0 0
        %5686 = vmatprep.subr.bf16.mxu0 0
        %5687 = vmatpush1.bf16.msra.mxu0 0
        %5688 = vmatprep.subr.bf16.mxu0 0
        %5689 = vmatpush1.bf16.msra.mxu0 0
        %5690 = vmatprep.subr.bf16.mxu0 0
        %5691 = vmatpush1.bf16.msra.mxu0 0
        %5692 = vmatprep.subr.bf16.mxu0 0
        %5693 = vmatpush1.bf16.msra.mxu0 0
        %5694 = vmatprep.subr.bf16.mxu0 0
        %5695 = vmatpush1.bf16.msra.mxu0 0
        %5696 = vmatprep.mubr.bf16.mxu0 0
        %5697 = vmatmul.mubr.bf16.gmra.mrb[0].mxu0 %v5274
        %v5698 = vpop.f32.mrb[0].mxu0
        %v5699 = vadd.f32 %v5344, %v5698
        %v5700 = vpop.f32.mrb[0].mxu0
        %v5701 = vadd.f32 %v5348, %v5700
        %v5702 = vpop.f32.mrb[0].mxu0
        %v5703 = vpop.f32.mrb[0].mxu0
        %5704 = vdwg.mxu0
        %5705 = vmatprep.subr.bf16.mxu0 %v5555
        %5706 = vmatpush1.bf16.msra.mxu0 %v5554
        %5707 = vmatprep.subr.bf16.mxu0 %v5562
        %5708 = vmatpush1.bf16.msra.mxu0 %v5561
        %5709 = vmatprep.subr.bf16.mxu0 %v5569
        %5710 = vmatpush1.bf16.msra.mxu0 %v5568
        %5711 = vmatprep.subr.bf16.mxu0 %v5576
        %5712 = vmatpush1.bf16.msra.mxu0 %v5575
        %5713 = vmatprep.subr.bf16.mxu0 %v5583
        %5714 = vmatpush1.bf16.msra.mxu0 %v5582
        %5715 = vmatprep.subr.bf16.mxu0 %v5590
        %5716 = vmatpush1.bf16.msra.mxu0 %v5589
        %5717 = vmatprep.subr.bf16.mxu0 %v5597
        %5718 = vmatpush1.bf16.msra.mxu0 %v5596
        %5719 = vmatprep.subr.bf16.mxu0 %v5604
        %5720 = vmatpush1.bf16.msra.mxu0 %v5603
        %5721 = vmatprep.subr.bf16.mxu0 0
        %5722 = vmatpush1.bf16.msra.mxu0 0
        %5723 = vmatprep.subr.bf16.mxu0 0
        %5724 = vmatpush1.bf16.msra.mxu0 0
        %5725 = vmatprep.subr.bf16.mxu0 0
        %5726 = vmatpush1.bf16.msra.mxu0 0
        %5727 = vmatprep.subr.bf16.mxu0 0
        %5728 = vmatpush1.bf16.msra.mxu0 0
        %5729 = vmatprep.subr.bf16.mxu0 0
        %5730 = vmatpush1.bf16.msra.mxu0 0
        %5731 = vmatprep.subr.bf16.mxu0 0
        %5732 = vmatpush1.bf16.msra.mxu0 0
        %5733 = vmatprep.subr.bf16.mxu0 0
        %5734 = vmatpush1.bf16.msra.mxu0 0
        %5735 = vmatprep.subr.bf16.mxu0 0
        %5736 = vmatpush1.bf16.msra.mxu0 0
        %5737 = vmatprep.mubr.bf16.mxu0 0
        %5738 = vmatmul.mubr.bf16.gmra.mrb[0].mxu0 %v5274
        %v5739 = vpop.f32.mrb[0].mxu0
        %v5740 = vadd.f32 %v5352, %v5739
        %v5741 = vpop.f32.mrb[0].mxu0
        %v5742 = vadd.f32 %v5356, %v5741
        %v5743 = vpop.f32.mrb[0].mxu0
        %v5744 = vpop.f32.mrb[0].mxu0
        %5745 = vdwg.mxu0
        %5746 = vmatprep.subr.bf16.mxu0 %v5557
        %5747 = vmatpush1.bf16.msra.mxu0 %v5556
        %5748 = vmatprep.subr.bf16.mxu0 %v5564
        %5749 = vmatpush1.bf16.msra.mxu0 %v5563
        %5750 = vmatprep.subr.bf16.mxu0 %v5571
        %5751 = vmatpush1.bf16.msra.mxu0 %v5570
        %5752 = vmatprep.subr.bf16.mxu0 %v5578
        %5753 = vmatpush1.bf16.msra.mxu0 %v5577
        %5754 = vmatprep.subr.bf16.mxu0 %v5585
        %5755 = vmatpush1.bf16.msra.mxu0 %v5584
        %5756 = vmatprep.subr.bf16.mxu0 %v5592
        %5757 = vmatpush1.bf16.msra.mxu0 %v5591
        %5758 = vmatprep.subr.bf16.mxu0 %v5599
        %5759 = vmatpush1.bf16.msra.mxu0 %v5598
        %5760 = vmatprep.subr.bf16.mxu0 %v5606
        %5761 = vmatpush1.bf16.msra.mxu0 %v5605
        %5762 = vmatprep.subr.bf16.mxu0 0
        %5763 = vmatpush1.bf16.msra.mxu0 0
        %5764 = vmatprep.subr.bf16.mxu0 0
        %5765 = vmatpush1.bf16.msra.mxu0 0
        %5766 = vmatprep.subr.bf16.mxu0 0
        %5767 = vmatpush1.bf16.msra.mxu0 0
        %5768 = vmatprep.subr.bf16.mxu0 0
        %5769 = vmatpush1.bf16.msra.mxu0 0
        %5770 = vmatprep.subr.bf16.mxu0 0
        %5771 = vmatpush1.bf16.msra.mxu0 0
        %5772 = vmatprep.subr.bf16.mxu0 0
        %5773 = vmatpush1.bf16.msra.mxu0 0
        %5774 = vmatprep.subr.bf16.mxu0 0
        %5775 = vmatpush1.bf16.msra.mxu0 0
        %5776 = vmatprep.subr.bf16.mxu0 0
        %5777 = vmatpush1.bf16.msra.mxu0 0
        %5778 = vmatprep.mubr.bf16.mxu0 0
        %5779 = vmatmul.mubr.bf16.gmra.mrb[0].mxu0 %v5274
        %v5780 = vpop.f32.mrb[0].mxu0
        %v5781 = vadd.f32 %v5360, %v5780
        %v5782 = vpop.f32.mrb[0].mxu0
        %v5783 = vadd.f32 %v5364, %v5782
        %v5784 = vpop.f32.mrb[0].mxu0
        %v5785 = vpop.f32.mrb[0].mxu0
        %5786 = vdwg.mxu0
        %5787 = vmatprep.subr.bf16.mxu0 0
        %5788 = vmatpush1.bf16.msra.mxu0 %v5558
        %5789 = vmatprep.subr.bf16.mxu0 0
        %5790 = vmatpush1.bf16.msra.mxu0 %v5565
        %5791 = vmatprep.subr.bf16.mxu0 0
        %5792 = vmatpush1.bf16.msra.mxu0 %v5572
        %5793 = vmatprep.subr.bf16.mxu0 0
        %5794 = vmatpush1.bf16.msra.mxu0 %v5579
        %5795 = vmatprep.subr.bf16.mxu0 0
        %5796 = vmatpush1.bf16.msra.mxu0 %v5586
        %5797 = vmatprep.subr.bf16.mxu0 0
        %5798 = vmatpush1.bf16.msra.mxu0 %v5593
        %5799 = vmatprep.subr.bf16.mxu0 0
        %5800 = vmatpush1.bf16.msra.mxu0 %v5600
        %5801 = vmatprep.subr.bf16.mxu0 0
        %5802 = vmatpush1.bf16.msra.mxu0 %v5607
        %5803 = vmatprep.subr.bf16.mxu0 0
        %5804 = vmatpush1.bf16.msra.mxu0 0
        %5805 = vmatprep.subr.bf16.mxu0 0
        %5806 = vmatpush1.bf16.msra.mxu0 0
        %5807 = vmatprep.subr.bf16.mxu0 0
        %5808 = vmatpush1.bf16.msra.mxu0 0
        %5809 = vmatprep.subr.bf16.mxu0 0
        %5810 = vmatpush1.bf16.msra.mxu0 0
        %5811 = vmatprep.subr.bf16.mxu0 0
        %5812 = vmatpush1.bf16.msra.mxu0 0
        %5813 = vmatprep.subr.bf16.mxu0 0
        %5814 = vmatpush1.bf16.msra.mxu0 0
        %5815 = vmatprep.subr.bf16.mxu0 0
        %5816 = vmatpush1.bf16.msra.mxu0 0
        %5817 = vmatprep.subr.bf16.mxu0 0
        %5818 = vmatpush1.bf16.msra.mxu0 0
        %5819 = vmatprep.mubr.bf16.mxu0 0
        %5820 = vmatmul.mubr.bf16.gmra.mrb[0].mxu0 %v5274
        %v5821 = vpop.f32.mrb[0].mxu0
        %v5822 = vadd.f32 %v5368, %v5821
        %v5823 = vpop.f32.mrb[0].mxu0
        %v5824 = vpop.f32.mrb[0].mxu0
        %v5825 = vpop.f32.mrb[0].mxu0
        %5826 = vdwg.mxu0
        %v5827 = vmax.f32 %v5699, 0.0
        %v5828 = vmax.f32 %v5701, 0.0
        %v5829 = vmax.f32 %v5740, 0.0
        %v5830 = vmax.f32 %v5742, 0.0
        %v5831 = vmax.f32 %v5781, 0.0
        %v5832 = vmax.f32 %v5783, 0.0
        %v5833 = vmax.f32 %v5822, 0.0
        %v5834 = vpack.c.bf16 %v5827, %v5827
        %v5835 = vpack.c.bf16 %v5828, %v5828
        %v5836 = vpack.c.bf16 %v5829, %v5829
        %v5837 = vpack.c.bf16 %v5830, %v5830
        %v5838 = vpack.c.bf16 %v5831, %v5831
        %v5839 = vpack.c.bf16 %v5832, %v5832
        %v5840 = vpack.c.bf16 %v5833, %v5833
        %v5841 = vld [vmem:[#allocation28] sm:$0xff]
        %v5842 = vld [vmem:[#allocation28 + $0x8] sm:$0xff]
        %v5843 = vld [vmem:[#allocation28 + $0x10] sm:$0xff]
        %v5844 = vld [vmem:[#allocation28 + $0x18] sm:$0xf]
        %v5845 = vld [vmem:[#allocation28 + $0x1c] sm:$0xff]
        %v5846 = vld [vmem:[#allocation28 + $0x24] sm:$0xff]
        %v5847 = vld [vmem:[#allocation28 + $0x2c] sm:$0xff]
        %v5848 = vld [vmem:[#allocation28 + $0x34] sm:$0xf]
        %v5849 = vld [vmem:[#allocation28 + $0x38] sm:$0xff]
        %v5850 = vld [vmem:[#allocation28 + $0x40] sm:$0xff]
        %v5851 = vld [vmem:[#allocation28 + $0x48] sm:$0xff]
        %v5852 = vld [vmem:[#allocation28 + $0x50] sm:$0xf]
        %v5853 = vld [vmem:[#allocation28 + $0x54] sm:$0xff]
        %v5854 = vld [vmem:[#allocation28 + $0x5c] sm:$0xff]
        %v5855 = vld [vmem:[#allocation28 + $0x64] sm:$0xff]
        %v5856 = vld [vmem:[#allocation28 + $0x6c] sm:$0xf]
        %v5857 = vld [vmem:[#allocation28 + $0x70] sm:$0xff]
        %v5858 = vld [vmem:[#allocation28 + $0x78] sm:$0xff]
        %v5859 = vld [vmem:[#allocation28 + $0x80] sm:$0xff]
        %v5860 = vld [vmem:[#allocation28 + $0x88] sm:$0xf]
        %v5861 = vld [vmem:[#allocation28 + $0x8c] sm:$0xff]
        %v5862 = vld [vmem:[#allocation28 + $0x94] sm:$0xff]
        %v5863 = vld [vmem:[#allocation28 + $0x9c] sm:$0xff]
        %v5864 = vld [vmem:[#allocation28 + $0xa4] sm:$0xf]
        %v5865 = vld [vmem:[#allocation28 + $0xa8] sm:$0xff]
        %v5866 = vld [vmem:[#allocation28 + $0xb0] sm:$0xff]
        %v5867 = vld [vmem:[#allocation28 + $0xb8] sm:$0xff]
        %v5868 = vld [vmem:[#allocation28 + $0xc0] sm:$0xf]
        %v5869 = vld [vmem:[#allocation28 + $0xc4] sm:$0xff]
        %v5870 = vld [vmem:[#allocation28 + $0xcc] sm:$0xff]
        %v5871 = vld [vmem:[#allocation28 + $0xd4] sm:$0xff]
        %v5872 = vld [vmem:[#allocation28 + $0xdc] sm:$0xf]
        %v5873 = vld [vmem:[#allocation28 + $0xe0] sm:$0xff]
        %v5874 = vld [vmem:[#allocation28 + $0xe8] sm:$0xff]
        %v5875 = vld [vmem:[#allocation28 + $0xf0] sm:$0xff]
        %v5876 = vld [vmem:[#allocation28 + $0xf8] sm:$0xf]
        %v5877 = vld [vmem:[#allocation28 + $0xfc] sm:$0xff]
        %v5878 = vld [vmem:[#allocation28 + $0x104] sm:$0xff]
        %v5879 = vld [vmem:[#allocation28 + $0x10c] sm:$0xff]
        %v5880 = vld [vmem:[#allocation28 + $0x114] sm:$0xf]
        %v5881 = vld [vmem:[#allocation28 + $0x118] sm:$0xff]
        %v5882 = vld [vmem:[#allocation28 + $0x120] sm:$0xff]
        %v5883 = vld [vmem:[#allocation28 + $0x128] sm:$0xff]
        %v5884 = vld [vmem:[#allocation28 + $0x130] sm:$0xf]
        %v5885 = vld [vmem:[#allocation28 + $0x134] sm:$0xff]
        %v5886 = vld [vmem:[#allocation28 + $0x13c] sm:$0xff]
        %v5887 = vld [vmem:[#allocation28 + $0x144] sm:$0xff]
        %v5888 = vld [vmem:[#allocation28 + $0x14c] sm:$0xf]
        %v5889 = vld [vmem:[#allocation28 + $0x150] sm:$0xff]
        %v5890 = vld [vmem:[#allocation28 + $0x158] sm:$0xff]
        %v5891 = vld [vmem:[#allocation28 + $0x160] sm:$0xff]
        %v5892 = vld [vmem:[#allocation28 + $0x168] sm:$0xf]
        %v5893 = vld [vmem:[#allocation28 + $0x16c] sm:$0xff]
        %v5894 = vld [vmem:[#allocation28 + $0x174] sm:$0xff]
        %v5895 = vld [vmem:[#allocation28 + $0x17c] sm:$0xff]
        %v5896 = vld [vmem:[#allocation28 + $0x184] sm:$0xf]
        %v5897 = vld [vmem:[#allocation28 + $0x188] sm:$0xff]
        %v5898 = vld [vmem:[#allocation28 + $0x190] sm:$0xff]
        %v5899 = vld [vmem:[#allocation28 + $0x198] sm:$0xff]
        %v5900 = vld [vmem:[#allocation28 + $0x1a0] sm:$0xf]
        %v5901 = vld [vmem:[#allocation28 + $0x1a4] sm:$0xff]
        %v5902 = vld [vmem:[#allocation28 + $0x1ac] sm:$0xff]
        %v5903 = vld [vmem:[#allocation28 + $0x1b4] sm:$0xff]
        %v5904 = vld [vmem:[#allocation28 + $0x1bc] sm:$0xf]
        %v5905 = vld [vmem:[#allocation28 + $0x1c0] sm:$0xff]
        %v5906 = vld [vmem:[#allocation28 + $0x1c8] sm:$0xff]
        %v5907 = vld [vmem:[#allocation28 + $0x1d0] sm:$0xff]
        %v5908 = vld [vmem:[#allocation28 + $0x1d8] sm:$0xf]
        %v5909 = vld [vmem:[#allocation28 + $0x1dc] sm:$0xff]
        %v5910 = vld [vmem:[#allocation28 + $0x1e4] sm:$0xff]
        %v5911 = vld [vmem:[#allocation28 + $0x1ec] sm:$0xff]
        %v5912 = vld [vmem:[#allocation28 + $0x1f4] sm:$0xf]
        %v5913 = vld [vmem:[#allocation28 + $0x1f8] sm:$0xff]
        %v5914 = vld [vmem:[#allocation28 + $0x200] sm:$0xff]
        %v5915 = vld [vmem:[#allocation28 + $0x208] sm:$0xff]
        %v5916 = vld [vmem:[#allocation28 + $0x210] sm:$0xf]
        %v5917 = vld [vmem:[#allocation28 + $0x214] sm:$0xff]
        %v5918 = vld [vmem:[#allocation28 + $0x21c] sm:$0xff]
        %v5919 = vld [vmem:[#allocation28 + $0x224] sm:$0xff]
        %v5920 = vld [vmem:[#allocation28 + $0x22c] sm:$0xf]
        %v5921 = vld [vmem:[#allocation28 + $0x230] sm:$0xff]
        %v5922 = vld [vmem:[#allocation28 + $0x238] sm:$0xff]
        %v5923 = vld [vmem:[#allocation28 + $0x240] sm:$0xff]
        %v5924 = vld [vmem:[#allocation28 + $0x248] sm:$0xf]
        %v5925 = vld [vmem:[#allocation28 + $0x24c] sm:$0xff]
        %v5926 = vld [vmem:[#allocation28 + $0x254] sm:$0xff]
        %v5927 = vld [vmem:[#allocation28 + $0x25c] sm:$0xff]
        %v5928 = vld [vmem:[#allocation28 + $0x264] sm:$0xf]
        %v5929 = vld [vmem:[#allocation28 + $0x268] sm:$0xff]
        %v5930 = vld [vmem:[#allocation28 + $0x270] sm:$0xff]
        %v5931 = vld [vmem:[#allocation28 + $0x278] sm:$0xff]
        %v5932 = vld [vmem:[#allocation28 + $0x280] sm:$0xf]
        %v5933 = vld [vmem:[#allocation28 + $0x284] sm:$0xff]
        %v5934 = vld [vmem:[#allocation28 + $0x28c] sm:$0xff]
        %v5935 = vld [vmem:[#allocation28 + $0x294] sm:$0xff]
        %v5936 = vld [vmem:[#allocation28 + $0x29c] sm:$0xf]
        %v5937 = vld [vmem:[#allocation28 + $0x2a0] sm:$0xff]
        %v5938 = vld [vmem:[#allocation28 + $0x2a8] sm:$0xff]
        %v5939 = vld [vmem:[#allocation28 + $0x2b0] sm:$0xff]
        %v5940 = vld [vmem:[#allocation28 + $0x2b8] sm:$0xf]
        %v5941 = vld [vmem:[#allocation28 + $0x2bc] sm:$0xff]
        %v5942 = vld [vmem:[#allocation28 + $0x2c4] sm:$0xff]
        %v5943 = vld [vmem:[#allocation28 + $0x2cc] sm:$0xff]
        %v5944 = vld [vmem:[#allocation28 + $0x2d4] sm:$0xf]
        %v5945 = vld [vmem:[#allocation28 + $0x2d8] sm:$0xff]
        %v5946 = vld [vmem:[#allocation28 + $0x2e0] sm:$0xff]
        %v5947 = vld [vmem:[#allocation28 + $0x2e8] sm:$0xff]
        %v5948 = vld [vmem:[#allocation28 + $0x2f0] sm:$0xf]
        %v5949 = vld [vmem:[#allocation28 + $0x2f4] sm:$0xff]
        %v5950 = vld [vmem:[#allocation28 + $0x2fc] sm:$0xff]
        %v5951 = vld [vmem:[#allocation28 + $0x304] sm:$0xff]
        %v5952 = vld [vmem:[#allocation28 + $0x30c] sm:$0xf]
        %v5953 = vld [vmem:[#allocation28 + $0x310] sm:$0xff]
        %v5954 = vld [vmem:[#allocation28 + $0x318] sm:$0xff]
        %v5955 = vld [vmem:[#allocation28 + $0x320] sm:$0xff]
        %v5956 = vld [vmem:[#allocation28 + $0x328] sm:$0xf]
        %v5957 = vld [vmem:[#allocation28 + $0x32c] sm:$0xff]
        %v5958 = vld [vmem:[#allocation28 + $0x334] sm:$0xff]
        %v5959 = vld [vmem:[#allocation28 + $0x33c] sm:$0xff]
        %v5960 = vld [vmem:[#allocation28 + $0x344] sm:$0xf]
        %v5961 = vld [vmem:[#allocation28 + $0x348] sm:$0xff]
        %v5962 = vld [vmem:[#allocation28 + $0x350] sm:$0xff]
        %v5963 = vld [vmem:[#allocation28 + $0x358] sm:$0xff]
        %v5964 = vld [vmem:[#allocation28 + $0x360] sm:$0xf]
        %v5965 = vld [vmem:[#allocation28 + $0x364] sm:$0xff]
        %v5966 = vld [vmem:[#allocation28 + $0x36c] sm:$0xff]
        %v5967 = vld [vmem:[#allocation28 + $0x374] sm:$0xff]
        %v5968 = vld [vmem:[#allocation28 + $0x37c] sm:$0xf]
        %v5969 = vld [vmem:[#allocation28 + $0x380] sm:$0xff]
        %v5970 = vld [vmem:[#allocation28 + $0x388] sm:$0xff]
        %v5971 = vld [vmem:[#allocation28 + $0x390] sm:$0xff]
        %v5972 = vld [vmem:[#allocation28 + $0x398] sm:$0xf]
        %v5973 = vld [vmem:[#allocation28 + $0x39c] sm:$0xff]
        %v5974 = vld [vmem:[#allocation28 + $0x3a4] sm:$0xff]
        %v5975 = vld [vmem:[#allocation28 + $0x3ac] sm:$0xff]
        %v5976 = vld [vmem:[#allocation28 + $0x3b4] sm:$0xf]
        %v5977 = vld [vmem:[#allocation28 + $0x3b8] sm:$0xff]
        %v5978 = vld [vmem:[#allocation28 + $0x3c0] sm:$0xff]
        %v5979 = vld [vmem:[#allocation28 + $0x3c8] sm:$0xff]
        %v5980 = vld [vmem:[#allocation28 + $0x3d0] sm:$0xf]
        %v5981 = vld [vmem:[#allocation28 + $0x3d4] sm:$0xff]
        %v5982 = vld [vmem:[#allocation28 + $0x3dc] sm:$0xff]
        %v5983 = vld [vmem:[#allocation28 + $0x3e4] sm:$0xff]
        %v5984 = vld [vmem:[#allocation28 + $0x3ec] sm:$0xf]
        %v5985 = vld [vmem:[#allocation28 + $0x3f0] sm:$0xff]
        %v5986 = vld [vmem:[#allocation28 + $0x3f8] sm:$0xff]
        %v5987 = vld [vmem:[#allocation28 + $0x400] sm:$0xff]
        %v5988 = vld [vmem:[#allocation28 + $0x408] sm:$0xf]
        %v5989 = vld [vmem:[#allocation28 + $0x40c] sm:$0xff]
        %v5990 = vld [vmem:[#allocation28 + $0x414] sm:$0xff]
        %v5991 = vld [vmem:[#allocation28 + $0x41c] sm:$0xff]
        %v5992 = vld [vmem:[#allocation28 + $0x424] sm:$0xf]
        %v5993 = vld [vmem:[#allocation28 + $0x428] sm:$0xff]
        %v5994 = vld [vmem:[#allocation28 + $0x430] sm:$0xff]
        %v5995 = vld [vmem:[#allocation28 + $0x438] sm:$0xff]
        %v5996 = vld [vmem:[#allocation28 + $0x440] sm:$0xf]
        %v5997 = vld [vmem:[#allocation28 + $0x444] sm:$0xff]
        %v5998 = vld [vmem:[#allocation28 + $0x44c] sm:$0xff]
        %v5999 = vld [vmem:[#allocation28 + $0x454] sm:$0xff]
        %v6000 = vld [vmem:[#allocation28 + $0x45c] sm:$0xf]
        %v6001 = vld [vmem:[#allocation28 + $0x460] sm:$0xff]
        %v6002 = vld [vmem:[#allocation28 + $0x468] sm:$0xff]
        %v6003 = vld [vmem:[#allocation28 + $0x470] sm:$0xff]
        %v6004 = vld [vmem:[#allocation28 + $0x478] sm:$0xf]
        %v6005 = vld [vmem:[#allocation28 + $0x47c] sm:$0xff]
        %v6006 = vld [vmem:[#allocation28 + $0x484] sm:$0xff]
        %v6007 = vld [vmem:[#allocation28 + $0x48c] sm:$0xff]
        %v6008 = vld [vmem:[#allocation28 + $0x494] sm:$0xf]
        %v6009 = vld [vmem:[#allocation28 + $0x498] sm:$0xff]
        %v6010 = vld [vmem:[#allocation28 + $0x4a0] sm:$0xff]
        %v6011 = vld [vmem:[#allocation28 + $0x4a8] sm:$0xff]
        %v6012 = vld [vmem:[#allocation28 + $0x4b0] sm:$0xf]
        %v6013 = vld [vmem:[#allocation28 + $0x4b4] sm:$0xff]
        %v6014 = vld [vmem:[#allocation28 + $0x4bc] sm:$0xff]
        %v6015 = vld [vmem:[#allocation28 + $0x4c4] sm:$0xff]
        %v6016 = vld [vmem:[#allocation28 + $0x4cc] sm:$0xf]
        %v6017 = vld [vmem:[#allocation28 + $0x4d0] sm:$0xff]
        %v6018 = vld [vmem:[#allocation28 + $0x4d8] sm:$0xff]
        %v6019 = vld [vmem:[#allocation28 + $0x4e0] sm:$0xff]
        %v6020 = vld [vmem:[#allocation28 + $0x4e8] sm:$0xf]
        %v6021 = vld [vmem:[#allocation28 + $0x4ec] sm:$0xff]
        %v6022 = vld [vmem:[#allocation28 + $0x4f4] sm:$0xff]
        %v6023 = vld [vmem:[#allocation28 + $0x4fc] sm:$0xff]
        %v6024 = vld [vmem:[#allocation28 + $0x504] sm:$0xf]
        %v6025 = vld [vmem:[#allocation28 + $0x508] sm:$0xff]
        %v6026 = vld [vmem:[#allocation28 + $0x510] sm:$0xff]
        %v6027 = vld [vmem:[#allocation28 + $0x518] sm:$0xff]
        %v6028 = vld [vmem:[#allocation28 + $0x520] sm:$0xf]
        %v6029 = vld [vmem:[#allocation28 + $0x524] sm:$0xff]
        %v6030 = vld [vmem:[#allocation28 + $0x52c] sm:$0xff]
        %v6031 = vld [vmem:[#allocation28 + $0x534] sm:$0xff]
        %v6032 = vld [vmem:[#allocation28 + $0x53c] sm:$0xf]
        %v6033 = vld [vmem:[#allocation28 + $0x540] sm:$0xff]
        %v6034 = vld [vmem:[#allocation28 + $0x548] sm:$0xff]
        %v6035 = vld [vmem:[#allocation28 + $0x550] sm:$0xff]
        %v6036 = vld [vmem:[#allocation28 + $0x558] sm:$0xf]
        %v6037 = vld [vmem:[#allocation28 + $0x55c] sm:$0xff]
        %v6038 = vld [vmem:[#allocation28 + $0x564] sm:$0xff]
        %v6039 = vld [vmem:[#allocation28 + $0x56c] sm:$0xff]
        %v6040 = vld [vmem:[#allocation28 + $0x574] sm:$0xf]
        %v6041 = vld [vmem:[#allocation28 + $0x578] sm:$0xff]
        %v6042 = vld [vmem:[#allocation28 + $0x580] sm:$0xff]
        %v6043 = vld [vmem:[#allocation28 + $0x588] sm:$0xff]
        %v6044 = vld [vmem:[#allocation28 + $0x590] sm:$0xf]
        %v6045 = vld [vmem:[#allocation28 + $0x594] sm:$0xff]
        %v6046 = vld [vmem:[#allocation28 + $0x59c] sm:$0xff]
        %v6047 = vld [vmem:[#allocation28 + $0x5a4] sm:$0xff]
        %v6048 = vld [vmem:[#allocation28 + $0x5ac] sm:$0xf]
        %v6049 = vld [vmem:[#allocation28 + $0x5b0] sm:$0xff]
        %v6050 = vld [vmem:[#allocation28 + $0x5b8] sm:$0xff]
        %v6051 = vld [vmem:[#allocation28 + $0x5c0] sm:$0xff]
        %v6052 = vld [vmem:[#allocation28 + $0x5c8] sm:$0xf]
        %v6053 = vld [vmem:[#allocation28 + $0x5cc] sm:$0xff]
        %v6054 = vld [vmem:[#allocation28 + $0x5d4] sm:$0xff]
        %v6055 = vld [vmem:[#allocation28 + $0x5dc] sm:$0xff]
        %v6056 = vld [vmem:[#allocation28 + $0x5e4] sm:$0xf]
        %v6057 = vld [vmem:[#allocation28 + $0x5e8] sm:$0xff]
        %v6058 = vld [vmem:[#allocation28 + $0x5f0] sm:$0xff]
        %v6059 = vld [vmem:[#allocation28 + $0x5f8] sm:$0xff]
        %v6060 = vld [vmem:[#allocation28 + $0x600] sm:$0xf]
        %v6061 = vld [vmem:[#allocation28 + $0x604] sm:$0xff]
        %v6062 = vld [vmem:[#allocation28 + $0x60c] sm:$0xff]
        %v6063 = vld [vmem:[#allocation28 + $0x614] sm:$0xff]
        %v6064 = vld [vmem:[#allocation28 + $0x61c] sm:$0xf]
        %v6065 = vld [vmem:[#allocation28 + $0x620] sm:$0xff]
        %v6066 = vld [vmem:[#allocation28 + $0x628] sm:$0xff]
        %v6067 = vld [vmem:[#allocation28 + $0x630] sm:$0xff]
        %v6068 = vld [vmem:[#allocation28 + $0x638] sm:$0xf]
        %v6069 = vld [vmem:[#allocation28 + $0x63c] sm:$0xff]
        %v6070 = vld [vmem:[#allocation28 + $0x644] sm:$0xff]
        %v6071 = vld [vmem:[#allocation28 + $0x64c] sm:$0xff]
        %v6072 = vld [vmem:[#allocation28 + $0x654] sm:$0xf]
        %v6073 = vld [vmem:[#allocation28 + $0x658] sm:$0xff]
        %v6074 = vld [vmem:[#allocation28 + $0x660] sm:$0xff]
        %v6075 = vld [vmem:[#allocation28 + $0x668] sm:$0xff]
        %v6076 = vld [vmem:[#allocation28 + $0x670] sm:$0xf]
        %v6077 = vld [vmem:[#allocation28 + $0x674] sm:$0xff]
        %v6078 = vld [vmem:[#allocation28 + $0x67c] sm:$0xff]
        %v6079 = vld [vmem:[#allocation28 + $0x684] sm:$0xff]
        %v6080 = vld [vmem:[#allocation28 + $0x68c] sm:$0xf]
        %v6081 = vld [vmem:[#allocation28 + $0x690] sm:$0xff]
        %v6082 = vld [vmem:[#allocation28 + $0x698] sm:$0xff]
        %v6083 = vld [vmem:[#allocation28 + $0x6a0] sm:$0xff]
        %v6084 = vld [vmem:[#allocation28 + $0x6a8] sm:$0xf]
        %v6085 = vld [vmem:[#allocation28 + $0x6ac] sm:$0xff]
        %v6086 = vld [vmem:[#allocation28 + $0x6b4] sm:$0xff]
        %v6087 = vld [vmem:[#allocation28 + $0x6bc] sm:$0xff]
        %v6088 = vld [vmem:[#allocation28 + $0x6c4] sm:$0xf]
        %v6089 = vld [vmem:[#allocation28 + $0x6c8] sm:$0xff]
        %v6090 = vld [vmem:[#allocation28 + $0x6d0] sm:$0xff]
        %v6091 = vld [vmem:[#allocation28 + $0x6d8] sm:$0xff]
        %v6092 = vld [vmem:[#allocation28 + $0x6e0] sm:$0xf]
        %v6093 = vld [vmem:[#allocation28 + $0x6e4] sm:$0xff]
        %v6094 = vld [vmem:[#allocation28 + $0x6ec] sm:$0xff]
        %v6095 = vld [vmem:[#allocation28 + $0x6f4] sm:$0xff]
        %v6096 = vld [vmem:[#allocation28 + $0x6fc] sm:$0xf]
        %v6097 = vld [vmem:[#allocation28 + $0x700] sm:$0xff]
        %v6098 = vld [vmem:[#allocation28 + $0x708] sm:$0xff]
        %v6099 = vld [vmem:[#allocation28 + $0x710] sm:$0xff]
        %v6100 = vld [vmem:[#allocation28 + $0x718] sm:$0xf]
        %v6101 = vld [vmem:[#allocation28 + $0x71c] sm:$0xff]
        %v6102 = vld [vmem:[#allocation28 + $0x724] sm:$0xff]
        %v6103 = vld [vmem:[#allocation28 + $0x72c] sm:$0xff]
        %v6104 = vld [vmem:[#allocation28 + $0x734] sm:$0xf]
        %v6105 = vld [vmem:[#allocation28 + $0x738] sm:$0xff]
        %v6106 = vld [vmem:[#allocation28 + $0x740] sm:$0xff]
        %v6107 = vld [vmem:[#allocation28 + $0x748] sm:$0xff]
        %v6108 = vld [vmem:[#allocation28 + $0x750] sm:$0xf]
        %v6109 = vld [vmem:[#allocation28 + $0x754] sm:$0xff]
        %v6110 = vld [vmem:[#allocation28 + $0x75c] sm:$0xff]
        %v6111 = vld [vmem:[#allocation28 + $0x764] sm:$0xff]
        %v6112 = vld [vmem:[#allocation28 + $0x76c] sm:$0xf]
        %v6113 = vld [vmem:[#allocation28 + $0x770] sm:$0xff]
        %v6114 = vld [vmem:[#allocation28 + $0x778] sm:$0xff]
        %v6115 = vld [vmem:[#allocation28 + $0x780] sm:$0xff]
        %v6116 = vld [vmem:[#allocation28 + $0x788] sm:$0xf]
        %v6117 = vld [vmem:[#allocation28 + $0x78c] sm:$0xff]
        %v6118 = vld [vmem:[#allocation28 + $0x794] sm:$0xff]
        %v6119 = vld [vmem:[#allocation28 + $0x79c] sm:$0xff]
        %v6120 = vld [vmem:[#allocation28 + $0x7a4] sm:$0xf]
        %v6121 = vld [vmem:[#allocation28 + $0x7a8] sm:$0xff]
        %v6122 = vld [vmem:[#allocation28 + $0x7b0] sm:$0xff]
        %v6123 = vld [vmem:[#allocation28 + $0x7b8] sm:$0xff]
        %v6124 = vld [vmem:[#allocation28 + $0x7c0] sm:$0xf]
        %v6125 = vld [vmem:[#allocation28 + $0x7c4] sm:$0xff]
        %v6126 = vld [vmem:[#allocation28 + $0x7cc] sm:$0xff]
        %v6127 = vld [vmem:[#allocation28 + $0x7d4] sm:$0xff]
        %v6128 = vld [vmem:[#allocation28 + $0x7dc] sm:$0xf]
        %v6129 = vld [vmem:[#allocation28 + $0x7e0] sm:$0xff]
        %v6130 = vld [vmem:[#allocation28 + $0x7e8] sm:$0xff]
        %v6131 = vld [vmem:[#allocation28 + $0x7f0] sm:$0xff]
        %v6132 = vld [vmem:[#allocation28 + $0x7f8] sm:$0xf]
        %v6133 = vld [vmem:[#allocation28 + $0x7fc] sm:$0xff]
        %v6134 = vld [vmem:[#allocation28 + $0x804] sm:$0xff]
        %v6135 = vld [vmem:[#allocation28 + $0x80c] sm:$0xff]
        %v6136 = vld [vmem:[#allocation28 + $0x814] sm:$0xf]
        %v6137 = vld [vmem:[#allocation28 + $0x818] sm:$0xff]
        %v6138 = vld [vmem:[#allocation28 + $0x820] sm:$0xff]
        %v6139 = vld [vmem:[#allocation28 + $0x828] sm:$0xff]
        %v6140 = vld [vmem:[#allocation28 + $0x830] sm:$0xf]
        %v6141 = vld [vmem:[#allocation28 + $0x834] sm:$0xff]
        %v6142 = vld [vmem:[#allocation28 + $0x83c] sm:$0xff]
        %v6143 = vld [vmem:[#allocation28 + $0x844] sm:$0xff]
        %v6144 = vld [vmem:[#allocation28 + $0x84c] sm:$0xf]
        %v6145 = vld [vmem:[#allocation28 + $0x850] sm:$0xff]
        %v6146 = vld [vmem:[#allocation28 + $0x858] sm:$0xff]
        %v6147 = vld [vmem:[#allocation28 + $0x860] sm:$0xff]
        %v6148 = vld [vmem:[#allocation28 + $0x868] sm:$0xf]
        %v6149 = vld [vmem:[#allocation28 + $0x86c] sm:$0xff]
        %v6150 = vld [vmem:[#allocation28 + $0x874] sm:$0xff]
        %v6151 = vld [vmem:[#allocation28 + $0x87c] sm:$0xff]
        %v6152 = vld [vmem:[#allocation28 + $0x884] sm:$0xf]
        %v6153 = vld [vmem:[#allocation28 + $0x888] sm:$0xff]
        %v6154 = vld [vmem:[#allocation28 + $0x890] sm:$0xff]
        %v6155 = vld [vmem:[#allocation28 + $0x898] sm:$0xff]
        %v6156 = vld [vmem:[#allocation28 + $0x8a0] sm:$0xf]
        %v6157 = vld [vmem:[#allocation28 + $0x8a4] sm:$0xff]
        %v6158 = vld [vmem:[#allocation28 + $0x8ac] sm:$0xff]
        %v6159 = vld [vmem:[#allocation28 + $0x8b4] sm:$0xff]
        %v6160 = vld [vmem:[#allocation28 + $0x8bc] sm:$0xf]
        %v6161 = vld [vmem:[#allocation28 + $0x8c0] sm:$0xff]
        %v6162 = vld [vmem:[#allocation28 + $0x8c8] sm:$0xff]
        %v6163 = vld [vmem:[#allocation28 + $0x8d0] sm:$0xff]
        %v6164 = vld [vmem:[#allocation28 + $0x8d8] sm:$0xf]
        %v6165 = vld [vmem:[#allocation28 + $0x8dc] sm:$0xff]
        %v6166 = vld [vmem:[#allocation28 + $0x8e4] sm:$0xff]
        %v6167 = vld [vmem:[#allocation28 + $0x8ec] sm:$0xff]
        %v6168 = vld [vmem:[#allocation28 + $0x8f4] sm:$0xf]
        %v6169 = vld [vmem:[#allocation28 + $0x8f8] sm:$0xff]
        %v6170 = vld [vmem:[#allocation28 + $0x900] sm:$0xff]
        %v6171 = vld [vmem:[#allocation28 + $0x908] sm:$0xff]
        %v6172 = vld [vmem:[#allocation28 + $0x910] sm:$0xf]
        %v6173 = vld [vmem:[#allocation28 + $0x914] sm:$0xff]
        %v6174 = vld [vmem:[#allocation28 + $0x91c] sm:$0xff]
        %v6175 = vld [vmem:[#allocation28 + $0x924] sm:$0xff]
        %v6176 = vld [vmem:[#allocation28 + $0x92c] sm:$0xf]
        %v6177 = vld [vmem:[#allocation28 + $0x930] sm:$0xff]
        %v6178 = vld [vmem:[#allocation28 + $0x938] sm:$0xff]
        %v6179 = vld [vmem:[#allocation28 + $0x940] sm:$0xff]
        %v6180 = vld [vmem:[#allocation28 + $0x948] sm:$0xf]
        %v6181 = vld [vmem:[#allocation28 + $0x94c] sm:$0xff]
        %v6182 = vld [vmem:[#allocation28 + $0x954] sm:$0xff]
        %v6183 = vld [vmem:[#allocation28 + $0x95c] sm:$0xff]
        %v6184 = vld [vmem:[#allocation28 + $0x964] sm:$0xf]
        %v6185 = vld [vmem:[#allocation28 + $0x968] sm:$0xff]
        %v6186 = vld [vmem:[#allocation28 + $0x970] sm:$0xff]
        %v6187 = vld [vmem:[#allocation28 + $0x978] sm:$0xff]
        %v6188 = vld [vmem:[#allocation28 + $0x980] sm:$0xf]
        %v6189 = vld [vmem:[#allocation28 + $0x984] sm:$0xff]
        %v6190 = vld [vmem:[#allocation28 + $0x98c] sm:$0xff]
        %v6191 = vld [vmem:[#allocation28 + $0x994] sm:$0xff]
        %v6192 = vld [vmem:[#allocation28 + $0x99c] sm:$0xf]
        %v6193 = vld [vmem:[#allocation28 + $0x9a0] sm:$0xff]
        %v6194 = vld [vmem:[#allocation28 + $0x9a8] sm:$0xff]
        %v6195 = vld [vmem:[#allocation28 + $0x9b0] sm:$0xff]
        %v6196 = vld [vmem:[#allocation28 + $0x9b8] sm:$0xf]
        %v6197 = vld [vmem:[#allocation28 + $0x9bc] sm:$0xff]
        %v6198 = vld [vmem:[#allocation28 + $0x9c4] sm:$0xff]
        %v6199 = vld [vmem:[#allocation28 + $0x9cc] sm:$0xff]
        %v6200 = vld [vmem:[#allocation28 + $0x9d4] sm:$0xf]
        %v6201 = vld [vmem:[#allocation28 + $0x9d8] sm:$0xff]
        %v6202 = vld [vmem:[#allocation28 + $0x9e0] sm:$0xff]
        %v6203 = vld [vmem:[#allocation28 + $0x9e8] sm:$0xff]
        %v6204 = vld [vmem:[#allocation28 + $0x9f0] sm:$0xf]
        %v6205 = vld [vmem:[#allocation28 + $0x9f4] sm:$0xff]
        %v6206 = vld [vmem:[#allocation28 + $0x9fc] sm:$0xff]
        %v6207 = vld [vmem:[#allocation28 + $0xa04] sm:$0xff]
        %v6208 = vld [vmem:[#allocation28 + $0xa0c] sm:$0xf]
        %v6209 = vld [vmem:[#allocation28 + $0xa10] sm:$0xff]
        %v6210 = vld [vmem:[#allocation28 + $0xa18] sm:$0xff]
        %v6211 = vld [vmem:[#allocation28 + $0xa20] sm:$0xff]
        %v6212 = vld [vmem:[#allocation28 + $0xa28] sm:$0xf]
        %v6213 = vld [vmem:[#allocation28 + $0xa2c] sm:$0xff]
        %v6214 = vld [vmem:[#allocation28 + $0xa34] sm:$0xff]
        %v6215 = vld [vmem:[#allocation28 + $0xa3c] sm:$0xff]
        %v6216 = vld [vmem:[#allocation28 + $0xa44] sm:$0xf]
        %v6217 = vld [vmem:[#allocation28 + $0xa48] sm:$0xff]
        %v6218 = vld [vmem:[#allocation28 + $0xa50] sm:$0xff]
        %v6219 = vld [vmem:[#allocation28 + $0xa58] sm:$0xff]
        %v6220 = vld [vmem:[#allocation28 + $0xa60] sm:$0xf]
        %v6221 = vld [vmem:[#allocation28 + $0xa64] sm:$0xff]
        %v6222 = vld [vmem:[#allocation28 + $0xa6c] sm:$0xff]
        %v6223 = vld [vmem:[#allocation28 + $0xa74] sm:$0xff]
        %v6224 = vld [vmem:[#allocation28 + $0xa7c] sm:$0xf]
        %v6225 = vld [vmem:[#allocation28 + $0xa80] sm:$0xff]
        %v6226 = vld [vmem:[#allocation28 + $0xa88] sm:$0xff]
        %v6227 = vld [vmem:[#allocation28 + $0xa90] sm:$0xff]
        %v6228 = vld [vmem:[#allocation28 + $0xa98] sm:$0xf]
        %v6229 = vld [vmem:[#allocation28 + $0xa9c] sm:$0xff]
        %v6230 = vld [vmem:[#allocation28 + $0xaa4] sm:$0xff]
        %v6231 = vld [vmem:[#allocation28 + $0xaac] sm:$0xff]
        %v6232 = vld [vmem:[#allocation28 + $0xab4] sm:$0xf]
        %v6233 = vld [vmem:[#allocation28 + $0xab8] sm:$0xff]
        %v6234 = vld [vmem:[#allocation28 + $0xac0] sm:$0xff]
        %v6235 = vld [vmem:[#allocation28 + $0xac8] sm:$0xff]
        %v6236 = vld [vmem:[#allocation28 + $0xad0] sm:$0xf]
        %v6237 = vld [vmem:[#allocation28 + $0xad4] sm:$0xff]
        %v6238 = vld [vmem:[#allocation28 + $0xadc] sm:$0xff]
        %v6239 = vld [vmem:[#allocation28 + $0xae4] sm:$0xff]
        %v6240 = vld [vmem:[#allocation28 + $0xaec] sm:$0xf]
        %v6241 = vld [vmem:[#allocation28 + $0xaf0] sm:$0xff]
        %v6242 = vld [vmem:[#allocation28 + $0xaf8] sm:$0xff]
        %v6243 = vld [vmem:[#allocation28 + $0xb00] sm:$0xff]
        %v6244 = vld [vmem:[#allocation28 + $0xb08] sm:$0xf]
        %v6245 = vld [vmem:[#allocation28 + $0xb0c] sm:$0xff]
        %v6246 = vld [vmem:[#allocation28 + $0xb14] sm:$0xff]
        %v6247 = vld [vmem:[#allocation28 + $0xb1c] sm:$0xff]
        %v6248 = vld [vmem:[#allocation28 + $0xb24] sm:$0xf]
        %v6249 = vld [vmem:[#allocation28 + $0xb28] sm:$0xff]
        %v6250 = vld [vmem:[#allocation28 + $0xb30] sm:$0xff]
        %v6251 = vld [vmem:[#allocation28 + $0xb38] sm:$0xff]
        %v6252 = vld [vmem:[#allocation28 + $0xb40] sm:$0xf]
        %v6253 = vld [vmem:[#allocation28 + $0xb44] sm:$0xff]
        %v6254 = vld [vmem:[#allocation28 + $0xb4c] sm:$0xff]
        %v6255 = vld [vmem:[#allocation28 + $0xb54] sm:$0xff]
        %v6256 = vld [vmem:[#allocation28 + $0xb5c] sm:$0xf]
        %v6257 = vld [vmem:[#allocation28 + $0xb60] sm:$0xff]
        %v6258 = vld [vmem:[#allocation28 + $0xb68] sm:$0xff]
        %v6259 = vld [vmem:[#allocation28 + $0xb70] sm:$0xff]
        %v6260 = vld [vmem:[#allocation28 + $0xb78] sm:$0xf]
        %v6261 = vld [vmem:[#allocation28 + $0xb7c] sm:$0xff]
        %v6262 = vld [vmem:[#allocation28 + $0xb84] sm:$0xff]
        %v6263 = vld [vmem:[#allocation28 + $0xb8c] sm:$0xff]
        %v6264 = vld [vmem:[#allocation28 + $0xb94] sm:$0xf]
        %v6265 = vld [vmem:[#allocation28 + $0xb98] sm:$0xff]
        %v6266 = vld [vmem:[#allocation28 + $0xba0] sm:$0xff]
        %v6267 = vld [vmem:[#allocation28 + $0xba8] sm:$0xff]
        %v6268 = vld [vmem:[#allocation28 + $0xbb0] sm:$0xf]
        %v6269 = vld [vmem:[#allocation28 + $0xbb4] sm:$0xff]
        %v6270 = vld [vmem:[#allocation28 + $0xbbc] sm:$0xff]
        %v6271 = vld [vmem:[#allocation28 + $0xbc4] sm:$0xff]
        %v6272 = vld [vmem:[#allocation28 + $0xbcc] sm:$0xf]
        %v6273 = vld [vmem:[#allocation28 + $0xbd0] sm:$0xff]
        %v6274 = vld [vmem:[#allocation28 + $0xbd8] sm:$0xff]
        %v6275 = vld [vmem:[#allocation28 + $0xbe0] sm:$0xff]
        %v6276 = vld [vmem:[#allocation28 + $0xbe8] sm:$0xf]
        %v6277 = vld [vmem:[#allocation28 + $0xbec] sm:$0xff]
        %v6278 = vld [vmem:[#allocation28 + $0xbf4] sm:$0xff]
        %v6279 = vld [vmem:[#allocation28 + $0xbfc] sm:$0xff]
        %v6280 = vld [vmem:[#allocation28 + $0xc04] sm:$0xf]
        %v6281 = vld [vmem:[#allocation28 + $0xc08] sm:$0xff]
        %v6282 = vld [vmem:[#allocation28 + $0xc10] sm:$0xff]
        %v6283 = vld [vmem:[#allocation28 + $0xc18] sm:$0xff]
        %v6284 = vld [vmem:[#allocation28 + $0xc20] sm:$0xf]
        %v6285 = vld [vmem:[#allocation28 + $0xc24] sm:$0xff]
        %v6286 = vld [vmem:[#allocation28 + $0xc2c] sm:$0xff]
        %v6287 = vld [vmem:[#allocation28 + $0xc34] sm:$0xff]
        %v6288 = vld [vmem:[#allocation28 + $0xc3c] sm:$0xf]
        %v6289 = vld [vmem:[#allocation29] sm:$0xff]
        %v6291 = vlaneseq
        %v6292 = vshrl.u32 %v6291, 7
        %v6293 = vsub.s32 0, %v6292
        %v6294 = vrot.slane %v6289, %v6293
        %v6295 = vlaneseq
        %v6296 = vshrl.u32 %v6295, 7
        %v6297 = vsub.s32 1, %v6296
        %v6298 = vrot.slane %v6289, %v6297
        %v6299 = vlaneseq
        %v6300 = vshrl.u32 %v6299, 7
        %v6301 = vsub.s32 2, %v6300
        %v6302 = vrot.slane %v6289, %v6301
        %v6303 = vlaneseq
        %v6304 = vshrl.u32 %v6303, 7
        %v6305 = vsub.s32 3, %v6304
        %v6306 = vrot.slane %v6289, %v6305
        %v6307 = vlaneseq
        %v6308 = vshrl.u32 %v6307, 7
        %v6309 = vsub.s32 4, %v6308
        %v6310 = vrot.slane %v6289, %v6309
        %v6311 = vlaneseq
        %v6312 = vshrl.u32 %v6311, 7
        %v6313 = vsub.s32 5, %v6312
        %v6314 = vrot.slane %v6289, %v6313
        %v6315 = vlaneseq
        %v6316 = vshrl.u32 %v6315, 7
        %v6317 = vsub.s32 6, %v6316
        %v6318 = vrot.slane %v6289, %v6317
        %v6774 = vunpack.c.l.b16 %v5841
        %v6775 = vunpack.c.h.b16 %v5841
        %v6776 = vunpack.c.l.b16 %v5842
        %v6777 = vunpack.c.h.b16 %v5842
        %v6778 = vunpack.c.l.b16 %v5843
        %v6779 = vunpack.c.h.b16 %v5843
        %v6780 = vunpack.c.l.b16 %v5844
        %v6781 = vunpack.c.l.b16 %v5845
        %v6782 = vunpack.c.h.b16 %v5845
        %v6783 = vunpack.c.l.b16 %v5846
        %v6784 = vunpack.c.h.b16 %v5846
        %v6785 = vunpack.c.l.b16 %v5847
        %v6786 = vunpack.c.h.b16 %v5847
        %v6787 = vunpack.c.l.b16 %v5848
        %v6788 = vunpack.c.l.b16 %v5849
        %v6789 = vunpack.c.h.b16 %v5849
        %v6790 = vunpack.c.l.b16 %v5850
        %v6791 = vunpack.c.h.b16 %v5850
        %v6792 = vunpack.c.l.b16 %v5851
        %v6793 = vunpack.c.h.b16 %v5851
        %v6794 = vunpack.c.l.b16 %v5852
        %v6795 = vunpack.c.l.b16 %v5853
        %v6796 = vunpack.c.h.b16 %v5853
        %v6797 = vunpack.c.l.b16 %v5854
        %v6798 = vunpack.c.h.b16 %v5854
        %v6799 = vunpack.c.l.b16 %v5855
        %v6800 = vunpack.c.h.b16 %v5855
        %v6801 = vunpack.c.l.b16 %v5856
        %v6802 = vunpack.c.l.b16 %v5857
        %v6803 = vunpack.c.h.b16 %v5857
        %v6804 = vunpack.c.l.b16 %v5858
        %v6805 = vunpack.c.h.b16 %v5858
        %v6806 = vunpack.c.l.b16 %v5859
        %v6807 = vunpack.c.h.b16 %v5859
        %v6808 = vunpack.c.l.b16 %v5860
        %v6809 = vunpack.c.l.b16 %v5861
        %v6810 = vunpack.c.h.b16 %v5861
        %v6811 = vunpack.c.l.b16 %v5862
        %v6812 = vunpack.c.h.b16 %v5862
        %v6813 = vunpack.c.l.b16 %v5863
        %v6814 = vunpack.c.h.b16 %v5863
        %v6815 = vunpack.c.l.b16 %v5864
        %v6816 = vunpack.c.l.b16 %v5865
        %v6817 = vunpack.c.h.b16 %v5865
        %v6818 = vunpack.c.l.b16 %v5866
        %v6819 = vunpack.c.h.b16 %v5866
        %v6820 = vunpack.c.l.b16 %v5867
        %v6821 = vunpack.c.h.b16 %v5867
        %v6822 = vunpack.c.l.b16 %v5868
        %v6823 = vunpack.c.l.b16 %v5869
        %v6824 = vunpack.c.h.b16 %v5869
        %v6825 = vunpack.c.l.b16 %v5870
        %v6826 = vunpack.c.h.b16 %v5870
        %v6827 = vunpack.c.l.b16 %v5871
        %v6828 = vunpack.c.h.b16 %v5871
        %v6829 = vunpack.c.l.b16 %v5872
        %v6830 = vunpack.c.l.b16 %v5873
        %v6831 = vunpack.c.h.b16 %v5873
        %v6832 = vunpack.c.l.b16 %v5874
        %v6833 = vunpack.c.h.b16 %v5874
        %v6834 = vunpack.c.l.b16 %v5875
        %v6835 = vunpack.c.h.b16 %v5875
        %v6836 = vunpack.c.l.b16 %v5876
        %v6837 = vunpack.c.l.b16 %v5877
        %v6838 = vunpack.c.h.b16 %v5877
        %v6839 = vunpack.c.l.b16 %v5878
        %v6840 = vunpack.c.h.b16 %v5878
        %v6841 = vunpack.c.l.b16 %v5879
        %v6842 = vunpack.c.h.b16 %v5879
        %v6843 = vunpack.c.l.b16 %v5880
        %v6844 = vunpack.c.l.b16 %v5881
        %v6845 = vunpack.c.h.b16 %v5881
        %v6846 = vunpack.c.l.b16 %v5882
        %v6847 = vunpack.c.h.b16 %v5882
        %v6848 = vunpack.c.l.b16 %v5883
        %v6849 = vunpack.c.h.b16 %v5883
        %v6850 = vunpack.c.l.b16 %v5884
        %v6851 = vunpack.c.l.b16 %v5885
        %v6852 = vunpack.c.h.b16 %v5885
        %v6853 = vunpack.c.l.b16 %v5886
        %v6854 = vunpack.c.h.b16 %v5886
        %v6855 = vunpack.c.l.b16 %v5887
        %v6856 = vunpack.c.h.b16 %v5887
        %v6857 = vunpack.c.l.b16 %v5888
        %v6858 = vunpack.c.l.b16 %v5889
        %v6859 = vunpack.c.h.b16 %v5889
        %v6860 = vunpack.c.l.b16 %v5890
        %v6861 = vunpack.c.h.b16 %v5890
        %v6862 = vunpack.c.l.b16 %v5891
        %v6863 = vunpack.c.h.b16 %v5891
        %v6864 = vunpack.c.l.b16 %v5892
        %v6865 = vunpack.c.l.b16 %v5893
        %v6866 = vunpack.c.h.b16 %v5893
        %v6867 = vunpack.c.l.b16 %v5894
        %v6868 = vunpack.c.h.b16 %v5894
        %v6869 = vunpack.c.l.b16 %v5895
        %v6870 = vunpack.c.h.b16 %v5895
        %v6871 = vunpack.c.l.b16 %v5896
        %v6872 = vunpack.c.l.b16 %v5897
        %v6873 = vunpack.c.h.b16 %v5897
        %v6874 = vunpack.c.l.b16 %v5898
        %v6875 = vunpack.c.h.b16 %v5898
        %v6876 = vunpack.c.l.b16 %v5899
        %v6877 = vunpack.c.h.b16 %v5899
        %v6878 = vunpack.c.l.b16 %v5900
        %v6879 = vunpack.c.l.b16 %v5901
        %v6880 = vunpack.c.h.b16 %v5901
        %v6881 = vunpack.c.l.b16 %v5902
        %v6882 = vunpack.c.h.b16 %v5902
        %v6883 = vunpack.c.l.b16 %v5903
        %v6884 = vunpack.c.h.b16 %v5903
        %v6885 = vunpack.c.l.b16 %v5904
        %v6886 = vunpack.c.l.b16 %v5905
        %v6887 = vunpack.c.h.b16 %v5905
        %v6888 = vunpack.c.l.b16 %v5906
        %v6889 = vunpack.c.h.b16 %v5906
        %v6890 = vunpack.c.l.b16 %v5907
        %v6891 = vunpack.c.h.b16 %v5907
        %v6892 = vunpack.c.l.b16 %v5908
        %v6893 = vunpack.c.l.b16 %v5909
        %v6894 = vunpack.c.h.b16 %v5909
        %v6895 = vunpack.c.l.b16 %v5910
        %v6896 = vunpack.c.h.b16 %v5910
        %v6897 = vunpack.c.l.b16 %v5911
        %v6898 = vunpack.c.h.b16 %v5911
        %v6899 = vunpack.c.l.b16 %v5912
        %v6900 = vunpack.c.l.b16 %v5913
        %v6901 = vunpack.c.h.b16 %v5913
        %v6902 = vunpack.c.l.b16 %v5914
        %v6903 = vunpack.c.h.b16 %v5914
        %v6904 = vunpack.c.l.b16 %v5915
        %v6905 = vunpack.c.h.b16 %v5915
        %v6906 = vunpack.c.l.b16 %v5916
        %v6907 = vunpack.c.l.b16 %v5917
        %v6908 = vunpack.c.h.b16 %v5917
        %v6909 = vunpack.c.l.b16 %v5918
        %v6910 = vunpack.c.h.b16 %v5918
        %v6911 = vunpack.c.l.b16 %v5919
        %v6912 = vunpack.c.h.b16 %v5919
        %v6913 = vunpack.c.l.b16 %v5920
        %v6914 = vunpack.c.l.b16 %v5921
        %v6915 = vunpack.c.h.b16 %v5921
        %v6916 = vunpack.c.l.b16 %v5922
        %v6917 = vunpack.c.h.b16 %v5922
        %v6918 = vunpack.c.l.b16 %v5923
        %v6919 = vunpack.c.h.b16 %v5923
        %v6920 = vunpack.c.l.b16 %v5924
        %v6921 = vunpack.c.l.b16 %v5925
        %v6922 = vunpack.c.h.b16 %v5925
        %v6923 = vunpack.c.l.b16 %v5926
        %v6924 = vunpack.c.h.b16 %v5926
        %v6925 = vunpack.c.l.b16 %v5927
        %v6926 = vunpack.c.h.b16 %v5927
        %v6927 = vunpack.c.l.b16 %v5928
        %v6928 = vunpack.c.l.b16 %v5929
        %v6929 = vunpack.c.h.b16 %v5929
        %v6930 = vunpack.c.l.b16 %v5930
        %v6931 = vunpack.c.h.b16 %v5930
        %v6932 = vunpack.c.l.b16 %v5931
        %v6933 = vunpack.c.h.b16 %v5931
        %v6934 = vunpack.c.l.b16 %v5932
        %v6935 = vunpack.c.l.b16 %v5933
        %v6936 = vunpack.c.h.b16 %v5933
        %v6937 = vunpack.c.l.b16 %v5934
        %v6938 = vunpack.c.h.b16 %v5934
        %v6939 = vunpack.c.l.b16 %v5935
        %v6940 = vunpack.c.h.b16 %v5935
        %v6941 = vunpack.c.l.b16 %v5936
        %v6942 = vunpack.c.l.b16 %v5937
        %v6943 = vunpack.c.h.b16 %v5937
        %v6944 = vunpack.c.l.b16 %v5938
        %v6945 = vunpack.c.h.b16 %v5938
        %v6946 = vunpack.c.l.b16 %v5939
        %v6947 = vunpack.c.h.b16 %v5939
        %v6948 = vunpack.c.l.b16 %v5940
        %v6949 = vunpack.c.l.b16 %v5941
        %v6950 = vunpack.c.h.b16 %v5941
        %v6951 = vunpack.c.l.b16 %v5942
        %v6952 = vunpack.c.h.b16 %v5942
        %v6953 = vunpack.c.l.b16 %v5943
        %v6954 = vunpack.c.h.b16 %v5943
        %v6955 = vunpack.c.l.b16 %v5944
        %v6956 = vunpack.c.l.b16 %v5945
        %v6957 = vunpack.c.h.b16 %v5945
        %v6958 = vunpack.c.l.b16 %v5946
        %v6959 = vunpack.c.h.b16 %v5946
        %v6960 = vunpack.c.l.b16 %v5947
        %v6961 = vunpack.c.h.b16 %v5947
        %v6962 = vunpack.c.l.b16 %v5948
        %v6963 = vunpack.c.l.b16 %v5949
        %v6964 = vunpack.c.h.b16 %v5949
        %v6965 = vunpack.c.l.b16 %v5950
        %v6966 = vunpack.c.h.b16 %v5950
        %v6967 = vunpack.c.l.b16 %v5951
        %v6968 = vunpack.c.h.b16 %v5951
        %v6969 = vunpack.c.l.b16 %v5952
        %v6970 = vunpack.c.l.b16 %v5953
        %v6971 = vunpack.c.h.b16 %v5953
        %v6972 = vunpack.c.l.b16 %v5954
        %v6973 = vunpack.c.h.b16 %v5954
        %v6974 = vunpack.c.l.b16 %v5955
        %v6975 = vunpack.c.h.b16 %v5955
        %v6976 = vunpack.c.l.b16 %v5956
        %v6977 = vunpack.c.l.b16 %v5957
        %v6978 = vunpack.c.h.b16 %v5957
        %v6979 = vunpack.c.l.b16 %v5958
        %v6980 = vunpack.c.h.b16 %v5958
        %v6981 = vunpack.c.l.b16 %v5959
        %v6982 = vunpack.c.h.b16 %v5959
        %v6983 = vunpack.c.l.b16 %v5960
        %v6984 = vunpack.c.l.b16 %v5961
        %v6985 = vunpack.c.h.b16 %v5961
        %v6986 = vunpack.c.l.b16 %v5962
        %v6987 = vunpack.c.h.b16 %v5962
        %v6988 = vunpack.c.l.b16 %v5963
        %v6989 = vunpack.c.h.b16 %v5963
        %v6990 = vunpack.c.l.b16 %v5964
        %v6991 = vunpack.c.l.b16 %v5965
        %v6992 = vunpack.c.h.b16 %v5965
        %v6993 = vunpack.c.l.b16 %v5966
        %v6994 = vunpack.c.h.b16 %v5966
        %v6995 = vunpack.c.l.b16 %v5967
        %v6996 = vunpack.c.h.b16 %v5967
        %v6997 = vunpack.c.l.b16 %v5968
        %v6998 = vunpack.c.l.b16 %v5969
        %v6999 = vunpack.c.h.b16 %v5969
        %v7000 = vunpack.c.l.b16 %v5970
        %v7001 = vunpack.c.h.b16 %v5970
        %v7002 = vunpack.c.l.b16 %v5971
        %v7003 = vunpack.c.h.b16 %v5971
        %v7004 = vunpack.c.l.b16 %v5972
        %v7005 = vunpack.c.l.b16 %v5973
        %v7006 = vunpack.c.h.b16 %v5973
        %v7007 = vunpack.c.l.b16 %v5974
        %v7008 = vunpack.c.h.b16 %v5974
        %v7009 = vunpack.c.l.b16 %v5975
        %v7010 = vunpack.c.h.b16 %v5975
        %v7011 = vunpack.c.l.b16 %v5976
        %v7012 = vunpack.c.l.b16 %v5977
        %v7013 = vunpack.c.h.b16 %v5977
        %v7014 = vunpack.c.l.b16 %v5978
        %v7015 = vunpack.c.h.b16 %v5978
        %v7016 = vunpack.c.l.b16 %v5979
        %v7017 = vunpack.c.h.b16 %v5979
        %v7018 = vunpack.c.l.b16 %v5980
        %v7019 = vunpack.c.l.b16 %v5981
        %v7020 = vunpack.c.h.b16 %v5981
        %v7021 = vunpack.c.l.b16 %v5982
        %v7022 = vunpack.c.h.b16 %v5982
        %v7023 = vunpack.c.l.b16 %v5983
        %v7024 = vunpack.c.h.b16 %v5983
        %v7025 = vunpack.c.l.b16 %v5984
        %v7026 = vunpack.c.l.b16 %v5985
        %v7027 = vunpack.c.h.b16 %v5985
        %v7028 = vunpack.c.l.b16 %v5986
        %v7029 = vunpack.c.h.b16 %v5986
        %v7030 = vunpack.c.l.b16 %v5987
        %v7031 = vunpack.c.h.b16 %v5987
        %v7032 = vunpack.c.l.b16 %v5988
        %v7033 = vunpack.c.l.b16 %v5989
        %v7034 = vunpack.c.h.b16 %v5989
        %v7035 = vunpack.c.l.b16 %v5990
        %v7036 = vunpack.c.h.b16 %v5990
        %v7037 = vunpack.c.l.b16 %v5991
        %v7038 = vunpack.c.h.b16 %v5991
        %v7039 = vunpack.c.l.b16 %v5992
        %v7040 = vunpack.c.l.b16 %v5993
        %v7041 = vunpack.c.h.b16 %v5993
        %v7042 = vunpack.c.l.b16 %v5994
        %v7043 = vunpack.c.h.b16 %v5994
        %v7044 = vunpack.c.l.b16 %v5995
        %v7045 = vunpack.c.h.b16 %v5995
        %v7046 = vunpack.c.l.b16 %v5996
        %v7047 = vunpack.c.l.b16 %v5997
        %v7048 = vunpack.c.h.b16 %v5997
        %v7049 = vunpack.c.l.b16 %v5998
        %v7050 = vunpack.c.h.b16 %v5998
        %v7051 = vunpack.c.l.b16 %v5999
        %v7052 = vunpack.c.h.b16 %v5999
        %v7053 = vunpack.c.l.b16 %v6000
        %v7054 = vunpack.c.l.b16 %v6001
        %v7055 = vunpack.c.h.b16 %v6001
        %v7056 = vunpack.c.l.b16 %v6002
        %v7057 = vunpack.c.h.b16 %v6002
        %v7058 = vunpack.c.l.b16 %v6003
        %v7059 = vunpack.c.h.b16 %v6003
        %v7060 = vunpack.c.l.b16 %v6004
        %v7061 = vunpack.c.l.b16 %v6005
        %v7062 = vunpack.c.h.b16 %v6005
        %v7063 = vunpack.c.l.b16 %v6006
        %v7064 = vunpack.c.h.b16 %v6006
        %v7065 = vunpack.c.l.b16 %v6007
        %v7066 = vunpack.c.h.b16 %v6007
        %v7067 = vunpack.c.l.b16 %v6008
        %v7068 = vunpack.c.l.b16 %v6009
        %v7069 = vunpack.c.h.b16 %v6009
        %v7070 = vunpack.c.l.b16 %v6010
        %v7071 = vunpack.c.h.b16 %v6010
        %v7072 = vunpack.c.l.b16 %v6011
        %v7073 = vunpack.c.h.b16 %v6011
        %v7074 = vunpack.c.l.b16 %v6012
        %v7075 = vunpack.c.l.b16 %v6013
        %v7076 = vunpack.c.h.b16 %v6013
        %v7077 = vunpack.c.l.b16 %v6014
        %v7078 = vunpack.c.h.b16 %v6014
        %v7079 = vunpack.c.l.b16 %v6015
        %v7080 = vunpack.c.h.b16 %v6015
        %v7081 = vunpack.c.l.b16 %v6016
        %v7082 = vunpack.c.l.b16 %v6017
        %v7083 = vunpack.c.h.b16 %v6017
        %v7084 = vunpack.c.l.b16 %v6018
        %v7085 = vunpack.c.h.b16 %v6018
        %v7086 = vunpack.c.l.b16 %v6019
        %v7087 = vunpack.c.h.b16 %v6019
        %v7088 = vunpack.c.l.b16 %v6020
        %v7089 = vunpack.c.l.b16 %v6021
        %v7090 = vunpack.c.h.b16 %v6021
        %v7091 = vunpack.c.l.b16 %v6022
        %v7092 = vunpack.c.h.b16 %v6022
        %v7093 = vunpack.c.l.b16 %v6023
        %v7094 = vunpack.c.h.b16 %v6023
        %v7095 = vunpack.c.l.b16 %v6024
        %v7096 = vunpack.c.l.b16 %v6025
        %v7097 = vunpack.c.h.b16 %v6025
        %v7098 = vunpack.c.l.b16 %v6026
        %v7099 = vunpack.c.h.b16 %v6026
        %v7100 = vunpack.c.l.b16 %v6027
        %v7101 = vunpack.c.h.b16 %v6027
        %v7102 = vunpack.c.l.b16 %v6028
        %v7103 = vunpack.c.l.b16 %v6029
        %v7104 = vunpack.c.h.b16 %v6029
        %v7105 = vunpack.c.l.b16 %v6030
        %v7106 = vunpack.c.h.b16 %v6030
        %v7107 = vunpack.c.l.b16 %v6031
        %v7108 = vunpack.c.h.b16 %v6031
        %v7109 = vunpack.c.l.b16 %v6032
        %v7110 = vunpack.c.l.b16 %v6033
        %v7111 = vunpack.c.h.b16 %v6033
        %v7112 = vunpack.c.l.b16 %v6034
        %v7113 = vunpack.c.h.b16 %v6034
        %v7114 = vunpack.c.l.b16 %v6035
        %v7115 = vunpack.c.h.b16 %v6035
        %v7116 = vunpack.c.l.b16 %v6036
        %v7117 = vunpack.c.l.b16 %v6037
        %v7118 = vunpack.c.h.b16 %v6037
        %v7119 = vunpack.c.l.b16 %v6038
        %v7120 = vunpack.c.h.b16 %v6038
        %v7121 = vunpack.c.l.b16 %v6039
        %v7122 = vunpack.c.h.b16 %v6039
        %v7123 = vunpack.c.l.b16 %v6040
        %v7124 = vunpack.c.l.b16 %v6041
        %v7125 = vunpack.c.h.b16 %v6041
        %v7126 = vunpack.c.l.b16 %v6042
        %v7127 = vunpack.c.h.b16 %v6042
        %v7128 = vunpack.c.l.b16 %v6043
        %v7129 = vunpack.c.h.b16 %v6043
        %v7130 = vunpack.c.l.b16 %v6044
        %v7131 = vunpack.c.l.b16 %v6045
        %v7132 = vunpack.c.h.b16 %v6045
        %v7133 = vunpack.c.l.b16 %v6046
        %v7134 = vunpack.c.h.b16 %v6046
        %v7135 = vunpack.c.l.b16 %v6047
        %v7136 = vunpack.c.h.b16 %v6047
        %v7137 = vunpack.c.l.b16 %v6048
        %v7138 = vunpack.c.l.b16 %v6049
        %v7139 = vunpack.c.h.b16 %v6049
        %v7140 = vunpack.c.l.b16 %v6050
        %v7141 = vunpack.c.h.b16 %v6050
        %v7142 = vunpack.c.l.b16 %v6051
        %v7143 = vunpack.c.h.b16 %v6051
        %v7144 = vunpack.c.l.b16 %v6052
        %v7145 = vunpack.c.l.b16 %v6053
        %v7146 = vunpack.c.h.b16 %v6053
        %v7147 = vunpack.c.l.b16 %v6054
        %v7148 = vunpack.c.h.b16 %v6054
        %v7149 = vunpack.c.l.b16 %v6055
        %v7150 = vunpack.c.h.b16 %v6055
        %v7151 = vunpack.c.l.b16 %v6056
        %v7152 = vunpack.c.l.b16 %v6057
        %v7153 = vunpack.c.h.b16 %v6057
        %v7154 = vunpack.c.l.b16 %v6058
        %v7155 = vunpack.c.h.b16 %v6058
        %v7156 = vunpack.c.l.b16 %v6059
        %v7157 = vunpack.c.h.b16 %v6059
        %v7158 = vunpack.c.l.b16 %v6060
        %v7159 = vunpack.c.l.b16 %v6061
        %v7160 = vunpack.c.h.b16 %v6061
        %v7161 = vunpack.c.l.b16 %v6062
        %v7162 = vunpack.c.h.b16 %v6062
        %v7163 = vunpack.c.l.b16 %v6063
        %v7164 = vunpack.c.h.b16 %v6063
        %v7165 = vunpack.c.l.b16 %v6064
        %v7166 = vunpack.c.l.b16 %v6065
        %v7167 = vunpack.c.h.b16 %v6065
        %v7168 = vunpack.c.l.b16 %v6066
        %v7169 = vunpack.c.h.b16 %v6066
        %v7170 = vunpack.c.l.b16 %v6067
        %v7171 = vunpack.c.h.b16 %v6067
        %v7172 = vunpack.c.l.b16 %v6068
        %v7173 = vunpack.c.l.b16 %v6069
        %v7174 = vunpack.c.h.b16 %v6069
        %v7175 = vunpack.c.l.b16 %v6070
        %v7176 = vunpack.c.h.b16 %v6070
        %v7177 = vunpack.c.l.b16 %v6071
        %v7178 = vunpack.c.h.b16 %v6071
        %v7179 = vunpack.c.l.b16 %v6072
        %v7180 = vunpack.c.l.b16 %v6073
        %v7181 = vunpack.c.h.b16 %v6073
        %v7182 = vunpack.c.l.b16 %v6074
        %v7183 = vunpack.c.h.b16 %v6074
        %v7184 = vunpack.c.l.b16 %v6075
        %v7185 = vunpack.c.h.b16 %v6075
        %v7186 = vunpack.c.l.b16 %v6076
        %v7187 = vunpack.c.l.b16 %v6077
        %v7188 = vunpack.c.h.b16 %v6077
        %v7189 = vunpack.c.l.b16 %v6078
        %v7190 = vunpack.c.h.b16 %v6078
        %v7191 = vunpack.c.l.b16 %v6079
        %v7192 = vunpack.c.h.b16 %v6079
        %v7193 = vunpack.c.l.b16 %v6080
        %v7194 = vunpack.c.l.b16 %v6081
        %v7195 = vunpack.c.h.b16 %v6081
        %v7196 = vunpack.c.l.b16 %v6082
        %v7197 = vunpack.c.h.b16 %v6082
        %v7198 = vunpack.c.l.b16 %v6083
        %v7199 = vunpack.c.h.b16 %v6083
        %v7200 = vunpack.c.l.b16 %v6084
        %v7201 = vunpack.c.l.b16 %v6085
        %v7202 = vunpack.c.h.b16 %v6085
        %v7203 = vunpack.c.l.b16 %v6086
        %v7204 = vunpack.c.h.b16 %v6086
        %v7205 = vunpack.c.l.b16 %v6087
        %v7206 = vunpack.c.h.b16 %v6087
        %v7207 = vunpack.c.l.b16 %v6088
        %v7208 = vunpack.c.l.b16 %v6089
        %v7209 = vunpack.c.h.b16 %v6089
        %v7210 = vunpack.c.l.b16 %v6090
        %v7211 = vunpack.c.h.b16 %v6090
        %v7212 = vunpack.c.l.b16 %v6091
        %v7213 = vunpack.c.h.b16 %v6091
        %v7214 = vunpack.c.l.b16 %v6092
        %v7215 = vunpack.c.l.b16 %v6093
        %v7216 = vunpack.c.h.b16 %v6093
        %v7217 = vunpack.c.l.b16 %v6094
        %v7218 = vunpack.c.h.b16 %v6094
        %v7219 = vunpack.c.l.b16 %v6095
        %v7220 = vunpack.c.h.b16 %v6095
        %v7221 = vunpack.c.l.b16 %v6096
        %v7222 = vunpack.c.l.b16 %v6097
        %v7223 = vunpack.c.h.b16 %v6097
        %v7224 = vunpack.c.l.b16 %v6098
        %v7225 = vunpack.c.h.b16 %v6098
        %v7226 = vunpack.c.l.b16 %v6099
        %v7227 = vunpack.c.h.b16 %v6099
        %v7228 = vunpack.c.l.b16 %v6100
        %v7229 = vunpack.c.l.b16 %v6101
        %v7230 = vunpack.c.h.b16 %v6101
        %v7231 = vunpack.c.l.b16 %v6102
        %v7232 = vunpack.c.h.b16 %v6102
        %v7233 = vunpack.c.l.b16 %v6103
        %v7234 = vunpack.c.h.b16 %v6103
        %v7235 = vunpack.c.l.b16 %v6104
        %v7236 = vunpack.c.l.b16 %v6105
        %v7237 = vunpack.c.h.b16 %v6105
        %v7238 = vunpack.c.l.b16 %v6106
        %v7239 = vunpack.c.h.b16 %v6106
        %v7240 = vunpack.c.l.b16 %v6107
        %v7241 = vunpack.c.h.b16 %v6107
        %v7242 = vunpack.c.l.b16 %v6108
        %v7243 = vunpack.c.l.b16 %v6109
        %v7244 = vunpack.c.h.b16 %v6109
        %v7245 = vunpack.c.l.b16 %v6110
        %v7246 = vunpack.c.h.b16 %v6110
        %v7247 = vunpack.c.l.b16 %v6111
        %v7248 = vunpack.c.h.b16 %v6111
        %v7249 = vunpack.c.l.b16 %v6112
        %v7250 = vunpack.c.l.b16 %v6113
        %v7251 = vunpack.c.h.b16 %v6113
        %v7252 = vunpack.c.l.b16 %v6114
        %v7253 = vunpack.c.h.b16 %v6114
        %v7254 = vunpack.c.l.b16 %v6115
        %v7255 = vunpack.c.h.b16 %v6115
        %v7256 = vunpack.c.l.b16 %v6116
        %v7257 = vunpack.c.l.b16 %v6117
        %v7258 = vunpack.c.h.b16 %v6117
        %v7259 = vunpack.c.l.b16 %v6118
        %v7260 = vunpack.c.h.b16 %v6118
        %v7261 = vunpack.c.l.b16 %v6119
        %v7262 = vunpack.c.h.b16 %v6119
        %v7263 = vunpack.c.l.b16 %v6120
        %v7264 = vunpack.c.l.b16 %v6121
        %v7265 = vunpack.c.h.b16 %v6121
        %v7266 = vunpack.c.l.b16 %v6122
        %v7267 = vunpack.c.h.b16 %v6122
        %v7268 = vunpack.c.l.b16 %v6123
        %v7269 = vunpack.c.h.b16 %v6123
        %v7270 = vunpack.c.l.b16 %v6124
        %v7271 = vunpack.c.l.b16 %v6125
        %v7272 = vunpack.c.h.b16 %v6125
        %v7273 = vunpack.c.l.b16 %v6126
        %v7274 = vunpack.c.h.b16 %v6126
        %v7275 = vunpack.c.l.b16 %v6127
        %v7276 = vunpack.c.h.b16 %v6127
        %v7277 = vunpack.c.l.b16 %v6128
        %v7278 = vunpack.c.l.b16 %v6129
        %v7279 = vunpack.c.h.b16 %v6129
        %v7280 = vunpack.c.l.b16 %v6130
        %v7281 = vunpack.c.h.b16 %v6130
        %v7282 = vunpack.c.l.b16 %v6131
        %v7283 = vunpack.c.h.b16 %v6131
        %v7284 = vunpack.c.l.b16 %v6132
        %v7285 = vunpack.c.l.b16 %v6133
        %v7286 = vunpack.c.h.b16 %v6133
        %v7287 = vunpack.c.l.b16 %v6134
        %v7288 = vunpack.c.h.b16 %v6134
        %v7289 = vunpack.c.l.b16 %v6135
        %v7290 = vunpack.c.h.b16 %v6135
        %v7291 = vunpack.c.l.b16 %v6136
        %v7292 = vunpack.c.l.b16 %v6137
        %v7293 = vunpack.c.h.b16 %v6137
        %v7294 = vunpack.c.l.b16 %v6138
        %v7295 = vunpack.c.h.b16 %v6138
        %v7296 = vunpack.c.l.b16 %v6139
        %v7297 = vunpack.c.h.b16 %v6139
        %v7298 = vunpack.c.l.b16 %v6140
        %v7299 = vunpack.c.l.b16 %v6141
        %v7300 = vunpack.c.h.b16 %v6141
        %v7301 = vunpack.c.l.b16 %v6142
        %v7302 = vunpack.c.h.b16 %v6142
        %v7303 = vunpack.c.l.b16 %v6143
        %v7304 = vunpack.c.h.b16 %v6143
        %v7305 = vunpack.c.l.b16 %v6144
        %v7306 = vunpack.c.l.b16 %v6145
        %v7307 = vunpack.c.h.b16 %v6145
        %v7308 = vunpack.c.l.b16 %v6146
        %v7309 = vunpack.c.h.b16 %v6146
        %v7310 = vunpack.c.l.b16 %v6147
        %v7311 = vunpack.c.h.b16 %v6147
        %v7312 = vunpack.c.l.b16 %v6148
        %v7313 = vunpack.c.l.b16 %v6149
        %v7314 = vunpack.c.h.b16 %v6149
        %v7315 = vunpack.c.l.b16 %v6150
        %v7316 = vunpack.c.h.b16 %v6150
        %v7317 = vunpack.c.l.b16 %v6151
        %v7318 = vunpack.c.h.b16 %v6151
        %v7319 = vunpack.c.l.b16 %v6152
        %v7320 = vunpack.c.l.b16 %v6153
        %v7321 = vunpack.c.h.b16 %v6153
        %v7322 = vunpack.c.l.b16 %v6154
        %v7323 = vunpack.c.h.b16 %v6154
        %v7324 = vunpack.c.l.b16 %v6155
        %v7325 = vunpack.c.h.b16 %v6155
        %v7326 = vunpack.c.l.b16 %v6156
        %v7327 = vunpack.c.l.b16 %v6157
        %v7328 = vunpack.c.h.b16 %v6157
        %v7329 = vunpack.c.l.b16 %v6158
        %v7330 = vunpack.c.h.b16 %v6158
        %v7331 = vunpack.c.l.b16 %v6159
        %v7332 = vunpack.c.h.b16 %v6159
        %v7333 = vunpack.c.l.b16 %v6160
        %v7334 = vunpack.c.l.b16 %v6161
        %v7335 = vunpack.c.h.b16 %v6161
        %v7336 = vunpack.c.l.b16 %v6162
        %v7337 = vunpack.c.h.b16 %v6162
        %v7338 = vunpack.c.l.b16 %v6163
        %v7339 = vunpack.c.h.b16 %v6163
        %v7340 = vunpack.c.l.b16 %v6164
        %v7341 = vunpack.c.l.b16 %v6165
        %v7342 = vunpack.c.h.b16 %v6165
        %v7343 = vunpack.c.l.b16 %v6166
        %v7344 = vunpack.c.h.b16 %v6166
        %v7345 = vunpack.c.l.b16 %v6167
        %v7346 = vunpack.c.h.b16 %v6167
        %v7347 = vunpack.c.l.b16 %v6168
        %v7348 = vunpack.c.l.b16 %v6169
        %v7349 = vunpack.c.h.b16 %v6169
        %v7350 = vunpack.c.l.b16 %v6170
        %v7351 = vunpack.c.h.b16 %v6170
        %v7352 = vunpack.c.l.b16 %v6171
        %v7353 = vunpack.c.h.b16 %v6171
        %v7354 = vunpack.c.l.b16 %v6172
        %v7355 = vunpack.c.l.b16 %v6173
        %v7356 = vunpack.c.h.b16 %v6173
        %v7357 = vunpack.c.l.b16 %v6174
        %v7358 = vunpack.c.h.b16 %v6174
        %v7359 = vunpack.c.l.b16 %v6175
        %v7360 = vunpack.c.h.b16 %v6175
        %v7361 = vunpack.c.l.b16 %v6176
        %v7362 = vunpack.c.l.b16 %v6177
        %v7363 = vunpack.c.h.b16 %v6177
        %v7364 = vunpack.c.l.b16 %v6178
        %v7365 = vunpack.c.h.b16 %v6178
        %v7366 = vunpack.c.l.b16 %v6179
        %v7367 = vunpack.c.h.b16 %v6179
        %v7368 = vunpack.c.l.b16 %v6180
        %v7369 = vunpack.c.l.b16 %v6181
        %v7370 = vunpack.c.h.b16 %v6181
        %v7371 = vunpack.c.l.b16 %v6182
        %v7372 = vunpack.c.h.b16 %v6182
        %v7373 = vunpack.c.l.b16 %v6183
        %v7374 = vunpack.c.h.b16 %v6183
        %v7375 = vunpack.c.l.b16 %v6184
        %v7376 = vunpack.c.l.b16 %v6185
        %v7377 = vunpack.c.h.b16 %v6185
        %v7378 = vunpack.c.l.b16 %v6186
        %v7379 = vunpack.c.h.b16 %v6186
        %v7380 = vunpack.c.l.b16 %v6187
        %v7381 = vunpack.c.h.b16 %v6187
        %v7382 = vunpack.c.l.b16 %v6188
        %v7383 = vunpack.c.l.b16 %v6189
        %v7384 = vunpack.c.h.b16 %v6189
        %v7385 = vunpack.c.l.b16 %v6190
        %v7386 = vunpack.c.h.b16 %v6190
        %v7387 = vunpack.c.l.b16 %v6191
        %v7388 = vunpack.c.h.b16 %v6191
        %v7389 = vunpack.c.l.b16 %v6192
        %v7390 = vunpack.c.l.b16 %v6193
        %v7391 = vunpack.c.h.b16 %v6193
        %v7392 = vunpack.c.l.b16 %v6194
        %v7393 = vunpack.c.h.b16 %v6194
        %v7394 = vunpack.c.l.b16 %v6195
        %v7395 = vunpack.c.h.b16 %v6195
        %v7396 = vunpack.c.l.b16 %v6196
        %v7397 = vunpack.c.l.b16 %v6197
        %v7398 = vunpack.c.h.b16 %v6197
        %v7399 = vunpack.c.l.b16 %v6198
        %v7400 = vunpack.c.h.b16 %v6198
        %v7401 = vunpack.c.l.b16 %v6199
        %v7402 = vunpack.c.h.b16 %v6199
        %v7403 = vunpack.c.l.b16 %v6200
        %v7404 = vunpack.c.l.b16 %v6201
        %v7405 = vunpack.c.h.b16 %v6201
        %v7406 = vunpack.c.l.b16 %v6202
        %v7407 = vunpack.c.h.b16 %v6202
        %v7408 = vunpack.c.l.b16 %v6203
        %v7409 = vunpack.c.h.b16 %v6203
        %v7410 = vunpack.c.l.b16 %v6204
        %v7411 = vunpack.c.l.b16 %v6205
        %v7412 = vunpack.c.h.b16 %v6205
        %v7413 = vunpack.c.l.b16 %v6206
        %v7414 = vunpack.c.h.b16 %v6206
        %v7415 = vunpack.c.l.b16 %v6207
        %v7416 = vunpack.c.h.b16 %v6207
        %v7417 = vunpack.c.l.b16 %v6208
        %v7418 = vunpack.c.l.b16 %v6209
        %v7419 = vunpack.c.h.b16 %v6209
        %v7420 = vunpack.c.l.b16 %v6210
        %v7421 = vunpack.c.h.b16 %v6210
        %v7422 = vunpack.c.l.b16 %v6211
        %v7423 = vunpack.c.h.b16 %v6211
        %v7424 = vunpack.c.l.b16 %v6212
        %v7425 = vunpack.c.l.b16 %v6213
        %v7426 = vunpack.c.h.b16 %v6213
        %v7427 = vunpack.c.l.b16 %v6214
        %v7428 = vunpack.c.h.b16 %v6214
        %v7429 = vunpack.c.l.b16 %v6215
        %v7430 = vunpack.c.h.b16 %v6215
        %v7431 = vunpack.c.l.b16 %v6216
        %v7432 = vunpack.c.l.b16 %v6217
        %v7433 = vunpack.c.h.b16 %v6217
        %v7434 = vunpack.c.l.b16 %v6218
        %v7435 = vunpack.c.h.b16 %v6218
        %v7436 = vunpack.c.l.b16 %v6219
        %v7437 = vunpack.c.h.b16 %v6219
        %v7438 = vunpack.c.l.b16 %v6220
        %v7439 = vunpack.c.l.b16 %v6221
        %v7440 = vunpack.c.h.b16 %v6221
        %v7441 = vunpack.c.l.b16 %v6222
        %v7442 = vunpack.c.h.b16 %v6222
        %v7443 = vunpack.c.l.b16 %v6223
        %v7444 = vunpack.c.h.b16 %v6223
        %v7445 = vunpack.c.l.b16 %v6224
        %v7446 = vunpack.c.l.b16 %v6225
        %v7447 = vunpack.c.h.b16 %v6225
        %v7448 = vunpack.c.l.b16 %v6226
        %v7449 = vunpack.c.h.b16 %v6226
        %v7450 = vunpack.c.l.b16 %v6227
        %v7451 = vunpack.c.h.b16 %v6227
        %v7452 = vunpack.c.l.b16 %v6228
        %v7453 = vunpack.c.l.b16 %v6229
        %v7454 = vunpack.c.h.b16 %v6229
        %v7455 = vunpack.c.l.b16 %v6230
        %v7456 = vunpack.c.h.b16 %v6230
        %v7457 = vunpack.c.l.b16 %v6231
        %v7458 = vunpack.c.h.b16 %v6231
        %v7459 = vunpack.c.l.b16 %v6232
        %v7460 = vunpack.c.l.b16 %v6233
        %v7461 = vunpack.c.h.b16 %v6233
        %v7462 = vunpack.c.l.b16 %v6234
        %v7463 = vunpack.c.h.b16 %v6234
        %v7464 = vunpack.c.l.b16 %v6235
        %v7465 = vunpack.c.h.b16 %v6235
        %v7466 = vunpack.c.l.b16 %v6236
        %v7467 = vunpack.c.l.b16 %v6237
        %v7468 = vunpack.c.h.b16 %v6237
        %v7469 = vunpack.c.l.b16 %v6238
        %v7470 = vunpack.c.h.b16 %v6238
        %v7471 = vunpack.c.l.b16 %v6239
        %v7472 = vunpack.c.h.b16 %v6239
        %v7473 = vunpack.c.l.b16 %v6240
        %v7474 = vunpack.c.l.b16 %v6241
        %v7475 = vunpack.c.h.b16 %v6241
        %v7476 = vunpack.c.l.b16 %v6242
        %v7477 = vunpack.c.h.b16 %v6242
        %v7478 = vunpack.c.l.b16 %v6243
        %v7479 = vunpack.c.h.b16 %v6243
        %v7480 = vunpack.c.l.b16 %v6244
        %v7481 = vunpack.c.l.b16 %v6245
        %v7482 = vunpack.c.h.b16 %v6245
        %v7483 = vunpack.c.l.b16 %v6246
        %v7484 = vunpack.c.h.b16 %v6246
        %v7485 = vunpack.c.l.b16 %v6247
        %v7486 = vunpack.c.h.b16 %v6247
        %v7487 = vunpack.c.l.b16 %v6248
        %v7488 = vunpack.c.l.b16 %v6249
        %v7489 = vunpack.c.h.b16 %v6249
        %v7490 = vunpack.c.l.b16 %v6250
        %v7491 = vunpack.c.h.b16 %v6250
        %v7492 = vunpack.c.l.b16 %v6251
        %v7493 = vunpack.c.h.b16 %v6251
        %v7494 = vunpack.c.l.b16 %v6252
        %v7495 = vunpack.c.l.b16 %v6253
        %v7496 = vunpack.c.h.b16 %v6253
        %v7497 = vunpack.c.l.b16 %v6254
        %v7498 = vunpack.c.h.b16 %v6254
        %v7499 = vunpack.c.l.b16 %v6255
        %v7500 = vunpack.c.h.b16 %v6255
        %v7501 = vunpack.c.l.b16 %v6256
        %v7502 = vunpack.c.l.b16 %v6257
        %v7503 = vunpack.c.h.b16 %v6257
        %v7504 = vunpack.c.l.b16 %v6258
        %v7505 = vunpack.c.h.b16 %v6258
        %v7506 = vunpack.c.l.b16 %v6259
        %v7507 = vunpack.c.h.b16 %v6259
        %v7508 = vunpack.c.l.b16 %v6260
        %v7509 = vunpack.c.l.b16 %v6261
        %v7510 = vunpack.c.h.b16 %v6261
        %v7511 = vunpack.c.l.b16 %v6262
        %v7512 = vunpack.c.h.b16 %v6262
        %v7513 = vunpack.c.l.b16 %v6263
        %v7514 = vunpack.c.h.b16 %v6263
        %v7515 = vunpack.c.l.b16 %v6264
        %v7516 = vunpack.c.l.b16 %v6265
        %v7517 = vunpack.c.h.b16 %v6265
        %v7518 = vunpack.c.l.b16 %v6266
        %v7519 = vunpack.c.h.b16 %v6266
        %v7520 = vunpack.c.l.b16 %v6267
        %v7521 = vunpack.c.h.b16 %v6267
        %v7522 = vunpack.c.l.b16 %v6268
        %v7523 = vunpack.c.l.b16 %v6269
        %v7524 = vunpack.c.h.b16 %v6269
        %v7525 = vunpack.c.l.b16 %v6270
        %v7526 = vunpack.c.h.b16 %v6270
        %v7527 = vunpack.c.l.b16 %v6271
        %v7528 = vunpack.c.h.b16 %v6271
        %v7529 = vunpack.c.l.b16 %v6272
        %v7530 = vunpack.c.l.b16 %v6273
        %v7531 = vunpack.c.h.b16 %v6273
        %v7532 = vunpack.c.l.b16 %v6274
        %v7533 = vunpack.c.h.b16 %v6274
        %v7534 = vunpack.c.l.b16 %v6275
        %v7535 = vunpack.c.h.b16 %v6275
        %v7536 = vunpack.c.l.b16 %v6276
        %v7537 = vunpack.c.l.b16 %v6277
        %v7538 = vunpack.c.h.b16 %v6277
        %v7539 = vunpack.c.l.b16 %v6278
        %v7540 = vunpack.c.h.b16 %v6278
        %v7541 = vunpack.c.l.b16 %v6279
        %v7542 = vunpack.c.h.b16 %v6279
        %v7543 = vunpack.c.l.b16 %v6280
        %v7544 = vunpack.c.l.b16 %v6281
        %v7545 = vunpack.c.h.b16 %v6281
        %v7546 = vunpack.c.l.b16 %v6282
        %v7547 = vunpack.c.h.b16 %v6282
        %v7548 = vunpack.c.l.b16 %v6283
        %v7549 = vunpack.c.h.b16 %v6283
        %v7550 = vunpack.c.l.b16 %v6284
        %v7551 = vunpack.c.l.b16 %v6285
        %v7552 = vunpack.c.h.b16 %v6285
        %v7553 = vunpack.c.l.b16 %v6286
        %v7554 = vunpack.c.h.b16 %v6286
        %v7555 = vunpack.c.l.b16 %v6287
        %v7556 = vunpack.c.h.b16 %v6287
        %v7557 = vunpack.c.l.b16 %v6288
        %v7558 = vpack.c.b16 %v6781, %v6774
        %v7559 = vpack.c.b16 %v6782, %v6775
        %v7560 = vpack.c.b16 %v6783, %v6776
        %v7561 = vpack.c.b16 %v6784, %v6777
        %v7562 = vpack.c.b16 %v6785, %v6778
        %v7563 = vpack.c.b16 %v6786, %v6779
        %v7564 = vpack.c.b16 %v6787, %v6780
        %v7565 = vpack.c.b16 %v6795, %v6788
        %v7566 = vpack.c.b16 %v6796, %v6789
        %v7567 = vpack.c.b16 %v6797, %v6790
        %v7568 = vpack.c.b16 %v6798, %v6791
        %v7569 = vpack.c.b16 %v6799, %v6792
        %v7570 = vpack.c.b16 %v6800, %v6793
        %v7571 = vpack.c.b16 %v6801, %v6794
        %v7572 = vpack.c.b16 %v6809, %v6802
        %v7573 = vpack.c.b16 %v6810, %v6803
        %v7574 = vpack.c.b16 %v6811, %v6804
        %v7575 = vpack.c.b16 %v6812, %v6805
        %v7576 = vpack.c.b16 %v6813, %v6806
        %v7577 = vpack.c.b16 %v6814, %v6807
        %v7578 = vpack.c.b16 %v6815, %v6808
        %v7579 = vpack.c.b16 %v6823, %v6816
        %v7580 = vpack.c.b16 %v6824, %v6817
        %v7581 = vpack.c.b16 %v6825, %v6818
        %v7582 = vpack.c.b16 %v6826, %v6819
        %v7583 = vpack.c.b16 %v6827, %v6820
        %v7584 = vpack.c.b16 %v6828, %v6821
        %v7585 = vpack.c.b16 %v6829, %v6822
        %v7586 = vpack.c.b16 %v6837, %v6830
        %v7587 = vpack.c.b16 %v6838, %v6831
        %v7588 = vpack.c.b16 %v6839, %v6832
        %v7589 = vpack.c.b16 %v6840, %v6833
        %v7590 = vpack.c.b16 %v6841, %v6834
        %v7591 = vpack.c.b16 %v6842, %v6835
        %v7592 = vpack.c.b16 %v6843, %v6836
        %v7593 = vpack.c.b16 %v6851, %v6844
        %v7594 = vpack.c.b16 %v6852, %v6845
        %v7595 = vpack.c.b16 %v6853, %v6846
        %v7596 = vpack.c.b16 %v6854, %v6847
        %v7597 = vpack.c.b16 %v6855, %v6848
        %v7598 = vpack.c.b16 %v6856, %v6849
        %v7599 = vpack.c.b16 %v6857, %v6850
        %v7600 = vpack.c.b16 %v6865, %v6858
        %v7601 = vpack.c.b16 %v6866, %v6859
        %v7602 = vpack.c.b16 %v6867, %v6860
        %v7603 = vpack.c.b16 %v6868, %v6861
        %v7604 = vpack.c.b16 %v6869, %v6862
        %v7605 = vpack.c.b16 %v6870, %v6863
        %v7606 = vpack.c.b16 %v6871, %v6864
        %v7607 = vpack.c.b16 %v6879, %v6872
        %v7608 = vpack.c.b16 %v6880, %v6873
        %v7609 = vpack.c.b16 %v6881, %v6874
        %v7610 = vpack.c.b16 %v6882, %v6875
        %v7611 = vpack.c.b16 %v6883, %v6876
        %v7612 = vpack.c.b16 %v6884, %v6877
        %v7613 = vpack.c.b16 %v6885, %v6878
        %v7614 = vpack.c.b16 %v6893, %v6886
        %v7615 = vpack.c.b16 %v6894, %v6887
        %v7616 = vpack.c.b16 %v6895, %v6888
        %v7617 = vpack.c.b16 %v6896, %v6889
        %v7618 = vpack.c.b16 %v6897, %v6890
        %v7619 = vpack.c.b16 %v6898, %v6891
        %v7620 = vpack.c.b16 %v6899, %v6892
        %v7621 = vpack.c.b16 %v6907, %v6900
        %v7622 = vpack.c.b16 %v6908, %v6901
        %v7623 = vpack.c.b16 %v6909, %v6902
        %v7624 = vpack.c.b16 %v6910, %v6903
        %v7625 = vpack.c.b16 %v6911, %v6904
        %v7626 = vpack.c.b16 %v6912, %v6905
        %v7627 = vpack.c.b16 %v6913, %v6906
        %v7628 = vpack.c.b16 %v6921, %v6914
        %v7629 = vpack.c.b16 %v6922, %v6915
        %v7630 = vpack.c.b16 %v6923, %v6916
        %v7631 = vpack.c.b16 %v6924, %v6917
        %v7632 = vpack.c.b16 %v6925, %v6918
        %v7633 = vpack.c.b16 %v6926, %v6919
        %v7634 = vpack.c.b16 %v6927, %v6920
        %v7635 = vpack.c.b16 %v6935, %v6928
        %v7636 = vpack.c.b16 %v6936, %v6929
        %v7637 = vpack.c.b16 %v6937, %v6930
        %v7638 = vpack.c.b16 %v6938, %v6931
        %v7639 = vpack.c.b16 %v6939, %v6932
        %v7640 = vpack.c.b16 %v6940, %v6933
        %v7641 = vpack.c.b16 %v6941, %v6934
        %v7642 = vpack.c.b16 %v6949, %v6942
        %v7643 = vpack.c.b16 %v6950, %v6943
        %v7644 = vpack.c.b16 %v6951, %v6944
        %v7645 = vpack.c.b16 %v6952, %v6945
        %v7646 = vpack.c.b16 %v6953, %v6946
        %v7647 = vpack.c.b16 %v6954, %v6947
        %v7648 = vpack.c.b16 %v6955, %v6948
        %v7649 = vpack.c.b16 %v6963, %v6956
        %v7650 = vpack.c.b16 %v6964, %v6957
        %v7651 = vpack.c.b16 %v6965, %v6958
        %v7652 = vpack.c.b16 %v6966, %v6959
        %v7653 = vpack.c.b16 %v6967, %v6960
        %v7654 = vpack.c.b16 %v6968, %v6961
        %v7655 = vpack.c.b16 %v6969, %v6962
        %v7656 = vpack.c.b16 %v6977, %v6970
        %v7657 = vpack.c.b16 %v6978, %v6971
        %v7658 = vpack.c.b16 %v6979, %v6972
        %v7659 = vpack.c.b16 %v6980, %v6973
        %v7660 = vpack.c.b16 %v6981, %v6974
        %v7661 = vpack.c.b16 %v6982, %v6975
        %v7662 = vpack.c.b16 %v6983, %v6976
        %v7663 = vpack.c.b16 %v6991, %v6984
        %v7664 = vpack.c.b16 %v6992, %v6985
        %v7665 = vpack.c.b16 %v6993, %v6986
        %v7666 = vpack.c.b16 %v6994, %v6987
        %v7667 = vpack.c.b16 %v6995, %v6988
        %v7668 = vpack.c.b16 %v6996, %v6989
        %v7669 = vpack.c.b16 %v6997, %v6990
        %v7670 = vpack.c.b16 %v7005, %v6998
        %v7671 = vpack.c.b16 %v7006, %v6999
        %v7672 = vpack.c.b16 %v7007, %v7000
        %v7673 = vpack.c.b16 %v7008, %v7001
        %v7674 = vpack.c.b16 %v7009, %v7002
        %v7675 = vpack.c.b16 %v7010, %v7003
        %v7676 = vpack.c.b16 %v7011, %v7004
        %v7677 = vpack.c.b16 %v7019, %v7012
        %v7678 = vpack.c.b16 %v7020, %v7013
        %v7679 = vpack.c.b16 %v7021, %v7014
        %v7680 = vpack.c.b16 %v7022, %v7015
        %v7681 = vpack.c.b16 %v7023, %v7016
        %v7682 = vpack.c.b16 %v7024, %v7017
        %v7683 = vpack.c.b16 %v7025, %v7018
        %v7684 = vpack.c.b16 %v7033, %v7026
        %v7685 = vpack.c.b16 %v7034, %v7027
        %v7686 = vpack.c.b16 %v7035, %v7028
        %v7687 = vpack.c.b16 %v7036, %v7029
        %v7688 = vpack.c.b16 %v7037, %v7030
        %v7689 = vpack.c.b16 %v7038, %v7031
        %v7690 = vpack.c.b16 %v7039, %v7032
        %v7691 = vpack.c.b16 %v7047, %v7040
        %v7692 = vpack.c.b16 %v7048, %v7041
        %v7693 = vpack.c.b16 %v7049, %v7042
        %v7694 = vpack.c.b16 %v7050, %v7043
        %v7695 = vpack.c.b16 %v7051, %v7044
        %v7696 = vpack.c.b16 %v7052, %v7045
        %v7697 = vpack.c.b16 %v7053, %v7046
        %v7698 = vpack.c.b16 %v7061, %v7054
        %v7699 = vpack.c.b16 %v7062, %v7055
        %v7700 = vpack.c.b16 %v7063, %v7056
        %v7701 = vpack.c.b16 %v7064, %v7057
        %v7702 = vpack.c.b16 %v7065, %v7058
        %v7703 = vpack.c.b16 %v7066, %v7059
        %v7704 = vpack.c.b16 %v7067, %v7060
        %v7705 = vpack.c.b16 %v7075, %v7068
        %v7706 = vpack.c.b16 %v7076, %v7069
        %v7707 = vpack.c.b16 %v7077, %v7070
        %v7708 = vpack.c.b16 %v7078, %v7071
        %v7709 = vpack.c.b16 %v7079, %v7072
        %v7710 = vpack.c.b16 %v7080, %v7073
        %v7711 = vpack.c.b16 %v7081, %v7074
        %v7712 = vpack.c.b16 %v7089, %v7082
        %v7713 = vpack.c.b16 %v7090, %v7083
        %v7714 = vpack.c.b16 %v7091, %v7084
        %v7715 = vpack.c.b16 %v7092, %v7085
        %v7716 = vpack.c.b16 %v7093, %v7086
        %v7717 = vpack.c.b16 %v7094, %v7087
        %v7718 = vpack.c.b16 %v7095, %v7088
        %v7719 = vpack.c.b16 %v7103, %v7096
        %v7720 = vpack.c.b16 %v7104, %v7097
        %v7721 = vpack.c.b16 %v7105, %v7098
        %v7722 = vpack.c.b16 %v7106, %v7099
        %v7723 = vpack.c.b16 %v7107, %v7100
        %v7724 = vpack.c.b16 %v7108, %v7101
        %v7725 = vpack.c.b16 %v7109, %v7102
        %v7726 = vpack.c.b16 %v7117, %v7110
        %v7727 = vpack.c.b16 %v7118, %v7111
        %v7728 = vpack.c.b16 %v7119, %v7112
        %v7729 = vpack.c.b16 %v7120, %v7113
        %v7730 = vpack.c.b16 %v7121, %v7114
        %v7731 = vpack.c.b16 %v7122, %v7115
        %v7732 = vpack.c.b16 %v7123, %v7116
        %v7733 = vpack.c.b16 %v7131, %v7124
        %v7734 = vpack.c.b16 %v7132, %v7125
        %v7735 = vpack.c.b16 %v7133, %v7126
        %v7736 = vpack.c.b16 %v7134, %v7127
        %v7737 = vpack.c.b16 %v7135, %v7128
        %v7738 = vpack.c.b16 %v7136, %v7129
        %v7739 = vpack.c.b16 %v7137, %v7130
        %v7740 = vpack.c.b16 %v7145, %v7138
        %v7741 = vpack.c.b16 %v7146, %v7139
        %v7742 = vpack.c.b16 %v7147, %v7140
        %v7743 = vpack.c.b16 %v7148, %v7141
        %v7744 = vpack.c.b16 %v7149, %v7142
        %v7745 = vpack.c.b16 %v7150, %v7143
        %v7746 = vpack.c.b16 %v7151, %v7144
        %v7747 = vpack.c.b16 %v7159, %v7152
        %v7748 = vpack.c.b16 %v7160, %v7153
        %v7749 = vpack.c.b16 %v7161, %v7154
        %v7750 = vpack.c.b16 %v7162, %v7155
        %v7751 = vpack.c.b16 %v7163, %v7156
        %v7752 = vpack.c.b16 %v7164, %v7157
        %v7753 = vpack.c.b16 %v7165, %v7158
        %v7754 = vpack.c.b16 %v7173, %v7166
        %v7755 = vpack.c.b16 %v7174, %v7167
        %v7756 = vpack.c.b16 %v7175, %v7168
        %v7757 = vpack.c.b16 %v7176, %v7169
        %v7758 = vpack.c.b16 %v7177, %v7170
        %v7759 = vpack.c.b16 %v7178, %v7171
        %v7760 = vpack.c.b16 %v7179, %v7172
        %v7761 = vpack.c.b16 %v7187, %v7180
        %v7762 = vpack.c.b16 %v7188, %v7181
        %v7763 = vpack.c.b16 %v7189, %v7182
        %v7764 = vpack.c.b16 %v7190, %v7183
        %v7765 = vpack.c.b16 %v7191, %v7184
        %v7766 = vpack.c.b16 %v7192, %v7185
        %v7767 = vpack.c.b16 %v7193, %v7186
        %v7768 = vpack.c.b16 %v7201, %v7194
        %v7769 = vpack.c.b16 %v7202, %v7195
        %v7770 = vpack.c.b16 %v7203, %v7196
        %v7771 = vpack.c.b16 %v7204, %v7197
        %v7772 = vpack.c.b16 %v7205, %v7198
        %v7773 = vpack.c.b16 %v7206, %v7199
        %v7774 = vpack.c.b16 %v7207, %v7200
        %v7775 = vpack.c.b16 %v7215, %v7208
        %v7776 = vpack.c.b16 %v7216, %v7209
        %v7777 = vpack.c.b16 %v7217, %v7210
        %v7778 = vpack.c.b16 %v7218, %v7211
        %v7779 = vpack.c.b16 %v7219, %v7212
        %v7780 = vpack.c.b16 %v7220, %v7213
        %v7781 = vpack.c.b16 %v7221, %v7214
        %v7782 = vpack.c.b16 %v7229, %v7222
        %v7783 = vpack.c.b16 %v7230, %v7223
        %v7784 = vpack.c.b16 %v7231, %v7224
        %v7785 = vpack.c.b16 %v7232, %v7225
        %v7786 = vpack.c.b16 %v7233, %v7226
        %v7787 = vpack.c.b16 %v7234, %v7227
        %v7788 = vpack.c.b16 %v7235, %v7228
        %v7789 = vpack.c.b16 %v7243, %v7236
        %v7790 = vpack.c.b16 %v7244, %v7237
        %v7791 = vpack.c.b16 %v7245, %v7238
        %v7792 = vpack.c.b16 %v7246, %v7239
        %v7793 = vpack.c.b16 %v7247, %v7240
        %v7794 = vpack.c.b16 %v7248, %v7241
        %v7795 = vpack.c.b16 %v7249, %v7242
        %v7796 = vpack.c.b16 %v7257, %v7250
        %v7797 = vpack.c.b16 %v7258, %v7251
        %v7798 = vpack.c.b16 %v7259, %v7252
        %v7799 = vpack.c.b16 %v7260, %v7253
        %v7800 = vpack.c.b16 %v7261, %v7254
        %v7801 = vpack.c.b16 %v7262, %v7255
        %v7802 = vpack.c.b16 %v7263, %v7256
        %v7803 = vpack.c.b16 %v7271, %v7264
        %v7804 = vpack.c.b16 %v7272, %v7265
        %v7805 = vpack.c.b16 %v7273, %v7266
        %v7806 = vpack.c.b16 %v7274, %v7267
        %v7807 = vpack.c.b16 %v7275, %v7268
        %v7808 = vpack.c.b16 %v7276, %v7269
        %v7809 = vpack.c.b16 %v7277, %v7270
        %v7810 = vpack.c.b16 %v7285, %v7278
        %v7811 = vpack.c.b16 %v7286, %v7279
        %v7812 = vpack.c.b16 %v7287, %v7280
        %v7813 = vpack.c.b16 %v7288, %v7281
        %v7814 = vpack.c.b16 %v7289, %v7282
        %v7815 = vpack.c.b16 %v7290, %v7283
        %v7816 = vpack.c.b16 %v7291, %v7284
        %v7817 = vpack.c.b16 %v7299, %v7292
        %v7818 = vpack.c.b16 %v7300, %v7293
        %v7819 = vpack.c.b16 %v7301, %v7294
        %v7820 = vpack.c.b16 %v7302, %v7295
        %v7821 = vpack.c.b16 %v7303, %v7296
        %v7822 = vpack.c.b16 %v7304, %v7297
        %v7823 = vpack.c.b16 %v7305, %v7298
        %v7824 = vpack.c.b16 %v7313, %v7306
        %v7825 = vpack.c.b16 %v7314, %v7307
        %v7826 = vpack.c.b16 %v7315, %v7308
        %v7827 = vpack.c.b16 %v7316, %v7309
        %v7828 = vpack.c.b16 %v7317, %v7310
        %v7829 = vpack.c.b16 %v7318, %v7311
        %v7830 = vpack.c.b16 %v7319, %v7312
        %v7831 = vpack.c.b16 %v7327, %v7320
        %v7832 = vpack.c.b16 %v7328, %v7321
        %v7833 = vpack.c.b16 %v7329, %v7322
        %v7834 = vpack.c.b16 %v7330, %v7323
        %v7835 = vpack.c.b16 %v7331, %v7324
        %v7836 = vpack.c.b16 %v7332, %v7325
        %v7837 = vpack.c.b16 %v7333, %v7326
        %v7838 = vpack.c.b16 %v7341, %v7334
        %v7839 = vpack.c.b16 %v7342, %v7335
        %v7840 = vpack.c.b16 %v7343, %v7336
        %v7841 = vpack.c.b16 %v7344, %v7337
        %v7842 = vpack.c.b16 %v7345, %v7338
        %v7843 = vpack.c.b16 %v7346, %v7339
        %v7844 = vpack.c.b16 %v7347, %v7340
        %v7845 = vpack.c.b16 %v7355, %v7348
        %v7846 = vpack.c.b16 %v7356, %v7349
        %v7847 = vpack.c.b16 %v7357, %v7350
        %v7848 = vpack.c.b16 %v7358, %v7351
        %v7849 = vpack.c.b16 %v7359, %v7352
        %v7850 = vpack.c.b16 %v7360, %v7353
        %v7851 = vpack.c.b16 %v7361, %v7354
        %v7852 = vpack.c.b16 %v7369, %v7362
        %v7853 = vpack.c.b16 %v7370, %v7363
        %v7854 = vpack.c.b16 %v7371, %v7364
        %v7855 = vpack.c.b16 %v7372, %v7365
        %v7856 = vpack.c.b16 %v7373, %v7366
        %v7857 = vpack.c.b16 %v7374, %v7367
        %v7858 = vpack.c.b16 %v7375, %v7368
        %v7859 = vpack.c.b16 %v7383, %v7376
        %v7860 = vpack.c.b16 %v7384, %v7377
        %v7861 = vpack.c.b16 %v7385, %v7378
        %v7862 = vpack.c.b16 %v7386, %v7379
        %v7863 = vpack.c.b16 %v7387, %v7380
        %v7864 = vpack.c.b16 %v7388, %v7381
        %v7865 = vpack.c.b16 %v7389, %v7382
        %v7866 = vpack.c.b16 %v7397, %v7390
        %v7867 = vpack.c.b16 %v7398, %v7391
        %v7868 = vpack.c.b16 %v7399, %v7392
        %v7869 = vpack.c.b16 %v7400, %v7393
        %v7870 = vpack.c.b16 %v7401, %v7394
        %v7871 = vpack.c.b16 %v7402, %v7395
        %v7872 = vpack.c.b16 %v7403, %v7396
        %v7873 = vpack.c.b16 %v7411, %v7404
        %v7874 = vpack.c.b16 %v7412, %v7405
        %v7875 = vpack.c.b16 %v7413, %v7406
        %v7876 = vpack.c.b16 %v7414, %v7407
        %v7877 = vpack.c.b16 %v7415, %v7408
        %v7878 = vpack.c.b16 %v7416, %v7409
        %v7879 = vpack.c.b16 %v7417, %v7410
        %v7880 = vpack.c.b16 %v7425, %v7418
        %v7881 = vpack.c.b16 %v7426, %v7419
        %v7882 = vpack.c.b16 %v7427, %v7420
        %v7883 = vpack.c.b16 %v7428, %v7421
        %v7884 = vpack.c.b16 %v7429, %v7422
        %v7885 = vpack.c.b16 %v7430, %v7423
        %v7886 = vpack.c.b16 %v7431, %v7424
        %v7887 = vpack.c.b16 %v7439, %v7432
        %v7888 = vpack.c.b16 %v7440, %v7433
        %v7889 = vpack.c.b16 %v7441, %v7434
        %v7890 = vpack.c.b16 %v7442, %v7435
        %v7891 = vpack.c.b16 %v7443, %v7436
        %v7892 = vpack.c.b16 %v7444, %v7437
        %v7893 = vpack.c.b16 %v7445, %v7438
        %v7894 = vpack.c.b16 %v7453, %v7446
        %v7895 = vpack.c.b16 %v7454, %v7447
        %v7896 = vpack.c.b16 %v7455, %v7448
        %v7897 = vpack.c.b16 %v7456, %v7449
        %v7898 = vpack.c.b16 %v7457, %v7450
        %v7899 = vpack.c.b16 %v7458, %v7451
        %v7900 = vpack.c.b16 %v7459, %v7452
        %v7901 = vpack.c.b16 %v7467, %v7460
        %v7902 = vpack.c.b16 %v7468, %v7461
        %v7903 = vpack.c.b16 %v7469, %v7462
        %v7904 = vpack.c.b16 %v7470, %v7463
        %v7905 = vpack.c.b16 %v7471, %v7464
        %v7906 = vpack.c.b16 %v7472, %v7465
        %v7907 = vpack.c.b16 %v7473, %v7466
        %v7908 = vpack.c.b16 %v7481, %v7474
        %v7909 = vpack.c.b16 %v7482, %v7475
        %v7910 = vpack.c.b16 %v7483, %v7476
        %v7911 = vpack.c.b16 %v7484, %v7477
        %v7912 = vpack.c.b16 %v7485, %v7478
        %v7913 = vpack.c.b16 %v7486, %v7479
        %v7914 = vpack.c.b16 %v7487, %v7480
        %v7915 = vpack.c.b16 %v7495, %v7488
        %v7916 = vpack.c.b16 %v7496, %v7489
        %v7917 = vpack.c.b16 %v7497, %v7490
        %v7918 = vpack.c.b16 %v7498, %v7491
        %v7919 = vpack.c.b16 %v7499, %v7492
        %v7920 = vpack.c.b16 %v7500, %v7493
        %v7921 = vpack.c.b16 %v7501, %v7494
        %v7922 = vpack.c.b16 %v7509, %v7502
        %v7923 = vpack.c.b16 %v7510, %v7503
        %v7924 = vpack.c.b16 %v7511, %v7504
        %v7925 = vpack.c.b16 %v7512, %v7505
        %v7926 = vpack.c.b16 %v7513, %v7506
        %v7927 = vpack.c.b16 %v7514, %v7507
        %v7928 = vpack.c.b16 %v7515, %v7508
        %v7929 = vpack.c.b16 %v7523, %v7516
        %v7930 = vpack.c.b16 %v7524, %v7517
        %v7931 = vpack.c.b16 %v7525, %v7518
        %v7932 = vpack.c.b16 %v7526, %v7519
        %v7933 = vpack.c.b16 %v7527, %v7520
        %v7934 = vpack.c.b16 %v7528, %v7521
        %v7935 = vpack.c.b16 %v7529, %v7522
        %v7936 = vpack.c.b16 %v7537, %v7530
        %v7937 = vpack.c.b16 %v7538, %v7531
        %v7938 = vpack.c.b16 %v7539, %v7532
        %v7939 = vpack.c.b16 %v7540, %v7533
        %v7940 = vpack.c.b16 %v7541, %v7534
        %v7941 = vpack.c.b16 %v7542, %v7535
        %v7942 = vpack.c.b16 %v7543, %v7536
        %v7943 = vpack.c.b16 %v7551, %v7544
        %v7944 = vpack.c.b16 %v7552, %v7545
        %v7945 = vpack.c.b16 %v7553, %v7546
        %v7946 = vpack.c.b16 %v7554, %v7547
        %v7947 = vpack.c.b16 %v7555, %v7548
        %v7948 = vpack.c.b16 %v7556, %v7549
        %v7949 = vpack.c.b16 %v7557, %v7550
        %8342 = vmatprep.subr.bf16.mxu0 %v7559
        %8343 = vmatpush1.bf16.msra.mxu0 %v7558
        %8344 = vmatprep.subr.bf16.mxu0 %v7566
        %8345 = vmatpush1.bf16.msra.mxu0 %v7565
        %8346 = vmatprep.subr.bf16.mxu0 %v7573
        %8347 = vmatpush1.bf16.msra.mxu0 %v7572
        %8348 = vmatprep.subr.bf16.mxu0 %v7580
        %8349 = vmatpush1.bf16.msra.mxu0 %v7579
        %8350 = vmatprep.subr.bf16.mxu0 %v7587
        %8351 = vmatpush1.bf16.msra.mxu0 %v7586
        %8352 = vmatprep.subr.bf16.mxu0 %v7594
        %8353 = vmatpush1.bf16.msra.mxu0 %v7593
        %8354 = vmatprep.subr.bf16.mxu0 %v7601
        %8355 = vmatpush1.bf16.msra.mxu0 %v7600
        %8356 = vmatprep.subr.bf16.mxu0 %v7608
        %8357 = vmatpush1.bf16.msra.mxu0 %v7607
        %8358 = vmatprep.subr.bf16.mxu0 %v7615
        %8359 = vmatpush1.bf16.msra.mxu0 %v7614
        %8360 = vmatprep.subr.bf16.mxu0 %v7622
        %8361 = vmatpush1.bf16.msra.mxu0 %v7621
        %8362 = vmatprep.subr.bf16.mxu0 %v7629
        %8363 = vmatpush1.bf16.msra.mxu0 %v7628
        %8364 = vmatprep.subr.bf16.mxu0 %v7636
        %8365 = vmatpush1.bf16.msra.mxu0 %v7635
        %8366 = vmatprep.subr.bf16.mxu0 %v7643
        %8367 = vmatpush1.bf16.msra.mxu0 %v7642
        %8368 = vmatprep.subr.bf16.mxu0 %v7650
        %8369 = vmatpush1.bf16.msra.mxu0 %v7649
        %8370 = vmatprep.subr.bf16.mxu0 %v7657
        %8371 = vmatpush1.bf16.msra.mxu0 %v7656
        %8372 = vmatprep.subr.bf16.mxu0 %v7664
        %8373 = vmatpush1.bf16.msra.mxu0 %v7663
        %8374 = vmatprep.mubr.bf16.mxu0 %v5835
        %8375 = vmatmul.mubr.bf16.gmra.mrb[0].mxu0 %v5834
        %v8376 = vpop.f32.mrb[0].mxu0
        %v8377 = vadd.f32 %v6294, %v8376
        %v8378 = vpop.f32.mrb[0].mxu0
        %v8379 = vadd.f32 %v6298, %v8378
        %v8380 = vpop.f32.mrb[0].mxu0
        %v8381 = vpop.f32.mrb[0].mxu0
        %8382 = vdwg.mxu0
        %8383 = vmatprep.subr.bf16.mxu0 %v7671
        %8384 = vmatpush1.bf16.msra.mxu0 %v7670
        %8385 = vmatprep.subr.bf16.mxu0 %v7678
        %8386 = vmatpush1.bf16.msra.mxu0 %v7677
        %8387 = vmatprep.subr.bf16.mxu0 %v7685
        %8388 = vmatpush1.bf16.msra.mxu0 %v7684
        %8389 = vmatprep.subr.bf16.mxu0 %v7692
        %8390 = vmatpush1.bf16.msra.mxu0 %v7691
        %8391 = vmatprep.subr.bf16.mxu0 %v7699
        %8392 = vmatpush1.bf16.msra.mxu0 %v7698
        %8393 = vmatprep.subr.bf16.mxu0 %v7706
        %8394 = vmatpush1.bf16.msra.mxu0 %v7705
        %8395 = vmatprep.subr.bf16.mxu0 %v7713
        %8396 = vmatpush1.bf16.msra.mxu0 %v7712
        %8397 = vmatprep.subr.bf16.mxu0 %v7720
        %8398 = vmatpush1.bf16.msra.mxu0 %v7719
        %8399 = vmatprep.subr.bf16.mxu0 %v7727
        %8400 = vmatpush1.bf16.msra.mxu0 %v7726
        %8401 = vmatprep.subr.bf16.mxu0 %v7734
        %8402 = vmatpush1.bf16.msra.mxu0 %v7733
        %8403 = vmatprep.subr.bf16.mxu0 %v7741
        %8404 = vmatpush1.bf16.msra.mxu0 %v7740
        %8405 = vmatprep.subr.bf16.mxu0 %v7748
        %8406 = vmatpush1.bf16.msra.mxu0 %v7747
        %8407 = vmatprep.subr.bf16.mxu0 %v7755
        %8408 = vmatpush1.bf16.msra.mxu0 %v7754
        %8409 = vmatprep.subr.bf16.mxu0 %v7762
        %8410 = vmatpush1.bf16.msra.mxu0 %v7761
        %8411 = vmatprep.subr.bf16.mxu0 %v7769
        %8412 = vmatpush1.bf16.msra.mxu0 %v7768
        %8413 = vmatprep.subr.bf16.mxu0 %v7776
        %8414 = vmatpush1.bf16.msra.mxu0 %v7775
        %8415 = vmatprep.mubr.bf16.mxu0 %v5837
        %8416 = vmatmul.mubr.bf16.gmra.mrb[0].mxu0 %v5836
        %v8417 = vpop.f32.mrb[0].mxu0
        %v8418 = vadd.f32 %v8377, %v8417
        %v8419 = vpop.f32.mrb[0].mxu0
        %v8420 = vadd.f32 %v8379, %v8419
        %v8421 = vpop.f32.mrb[0].mxu0
        %v8422 = vpop.f32.mrb[0].mxu0
        %8423 = vdwg.mxu0
        %8424 = vmatprep.subr.bf16.mxu0 %v7783
        %8425 = vmatpush1.bf16.msra.mxu0 %v7782
        %8426 = vmatprep.subr.bf16.mxu0 %v7790
        %8427 = vmatpush1.bf16.msra.mxu0 %v7789
        %8428 = vmatprep.subr.bf16.mxu0 %v7797
        %8429 = vmatpush1.bf16.msra.mxu0 %v7796
        %8430 = vmatprep.subr.bf16.mxu0 %v7804
        %8431 = vmatpush1.bf16.msra.mxu0 %v7803
        %8432 = vmatprep.subr.bf16.mxu0 %v7811
        %8433 = vmatpush1.bf16.msra.mxu0 %v7810
        %8434 = vmatprep.subr.bf16.mxu0 %v7818
        %8435 = vmatpush1.bf16.msra.mxu0 %v7817
        %8436 = vmatprep.subr.bf16.mxu0 %v7825
        %8437 = vmatpush1.bf16.msra.mxu0 %v7824
        %8438 = vmatprep.subr.bf16.mxu0 %v7832
        %8439 = vmatpush1.bf16.msra.mxu0 %v7831
        %8440 = vmatprep.subr.bf16.mxu0 %v7839
        %8441 = vmatpush1.bf16.msra.mxu0 %v7838
        %8442 = vmatprep.subr.bf16.mxu0 %v7846
        %8443 = vmatpush1.bf16.msra.mxu0 %v7845
        %8444 = vmatprep.subr.bf16.mxu0 %v7853
        %8445 = vmatpush1.bf16.msra.mxu0 %v7852
        %8446 = vmatprep.subr.bf16.mxu0 %v7860
        %8447 = vmatpush1.bf16.msra.mxu0 %v7859
        %8448 = vmatprep.subr.bf16.mxu0 %v7867
        %8449 = vmatpush1.bf16.msra.mxu0 %v7866
        %8450 = vmatprep.subr.bf16.mxu0 %v7874
        %8451 = vmatpush1.bf16.msra.mxu0 %v7873
        %8452 = vmatprep.subr.bf16.mxu0 %v7881
        %8453 = vmatpush1.bf16.msra.mxu0 %v7880
        %8454 = vmatprep.subr.bf16.mxu0 %v7888
        %8455 = vmatpush1.bf16.msra.mxu0 %v7887
        %8456 = vmatprep.mubr.bf16.mxu0 %v5839
        %8457 = vmatmul.mubr.bf16.gmra.mrb[0].mxu0 %v5838
        %v8458 = vpop.f32.mrb[0].mxu0
        %v8459 = vadd.f32 %v8418, %v8458
        %v8460 = vpop.f32.mrb[0].mxu0
        %v8461 = vadd.f32 %v8420, %v8460
        %v8462 = vpop.f32.mrb[0].mxu0
        %v8463 = vpop.f32.mrb[0].mxu0
        %8464 = vdwg.mxu0
        %8465 = vmatprep.subr.bf16.mxu0 %v7895
        %8466 = vmatpush1.bf16.msra.mxu0 %v7894
        %8467 = vmatprep.subr.bf16.mxu0 %v7902
        %8468 = vmatpush1.bf16.msra.mxu0 %v7901
        %8469 = vmatprep.subr.bf16.mxu0 %v7909
        %8470 = vmatpush1.bf16.msra.mxu0 %v7908
        %8471 = vmatprep.subr.bf16.mxu0 %v7916
        %8472 = vmatpush1.bf16.msra.mxu0 %v7915
        %8473 = vmatprep.subr.bf16.mxu0 %v7923
        %8474 = vmatpush1.bf16.msra.mxu0 %v7922
        %8475 = vmatprep.subr.bf16.mxu0 %v7930
        %8476 = vmatpush1.bf16.msra.mxu0 %v7929
        %8477 = vmatprep.subr.bf16.mxu0 %v7937
        %8478 = vmatpush1.bf16.msra.mxu0 %v7936
        %8479 = vmatprep.subr.bf16.mxu0 %v7944
        %8480 = vmatpush1.bf16.msra.mxu0 %v7943
        %8481 = vmatprep.subr.bf16.mxu0 0
        %8482 = vmatpush1.bf16.msra.mxu0 0
        %8483 = vmatprep.subr.bf16.mxu0 0
        %8484 = vmatpush1.bf16.msra.mxu0 0
        %8485 = vmatprep.subr.bf16.mxu0 0
        %8486 = vmatpush1.bf16.msra.mxu0 0
        %8487 = vmatprep.subr.bf16.mxu0 0
        %8488 = vmatpush1.bf16.msra.mxu0 0
        %8489 = vmatprep.subr.bf16.mxu0 0
        %8490 = vmatpush1.bf16.msra.mxu0 0
        %8491 = vmatprep.subr.bf16.mxu0 0
        %8492 = vmatpush1.bf16.msra.mxu0 0
        %8493 = vmatprep.subr.bf16.mxu0 0
        %8494 = vmatpush1.bf16.msra.mxu0 0
        %8495 = vmatprep.subr.bf16.mxu0 0
        %8496 = vmatpush1.bf16.msra.mxu0 0
        %8497 = vmatprep.mubr.bf16.mxu0 0
        %8498 = vmatmul.mubr.bf16.gmra.mrb[0].mxu0 %v5840
        %v8499 = vpop.f32.mrb[0].mxu0
        %v8500 = vadd.f32 %v8459, %v8499
        %v8501 = vpop.f32.mrb[0].mxu0
        %v8502 = vadd.f32 %v8461, %v8501
        %v8503 = vpop.f32.mrb[0].mxu0
        %v8504 = vpop.f32.mrb[0].mxu0
        %8505 = vdwg.mxu0
        %8506 = vmatprep.subr.bf16.mxu0 %v7561
        %8507 = vmatpush1.bf16.msra.mxu0 %v7560
        %8508 = vmatprep.subr.bf16.mxu0 %v7568
        %8509 = vmatpush1.bf16.msra.mxu0 %v7567
        %8510 = vmatprep.subr.bf16.mxu0 %v7575
        %8511 = vmatpush1.bf16.msra.mxu0 %v7574
        %8512 = vmatprep.subr.bf16.mxu0 %v7582
        %8513 = vmatpush1.bf16.msra.mxu0 %v7581
        %8514 = vmatprep.subr.bf16.mxu0 %v7589
        %8515 = vmatpush1.bf16.msra.mxu0 %v7588
        %8516 = vmatprep.subr.bf16.mxu0 %v7596
        %8517 = vmatpush1.bf16.msra.mxu0 %v7595
        %8518 = vmatprep.subr.bf16.mxu0 %v7603
        %8519 = vmatpush1.bf16.msra.mxu0 %v7602
        %8520 = vmatprep.subr.bf16.mxu0 %v7610
        %8521 = vmatpush1.bf16.msra.mxu0 %v7609
        %8522 = vmatprep.subr.bf16.mxu0 %v7617
        %8523 = vmatpush1.bf16.msra.mxu0 %v7616
        %8524 = vmatprep.subr.bf16.mxu0 %v7624
        %8525 = vmatpush1.bf16.msra.mxu0 %v7623
        %8526 = vmatprep.subr.bf16.mxu0 %v7631
        %8527 = vmatpush1.bf16.msra.mxu0 %v7630
        %8528 = vmatprep.subr.bf16.mxu0 %v7638
        %8529 = vmatpush1.bf16.msra.mxu0 %v7637
        %8530 = vmatprep.subr.bf16.mxu0 %v7645
        %8531 = vmatpush1.bf16.msra.mxu0 %v7644
        %8532 = vmatprep.subr.bf16.mxu0 %v7652
        %8533 = vmatpush1.bf16.msra.mxu0 %v7651
        %8534 = vmatprep.subr.bf16.mxu0 %v7659
        %8535 = vmatpush1.bf16.msra.mxu0 %v7658
        %8536 = vmatprep.subr.bf16.mxu0 %v7666
        %8537 = vmatpush1.bf16.msra.mxu0 %v7665
        %8538 = vmatprep.mubr.bf16.mxu0 %v5835
        %8539 = vmatmul.mubr.bf16.gmra.mrb[0].mxu0 %v5834
        %v8540 = vpop.f32.mrb[0].mxu0
        %v8541 = vadd.f32 %v6302, %v8540
        %v8542 = vpop.f32.mrb[0].mxu0
        %v8543 = vadd.f32 %v6306, %v8542
        %v8544 = vpop.f32.mrb[0].mxu0
        %v8545 = vpop.f32.mrb[0].mxu0
        %8546 = vdwg.mxu0
        %8547 = vmatprep.subr.bf16.mxu0 %v7673
        %8548 = vmatpush1.bf16.msra.mxu0 %v7672
        %8549 = vmatprep.subr.bf16.mxu0 %v7680
        %8550 = vmatpush1.bf16.msra.mxu0 %v7679
        %8551 = vmatprep.subr.bf16.mxu0 %v7687
        %8552 = vmatpush1.bf16.msra.mxu0 %v7686
        %8553 = vmatprep.subr.bf16.mxu0 %v7694
        %8554 = vmatpush1.bf16.msra.mxu0 %v7693
        %8555 = vmatprep.subr.bf16.mxu0 %v7701
        %8556 = vmatpush1.bf16.msra.mxu0 %v7700
        %8557 = vmatprep.subr.bf16.mxu0 %v7708
        %8558 = vmatpush1.bf16.msra.mxu0 %v7707
        %8559 = vmatprep.subr.bf16.mxu0 %v7715
        %8560 = vmatpush1.bf16.msra.mxu0 %v7714
        %8561 = vmatprep.subr.bf16.mxu0 %v7722
        %8562 = vmatpush1.bf16.msra.mxu0 %v7721
        %8563 = vmatprep.subr.bf16.mxu0 %v7729
        %8564 = vmatpush1.bf16.msra.mxu0 %v7728
        %8565 = vmatprep.subr.bf16.mxu0 %v7736
        %8566 = vmatpush1.bf16.msra.mxu0 %v7735
        %8567 = vmatprep.subr.bf16.mxu0 %v7743
        %8568 = vmatpush1.bf16.msra.mxu0 %v7742
        %8569 = vmatprep.subr.bf16.mxu0 %v7750
        %8570 = vmatpush1.bf16.msra.mxu0 %v7749
        %8571 = vmatprep.subr.bf16.mxu0 %v7757
        %8572 = vmatpush1.bf16.msra.mxu0 %v7756
        %8573 = vmatprep.subr.bf16.mxu0 %v7764
        %8574 = vmatpush1.bf16.msra.mxu0 %v7763
        %8575 = vmatprep.subr.bf16.mxu0 %v7771
        %8576 = vmatpush1.bf16.msra.mxu0 %v7770
        %8577 = vmatprep.subr.bf16.mxu0 %v7778
        %8578 = vmatpush1.bf16.msra.mxu0 %v7777
        %8579 = vmatprep.mubr.bf16.mxu0 %v5837
        %8580 = vmatmul.mubr.bf16.gmra.mrb[0].mxu0 %v5836
        %v8581 = vpop.f32.mrb[0].mxu0
        %v8582 = vadd.f32 %v8541, %v8581
        %v8583 = vpop.f32.mrb[0].mxu0
        %v8584 = vadd.f32 %v8543, %v8583
        %v8585 = vpop.f32.mrb[0].mxu0
        %v8586 = vpop.f32.mrb[0].mxu0
        %8587 = vdwg.mxu0
        %8588 = vmatprep.subr.bf16.mxu0 %v7785
        %8589 = vmatpush1.bf16.msra.mxu0 %v7784
        %8590 = vmatprep.subr.bf16.mxu0 %v7792
        %8591 = vmatpush1.bf16.msra.mxu0 %v7791
        %8592 = vmatprep.subr.bf16.mxu0 %v7799
        %8593 = vmatpush1.bf16.msra.mxu0 %v7798
        %8594 = vmatprep.subr.bf16.mxu0 %v7806
        %8595 = vmatpush1.bf16.msra.mxu0 %v7805
        %8596 = vmatprep.subr.bf16.mxu0 %v7813
        %8597 = vmatpush1.bf16.msra.mxu0 %v7812
        %8598 = vmatprep.subr.bf16.mxu0 %v7820
        %8599 = vmatpush1.bf16.msra.mxu0 %v7819
        %8600 = vmatprep.subr.bf16.mxu0 %v7827
        %8601 = vmatpush1.bf16.msra.mxu0 %v7826
        %8602 = vmatprep.subr.bf16.mxu0 %v7834
        %8603 = vmatpush1.bf16.msra.mxu0 %v7833
        %8604 = vmatprep.subr.bf16.mxu0 %v7841
        %8605 = vmatpush1.bf16.msra.mxu0 %v7840
        %8606 = vmatprep.subr.bf16.mxu0 %v7848
        %8607 = vmatpush1.bf16.msra.mxu0 %v7847
        %8608 = vmatprep.subr.bf16.mxu0 %v7855
        %8609 = vmatpush1.bf16.msra.mxu0 %v7854
        %8610 = vmatprep.subr.bf16.mxu0 %v7862
        %8611 = vmatpush1.bf16.msra.mxu0 %v7861
        %8612 = vmatprep.subr.bf16.mxu0 %v7869
        %8613 = vmatpush1.bf16.msra.mxu0 %v7868
        %8614 = vmatprep.subr.bf16.mxu0 %v7876
        %8615 = vmatpush1.bf16.msra.mxu0 %v7875
        %8616 = vmatprep.subr.bf16.mxu0 %v7883
        %8617 = vmatpush1.bf16.msra.mxu0 %v7882
        %8618 = vmatprep.subr.bf16.mxu0 %v7890
        %8619 = vmatpush1.bf16.msra.mxu0 %v7889
        %8620 = vmatprep.mubr.bf16.mxu0 %v5839
        %8621 = vmatmul.mubr.bf16.gmra.mrb[0].mxu0 %v5838
        %v8622 = vpop.f32.mrb[0].mxu0
        %v8623 = vadd.f32 %v8582, %v8622
        %v8624 = vpop.f32.mrb[0].mxu0
        %v8625 = vadd.f32 %v8584, %v8624
        %v8626 = vpop.f32.mrb[0].mxu0
        %v8627 = vpop.f32.mrb[0].mxu0
        %8628 = vdwg.mxu0
        %8629 = vmatprep.subr.bf16.mxu0 %v7897
        %8630 = vmatpush1.bf16.msra.mxu0 %v7896
        %8631 = vmatprep.subr.bf16.mxu0 %v7904
        %8632 = vmatpush1.bf16.msra.mxu0 %v7903
        %8633 = vmatprep.subr.bf16.mxu0 %v7911
        %8634 = vmatpush1.bf16.msra.mxu0 %v7910
        %8635 = vmatprep.subr.bf16.mxu0 %v7918
        %8636 = vmatpush1.bf16.msra.mxu0 %v7917
        %8637 = vmatprep.subr.bf16.mxu0 %v7925
        %8638 = vmatpush1.bf16.msra.mxu0 %v7924
        %8639 = vmatprep.subr.bf16.mxu0 %v7932
        %8640 = vmatpush1.bf16.msra.mxu0 %v7931
        %8641 = vmatprep.subr.bf16.mxu0 %v7939
        %8642 = vmatpush1.bf16.msra.mxu0 %v7938
        %8643 = vmatprep.subr.bf16.mxu0 %v7946
        %8644 = vmatpush1.bf16.msra.mxu0 %v7945
        %8645 = vmatprep.subr.bf16.mxu0 0
        %8646 = vmatpush1.bf16.msra.mxu0 0
        %8647 = vmatprep.subr.bf16.mxu0 0
        %8648 = vmatpush1.bf16.msra.mxu0 0
        %8649 = vmatprep.subr.bf16.mxu0 0
        %8650 = vmatpush1.bf16.msra.mxu0 0
        %8651 = vmatprep.subr.bf16.mxu0 0
        %8652 = vmatpush1.bf16.msra.mxu0 0
        %8653 = vmatprep.subr.bf16.mxu0 0
        %8654 = vmatpush1.bf16.msra.mxu0 0
        %8655 = vmatprep.subr.bf16.mxu0 0
        %8656 = vmatpush1.bf16.msra.mxu0 0
        %8657 = vmatprep.subr.bf16.mxu0 0
        %8658 = vmatpush1.bf16.msra.mxu0 0
        %8659 = vmatprep.subr.bf16.mxu0 0
        %8660 = vmatpush1.bf16.msra.mxu0 0
        %8661 = vmatprep.mubr.bf16.mxu0 0
        %8662 = vmatmul.mubr.bf16.gmra.mrb[0].mxu0 %v5840
        %v8663 = vpop.f32.mrb[0].mxu0
        %v8664 = vadd.f32 %v8623, %v8663
        %v8665 = vpop.f32.mrb[0].mxu0
        %v8666 = vadd.f32 %v8625, %v8665
        %v8667 = vpop.f32.mrb[0].mxu0
        %v8668 = vpop.f32.mrb[0].mxu0
        %8669 = vdwg.mxu0
        %8670 = vmatprep.subr.bf16.mxu0 %v7563
        %8671 = vmatpush1.bf16.msra.mxu0 %v7562
        %8672 = vmatprep.subr.bf16.mxu0 %v7570
        %8673 = vmatpush1.bf16.msra.mxu0 %v7569
        %8674 = vmatprep.subr.bf16.mxu0 %v7577
        %8675 = vmatpush1.bf16.msra.mxu0 %v7576
        %8676 = vmatprep.subr.bf16.mxu0 %v7584
        %8677 = vmatpush1.bf16.msra.mxu0 %v7583
        %8678 = vmatprep.subr.bf16.mxu0 %v7591
        %8679 = vmatpush1.bf16.msra.mxu0 %v7590
        %8680 = vmatprep.subr.bf16.mxu0 %v7598
        %8681 = vmatpush1.bf16.msra.mxu0 %v7597
        %8682 = vmatprep.subr.bf16.mxu0 %v7605
        %8683 = vmatpush1.bf16.msra.mxu0 %v7604
        %8684 = vmatprep.subr.bf16.mxu0 %v7612
        %8685 = vmatpush1.bf16.msra.mxu0 %v7611
        %8686 = vmatprep.subr.bf16.mxu0 %v7619
        %8687 = vmatpush1.bf16.msra.mxu0 %v7618
        %8688 = vmatprep.subr.bf16.mxu0 %v7626
        %8689 = vmatpush1.bf16.msra.mxu0 %v7625
        %8690 = vmatprep.subr.bf16.mxu0 %v7633
        %8691 = vmatpush1.bf16.msra.mxu0 %v7632
        %8692 = vmatprep.subr.bf16.mxu0 %v7640
        %8693 = vmatpush1.bf16.msra.mxu0 %v7639
        %8694 = vmatprep.subr.bf16.mxu0 %v7647
        %8695 = vmatpush1.bf16.msra.mxu0 %v7646
        %8696 = vmatprep.subr.bf16.mxu0 %v7654
        %8697 = vmatpush1.bf16.msra.mxu0 %v7653
        %8698 = vmatprep.subr.bf16.mxu0 %v7661
        %8699 = vmatpush1.bf16.msra.mxu0 %v7660
        %8700 = vmatprep.subr.bf16.mxu0 %v7668
        %8701 = vmatpush1.bf16.msra.mxu0 %v7667
        %8702 = vmatprep.mubr.bf16.mxu0 %v5835
        %8703 = vmatmul.mubr.bf16.gmra.mrb[0].mxu0 %v5834
        %v8704 = vpop.f32.mrb[0].mxu0
        %v8705 = vadd.f32 %v6310, %v8704
        %v8706 = vpop.f32.mrb[0].mxu0
        %v8707 = vadd.f32 %v6314, %v8706
        %v8708 = vpop.f32.mrb[0].mxu0
        %v8709 = vpop.f32.mrb[0].mxu0
        %8710 = vdwg.mxu0
        %8711 = vmatprep.subr.bf16.mxu0 %v7675
        %8712 = vmatpush1.bf16.msra.mxu0 %v7674
        %8713 = vmatprep.subr.bf16.mxu0 %v7682
        %8714 = vmatpush1.bf16.msra.mxu0 %v7681
        %8715 = vmatprep.subr.bf16.mxu0 %v7689
        %8716 = vmatpush1.bf16.msra.mxu0 %v7688
        %8717 = vmatprep.subr.bf16.mxu0 %v7696
        %8718 = vmatpush1.bf16.msra.mxu0 %v7695
        %8719 = vmatprep.subr.bf16.mxu0 %v7703
        %8720 = vmatpush1.bf16.msra.mxu0 %v7702
        %8721 = vmatprep.subr.bf16.mxu0 %v7710
        %8722 = vmatpush1.bf16.msra.mxu0 %v7709
        %8723 = vmatprep.subr.bf16.mxu0 %v7717
        %8724 = vmatpush1.bf16.msra.mxu0 %v7716
        %8725 = vmatprep.subr.bf16.mxu0 %v7724
        %8726 = vmatpush1.bf16.msra.mxu0 %v7723
        %8727 = vmatprep.subr.bf16.mxu0 %v7731
        %8728 = vmatpush1.bf16.msra.mxu0 %v7730
        %8729 = vmatprep.subr.bf16.mxu0 %v7738
        %8730 = vmatpush1.bf16.msra.mxu0 %v7737
        %8731 = vmatprep.subr.bf16.mxu0 %v7745
        %8732 = vmatpush1.bf16.msra.mxu0 %v7744
        %8733 = vmatprep.subr.bf16.mxu0 %v7752
        %8734 = vmatpush1.bf16.msra.mxu0 %v7751
        %8735 = vmatprep.subr.bf16.mxu0 %v7759
        %8736 = vmatpush1.bf16.msra.mxu0 %v7758
        %8737 = vmatprep.subr.bf16.mxu0 %v7766
        %8738 = vmatpush1.bf16.msra.mxu0 %v7765
        %8739 = vmatprep.subr.bf16.mxu0 %v7773
        %8740 = vmatpush1.bf16.msra.mxu0 %v7772
        %8741 = vmatprep.subr.bf16.mxu0 %v7780
        %8742 = vmatpush1.bf16.msra.mxu0 %v7779
        %8743 = vmatprep.mubr.bf16.mxu0 %v5837
        %8744 = vmatmul.mubr.bf16.gmra.mrb[0].mxu0 %v5836
        %v8745 = vpop.f32.mrb[0].mxu0
        %v8746 = vadd.f32 %v8705, %v8745
        %v8747 = vpop.f32.mrb[0].mxu0
        %v8748 = vadd.f32 %v8707, %v8747
        %v8749 = vpop.f32.mrb[0].mxu0
        %v8750 = vpop.f32.mrb[0].mxu0
        %8751 = vdwg.mxu0
        %8752 = vmatprep.subr.bf16.mxu0 %v7787
        %8753 = vmatpush1.bf16.msra.mxu0 %v7786
        %8754 = vmatprep.subr.bf16.mxu0 %v7794
        %8755 = vmatpush1.bf16.msra.mxu0 %v7793
        %8756 = vmatprep.subr.bf16.mxu0 %v7801
        %8757 = vmatpush1.bf16.msra.mxu0 %v7800
        %8758 = vmatprep.subr.bf16.mxu0 %v7808
        %8759 = vmatpush1.bf16.msra.mxu0 %v7807
        %8760 = vmatprep.subr.bf16.mxu0 %v7815
        %8761 = vmatpush1.bf16.msra.mxu0 %v7814
        %8762 = vmatprep.subr.bf16.mxu0 %v7822
        %8763 = vmatpush1.bf16.msra.mxu0 %v7821
        %8764 = vmatprep.subr.bf16.mxu0 %v7829
        %8765 = vmatpush1.bf16.msra.mxu0 %v7828
        %8766 = vmatprep.subr.bf16.mxu0 %v7836
        %8767 = vmatpush1.bf16.msra.mxu0 %v7835
        %8768 = vmatprep.subr.bf16.mxu0 %v7843
        %8769 = vmatpush1.bf16.msra.mxu0 %v7842
        %8770 = vmatprep.subr.bf16.mxu0 %v7850
        %8771 = vmatpush1.bf16.msra.mxu0 %v7849
        %8772 = vmatprep.subr.bf16.mxu0 %v7857
        %8773 = vmatpush1.bf16.msra.mxu0 %v7856
        %8774 = vmatprep.subr.bf16.mxu0 %v7864
        %8775 = vmatpush1.bf16.msra.mxu0 %v7863
        %8776 = vmatprep.subr.bf16.mxu0 %v7871
        %8777 = vmatpush1.bf16.msra.mxu0 %v7870
        %8778 = vmatprep.subr.bf16.mxu0 %v7878
        %8779 = vmatpush1.bf16.msra.mxu0 %v7877
        %8780 = vmatprep.subr.bf16.mxu0 %v7885
        %8781 = vmatpush1.bf16.msra.mxu0 %v7884
        %8782 = vmatprep.subr.bf16.mxu0 %v7892
        %8783 = vmatpush1.bf16.msra.mxu0 %v7891
        %8784 = vmatprep.mubr.bf16.mxu0 %v5839
        %8785 = vmatmul.mubr.bf16.gmra.mrb[0].mxu0 %v5838
        %v8786 = vpop.f32.mrb[0].mxu0
        %v8787 = vadd.f32 %v8746, %v8786
        %v8788 = vpop.f32.mrb[0].mxu0
        %v8789 = vadd.f32 %v8748, %v8788
        %v8790 = vpop.f32.mrb[0].mxu0
        %v8791 = vpop.f32.mrb[0].mxu0
        %8792 = vdwg.mxu0
        %8793 = vmatprep.subr.bf16.mxu0 %v7899
        %8794 = vmatpush1.bf16.msra.mxu0 %v7898
        %8795 = vmatprep.subr.bf16.mxu0 %v7906
        %8796 = vmatpush1.bf16.msra.mxu0 %v7905
        %8797 = vmatprep.subr.bf16.mxu0 %v7913
        %8798 = vmatpush1.bf16.msra.mxu0 %v7912
        %8799 = vmatprep.subr.bf16.mxu0 %v7920
        %8800 = vmatpush1.bf16.msra.mxu0 %v7919
        %8801 = vmatprep.subr.bf16.mxu0 %v7927
        %8802 = vmatpush1.bf16.msra.mxu0 %v7926
        %8803 = vmatprep.subr.bf16.mxu0 %v7934
        %8804 = vmatpush1.bf16.msra.mxu0 %v7933
        %8805 = vmatprep.subr.bf16.mxu0 %v7941
        %8806 = vmatpush1.bf16.msra.mxu0 %v7940
        %8807 = vmatprep.subr.bf16.mxu0 %v7948
        %8808 = vmatpush1.bf16.msra.mxu0 %v7947
        %8809 = vmatprep.subr.bf16.mxu0 0
        %8810 = vmatpush1.bf16.msra.mxu0 0
        %8811 = vmatprep.subr.bf16.mxu0 0
        %8812 = vmatpush1.bf16.msra.mxu0 0
        %8813 = vmatprep.subr.bf16.mxu0 0
        %8814 = vmatpush1.bf16.msra.mxu0 0
        %8815 = vmatprep.subr.bf16.mxu0 0
        %8816 = vmatpush1.bf16.msra.mxu0 0
        %8817 = vmatprep.subr.bf16.mxu0 0
        %8818 = vmatpush1.bf16.msra.mxu0 0
        %8819 = vmatprep.subr.bf16.mxu0 0
        %8820 = vmatpush1.bf16.msra.mxu0 0
        %8821 = vmatprep.subr.bf16.mxu0 0
        %8822 = vmatpush1.bf16.msra.mxu0 0
        %8823 = vmatprep.subr.bf16.mxu0 0
        %8824 = vmatpush1.bf16.msra.mxu0 0
        %8825 = vmatprep.mubr.bf16.mxu0 0
        %8826 = vmatmul.mubr.bf16.gmra.mrb[0].mxu0 %v5840
        %v8827 = vpop.f32.mrb[0].mxu0
        %v8828 = vadd.f32 %v8787, %v8827
        %v8829 = vpop.f32.mrb[0].mxu0
        %v8830 = vadd.f32 %v8789, %v8829
        %v8831 = vpop.f32.mrb[0].mxu0
        %v8832 = vpop.f32.mrb[0].mxu0
        %8833 = vdwg.mxu0
        %8834 = vmatprep.subr.bf16.mxu0 0
        %8835 = vmatpush1.bf16.msra.mxu0 %v7564
        %8836 = vmatprep.subr.bf16.mxu0 0
        %8837 = vmatpush1.bf16.msra.mxu0 %v7571
        %8838 = vmatprep.subr.bf16.mxu0 0
        %8839 = vmatpush1.bf16.msra.mxu0 %v7578
        %8840 = vmatprep.subr.bf16.mxu0 0
        %8841 = vmatpush1.bf16.msra.mxu0 %v7585
        %8842 = vmatprep.subr.bf16.mxu0 0
        %8843 = vmatpush1.bf16.msra.mxu0 %v7592
        %8844 = vmatprep.subr.bf16.mxu0 0
        %8845 = vmatpush1.bf16.msra.mxu0 %v7599
        %8846 = vmatprep.subr.bf16.mxu0 0
        %8847 = vmatpush1.bf16.msra.mxu0 %v7606
        %8848 = vmatprep.subr.bf16.mxu0 0
        %8849 = vmatpush1.bf16.msra.mxu0 %v7613
        %8850 = vmatprep.subr.bf16.mxu0 0
        %8851 = vmatpush1.bf16.msra.mxu0 %v7620
        %8852 = vmatprep.subr.bf16.mxu0 0
        %8853 = vmatpush1.bf16.msra.mxu0 %v7627
        %8854 = vmatprep.subr.bf16.mxu0 0
        %8855 = vmatpush1.bf16.msra.mxu0 %v7634
        %8856 = vmatprep.subr.bf16.mxu0 0
        %8857 = vmatpush1.bf16.msra.mxu0 %v7641
        %8858 = vmatprep.subr.bf16.mxu0 0
        %8859 = vmatpush1.bf16.msra.mxu0 %v7648
        %8860 = vmatprep.subr.bf16.mxu0 0
        %8861 = vmatpush1.bf16.msra.mxu0 %v7655
        %8862 = vmatprep.subr.bf16.mxu0 0
        %8863 = vmatpush1.bf16.msra.mxu0 %v7662
        %8864 = vmatprep.subr.bf16.mxu0 0
        %8865 = vmatpush1.bf16.msra.mxu0 %v7669
        %8866 = vmatprep.mubr.bf16.mxu0 %v5835
        %8867 = vmatmul.mubr.bf16.gmra.mrb[0].mxu0 %v5834
        %v8868 = vpop.f32.mrb[0].mxu0
        %v8869 = vadd.f32 %v6318, %v8868
        %v8870 = vpop.f32.mrb[0].mxu0
        %v8871 = vpop.f32.mrb[0].mxu0
        %v8872 = vpop.f32.mrb[0].mxu0
        %8873 = vdwg.mxu0
        %8874 = vmatprep.subr.bf16.mxu0 0
        %8875 = vmatpush1.bf16.msra.mxu0 %v7676
        %8876 = vmatprep.subr.bf16.mxu0 0
        %8877 = vmatpush1.bf16.msra.mxu0 %v7683
        %8878 = vmatprep.subr.bf16.mxu0 0
        %8879 = vmatpush1.bf16.msra.mxu0 %v7690
        %8880 = vmatprep.subr.bf16.mxu0 0
        %8881 = vmatpush1.bf16.msra.mxu0 %v7697
        %8882 = vmatprep.subr.bf16.mxu0 0
        %8883 = vmatpush1.bf16.msra.mxu0 %v7704
        %8884 = vmatprep.subr.bf16.mxu0 0
        %8885 = vmatpush1.bf16.msra.mxu0 %v7711
        %8886 = vmatprep.subr.bf16.mxu0 0
        %8887 = vmatpush1.bf16.msra.mxu0 %v7718
        %8888 = vmatprep.subr.bf16.mxu0 0
        %8889 = vmatpush1.bf16.msra.mxu0 %v7725
        %8890 = vmatprep.subr.bf16.mxu0 0
        %8891 = vmatpush1.bf16.msra.mxu0 %v7732
        %8892 = vmatprep.subr.bf16.mxu0 0
        %8893 = vmatpush1.bf16.msra.mxu0 %v7739
        %8894 = vmatprep.subr.bf16.mxu0 0
        %8895 = vmatpush1.bf16.msra.mxu0 %v7746
        %8896 = vmatprep.subr.bf16.mxu0 0
        %8897 = vmatpush1.bf16.msra.mxu0 %v7753
        %8898 = vmatprep.subr.bf16.mxu0 0
        %8899 = vmatpush1.bf16.msra.mxu0 %v7760
        %8900 = vmatprep.subr.bf16.mxu0 0
        %8901 = vmatpush1.bf16.msra.mxu0 %v7767
        %8902 = vmatprep.subr.bf16.mxu0 0
        %8903 = vmatpush1.bf16.msra.mxu0 %v7774
        %8904 = vmatprep.subr.bf16.mxu0 0
        %8905 = vmatpush1.bf16.msra.mxu0 %v7781
        %8906 = vmatprep.mubr.bf16.mxu0 %v5837
        %8907 = vmatmul.mubr.bf16.gmra.mrb[0].mxu0 %v5836
        %v8908 = vpop.f32.mrb[0].mxu0
        %v8909 = vadd.f32 %v8869, %v8908
        %v8910 = vpop.f32.mrb[0].mxu0
        %v8911 = vpop.f32.mrb[0].mxu0
        %v8912 = vpop.f32.mrb[0].mxu0
        %8913 = vdwg.mxu0
        %8914 = vmatprep.subr.bf16.mxu0 0
        %8915 = vmatpush1.bf16.msra.mxu0 %v7788
        %8916 = vmatprep.subr.bf16.mxu0 0
        %8917 = vmatpush1.bf16.msra.mxu0 %v7795
        %8918 = vmatprep.subr.bf16.mxu0 0
        %8919 = vmatpush1.bf16.msra.mxu0 %v7802
        %8920 = vmatprep.subr.bf16.mxu0 0
        %8921 = vmatpush1.bf16.msra.mxu0 %v7809
        %8922 = vmatprep.subr.bf16.mxu0 0
        %8923 = vmatpush1.bf16.msra.mxu0 %v7816
        %8924 = vmatprep.subr.bf16.mxu0 0
        %8925 = vmatpush1.bf16.msra.mxu0 %v7823
        %8926 = vmatprep.subr.bf16.mxu0 0
        %8927 = vmatpush1.bf16.msra.mxu0 %v7830
        %8928 = vmatprep.subr.bf16.mxu0 0
        %8929 = vmatpush1.bf16.msra.mxu0 %v7837
        %8930 = vmatprep.subr.bf16.mxu0 0
        %8931 = vmatpush1.bf16.msra.mxu0 %v7844
        %8932 = vmatprep.subr.bf16.mxu0 0
        %8933 = vmatpush1.bf16.msra.mxu0 %v7851
        %8934 = vmatprep.subr.bf16.mxu0 0
        %8935 = vmatpush1.bf16.msra.mxu0 %v7858
        %8936 = vmatprep.subr.bf16.mxu0 0
        %8937 = vmatpush1.bf16.msra.mxu0 %v7865
        %8938 = vmatprep.subr.bf16.mxu0 0
        %8939 = vmatpush1.bf16.msra.mxu0 %v7872
        %8940 = vmatprep.subr.bf16.mxu0 0
        %8941 = vmatpush1.bf16.msra.mxu0 %v7879
        %8942 = vmatprep.subr.bf16.mxu0 0
        %8943 = vmatpush1.bf16.msra.mxu0 %v7886
        %8944 = vmatprep.subr.bf16.mxu0 0
        %8945 = vmatpush1.bf16.msra.mxu0 %v7893
        %8946 = vmatprep.mubr.bf16.mxu0 %v5839
        %8947 = vmatmul.mubr.bf16.gmra.mrb[0].mxu0 %v5838
        %v8948 = vpop.f32.mrb[0].mxu0
        %v8949 = vadd.f32 %v8909, %v8948
        %v8950 = vpop.f32.mrb[0].mxu0
        %v8951 = vpop.f32.mrb[0].mxu0
        %v8952 = vpop.f32.mrb[0].mxu0
        %8953 = vdwg.mxu0
        %8954 = vmatprep.subr.bf16.mxu0 0
        %8955 = vmatpush1.bf16.msra.mxu0 %v7900
        %8956 = vmatprep.subr.bf16.mxu0 0
        %8957 = vmatpush1.bf16.msra.mxu0 %v7907
        %8958 = vmatprep.subr.bf16.mxu0 0
        %8959 = vmatpush1.bf16.msra.mxu0 %v7914
        %8960 = vmatprep.subr.bf16.mxu0 0
        %8961 = vmatpush1.bf16.msra.mxu0 %v7921
        %8962 = vmatprep.subr.bf16.mxu0 0
        %8963 = vmatpush1.bf16.msra.mxu0 %v7928
        %8964 = vmatprep.subr.bf16.mxu0 0
        %8965 = vmatpush1.bf16.msra.mxu0 %v7935
        %8966 = vmatprep.subr.bf16.mxu0 0
        %8967 = vmatpush1.bf16.msra.mxu0 %v7942
        %8968 = vmatprep.subr.bf16.mxu0 0
        %8969 = vmatpush1.bf16.msra.mxu0 %v7949
        %8970 = vmatprep.subr.bf16.mxu0 0
        %8971 = vmatpush1.bf16.msra.mxu0 0
        %8972 = vmatprep.subr.bf16.mxu0 0
        %8973 = vmatpush1.bf16.msra.mxu0 0
        %8974 = vmatprep.subr.bf16.mxu0 0
        %8975 = vmatpush1.bf16.msra.mxu0 0
        %8976 = vmatprep.subr.bf16.mxu0 0
        %8977 = vmatpush1.bf16.msra.mxu0 0
        %8978 = vmatprep.subr.bf16.mxu0 0
        %8979 = vmatpush1.bf16.msra.mxu0 0
        %8980 = vmatprep.subr.bf16.mxu0 0
        %8981 = vmatpush1.bf16.msra.mxu0 0
        %8982 = vmatprep.subr.bf16.mxu0 0
        %8983 = vmatpush1.bf16.msra.mxu0 0
        %8984 = vmatprep.subr.bf16.mxu0 0
        %8985 = vmatpush1.bf16.msra.mxu0 0
        %8986 = vmatprep.mubr.bf16.mxu0 0
        %8987 = vmatmul.mubr.bf16.gmra.mrb[0].mxu0 %v5840
        %v8988 = vpop.f32.mrb[0].mxu0
        %v8989 = vadd.f32 %v8949, %v8988
        %v8990 = vpop.f32.mrb[0].mxu0
        %v8991 = vpop.f32.mrb[0].mxu0
        %v8992 = vpop.f32.mrb[0].mxu0
        %8993 = vdwg.mxu0
        %v8994 = vand.u32 2147483647, %v8500
        %v8995 = vand.u32 2147483647, %v8502
        %v8996 = vand.u32 2147483647, %v8664
        %v8997 = vand.u32 2147483647, %v8666
        %v8998 = vand.u32 2147483647, %v8828
        %v8999 = vand.u32 2147483647, %v8830
        %v9000 = vand.u32 2147483647, %v8989
        %v9001 = vsub.f32 0.0, %v8994
        %v9002 = vsub.f32 0.0, %v8995
        %v9003 = vsub.f32 0.0, %v8996
        %v9004 = vsub.f32 0.0, %v8997
        %v9005 = vsub.f32 0.0, %v8998
        %v9006 = vsub.f32 0.0, %v8999
        %v9007 = vsub.f32 0.0, %v9000
        %v9008 = vmul.f32 %v9001, 1.442695
        %v9009 = vpow.pop %v9008
        %v9010 = vmul.f32 %v9002, 1.442695
        %v9011 = vpow.pop %v9010
        %v9012 = vmul.f32 %v9003, 1.442695
        %v9013 = vpow.pop %v9012
        %v9014 = vmul.f32 %v9004, 1.442695
        %v9015 = vpow.pop %v9014
        %v9016 = vmul.f32 %v9005, 1.442695
        %v9017 = vpow.pop %v9016
        %v9018 = vmul.f32 %v9006, 1.442695
        %v9019 = vpow.pop %v9018
        %v9020 = vmul.f32 %v9007, 1.442695
        %v9021 = vpow.pop %v9020
        %v9022 = vadd.f32 %v9009, 1.0
        %v9023 = vadd.f32 %v9011, 1.0
        %v9024 = vadd.f32 %v9013, 1.0
        %v9025 = vadd.f32 %v9015, 1.0
        %v9026 = vadd.f32 %v9017, 1.0
        %v9027 = vadd.f32 %v9019, 1.0
        %v9028 = vadd.f32 %v9021, 1.0
        %v9029 = vrcp.pop %v9022
        %v9030 = vrcp.pop %v9023
        %v9031 = vrcp.pop %v9024
        %v9032 = vrcp.pop %v9025
        %v9033 = vrcp.pop %v9026
        %v9034 = vrcp.pop %v9027
        %v9035 = vrcp.pop %v9028
        %vm9036 = vcmp.ge.f32.partialorder %v8500, 0.0
        %vm9037 = vcmp.ge.f32.partialorder %v8502, 0.0
        %vm9038 = vcmp.ge.f32.partialorder %v8664, 0.0
        %vm9039 = vcmp.ge.f32.partialorder %v8666, 0.0
        %vm9040 = vcmp.ge.f32.partialorder %v8828, 0.0
        %vm9041 = vcmp.ge.f32.partialorder %v8830, 0.0
        %vm9042 = vcmp.ge.f32.partialorder %v8989, 0.0
        %v9043 = vmul.f32 %v9009, %v9029
        %v9044 = vmul.f32 %v9011, %v9030
        %v9045 = vmul.f32 %v9013, %v9031
        %v9046 = vmul.f32 %v9015, %v9032
        %v9047 = vmul.f32 %v9017, %v9033
        %v9048 = vmul.f32 %v9019, %v9034
        %v9049 = vmul.f32 %v9021, %v9035
        %v9050 = vsel %vm9036, %v9029, %v9043
        %v9051 = vsel %vm9037, %v9030, %v9044
        %v9052 = vsel %vm9038, %v9031, %v9045
        %v9053 = vsel %vm9039, %v9032, %v9046
        %v9054 = vsel %vm9040, %v9033, %v9047
        %v9055 = vsel %vm9041, %v9034, %v9048
        %v9056 = vsel %vm9042, %v9035, %v9049
        %v9057 = vmax.f32 %v9050, 0.0
        %v9058 = vmax.f32 %v9051, 0.0
        %v9059 = vmax.f32 %v9052, 0.0
        %v9060 = vmax.f32 %v9053, 0.0
        %v9061 = vmax.f32 %v9054, 0.0
        %v9062 = vmax.f32 %v9055, 0.0
        %v9063 = vmax.f32 %v9056, 0.0
        %v9064 = vmin.f32 %v9057, 1.0
        %v9065 = vmin.f32 %v9058, 1.0
        %v9066 = vmin.f32 %v9059, 1.0
        %v9067 = vmin.f32 %v9060, 1.0
        %v9068 = vmin.f32 %v9061, 1.0
        %v9069 = vmin.f32 %v9062, 1.0
        %v9070 = vmin.f32 %v9063, 1.0
        %9071 = vst [vmem:[%s999] sm:$0xff] %v9064
        %9072 = vst [vmem:[%s999 + $0x8] sm:$0xff] %v9065
        %9073 = vst [vmem:[%s999 + $0x10] sm:$0xff] %v9066
        %9074 = vst [vmem:[%s999 + $0x18] sm:$0xff] %v9067
        %9075 = vst [vmem:[%s999 + $0x20] sm:$0xff] %v9068
        %9076 = vst [vmem:[%s999 + $0x28] sm:$0xff] %v9069
        %9077 = vst [vmem:[%s999 + $0x30] sm:$0xff] %v9070
        %p9078 = scmp.lt.s32.totalorder %s40, 1
        %s9079 = scalar_select %p9078, %s40, 1
        %s9080 = smul.addr %s9079, 2
        %s9081 = smul.addr %s9080, 8
        %s9082 = scalar_lea.vmem %s18, %s9081
        %p9083 = scmp.lt.s32.totalorder %s40, 1
        %s9084 = scalar_select %p9083, %s40, 1
        %s9085 = smul.addr %s9084, 7
        %s9086 = smul.addr %s9085, 8
        %s9087 = scalar_lea.vmem %s19, %s9086
        // Predicated region
        $region195: #{_lambda_.1} parent=125 // pred_check
          %p9088 = pneg %p446
        $region196: #{_lambda_.1} parent=125 // pred_check_branch
          %9090 = sbr.rel (%p9088) target = $region198
        $region197: #{_lambda_.1} parent=125 // pred_region
          _
        $region198: #{_lambda_.1} parent=125 // pred_fallthru
          _
        // Predicated region
        $region199: #{_lambda_.1} parent=125 // pred_check
          %p9091 = pneg %p472
        $region200: #{_lambda_.1} parent=125 // pred_check_branch
          %9093 = sbr.rel (%p9091) target = $region202
        $region201: #{_lambda_.1} parent=125 // pred_region
          _
        $region202: #{_lambda_.1} parent=125 // pred_fallthru
          _
      $region126: #{_lambda_.1} parent=5 // pred_fallthru
        _
      %p9094 = scmp.le.s32.totalorder 2, %s35
      // Predicated region
      $region203: #{_lambda_.1} parent=5 // pred_check
        %p9095 = pneg %p9094
      $region204: #{_lambda_.1} parent=5 // pred_check_branch
        %9097 = sbr.rel (%p9095) target = $region206
      $region205: #{_lambda_.1} parent=5 // pred_region
        %s9098 = ssub.s32 %s35, 2
        // Predicated region
        $region207: #{_lambda_.1} parent=205 // pred_check
          %p9099 = pneg %p452
        $region208: #{_lambda_.1} parent=205 // pred_check_branch
          %9101 = sbr.rel (%p9099) target = $region210
        $region209: #{_lambda_.1} parent=205 // pred_region
          %p9102 = scmp.lt.s32.totalorder %s41, 1
          %s9103 = scalar_select %p9102, %s41, 1
          %s9104 = smul.addr %s9103, 2
          %s9105 = smul.addr %s9104, 8
          %s9106 = scalar_lea.vmem %s18, %s9105
        $region210: #{_lambda_.1} parent=205 // pred_fallthru
          _
        // Predicated region
        $region211: #{_lambda_.1} parent=205 // pred_check
          %p9107 = pneg %p478
        $region212: #{_lambda_.1} parent=205 // pred_check_branch
          %9109 = sbr.rel (%p9107) target = $region214
        $region213: #{_lambda_.1} parent=205 // pred_region
          %p9110 = scmp.lt.s32.totalorder %s41, 1
          %s9111 = scalar_select %p9110, %s41, 1
          %s9112 = smul.addr %s9111, 7
          %s9113 = smul.addr %s9112, 8
          %s9114 = scalar_lea.vmem %s19, %s9113
        $region214: #{_lambda_.1} parent=205 // pred_fallthru
          _
      $region206: #{_lambda_.1} parent=5 // pred_fallthru
        _
    $region6: #{_lambda_.1} parent=1 // loop_footer
      %s39 = sadd.s32 1, %s35
    $region7: #{_lambda_.1} parent=1 // loop_footer_branch
      %34 = sbr.rel target = $region3
    $region8: #{_lambda_.1} parent=1 // loop_exit
      _
    %9115 = vsyncpa [#allocation7], 1
    %s9116 = scalar_lea.sflag [#allocation7], 1
    %9117 = vsyncpa %s9116, 1
    %9118 = vsyncpa [#allocation9], 1
    %9119 = vsyncpa [#allocation12], 1
    %9120 = vsyncpa [#allocation15], 1
    %9121 = vsyncpa [#allocation18], 1
    %9122 = vsyncpa [#allocation21], 1
    %9123 = vsyncpa [#allocation24], 1
    %9124 = vsyncpa [#allocation27], 1
    %9125 = vsyncpa [#allocation30], 1

</llo_original>
